<compile_context>
chip_gen: v7x
topology: tpu7x:2x2x1
jax: 0.10.0
libtpu: 0.0.40
codegen_flags: <defaults>
</compile_context>

<pallas_src>
import functools
import math

import jax
import jax.numpy as jnp
from jax import lax
from jax.experimental import pallas as pl
from jax.experimental.pallas import tpu as pltpu

# ------------------------- hyperparameters (small) -------------------------
CHANNELS = 16        # `channels`   (must be even; half = 8)
HIDDEN = 32          # `hidden_channels`
KERNEL_SIZE = 5      # `kernel_size`
DILATION_RATE = 1    # `dilation_rate`
N_LAYERS = 4         # `n_layers`
N_FLOWS = 4          # `n_flows`
# gin_channels = 0  -> no conditioning path.


# ------------------------------ Pallas kernel ------------------------------
def _fused_block_kernel(x_ref, mask_ref, pre_w_ref, pre_b_ref,
                        w_in_ref, b_in_ref, w_rs_ref, b_rs_ref,
                        post_w_ref, post_b_ref, out_ref,
                        *, n_flows, n_layers, hidden, kernel_size,
                        dilation_rate):
    C, T = x_ref.shape
    half = C // 2

    mask = mask_ref[...]                                        # (1, T)
    mask_h = jnp.broadcast_to(mask, (hidden, T))                # hoisted bcast
    mask_half = jnp.broadcast_to(mask, (half, T))

    # Static tap offsets per layer (with dilation_rate=1 they are identical
    # for every layer, so the boundary masks below are shared by all layers
    # and all flows).
    offsets = []
    for i in range(n_layers):
        dil = dilation_rate ** i
        pad = (kernel_size * dil - dil) // 2
        offsets.append(tuple(k * dil - pad for k in range(kernel_size)))

    # Hoisted boundary-validity masks: one per distinct nonzero offset.
    t_idx = lax.broadcasted_iota(jnp.int32, (1, T), 1)
    valid = {}
    for offs in offsets:
        for off in offs:
            if off != 0 and off not in valid:
                ok = jnp.logical_and(t_idx + off >= 0, t_idx + off < T)
                valid[off] = ok.astype(jnp.float32)

    def shift(h, off):
        # s[:, t] = h[:, t + off], zero outside [0, T)  (Conv1d zero padding).
        if off == 0:
            return h
        rolled = pltpu.roll(h, shift=(-off) % T, axis=1)
        return rolled * valid[off]

    u = x_ref[:half, :]                                         # (half, T)
    v = x_ref[half:, :]                                         # (half, T)

    for f in range(n_flows):
        # pre 1x1 conv:  h = pre(x0) * mask
        h = (jnp.dot(pre_w_ref[f], u, preferred_element_type=jnp.float32)
             + pre_b_ref[f]) * mask_h                           # (H, T)

        # WaveNet (WN) stack, g = None, dropout = identity
        skip = jnp.zeros((hidden, T), jnp.float32)
        for i in range(n_layers):
            li = f * n_layers + i
            # K taps folded into one matmul: (2H, K*H) @ (K*H, T)
            stacked = jnp.concatenate([shift(h, off) for off in offsets[i]],
                                      axis=0)                   # (K*H, T)
            x_in = (jnp.dot(w_in_ref[li], stacked,
                            preferred_element_type=jnp.float32)
                    + b_in_ref[li])                             # (2H, T)
            # fused_add_tanh_sigmoid_multiply (g_l == 0)
            acts = (jnp.tanh(x_in[:hidden, :])
                    * jax.nn.sigmoid(x_in[hidden:, :]))         # (H, T)
            if i < n_layers - 1:
                rs = (jnp.dot(w_rs_ref[li], acts,
                              preferred_element_type=jnp.float32)
                      + b_rs_ref[li])                           # (2H, T)
                h = (h + rs[:hidden, :]) * mask_h
                skip = skip + rs[hidden:, :]
            else:
                # Last layer only has skip channels: (H, H) @ (H, T).
                rs = (jnp.dot(w_rs_ref[li, hidden:, :], acts,
                              preferred_element_type=jnp.float32)
                      + b_rs_ref[li, hidden:, :])               # (H, T)
                skip = skip + rs
        skip = skip * mask_h

        # post 1x1 conv; mean_only=True  =>  m = stats, logs = 0
        m = (jnp.dot(post_w_ref[f], skip,
                     preferred_element_type=jnp.float32)
             + post_b_ref[f]) * mask_half                       # (half, T)

        # Coupling update + Flip (Flip already folded into the weights).
        u, v = m + v * mask_half, u

    out_ref[...] = jnp.concatenate([u, v], axis=0)              # lane-dense


# ------------------------------ host wrapper --------------------------------
def _resident_spec(arr):
    nd = arr.ndim
    return pl.BlockSpec(arr.shape, lambda b, _n=nd: (0,) * _n)


def residual_coupling_block_forward(x, x_mask, flow_params,
                                    dilation_rate=DILATION_RATE):
    """ResidualCouplingBlock.forward(x, x_mask, g=None, reverse=False)."""
    # TODO(synk): reverse=True (inverse) path is not implemented; forward only.
    B, C, T = x.shape
    half = C // 2
    n_flows = len(flow_params)
    hidden = flow_params[0]['pre_w'].shape[0]
    n_layers = flow_params[0]['w_in'].shape[0]
    K = flow_params[0]['w_in'].shape[1]

    # ---- host-side weight prep: fold Flip + K taps into the weights --------
    pre_w, pre_b, post_w, post_b = [], [], [], []
    w_in, b_in, w_rs, b_rs = [], [], [], []
    for f, p in enumerate(flow_params):
        pw, po_w, po_b = p['pre_w'], p['post_w'], p['post_b']
        if f % 2 == 1:                    # odd flows absorb the channel Flip
            pw = pw[:, ::-1]              # reverse input-channel columns
            po_w = po_w[::-1, :]          # reverse output-channel rows
            po_b = po_b[::-1, :]
        pre_w.append(pw)
        pre_b.append(p['pre_b'])
        post_w.append(po_w)
        post_b.append(po_b)
        # (n_layers, K, 2H, H) -> (n_layers, 2H, K*H): one matmul per WN layer.
        w_in.append(jnp.transpose(p['w_in'], (0, 2, 1, 3))
                    .reshape(n_layers, 2 * hidden, K * hidden))
        b_in.append(p['b_in'])
        w_rs.append(p['w_rs'])
        b_rs.append(p['b_rs'])

    pre_w = jnp.stack(pre_w)                      # (F, H, half)
    pre_b = jnp.stack(pre_b)                      # (F, H, 1)
    post_w = jnp.stack(post_w)                    # (F, half, H)
    post_b = jnp.stack(post_b)                    # (F, half, 1)
    w_in = jnp.concatenate(w_in, axis=0)          # (F*L, 2H, K*H)
    b_in = jnp.concatenate(b_in, axis=0)          # (F*L, 2H, 1)
    w_rs = jnp.concatenate(w_rs, axis=0)          # (F*L, 2H, H)
    b_rs = jnp.concatenate(b_rs, axis=0)          # (F*L, 2H, 1)

    kernel = functools.partial(
        _fused_block_kernel, n_flows=n_flows, n_layers=n_layers,
        hidden=hidden, kernel_size=K, dilation_rate=dilation_rate)

    y = pl.pallas_call(
        kernel,
        out_shape=jax.ShapeDtypeStruct((B, C, T), jnp.float32),
        grid=(B,),
        in_specs=[
            pl.BlockSpec((None, C, T), lambda b: (b, 0, 0)),
            pl.BlockSpec((None, 1, T), lambda b: (b, 0, 0)),
            _resident_spec(pre_w), _resident_spec(pre_b),
            _resident_spec(w_in), _resident_spec(b_in),
            _resident_spec(w_rs), _resident_spec(b_rs),
            _resident_spec(post_w), _resident_spec(post_b),
        ],
        out_specs=pl.BlockSpec((None, C, T), lambda b: (b, 0, 0)),
        # Weights (~few MiB incl. lane padding & double-buffering) fit the
        # 32 MiB scoped-VMEM default on v5e/v6e/v7x; set vmem_limit_bytes
        # explicitly if T is scaled up by orders of magnitude.
        compiler_params=pltpu.CompilerParams(
            dimension_semantics=("parallel",)),
    )(x, x_mask, pre_w, pre_b, w_in, b_in, w_rs, b_rs, post_w, post_b)

    if n_flows % 2 == 1:
        # Odd flow count leaves one pending reversal of each output half.
        y = jnp.concatenate([y[:, :half][:, ::-1], y[:, half:][:, ::-1]],
                            axis=1)
    return y


# ----------------------- pure-JAX reference (checking) ----------------------
_HI = jax.lax.Precision.HIGHEST


def _conv1x1_ref(x, w, b):
    return jnp.einsum('oi,bit->bot', w, x, precision=_HI) + b[None]


def _ref_coupling_layer(x, mask, p, dilation_rate):
    hidden = p['pre_w'].shape[0]
    half = p['pre_w'].shape[1]
    n_layers, K = p['w_in'].shape[0], p['w_in'].shape[1]
    x0, x1 = x[:, :half], x[:, half:]
    h = _conv1x1_ref(x0, p['pre_w'], p['pre_b']) * mask
    out = jnp.zeros_like(h)
    for i in range(n_layers):
        dil = dilation_rate ** i
        pad = (K * dil - dil) // 2
        w = jnp.transpose(p['w_in'][i], (1, 2, 0))          # (2H, H, K)
        x_in = lax.conv_general_dilated(
            h, w, window_strides=(1,), padding=[(pad, pad)],
            rhs_dilation=(dil,), dimension_numbers=('NCH', 'OIH', 'NCH'),
            precision=_HI) + p['b_in'][i][None]
        acts = jnp.tanh(x_in[:, :hidden]) * jax.nn.sigmoid(x_in[:, hidden:])
        rs = (jnp.einsum('oi,bit->bot', p['w_rs'][i], acts, precision=_HI)
              + p['b_rs'][i][None])
        if i < n_layers - 1:
            h = (h + rs[:, :hidden]) * mask
        out = out + rs[:, hidden:]
    out = out * mask
    m = _conv1x1_ref(out, p['post_w'], p['post_b']) * mask
    return jnp.concatenate([x0, m + x1 * mask], axis=1)


def _ref_block(x, mask, flow_params, dilation_rate):
    for p in flow_params:
        x = _ref_coupling_layer(x, mask, p, dilation_rate)
        x = x[:, ::-1, :]                                   # Flip
    return x


# ------------------------------- parameters --------------------------------
def init_flow_params(key, channels, hidden, kernel_size, n_layers):
    half = channels // 2
    ks = jax.random.split(key, 8)
    s_pre = 1.0 / math.sqrt(half)
    s_in = 1.0 / math.sqrt(hidden * kernel_size)
    s_rs = 1.0 / math.sqrt(hidden)

    w_rs = jax.random.normal(ks[4], (n_layers, 2 * hidden, hidden),
                             jnp.float32) * s_rs
    b_rs = jax.random.normal(ks[5], (n_layers, 2 * hidden, 1),
                             jnp.float32) * 0.1
    # PyTorch's last WN layer only produces `hidden` skip channels; stacked as
    # (2H, H) here with the unused residual half zeroed (never read anyway).
    w_rs = w_rs.at[-1, :hidden].set(0.0)
    b_rs = b_rs.at[-1, :hidden].set(0.0)

    return {
        'pre_w': jax.random.normal(ks[0], (hidden, half), jnp.float32) * s_pre,
        'pre_b': jax.random.normal(ks[1], (hidden, 1), jnp.float32) * 0.1,
        'w_in': jax.random.normal(
            ks[2], (n_layers, kernel_size, 2 * hidden, hidden),
            jnp.float32) * s_in,
        'b_in': jax.random.normal(ks[3], (n_layers, 2 * hidden, 1),
                                  jnp.float32) * 0.1,
        'w_rs': w_rs,
        'b_rs': b_rs,
        'post_w': jax.random.normal(ks[6], (half, hidden),
                                    jnp.float32) * (0.1 * s_rs),
        'post_b': jax.random.normal(ks[7], (half, 1), jnp.float32) * 0.01,
    }


# ----------------------------------- main -----------------------------------
if __name__ == "__main__":
    key = jax.random.PRNGKey(0)
    k_x, k_p = jax.random.split(key)

    B, T = 2, 128
    x = jax.random.normal(k_x, (B, CHANNELS, T), jnp.float32)
    lengths = jnp.array([T, 3 * T // 4], jnp.int32)
    t_idx = jnp.arange(T)[None, None, :]
    x_mask = (t_idx < lengths[:, None, None]).astype(jnp.float32)  # (B,1,T)

    flow_keys = jax.random.split(k_p, N_FLOWS)
    flow_params = [init_flow_params(fk, CHANNELS, HIDDEN, KERNEL_SIZE,
                                    N_LAYERS) for fk in flow_keys]

    y = residual_coupling_block_forward(x, x_mask, flow_params)
    y = jax.block_until_ready(y)

    y_ref = _ref_block(x, x_mask, flow_params, DILATION_RATE)
    y_ref = jax.block_until_ready(y_ref)

    rel_err = float(jnp.max(jnp.abs(y - y_ref) /
                            jnp.maximum(jnp.abs(y_ref), 1.0)))
    assert y.shape == (B, CHANNELS, T) and y.dtype == jnp.float32
    assert rel_err < 5e-2, f"kernel mismatch vs reference: {rel_err}"
    print("KERNEL_OK")
</pallas_src>

<mosaic_0001>
module attributes {stable_mosaic.version = 11 : i64} {
  func.func @_fused_block_kernel(%arg0: i32, %arg1: memref<1x16x128xf32, #tpu.memory_space<vmem>>, %arg2: memref<1x1x128xf32, #tpu.memory_space<vmem>>, %arg3: memref<4x32x8xf32, #tpu.memory_space<vmem>>, %arg4: memref<4x32x1xf32, #tpu.memory_space<vmem>>, %arg5: memref<16x64x160xf32, #tpu.memory_space<vmem>>, %arg6: memref<16x64x1xf32, #tpu.memory_space<vmem>>, %arg7: memref<16x64x32xf32, #tpu.memory_space<vmem>>, %arg8: memref<16x64x1xf32, #tpu.memory_space<vmem>>, %arg9: memref<4x8x32xf32, #tpu.memory_space<vmem>>, %arg10: memref<4x8x1xf32, #tpu.memory_space<vmem>>, %arg11: memref<1x16x128xf32, #tpu.memory_space<vmem>>) attributes {dimension_semantics = [#tpu.dimension_semantics<parallel>], iteration_bounds = array<i64: 2>, scalar_prefetch = 0 : i64, scratch_operands = 0 : i64, tpu.core_type = #tpu.core_type<tc>, window_params = [{transform_indices = @transform_0, window_bounds = array<i64: 1, 16, 128>}, {transform_indices = @transform_1, window_bounds = array<i64: 1, 1, 128>}, {pipeline_mode = #tpu.pipeline_mode<synchronous>, transform_indices = @transform_2, window_bounds = array<i64: 4, 32, 8>}, {pipeline_mode = #tpu.pipeline_mode<synchronous>, transform_indices = @transform_3, window_bounds = array<i64: 4, 32, 1>}, {pipeline_mode = #tpu.pipeline_mode<synchronous>, transform_indices = @transform_4, window_bounds = array<i64: 16, 64, 160>}, {pipeline_mode = #tpu.pipeline_mode<synchronous>, transform_indices = @transform_5, window_bounds = array<i64: 16, 64, 1>}, {pipeline_mode = #tpu.pipeline_mode<synchronous>, transform_indices = @transform_6, window_bounds = array<i64: 16, 64, 32>}, {pipeline_mode = #tpu.pipeline_mode<synchronous>, transform_indices = @transform_7, window_bounds = array<i64: 16, 64, 1>}, {pipeline_mode = #tpu.pipeline_mode<synchronous>, transform_indices = @transform_8, window_bounds = array<i64: 4, 8, 32>}, {pipeline_mode = #tpu.pipeline_mode<synchronous>, transform_indices = @transform_9, window_bounds = array<i64: 4, 8, 1>}, {transform_indices = @transform_10, window_bounds = array<i64: 1, 16, 128>}]} {
    %c0 = arith.constant 0 : index
    %c0_0 = arith.constant 0 : index
    %c0_1 = arith.constant 0 : index
    %0 = vector.load %arg2[%c0, %c0_0, %c0_1] : memref<1x1x128xf32, #tpu.memory_space<vmem>>, vector<1x1x128xf32>
    %1 = vector.shape_cast %0 : vector<1x1x128xf32> to vector<1x128xf32>
    %2 = vector.shape_cast %1 : vector<1x128xf32> to vector<1x128xf32>
    %3 = vector.broadcast %2 : vector<1x128xf32> to vector<32x128xf32>
    %4 = vector.shape_cast %1 : vector<1x128xf32> to vector<1x128xf32>
    %5 = vector.broadcast %4 : vector<1x128xf32> to vector<8x128xf32>
    %6 = tpu.iota {dimensions = array<i32: 1>} : vector<1x128xi32>
    %c-2_i32 = arith.constant -2 : i32
    %7 = vector.broadcast %c-2_i32 : i32 to vector<1x128xi32>
    %8 = arith.addi %6, %7 : vector<1x128xi32>
    %c0_i32 = arith.constant 0 : i32
    %9 = vector.broadcast %c0_i32 : i32 to vector<1x128xi32>
    %10 = arith.cmpi sge, %8, %9 : vector<1x128xi32>
    %c-2_i32_2 = arith.constant -2 : i32
    %11 = vector.broadcast %c-2_i32_2 : i32 to vector<1x128xi32>
    %12 = arith.addi %6, %11 : vector<1x128xi32>
    %c128_i32 = arith.constant 128 : i32
    %13 = vector.broadcast %c128_i32 : i32 to vector<1x128xi32>
    %14 = arith.cmpi slt, %12, %13 : vector<1x128xi32>
    %15 = arith.andi %10, %14 : vector<1x128xi1>
    %16 = arith.extui %15 : vector<1x128xi1> to vector<1x128xi32>
    %17 = arith.sitofp %16 : vector<1x128xi32> to vector<1x128xf32>
    %c-1_i32 = arith.constant -1 : i32
    %18 = vector.broadcast %c-1_i32 : i32 to vector<1x128xi32>
    %19 = arith.addi %6, %18 : vector<1x128xi32>
    %c0_i32_3 = arith.constant 0 : i32
    %20 = vector.broadcast %c0_i32_3 : i32 to vector<1x128xi32>
    %21 = arith.cmpi sge, %19, %20 : vector<1x128xi32>
    %c-1_i32_4 = arith.constant -1 : i32
    %22 = vector.broadcast %c-1_i32_4 : i32 to vector<1x128xi32>
    %23 = arith.addi %6, %22 : vector<1x128xi32>
    %c128_i32_5 = arith.constant 128 : i32
    %24 = vector.broadcast %c128_i32_5 : i32 to vector<1x128xi32>
    %25 = arith.cmpi slt, %23, %24 : vector<1x128xi32>
    %26 = arith.andi %21, %25 : vector<1x128xi1>
    %27 = arith.extui %26 : vector<1x128xi1> to vector<1x128xi32>
    %28 = arith.sitofp %27 : vector<1x128xi32> to vector<1x128xf32>
    %c1_i32 = arith.constant 1 : i32
    %29 = vector.broadcast %c1_i32 : i32 to vector<1x128xi32>
    %30 = arith.addi %6, %29 : vector<1x128xi32>
    %c0_i32_6 = arith.constant 0 : i32
    %31 = vector.broadcast %c0_i32_6 : i32 to vector<1x128xi32>
    %32 = arith.cmpi sge, %30, %31 : vector<1x128xi32>
    %c1_i32_7 = arith.constant 1 : i32
    %33 = vector.broadcast %c1_i32_7 : i32 to vector<1x128xi32>
    %34 = arith.addi %6, %33 : vector<1x128xi32>
    %c128_i32_8 = arith.constant 128 : i32
    %35 = vector.broadcast %c128_i32_8 : i32 to vector<1x128xi32>
    %36 = arith.cmpi slt, %34, %35 : vector<1x128xi32>
    %37 = arith.andi %32, %36 : vector<1x128xi1>
    %38 = arith.extui %37 : vector<1x128xi1> to vector<1x128xi32>
    %39 = arith.sitofp %38 : vector<1x128xi32> to vector<1x128xf32>
    %c2_i32 = arith.constant 2 : i32
    %40 = vector.broadcast %c2_i32 : i32 to vector<1x128xi32>
    %41 = arith.addi %6, %40 : vector<1x128xi32>
    %c0_i32_9 = arith.constant 0 : i32
    %42 = vector.broadcast %c0_i32_9 : i32 to vector<1x128xi32>
    %43 = arith.cmpi sge, %41, %42 : vector<1x128xi32>
    %c2_i32_10 = arith.constant 2 : i32
    %44 = vector.broadcast %c2_i32_10 : i32 to vector<1x128xi32>
    %45 = arith.addi %6, %44 : vector<1x128xi32>
    %c128_i32_11 = arith.constant 128 : i32
    %46 = vector.broadcast %c128_i32_11 : i32 to vector<1x128xi32>
    %47 = arith.cmpi slt, %45, %46 : vector<1x128xi32>
    %48 = arith.andi %43, %47 : vector<1x128xi1>
    %49 = arith.extui %48 : vector<1x128xi1> to vector<1x128xi32>
    %50 = arith.sitofp %49 : vector<1x128xi32> to vector<1x128xf32>
    %c0_12 = arith.constant 0 : index
    %c0_13 = arith.constant 0 : index
    %c0_14 = arith.constant 0 : index
    %51 = vector.load %arg1[%c0_12, %c0_13, %c0_14] : memref<1x16x128xf32, #tpu.memory_space<vmem>>, vector<1x8x128xf32>
    %52 = vector.shape_cast %51 : vector<1x8x128xf32> to vector<8x128xf32>
    %c0_15 = arith.constant 0 : index
    %c8 = arith.constant 8 : index
    %c0_16 = arith.constant 0 : index
    %53 = vector.load %arg1[%c0_15, %c8, %c0_16] : memref<1x16x128xf32, #tpu.memory_space<vmem>>, vector<1x8x128xf32>
    %54 = vector.shape_cast %53 : vector<1x8x128xf32> to vector<8x128xf32>
    %c0_17 = arith.constant 0 : index
    %c0_18 = arith.constant 0 : index
    %c0_19 = arith.constant 0 : index
    %55 = vector.load %arg3[%c0_17, %c0_18, %c0_19] : memref<4x32x8xf32, #tpu.memory_space<vmem>>, vector<1x32x8xf32>
    %56 = vector.shape_cast %55 : vector<1x32x8xf32> to vector<32x8xf32>
    %cst = arith.constant dense<0.000000e+00> : vector<32x128xf32>
    %57 = tpu.matmul %56, %52, %cst {dimension_numbers = #tpu.dot_dimension_numbers<[1], [0], [0], [1], [0, 0, 1, 1], [], []>} : vector<32x8xf32>, vector<8x128xf32>, vector<32x128xf32> -> vector<32x128xf32>
    %c0_20 = arith.constant 0 : index
    %c0_21 = arith.constant 0 : index
    %c0_22 = arith.constant 0 : index
    %58 = vector.load %arg4[%c0_20, %c0_21, %c0_22] : memref<4x32x1xf32, #tpu.memory_space<vmem>>, vector<1x32x1xf32>
    %59 = vector.shape_cast %58 : vector<1x32x1xf32> to vector<32x1xf32>
    %60 = vector.broadcast %59 : vector<32x1xf32> to vector<32x128xf32>
    %61 = arith.addf %57, %60 : vector<32x128xf32>
    %62 = arith.mulf %61, %3 : vector<32x128xf32>
    %cst_23 = arith.constant 0.000000e+00 : f32
    %63 = vector.broadcast %cst_23 : f32 to vector<32x128xf32>
    %c2_i32_24 = arith.constant 2 : i32
    %64 = tpu.dynamic_rotate %62 by %c2_i32_24 dim 1 : vector<32x128xf32>, i32 -> vector<32x128xf32>
    %65 = vector.broadcast %17 : vector<1x128xf32> to vector<32x128xf32>
    %66 = arith.mulf %64, %65 : vector<32x128xf32>
    %c1_i32_25 = arith.constant 1 : i32
    %67 = tpu.dynamic_rotate %62 by %c1_i32_25 dim 1 : vector<32x128xf32>, i32 -> vector<32x128xf32>
    %68 = vector.broadcast %28 : vector<1x128xf32> to vector<32x128xf32>
    %69 = arith.mulf %67, %68 : vector<32x128xf32>
    %c127_i32 = arith.constant 127 : i32
    %70 = tpu.dynamic_rotate %62 by %c127_i32 dim 1 : vector<32x128xf32>, i32 -> vector<32x128xf32>
    %71 = vector.broadcast %39 : vector<1x128xf32> to vector<32x128xf32>
    %72 = arith.mulf %70, %71 : vector<32x128xf32>
    %c126_i32 = arith.constant 126 : i32
    %73 = tpu.dynamic_rotate %62 by %c126_i32 dim 1 : vector<32x128xf32>, i32 -> vector<32x128xf32>
    %74 = vector.broadcast %50 : vector<1x128xf32> to vector<32x128xf32>
    %75 = arith.mulf %73, %74 : vector<32x128xf32>
    %76 = tpu.concatenate %66, %69, %62, %72, %75 in 0 : vector<32x128xf32>, vector<32x128xf32>, vector<32x128xf32>, vector<32x128xf32>, vector<32x128xf32> -> vector<160x128xf32>
    %c0_26 = arith.constant 0 : index
    %c0_27 = arith.constant 0 : index
    %c0_28 = arith.constant 0 : index
    %77 = vector.load %arg5[%c0_26, %c0_27, %c0_28] : memref<16x64x160xf32, #tpu.memory_space<vmem>>, vector<1x64x160xf32>
    %78 = vector.shape_cast %77 : vector<1x64x160xf32> to vector<64x160xf32>
    %cst_29 = arith.constant dense<0.000000e+00> : vector<64x128xf32>
    %79 = tpu.matmul %78, %76, %cst_29 {dimension_numbers = #tpu.dot_dimension_numbers<[1], [0], [0], [1], [0, 0, 1, 1], [], []>} : vector<64x160xf32>, vector<160x128xf32>, vector<64x128xf32> -> vector<64x128xf32>
    %c0_30 = arith.constant 0 : index
    %c0_31 = arith.constant 0 : index
    %c0_32 = arith.constant 0 : index
    %80 = vector.load %arg6[%c0_30, %c0_31, %c0_32] : memref<16x64x1xf32, #tpu.memory_space<vmem>>, vector<1x64x1xf32>
    %81 = vector.shape_cast %80 : vector<1x64x1xf32> to vector<64x1xf32>
    %82 = vector.broadcast %81 : vector<64x1xf32> to vector<64x128xf32>
    %83 = arith.addf %79, %82 : vector<64x128xf32>
    %84 = vector.extract_strided_slice %83 {offsets = [0, 0], sizes = [32, 128], strides = [1, 1]} : vector<64x128xf32> to vector<32x128xf32>
    %85 = math.tanh %84 : vector<32x128xf32>
    %86 = vector.extract_strided_slice %83 {offsets = [32, 0], sizes = [32, 128], strides = [1, 1]} : vector<64x128xf32> to vector<32x128xf32>
    %87 = arith.negf %86 : vector<32x128xf32>
    %88 = math.exp %87 : vector<32x128xf32>
    %cst_33 = arith.constant 1.000000e+00 : f32
    %89 = vector.broadcast %cst_33 : f32 to vector<32x128xf32>
    %90 = arith.addf %89, %88 : vector<32x128xf32>
    %91 = arith.divf %89, %90 : vector<32x128xf32>
    %92 = arith.mulf %85, %91 : vector<32x128xf32>
    %c0_34 = arith.constant 0 : index
    %c0_35 = arith.constant 0 : index
    %c0_36 = arith.constant 0 : index
    %93 = vector.load %arg7[%c0_34, %c0_35, %c0_36] : memref<16x64x32xf32, #tpu.memory_space<vmem>>, vector<1x64x32xf32>
    %94 = vector.shape_cast %93 : vector<1x64x32xf32> to vector<64x32xf32>
    %cst_37 = arith.constant dense<0.000000e+00> : vector<64x128xf32>
    %95 = tpu.matmul %94, %92, %cst_37 {dimension_numbers = #tpu.dot_dimension_numbers<[1], [0], [0], [1], [0, 0, 1, 1], [], []>} : vector<64x32xf32>, vector<32x128xf32>, vector<64x128xf32> -> vector<64x128xf32>
    %c0_38 = arith.constant 0 : index
    %c0_39 = arith.constant 0 : index
    %c0_40 = arith.constant 0 : index
    %96 = vector.load %arg8[%c0_38, %c0_39, %c0_40] : memref<16x64x1xf32, #tpu.memory_space<vmem>>, vector<1x64x1xf32>
    %97 = vector.shape_cast %96 : vector<1x64x1xf32> to vector<64x1xf32>
    %98 = vector.broadcast %97 : vector<64x1xf32> to vector<64x128xf32>
    %99 = arith.addf %95, %98 : vector<64x128xf32>
    %100 = vector.extract_strided_slice %99 {offsets = [0, 0], sizes = [32, 128], strides = [1, 1]} : vector<64x128xf32> to vector<32x128xf32>
    %101 = arith.addf %62, %100 : vector<32x128xf32>
    %102 = arith.mulf %101, %3 : vector<32x128xf32>
    %103 = vector.extract_strided_slice %99 {offsets = [32, 0], sizes = [32, 128], strides = [1, 1]} : vector<64x128xf32> to vector<32x128xf32>
    %104 = arith.addf %63, %103 : vector<32x128xf32>
    %c2_i32_41 = arith.constant 2 : i32
    %105 = tpu.dynamic_rotate %102 by %c2_i32_41 dim 1 : vector<32x128xf32>, i32 -> vector<32x128xf32>
    %106 = vector.broadcast %17 : vector<1x128xf32> to vector<32x128xf32>
    %107 = arith.mulf %105, %106 : vector<32x128xf32>
    %c1_i32_42 = arith.constant 1 : i32
    %108 = tpu.dynamic_rotate %102 by %c1_i32_42 dim 1 : vector<32x128xf32>, i32 -> vector<32x128xf32>
    %109 = vector.broadcast %28 : vector<1x128xf32> to vector<32x128xf32>
    %110 = arith.mulf %108, %109 : vector<32x128xf32>
    %c127_i32_43 = arith.constant 127 : i32
    %111 = tpu.dynamic_rotate %102 by %c127_i32_43 dim 1 : vector<32x128xf32>, i32 -> vector<32x128xf32>
    %112 = vector.broadcast %39 : vector<1x128xf32> to vector<32x128xf32>
    %113 = arith.mulf %111, %112 : vector<32x128xf32>
    %c126_i32_44 = arith.constant 126 : i32
    %114 = tpu.dynamic_rotate %102 by %c126_i32_44 dim 1 : vector<32x128xf32>, i32 -> vector<32x128xf32>
    %115 = vector.broadcast %50 : vector<1x128xf32> to vector<32x128xf32>
    %116 = arith.mulf %114, %115 : vector<32x128xf32>
    %117 = tpu.concatenate %107, %110, %102, %113, %116 in 0 : vector<32x128xf32>, vector<32x128xf32>, vector<32x128xf32>, vector<32x128xf32>, vector<32x128xf32> -> vector<160x128xf32>
    %c1 = arith.constant 1 : index
    %c0_45 = arith.constant 0 : index
    %c0_46 = arith.constant 0 : index
    %118 = vector.load %arg5[%c1, %c0_45, %c0_46] : memref<16x64x160xf32, #tpu.memory_space<vmem>>, vector<1x64x160xf32>
    %119 = vector.shape_cast %118 : vector<1x64x160xf32> to vector<64x160xf32>
    %cst_47 = arith.constant dense<0.000000e+00> : vector<64x128xf32>
    %120 = tpu.matmul %119, %117, %cst_47 {dimension_numbers = #tpu.dot_dimension_numbers<[1], [0], [0], [1], [0, 0, 1, 1], [], []>} : vector<64x160xf32>, vector<160x128xf32>, vector<64x128xf32> -> vector<64x128xf32>
    %c1_48 = arith.constant 1 : index
    %c0_49 = arith.constant 0 : index
    %c0_50 = arith.constant 0 : index
    %121 = vector.load %arg6[%c1_48, %c0_49, %c0_50] : memref<16x64x1xf32, #tpu.memory_space<vmem>>, vector<1x64x1xf32>
    %122 = vector.shape_cast %121 : vector<1x64x1xf32> to vector<64x1xf32>
    %123 = vector.broadcast %122 : vector<64x1xf32> to vector<64x128xf32>
    %124 = arith.addf %120, %123 : vector<64x128xf32>
    %125 = vector.extract_strided_slice %124 {offsets = [0, 0], sizes = [32, 128], strides = [1, 1]} : vector<64x128xf32> to vector<32x128xf32>
    %126 = math.tanh %125 : vector<32x128xf32>
    %127 = vector.extract_strided_slice %124 {offsets = [32, 0], sizes = [32, 128], strides = [1, 1]} : vector<64x128xf32> to vector<32x128xf32>
    %128 = arith.negf %127 : vector<32x128xf32>
    %129 = math.exp %128 : vector<32x128xf32>
    %cst_51 = arith.constant 1.000000e+00 : f32
    %130 = vector.broadcast %cst_51 : f32 to vector<32x128xf32>
    %131 = arith.addf %130, %129 : vector<32x128xf32>
    %132 = arith.divf %130, %131 : vector<32x128xf32>
    %133 = arith.mulf %126, %132 : vector<32x128xf32>
    %c1_52 = arith.constant 1 : index
    %c0_53 = arith.constant 0 : index
    %c0_54 = arith.constant 0 : index
    %134 = vector.load %arg7[%c1_52, %c0_53, %c0_54] : memref<16x64x32xf32, #tpu.memory_space<vmem>>, vector<1x64x32xf32>
    %135 = vector.shape_cast %134 : vector<1x64x32xf32> to vector<64x32xf32>
    %cst_55 = arith.constant dense<0.000000e+00> : vector<64x128xf32>
    %136 = tpu.matmul %135, %133, %cst_55 {dimension_numbers = #tpu.dot_dimension_numbers<[1], [0], [0], [1], [0, 0, 1, 1], [], []>} : vector<64x32xf32>, vector<32x128xf32>, vector<64x128xf32> -> vector<64x128xf32>
    %c1_56 = arith.constant 1 : index
    %c0_57 = arith.constant 0 : index
    %c0_58 = arith.constant 0 : index
    %137 = vector.load %arg8[%c1_56, %c0_57, %c0_58] : memref<16x64x1xf32, #tpu.memory_space<vmem>>, vector<1x64x1xf32>
    %138 = vector.shape_cast %137 : vector<1x64x1xf32> to vector<64x1xf32>
    %139 = vector.broadcast %138 : vector<64x1xf32> to vector<64x128xf32>
    %140 = arith.addf %136, %139 : vector<64x128xf32>
    %141 = vector.extract_strided_slice %140 {offsets = [0, 0], sizes = [32, 128], strides = [1, 1]} : vector<64x128xf32> to vector<32x128xf32>
    %142 = arith.addf %102, %141 : vector<32x128xf32>
    %143 = arith.mulf %142, %3 : vector<32x128xf32>
    %144 = vector.extract_strided_slice %140 {offsets = [32, 0], sizes = [32, 128], strides = [1, 1]} : vector<64x128xf32> to vector<32x128xf32>
    %145 = arith.addf %104, %144 : vector<32x128xf32>
    %c2_i32_59 = arith.constant 2 : i32
    %146 = tpu.dynamic_rotate %143 by %c2_i32_59 dim 1 : vector<32x128xf32>, i32 -> vector<32x128xf32>
    %147 = vector.broadcast %17 : vector<1x128xf32> to vector<32x128xf32>
    %148 = arith.mulf %146, %147 : vector<32x128xf32>
    %c1_i32_60 = arith.constant 1 : i32
    %149 = tpu.dynamic_rotate %143 by %c1_i32_60 dim 1 : vector<32x128xf32>, i32 -> vector<32x128xf32>
    %150 = vector.broadcast %28 : vector<1x128xf32> to vector<32x128xf32>
    %151 = arith.mulf %149, %150 : vector<32x128xf32>
    %c127_i32_61 = arith.constant 127 : i32
    %152 = tpu.dynamic_rotate %143 by %c127_i32_61 dim 1 : vector<32x128xf32>, i32 -> vector<32x128xf32>
    %153 = vector.broadcast %39 : vector<1x128xf32> to vector<32x128xf32>
    %154 = arith.mulf %152, %153 : vector<32x128xf32>
    %c126_i32_62 = arith.constant 126 : i32
    %155 = tpu.dynamic_rotate %143 by %c126_i32_62 dim 1 : vector<32x128xf32>, i32 -> vector<32x128xf32>
    %156 = vector.broadcast %50 : vector<1x128xf32> to vector<32x128xf32>
    %157 = arith.mulf %155, %156 : vector<32x128xf32>
    %158 = tpu.concatenate %148, %151, %143, %154, %157 in 0 : vector<32x128xf32>, vector<32x128xf32>, vector<32x128xf32>, vector<32x128xf32>, vector<32x128xf32> -> vector<160x128xf32>
    %c2 = arith.constant 2 : index
    %c0_63 = arith.constant 0 : index
    %c0_64 = arith.constant 0 : index
    %159 = vector.load %arg5[%c2, %c0_63, %c0_64] : memref<16x64x160xf32, #tpu.memory_space<vmem>>, vector<1x64x160xf32>
    %160 = vector.shape_cast %159 : vector<1x64x160xf32> to vector<64x160xf32>
    %cst_65 = arith.constant dense<0.000000e+00> : vector<64x128xf32>
    %161 = tpu.matmul %160, %158, %cst_65 {dimension_numbers = #tpu.dot_dimension_numbers<[1], [0], [0], [1], [0, 0, 1, 1], [], []>} : vector<64x160xf32>, vector<160x128xf32>, vector<64x128xf32> -> vector<64x128xf32>
    %c2_66 = arith.constant 2 : index
    %c0_67 = arith.constant 0 : index
    %c0_68 = arith.constant 0 : index
    %162 = vector.load %arg6[%c2_66, %c0_67, %c0_68] : memref<16x64x1xf32, #tpu.memory_space<vmem>>, vector<1x64x1xf32>
    %163 = vector.shape_cast %162 : vector<1x64x1xf32> to vector<64x1xf32>
    %164 = vector.broadcast %163 : vector<64x1xf32> to vector<64x128xf32>
    %165 = arith.addf %161, %164 : vector<64x128xf32>
    %166 = vector.extract_strided_slice %165 {offsets = [0, 0], sizes = [32, 128], strides = [1, 1]} : vector<64x128xf32> to vector<32x128xf32>
    %167 = math.tanh %166 : vector<32x128xf32>
    %168 = vector.extract_strided_slice %165 {offsets = [32, 0], sizes = [32, 128], strides = [1, 1]} : vector<64x128xf32> to vector<32x128xf32>
    %169 = arith.negf %168 : vector<32x128xf32>
    %170 = math.exp %169 : vector<32x128xf32>
    %cst_69 = arith.constant 1.000000e+00 : f32
    %171 = vector.broadcast %cst_69 : f32 to vector<32x128xf32>
    %172 = arith.addf %171, %170 : vector<32x128xf32>
    %173 = arith.divf %171, %172 : vector<32x128xf32>
    %174 = arith.mulf %167, %173 : vector<32x128xf32>
    %c2_70 = arith.constant 2 : index
    %c0_71 = arith.constant 0 : index
    %c0_72 = arith.constant 0 : index
    %175 = vector.load %arg7[%c2_70, %c0_71, %c0_72] : memref<16x64x32xf32, #tpu.memory_space<vmem>>, vector<1x64x32xf32>
    %176 = vector.shape_cast %175 : vector<1x64x32xf32> to vector<64x32xf32>
    %cst_73 = arith.constant dense<0.000000e+00> : vector<64x128xf32>
    %177 = tpu.matmul %176, %174, %cst_73 {dimension_numbers = #tpu.dot_dimension_numbers<[1], [0], [0], [1], [0, 0, 1, 1], [], []>} : vector<64x32xf32>, vector<32x128xf32>, vector<64x128xf32> -> vector<64x128xf32>
    %c2_74 = arith.constant 2 : index
    %c0_75 = arith.constant 0 : index
    %c0_76 = arith.constant 0 : index
    %178 = vector.load %arg8[%c2_74, %c0_75, %c0_76] : memref<16x64x1xf32, #tpu.memory_space<vmem>>, vector<1x64x1xf32>
    %179 = vector.shape_cast %178 : vector<1x64x1xf32> to vector<64x1xf32>
    %180 = vector.broadcast %179 : vector<64x1xf32> to vector<64x128xf32>
    %181 = arith.addf %177, %180 : vector<64x128xf32>
    %182 = vector.extract_strided_slice %181 {offsets = [0, 0], sizes = [32, 128], strides = [1, 1]} : vector<64x128xf32> to vector<32x128xf32>
    %183 = arith.addf %143, %182 : vector<32x128xf32>
    %184 = arith.mulf %183, %3 : vector<32x128xf32>
    %185 = vector.extract_strided_slice %181 {offsets = [32, 0], sizes = [32, 128], strides = [1, 1]} : vector<64x128xf32> to vector<32x128xf32>
    %186 = arith.addf %145, %185 : vector<32x128xf32>
    %c2_i32_77 = arith.constant 2 : i32
    %187 = tpu.dynamic_rotate %184 by %c2_i32_77 dim 1 : vector<32x128xf32>, i32 -> vector<32x128xf32>
    %188 = vector.broadcast %17 : vector<1x128xf32> to vector<32x128xf32>
    %189 = arith.mulf %187, %188 : vector<32x128xf32>
    %c1_i32_78 = arith.constant 1 : i32
    %190 = tpu.dynamic_rotate %184 by %c1_i32_78 dim 1 : vector<32x128xf32>, i32 -> vector<32x128xf32>
    %191 = vector.broadcast %28 : vector<1x128xf32> to vector<32x128xf32>
    %192 = arith.mulf %190, %191 : vector<32x128xf32>
    %c127_i32_79 = arith.constant 127 : i32
    %193 = tpu.dynamic_rotate %184 by %c127_i32_79 dim 1 : vector<32x128xf32>, i32 -> vector<32x128xf32>
    %194 = vector.broadcast %39 : vector<1x128xf32> to vector<32x128xf32>
    %195 = arith.mulf %193, %194 : vector<32x128xf32>
    %c126_i32_80 = arith.constant 126 : i32
    %196 = tpu.dynamic_rotate %184 by %c126_i32_80 dim 1 : vector<32x128xf32>, i32 -> vector<32x128xf32>
    %197 = vector.broadcast %50 : vector<1x128xf32> to vector<32x128xf32>
    %198 = arith.mulf %196, %197 : vector<32x128xf32>
    %199 = tpu.concatenate %189, %192, %184, %195, %198 in 0 : vector<32x128xf32>, vector<32x128xf32>, vector<32x128xf32>, vector<32x128xf32>, vector<32x128xf32> -> vector<160x128xf32>
    %c3 = arith.constant 3 : index
    %c0_81 = arith.constant 0 : index
    %c0_82 = arith.constant 0 : index
    %200 = vector.load %arg5[%c3, %c0_81, %c0_82] : memref<16x64x160xf32, #tpu.memory_space<vmem>>, vector<1x64x160xf32>
    %201 = vector.shape_cast %200 : vector<1x64x160xf32> to vector<64x160xf32>
    %cst_83 = arith.constant dense<0.000000e+00> : vector<64x128xf32>
    %202 = tpu.matmul %201, %199, %cst_83 {dimension_numbers = #tpu.dot_dimension_numbers<[1], [0], [0], [1], [0, 0, 1, 1], [], []>} : vector<64x160xf32>, vector<160x128xf32>, vector<64x128xf32> -> vector<64x128xf32>
    %c3_84 = arith.constant 3 : index
    %c0_85 = arith.constant 0 : index
    %c0_86 = arith.constant 0 : index
    %203 = vector.load %arg6[%c3_84, %c0_85, %c0_86] : memref<16x64x1xf32, #tpu.memory_space<vmem>>, vector<1x64x1xf32>
    %204 = vector.shape_cast %203 : vector<1x64x1xf32> to vector<64x1xf32>
    %205 = vector.broadcast %204 : vector<64x1xf32> to vector<64x128xf32>
    %206 = arith.addf %202, %205 : vector<64x128xf32>
    %207 = vector.extract_strided_slice %206 {offsets = [0, 0], sizes = [32, 128], strides = [1, 1]} : vector<64x128xf32> to vector<32x128xf32>
    %208 = math.tanh %207 : vector<32x128xf32>
    %209 = vector.extract_strided_slice %206 {offsets = [32, 0], sizes = [32, 128], strides = [1, 1]} : vector<64x128xf32> to vector<32x128xf32>
    %210 = arith.negf %209 : vector<32x128xf32>
    %211 = math.exp %210 : vector<32x128xf32>
    %cst_87 = arith.constant 1.000000e+00 : f32
    %212 = vector.broadcast %cst_87 : f32 to vector<32x128xf32>
    %213 = arith.addf %212, %211 : vector<32x128xf32>
    %214 = arith.divf %212, %213 : vector<32x128xf32>
    %215 = arith.mulf %208, %214 : vector<32x128xf32>
    %c3_88 = arith.constant 3 : index
    %c32 = arith.constant 32 : index
    %c0_89 = arith.constant 0 : index
    %216 = vector.load %arg7[%c3_88, %c32, %c0_89] : memref<16x64x32xf32, #tpu.memory_space<vmem>>, vector<1x32x32xf32>
    %217 = vector.shape_cast %216 : vector<1x32x32xf32> to vector<32x32xf32>
    %cst_90 = arith.constant dense<0.000000e+00> : vector<32x128xf32>
    %218 = tpu.matmul %217, %215, %cst_90 {dimension_numbers = #tpu.dot_dimension_numbers<[1], [0], [0], [1], [0, 0, 1, 1], [], []>} : vector<32x32xf32>, vector<32x128xf32>, vector<32x128xf32> -> vector<32x128xf32>
    %c3_91 = arith.constant 3 : index
    %c32_92 = arith.constant 32 : index
    %c0_93 = arith.constant 0 : index
    %219 = vector.load %arg8[%c3_91, %c32_92, %c0_93] : memref<16x64x1xf32, #tpu.memory_space<vmem>>, vector<1x32x1xf32>
    %220 = vector.shape_cast %219 : vector<1x32x1xf32> to vector<32x1xf32>
    %221 = vector.broadcast %220 : vector<32x1xf32> to vector<32x128xf32>
    %222 = arith.addf %218, %221 : vector<32x128xf32>
    %223 = arith.addf %186, %222 : vector<32x128xf32>
    %224 = arith.mulf %223, %3 : vector<32x128xf32>
    %c0_94 = arith.constant 0 : index
    %c0_95 = arith.constant 0 : index
    %c0_96 = arith.constant 0 : index
    %225 = vector.load %arg9[%c0_94, %c0_95, %c0_96] : memref<4x8x32xf32, #tpu.memory_space<vmem>>, vector<1x8x32xf32>
    %226 = vector.shape_cast %225 : vector<1x8x32xf32> to vector<8x32xf32>
    %cst_97 = arith.constant dense<0.000000e+00> : vector<8x128xf32>
    %227 = tpu.matmul %226, %224, %cst_97 {dimension_numbers = #tpu.dot_dimension_numbers<[1], [0], [0], [1], [0, 0, 1, 1], [], []>} : vector<8x32xf32>, vector<32x128xf32>, vector<8x128xf32> -> vector<8x128xf32>
    %c0_98 = arith.constant 0 : index
    %c0_99 = arith.constant 0 : index
    %c0_100 = arith.constant 0 : index
    %228 = vector.load %arg10[%c0_98, %c0_99, %c0_100] : memref<4x8x1xf32, #tpu.memory_space<vmem>>, vector<1x8x1xf32>
    %229 = vector.shape_cast %228 : vector<1x8x1xf32> to vector<8x1xf32>
    %230 = vector.broadcast %229 : vector<8x1xf32> to vector<8x128xf32>
    %231 = arith.addf %227, %230 : vector<8x128xf32>
    %232 = arith.mulf %231, %5 : vector<8x128xf32>
    %233 = arith.mulf %54, %5 : vector<8x128xf32>
    %234 = arith.addf %232, %233 : vector<8x128xf32>
    %c1_101 = arith.constant 1 : index
    %c0_102 = arith.constant 0 : index
    %c0_103 = arith.constant 0 : index
    %235 = vector.load %arg3[%c1_101, %c0_102, %c0_103] : memref<4x32x8xf32, #tpu.memory_space<vmem>>, vector<1x32x8xf32>
    %236 = vector.shape_cast %235 : vector<1x32x8xf32> to vector<32x8xf32>
    %cst_104 = arith.constant dense<0.000000e+00> : vector<32x128xf32>
    %237 = tpu.matmul %236, %234, %cst_104 {dimension_numbers = #tpu.dot_dimension_numbers<[1], [0], [0], [1], [0, 0, 1, 1], [], []>} : vector<32x8xf32>, vector<8x128xf32>, vector<32x128xf32> -> vector<32x128xf32>
    %c1_105 = arith.constant 1 : index
    %c0_106 = arith.constant 0 : index
    %c0_107 = arith.constant 0 : index
    %238 = vector.load %arg4[%c1_105, %c0_106, %c0_107] : memref<4x32x1xf32, #tpu.memory_space<vmem>>, vector<1x32x1xf32>
    %239 = vector.shape_cast %238 : vector<1x32x1xf32> to vector<32x1xf32>
    %240 = vector.broadcast %239 : vector<32x1xf32> to vector<32x128xf32>
    %241 = arith.addf %237, %240 : vector<32x128xf32>
    %242 = arith.mulf %241, %3 : vector<32x128xf32>
    %cst_108 = arith.constant 0.000000e+00 : f32
    %243 = vector.broadcast %cst_108 : f32 to vector<32x128xf32>
    %c2_i32_109 = arith.constant 2 : i32
    %244 = tpu.dynamic_rotate %242 by %c2_i32_109 dim 1 : vector<32x128xf32>, i32 -> vector<32x128xf32>
    %245 = vector.broadcast %17 : vector<1x128xf32> to vector<32x128xf32>
    %246 = arith.mulf %244, %245 : vector<32x128xf32>
    %c1_i32_110 = arith.constant 1 : i32
    %247 = tpu.dynamic_rotate %242 by %c1_i32_110 dim 1 : vector<32x128xf32>, i32 -> vector<32x128xf32>
    %248 = vector.broadcast %28 : vector<1x128xf32> to vector<32x128xf32>
    %249 = arith.mulf %247, %248 : vector<32x128xf32>
    %c127_i32_111 = arith.constant 127 : i32
    %250 = tpu.dynamic_rotate %242 by %c127_i32_111 dim 1 : vector<32x128xf32>, i32 -> vector<32x128xf32>
    %251 = vector.broadcast %39 : vector<1x128xf32> to vector<32x128xf32>
    %252 = arith.mulf %250, %251 : vector<32x128xf32>
    %c126_i32_112 = arith.constant 126 : i32
    %253 = tpu.dynamic_rotate %242 by %c126_i32_112 dim 1 : vector<32x128xf32>, i32 -> vector<32x128xf32>
    %254 = vector.broadcast %50 : vector<1x128xf32> to vector<32x128xf32>
    %255 = arith.mulf %253, %254 : vector<32x128xf32>
    %256 = tpu.concatenate %246, %249, %242, %252, %255 in 0 : vector<32x128xf32>, vector<32x128xf32>, vector<32x128xf32>, vector<32x128xf32>, vector<32x128xf32> -> vector<160x128xf32>
    %c4 = arith.constant 4 : index
    %c0_113 = arith.constant 0 : index
    %c0_114 = arith.constant 0 : index
    %257 = vector.load %arg5[%c4, %c0_113, %c0_114] : memref<16x64x160xf32, #tpu.memory_space<vmem>>, vector<1x64x160xf32>
    %258 = vector.shape_cast %257 : vector<1x64x160xf32> to vector<64x160xf32>
    %cst_115 = arith.constant dense<0.000000e+00> : vector<64x128xf32>
    %259 = tpu.matmul %258, %256, %cst_115 {dimension_numbers = #tpu.dot_dimension_numbers<[1], [0], [0], [1], [0, 0, 1, 1], [], []>} : vector<64x160xf32>, vector<160x128xf32>, vector<64x128xf32> -> vector<64x128xf32>
    %c4_116 = arith.constant 4 : index
    %c0_117 = arith.constant 0 : index
    %c0_118 = arith.constant 0 : index
    %260 = vector.load %arg6[%c4_116, %c0_117, %c0_118] : memref<16x64x1xf32, #tpu.memory_space<vmem>>, vector<1x64x1xf32>
    %261 = vector.shape_cast %260 : vector<1x64x1xf32> to vector<64x1xf32>
    %262 = vector.broadcast %261 : vector<64x1xf32> to vector<64x128xf32>
    %263 = arith.addf %259, %262 : vector<64x128xf32>
    %264 = vector.extract_strided_slice %263 {offsets = [0, 0], sizes = [32, 128], strides = [1, 1]} : vector<64x128xf32> to vector<32x128xf32>
    %265 = math.tanh %264 : vector<32x128xf32>
    %266 = vector.extract_strided_slice %263 {offsets = [32, 0], sizes = [32, 128], strides = [1, 1]} : vector<64x128xf32> to vector<32x128xf32>
    %267 = arith.negf %266 : vector<32x128xf32>
    %268 = math.exp %267 : vector<32x128xf32>
    %cst_119 = arith.constant 1.000000e+00 : f32
    %269 = vector.broadcast %cst_119 : f32 to vector<32x128xf32>
    %270 = arith.addf %269, %268 : vector<32x128xf32>
    %271 = arith.divf %269, %270 : vector<32x128xf32>
    %272 = arith.mulf %265, %271 : vector<32x128xf32>
    %c4_120 = arith.constant 4 : index
    %c0_121 = arith.constant 0 : index
    %c0_122 = arith.constant 0 : index
    %273 = vector.load %arg7[%c4_120, %c0_121, %c0_122] : memref<16x64x32xf32, #tpu.memory_space<vmem>>, vector<1x64x32xf32>
    %274 = vector.shape_cast %273 : vector<1x64x32xf32> to vector<64x32xf32>
    %cst_123 = arith.constant dense<0.000000e+00> : vector<64x128xf32>
    %275 = tpu.matmul %274, %272, %cst_123 {dimension_numbers = #tpu.dot_dimension_numbers<[1], [0], [0], [1], [0, 0, 1, 1], [], []>} : vector<64x32xf32>, vector<32x128xf32>, vector<64x128xf32> -> vector<64x128xf32>
    %c4_124 = arith.constant 4 : index
    %c0_125 = arith.constant 0 : index
    %c0_126 = arith.constant 0 : index
    %276 = vector.load %arg8[%c4_124, %c0_125, %c0_126] : memref<16x64x1xf32, #tpu.memory_space<vmem>>, vector<1x64x1xf32>
    %277 = vector.shape_cast %276 : vector<1x64x1xf32> to vector<64x1xf32>
    %278 = vector.broadcast %277 : vector<64x1xf32> to vector<64x128xf32>
    %279 = arith.addf %275, %278 : vector<64x128xf32>
    %280 = vector.extract_strided_slice %279 {offsets = [0, 0], sizes = [32, 128], strides = [1, 1]} : vector<64x128xf32> to vector<32x128xf32>
    %281 = arith.addf %242, %280 : vector<32x128xf32>
    %282 = arith.mulf %281, %3 : vector<32x128xf32>
    %283 = vector.extract_strided_slice %279 {offsets = [32, 0], sizes = [32, 128], strides = [1, 1]} : vector<64x128xf32> to vector<32x128xf32>
    %284 = arith.addf %243, %283 : vector<32x128xf32>
    %c2_i32_127 = arith.constant 2 : i32
    %285 = tpu.dynamic_rotate %282 by %c2_i32_127 dim 1 : vector<32x128xf32>, i32 -> vector<32x128xf32>
    %286 = vector.broadcast %17 : vector<1x128xf32> to vector<32x128xf32>
    %287 = arith.mulf %285, %286 : vector<32x128xf32>
    %c1_i32_128 = arith.constant 1 : i32
    %288 = tpu.dynamic_rotate %282 by %c1_i32_128 dim 1 : vector<32x128xf32>, i32 -> vector<32x128xf32>
    %289 = vector.broadcast %28 : vector<1x128xf32> to vector<32x128xf32>
    %290 = arith.mulf %288, %289 : vector<32x128xf32>
    %c127_i32_129 = arith.constant 127 : i32
    %291 = tpu.dynamic_rotate %282 by %c127_i32_129 dim 1 : vector<32x128xf32>, i32 -> vector<32x128xf32>
    %292 = vector.broadcast %39 : vector<1x128xf32> to vector<32x128xf32>
    %293 = arith.mulf %291, %292 : vector<32x128xf32>
    %c126_i32_130 = arith.constant 126 : i32
    %294 = tpu.dynamic_rotate %282 by %c126_i32_130 dim 1 : vector<32x128xf32>, i32 -> vector<32x128xf32>
    %295 = vector.broadcast %50 : vector<1x128xf32> to vector<32x128xf32>
    %296 = arith.mulf %294, %295 : vector<32x128xf32>
    %297 = tpu.concatenate %287, %290, %282, %293, %296 in 0 : vector<32x128xf32>, vector<32x128xf32>, vector<32x128xf32>, vector<32x128xf32>, vector<32x128xf32> -> vector<160x128xf32>
    %c5 = arith.constant 5 : index
    %c0_131 = arith.constant 0 : index
    %c0_132 = arith.constant 0 : index
    %298 = vector.load %arg5[%c5, %c0_131, %c0_132] : memref<16x64x160xf32, #tpu.memory_space<vmem>>, vector<1x64x160xf32>
    %299 = vector.shape_cast %298 : vector<1x64x160xf32> to vector<64x160xf32>
    %cst_133 = arith.constant dense<0.000000e+00> : vector<64x128xf32>
    %300 = tpu.matmul %299, %297, %cst_133 {dimension_numbers = #tpu.dot_dimension_numbers<[1], [0], [0], [1], [0, 0, 1, 1], [], []>} : vector<64x160xf32>, vector<160x128xf32>, vector<64x128xf32> -> vector<64x128xf32>
    %c5_134 = arith.constant 5 : index
    %c0_135 = arith.constant 0 : index
    %c0_136 = arith.constant 0 : index
    %301 = vector.load %arg6[%c5_134, %c0_135, %c0_136] : memref<16x64x1xf32, #tpu.memory_space<vmem>>, vector<1x64x1xf32>
    %302 = vector.shape_cast %301 : vector<1x64x1xf32> to vector<64x1xf32>
    %303 = vector.broadcast %302 : vector<64x1xf32> to vector<64x128xf32>
    %304 = arith.addf %300, %303 : vector<64x128xf32>
    %305 = vector.extract_strided_slice %304 {offsets = [0, 0], sizes = [32, 128], strides = [1, 1]} : vector<64x128xf32> to vector<32x128xf32>
    %306 = math.tanh %305 : vector<32x128xf32>
    %307 = vector.extract_strided_slice %304 {offsets = [32, 0], sizes = [32, 128], strides = [1, 1]} : vector<64x128xf32> to vector<32x128xf32>
    %308 = arith.negf %307 : vector<32x128xf32>
    %309 = math.exp %308 : vector<32x128xf32>
    %cst_137 = arith.constant 1.000000e+00 : f32
    %310 = vector.broadcast %cst_137 : f32 to vector<32x128xf32>
    %311 = arith.addf %310, %309 : vector<32x128xf32>
    %312 = arith.divf %310, %311 : vector<32x128xf32>
    %313 = arith.mulf %306, %312 : vector<32x128xf32>
    %c5_138 = arith.constant 5 : index
    %c0_139 = arith.constant 0 : index
    %c0_140 = arith.constant 0 : index
    %314 = vector.load %arg7[%c5_138, %c0_139, %c0_140] : memref<16x64x32xf32, #tpu.memory_space<vmem>>, vector<1x64x32xf32>
    %315 = vector.shape_cast %314 : vector<1x64x32xf32> to vector<64x32xf32>
    %cst_141 = arith.constant dense<0.000000e+00> : vector<64x128xf32>
    %316 = tpu.matmul %315, %313, %cst_141 {dimension_numbers = #tpu.dot_dimension_numbers<[1], [0], [0], [1], [0, 0, 1, 1], [], []>} : vector<64x32xf32>, vector<32x128xf32>, vector<64x128xf32> -> vector<64x128xf32>
    %c5_142 = arith.constant 5 : index
    %c0_143 = arith.constant 0 : index
    %c0_144 = arith.constant 0 : index
    %317 = vector.load %arg8[%c5_142, %c0_143, %c0_144] : memref<16x64x1xf32, #tpu.memory_space<vmem>>, vector<1x64x1xf32>
    %318 = vector.shape_cast %317 : vector<1x64x1xf32> to vector<64x1xf32>
    %319 = vector.broadcast %318 : vector<64x1xf32> to vector<64x128xf32>
    %320 = arith.addf %316, %319 : vector<64x128xf32>
    %321 = vector.extract_strided_slice %320 {offsets = [0, 0], sizes = [32, 128], strides = [1, 1]} : vector<64x128xf32> to vector<32x128xf32>
    %322 = arith.addf %282, %321 : vector<32x128xf32>
    %323 = arith.mulf %322, %3 : vector<32x128xf32>
    %324 = vector.extract_strided_slice %320 {offsets = [32, 0], sizes = [32, 128], strides = [1, 1]} : vector<64x128xf32> to vector<32x128xf32>
    %325 = arith.addf %284, %324 : vector<32x128xf32>
    %c2_i32_145 = arith.constant 2 : i32
    %326 = tpu.dynamic_rotate %323 by %c2_i32_145 dim 1 : vector<32x128xf32>, i32 -> vector<32x128xf32>
    %327 = vector.broadcast %17 : vector<1x128xf32> to vector<32x128xf32>
    %328 = arith.mulf %326, %327 : vector<32x128xf32>
    %c1_i32_146 = arith.constant 1 : i32
    %329 = tpu.dynamic_rotate %323 by %c1_i32_146 dim 1 : vector<32x128xf32>, i32 -> vector<32x128xf32>
    %330 = vector.broadcast %28 : vector<1x128xf32> to vector<32x128xf32>
    %331 = arith.mulf %329, %330 : vector<32x128xf32>
    %c127_i32_147 = arith.constant 127 : i32
    %332 = tpu.dynamic_rotate %323 by %c127_i32_147 dim 1 : vector<32x128xf32>, i32 -> vector<32x128xf32>
    %333 = vector.broadcast %39 : vector<1x128xf32> to vector<32x128xf32>
    %334 = arith.mulf %332, %333 : vector<32x128xf32>
    %c126_i32_148 = arith.constant 126 : i32
    %335 = tpu.dynamic_rotate %323 by %c126_i32_148 dim 1 : vector<32x128xf32>, i32 -> vector<32x128xf32>
    %336 = vector.broadcast %50 : vector<1x128xf32> to vector<32x128xf32>
    %337 = arith.mulf %335, %336 : vector<32x128xf32>
    %338 = tpu.concatenate %328, %331, %323, %334, %337 in 0 : vector<32x128xf32>, vector<32x128xf32>, vector<32x128xf32>, vector<32x128xf32>, vector<32x128xf32> -> vector<160x128xf32>
    %c6 = arith.constant 6 : index
    %c0_149 = arith.constant 0 : index
    %c0_150 = arith.constant 0 : index
    %339 = vector.load %arg5[%c6, %c0_149, %c0_150] : memref<16x64x160xf32, #tpu.memory_space<vmem>>, vector<1x64x160xf32>
    %340 = vector.shape_cast %339 : vector<1x64x160xf32> to vector<64x160xf32>
    %cst_151 = arith.constant dense<0.000000e+00> : vector<64x128xf32>
    %341 = tpu.matmul %340, %338, %cst_151 {dimension_numbers = #tpu.dot_dimension_numbers<[1], [0], [0], [1], [0, 0, 1, 1], [], []>} : vector<64x160xf32>, vector<160x128xf32>, vector<64x128xf32> -> vector<64x128xf32>
    %c6_152 = arith.constant 6 : index
    %c0_153 = arith.constant 0 : index
    %c0_154 = arith.constant 0 : index
    %342 = vector.load %arg6[%c6_152, %c0_153, %c0_154] : memref<16x64x1xf32, #tpu.memory_space<vmem>>, vector<1x64x1xf32>
    %343 = vector.shape_cast %342 : vector<1x64x1xf32> to vector<64x1xf32>
    %344 = vector.broadcast %343 : vector<64x1xf32> to vector<64x128xf32>
    %345 = arith.addf %341, %344 : vector<64x128xf32>
    %346 = vector.extract_strided_slice %345 {offsets = [0, 0], sizes = [32, 128], strides = [1, 1]} : vector<64x128xf32> to vector<32x128xf32>
    %347 = math.tanh %346 : vector<32x128xf32>
    %348 = vector.extract_strided_slice %345 {offsets = [32, 0], sizes = [32, 128], strides = [1, 1]} : vector<64x128xf32> to vector<32x128xf32>
    %349 = arith.negf %348 : vector<32x128xf32>
    %350 = math.exp %349 : vector<32x128xf32>
    %cst_155 = arith.constant 1.000000e+00 : f32
    %351 = vector.broadcast %cst_155 : f32 to vector<32x128xf32>
    %352 = arith.addf %351, %350 : vector<32x128xf32>
    %353 = arith.divf %351, %352 : vector<32x128xf32>
    %354 = arith.mulf %347, %353 : vector<32x128xf32>
    %c6_156 = arith.constant 6 : index
    %c0_157 = arith.constant 0 : index
    %c0_158 = arith.constant 0 : index
    %355 = vector.load %arg7[%c6_156, %c0_157, %c0_158] : memref<16x64x32xf32, #tpu.memory_space<vmem>>, vector<1x64x32xf32>
    %356 = vector.shape_cast %355 : vector<1x64x32xf32> to vector<64x32xf32>
    %cst_159 = arith.constant dense<0.000000e+00> : vector<64x128xf32>
    %357 = tpu.matmul %356, %354, %cst_159 {dimension_numbers = #tpu.dot_dimension_numbers<[1], [0], [0], [1], [0, 0, 1, 1], [], []>} : vector<64x32xf32>, vector<32x128xf32>, vector<64x128xf32> -> vector<64x128xf32>
    %c6_160 = arith.constant 6 : index
    %c0_161 = arith.constant 0 : index
    %c0_162 = arith.constant 0 : index
    %358 = vector.load %arg8[%c6_160, %c0_161, %c0_162] : memref<16x64x1xf32, #tpu.memory_space<vmem>>, vector<1x64x1xf32>
    %359 = vector.shape_cast %358 : vector<1x64x1xf32> to vector<64x1xf32>
    %360 = vector.broadcast %359 : vector<64x1xf32> to vector<64x128xf32>
    %361 = arith.addf %357, %360 : vector<64x128xf32>
    %362 = vector.extract_strided_slice %361 {offsets = [0, 0], sizes = [32, 128], strides = [1, 1]} : vector<64x128xf32> to vector<32x128xf32>
    %363 = arith.addf %323, %362 : vector<32x128xf32>
    %364 = arith.mulf %363, %3 : vector<32x128xf32>
    %365 = vector.extract_strided_slice %361 {offsets = [32, 0], sizes = [32, 128], strides = [1, 1]} : vector<64x128xf32> to vector<32x128xf32>
    %366 = arith.addf %325, %365 : vector<32x128xf32>
    %c2_i32_163 = arith.constant 2 : i32
    %367 = tpu.dynamic_rotate %364 by %c2_i32_163 dim 1 : vector<32x128xf32>, i32 -> vector<32x128xf32>
    %368 = vector.broadcast %17 : vector<1x128xf32> to vector<32x128xf32>
    %369 = arith.mulf %367, %368 : vector<32x128xf32>
    %c1_i32_164 = arith.constant 1 : i32
    %370 = tpu.dynamic_rotate %364 by %c1_i32_164 dim 1 : vector<32x128xf32>, i32 -> vector<32x128xf32>
    %371 = vector.broadcast %28 : vector<1x128xf32> to vector<32x128xf32>
    %372 = arith.mulf %370, %371 : vector<32x128xf32>
    %c127_i32_165 = arith.constant 127 : i32
    %373 = tpu.dynamic_rotate %364 by %c127_i32_165 dim 1 : vector<32x128xf32>, i32 -> vector<32x128xf32>
    %374 = vector.broadcast %39 : vector<1x128xf32> to vector<32x128xf32>
    %375 = arith.mulf %373, %374 : vector<32x128xf32>
    %c126_i32_166 = arith.constant 126 : i32
    %376 = tpu.dynamic_rotate %364 by %c126_i32_166 dim 1 : vector<32x128xf32>, i32 -> vector<32x128xf32>
    %377 = vector.broadcast %50 : vector<1x128xf32> to vector<32x128xf32>
    %378 = arith.mulf %376, %377 : vector<32x128xf32>
    %379 = tpu.concatenate %369, %372, %364, %375, %378 in 0 : vector<32x128xf32>, vector<32x128xf32>, vector<32x128xf32>, vector<32x128xf32>, vector<32x128xf32> -> vector<160x128xf32>
    %c7 = arith.constant 7 : index
    %c0_167 = arith.constant 0 : index
    %c0_168 = arith.constant 0 : index
    %380 = vector.load %arg5[%c7, %c0_167, %c0_168] : memref<16x64x160xf32, #tpu.memory_space<vmem>>, vector<1x64x160xf32>
    %381 = vector.shape_cast %380 : vector<1x64x160xf32> to vector<64x160xf32>
    %cst_169 = arith.constant dense<0.000000e+00> : vector<64x128xf32>
    %382 = tpu.matmul %381, %379, %cst_169 {dimension_numbers = #tpu.dot_dimension_numbers<[1], [0], [0], [1], [0, 0, 1, 1], [], []>} : vector<64x160xf32>, vector<160x128xf32>, vector<64x128xf32> -> vector<64x128xf32>
    %c7_170 = arith.constant 7 : index
    %c0_171 = arith.constant 0 : index
    %c0_172 = arith.constant 0 : index
    %383 = vector.load %arg6[%c7_170, %c0_171, %c0_172] : memref<16x64x1xf32, #tpu.memory_space<vmem>>, vector<1x64x1xf32>
    %384 = vector.shape_cast %383 : vector<1x64x1xf32> to vector<64x1xf32>
    %385 = vector.broadcast %384 : vector<64x1xf32> to vector<64x128xf32>
    %386 = arith.addf %382, %385 : vector<64x128xf32>
    %387 = vector.extract_strided_slice %386 {offsets = [0, 0], sizes = [32, 128], strides = [1, 1]} : vector<64x128xf32> to vector<32x128xf32>
    %388 = math.tanh %387 : vector<32x128xf32>
    %389 = vector.extract_strided_slice %386 {offsets = [32, 0], sizes = [32, 128], strides = [1, 1]} : vector<64x128xf32> to vector<32x128xf32>
    %390 = arith.negf %389 : vector<32x128xf32>
    %391 = math.exp %390 : vector<32x128xf32>
    %cst_173 = arith.constant 1.000000e+00 : f32
    %392 = vector.broadcast %cst_173 : f32 to vector<32x128xf32>
    %393 = arith.addf %392, %391 : vector<32x128xf32>
    %394 = arith.divf %392, %393 : vector<32x128xf32>
    %395 = arith.mulf %388, %394 : vector<32x128xf32>
    %c7_174 = arith.constant 7 : index
    %c32_175 = arith.constant 32 : index
    %c0_176 = arith.constant 0 : index
    %396 = vector.load %arg7[%c7_174, %c32_175, %c0_176] : memref<16x64x32xf32, #tpu.memory_space<vmem>>, vector<1x32x32xf32>
    %397 = vector.shape_cast %396 : vector<1x32x32xf32> to vector<32x32xf32>
    %cst_177 = arith.constant dense<0.000000e+00> : vector<32x128xf32>
    %398 = tpu.matmul %397, %395, %cst_177 {dimension_numbers = #tpu.dot_dimension_numbers<[1], [0], [0], [1], [0, 0, 1, 1], [], []>} : vector<32x32xf32>, vector<32x128xf32>, vector<32x128xf32> -> vector<32x128xf32>
    %c7_178 = arith.constant 7 : index
    %c32_179 = arith.constant 32 : index
    %c0_180 = arith.constant 0 : index
    %399 = vector.load %arg8[%c7_178, %c32_179, %c0_180] : memref<16x64x1xf32, #tpu.memory_space<vmem>>, vector<1x32x1xf32>
    %400 = vector.shape_cast %399 : vector<1x32x1xf32> to vector<32x1xf32>
    %401 = vector.broadcast %400 : vector<32x1xf32> to vector<32x128xf32>
    %402 = arith.addf %398, %401 : vector<32x128xf32>
    %403 = arith.addf %366, %402 : vector<32x128xf32>
    %404 = arith.mulf %403, %3 : vector<32x128xf32>
    %c1_181 = arith.constant 1 : index
    %c0_182 = arith.constant 0 : index
    %c0_183 = arith.constant 0 : index
    %405 = vector.load %arg9[%c1_181, %c0_182, %c0_183] : memref<4x8x32xf32, #tpu.memory_space<vmem>>, vector<1x8x32xf32>
    %406 = vector.shape_cast %405 : vector<1x8x32xf32> to vector<8x32xf32>
    %cst_184 = arith.constant dense<0.000000e+00> : vector<8x128xf32>
    %407 = tpu.matmul %406, %404, %cst_184 {dimension_numbers = #tpu.dot_dimension_numbers<[1], [0], [0], [1], [0, 0, 1, 1], [], []>} : vector<8x32xf32>, vector<32x128xf32>, vector<8x128xf32> -> vector<8x128xf32>
    %c1_185 = arith.constant 1 : index
    %c0_186 = arith.constant 0 : index
    %c0_187 = arith.constant 0 : index
    %408 = vector.load %arg10[%c1_185, %c0_186, %c0_187] : memref<4x8x1xf32, #tpu.memory_space<vmem>>, vector<1x8x1xf32>
    %409 = vector.shape_cast %408 : vector<1x8x1xf32> to vector<8x1xf32>
    %410 = vector.broadcast %409 : vector<8x1xf32> to vector<8x128xf32>
    %411 = arith.addf %407, %410 : vector<8x128xf32>
    %412 = arith.mulf %411, %5 : vector<8x128xf32>
    %413 = arith.mulf %52, %5 : vector<8x128xf32>
    %414 = arith.addf %412, %413 : vector<8x128xf32>
    %c2_188 = arith.constant 2 : index
    %c0_189 = arith.constant 0 : index
    %c0_190 = arith.constant 0 : index
    %415 = vector.load %arg3[%c2_188, %c0_189, %c0_190] : memref<4x32x8xf32, #tpu.memory_space<vmem>>, vector<1x32x8xf32>
    %416 = vector.shape_cast %415 : vector<1x32x8xf32> to vector<32x8xf32>
    %cst_191 = arith.constant dense<0.000000e+00> : vector<32x128xf32>
    %417 = tpu.matmul %416, %414, %cst_191 {dimension_numbers = #tpu.dot_dimension_numbers<[1], [0], [0], [1], [0, 0, 1, 1], [], []>} : vector<32x8xf32>, vector<8x128xf32>, vector<32x128xf32> -> vector<32x128xf32>
    %c2_192 = arith.constant 2 : index
    %c0_193 = arith.constant 0 : index
    %c0_194 = arith.constant 0 : index
    %418 = vector.load %arg4[%c2_192, %c0_193, %c0_194] : memref<4x32x1xf32, #tpu.memory_space<vmem>>, vector<1x32x1xf32>
    %419 = vector.shape_cast %418 : vector<1x32x1xf32> to vector<32x1xf32>
    %420 = vector.broadcast %419 : vector<32x1xf32> to vector<32x128xf32>
    %421 = arith.addf %417, %420 : vector<32x128xf32>
    %422 = arith.mulf %421, %3 : vector<32x128xf32>
    %cst_195 = arith.constant 0.000000e+00 : f32
    %423 = vector.broadcast %cst_195 : f32 to vector<32x128xf32>
    %c2_i32_196 = arith.constant 2 : i32
    %424 = tpu.dynamic_rotate %422 by %c2_i32_196 dim 1 : vector<32x128xf32>, i32 -> vector<32x128xf32>
    %425 = vector.broadcast %17 : vector<1x128xf32> to vector<32x128xf32>
    %426 = arith.mulf %424, %425 : vector<32x128xf32>
    %c1_i32_197 = arith.constant 1 : i32
    %427 = tpu.dynamic_rotate %422 by %c1_i32_197 dim 1 : vector<32x128xf32>, i32 -> vector<32x128xf32>
    %428 = vector.broadcast %28 : vector<1x128xf32> to vector<32x128xf32>
    %429 = arith.mulf %427, %428 : vector<32x128xf32>
    %c127_i32_198 = arith.constant 127 : i32
    %430 = tpu.dynamic_rotate %422 by %c127_i32_198 dim 1 : vector<32x128xf32>, i32 -> vector<32x128xf32>
    %431 = vector.broadcast %39 : vector<1x128xf32> to vector<32x128xf32>
    %432 = arith.mulf %430, %431 : vector<32x128xf32>
    %c126_i32_199 = arith.constant 126 : i32
    %433 = tpu.dynamic_rotate %422 by %c126_i32_199 dim 1 : vector<32x128xf32>, i32 -> vector<32x128xf32>
    %434 = vector.broadcast %50 : vector<1x128xf32> to vector<32x128xf32>
    %435 = arith.mulf %433, %434 : vector<32x128xf32>
    %436 = tpu.concatenate %426, %429, %422, %432, %435 in 0 : vector<32x128xf32>, vector<32x128xf32>, vector<32x128xf32>, vector<32x128xf32>, vector<32x128xf32> -> vector<160x128xf32>
    %c8_200 = arith.constant 8 : index
    %c0_201 = arith.constant 0 : index
    %c0_202 = arith.constant 0 : index
    %437 = vector.load %arg5[%c8_200, %c0_201, %c0_202] : memref<16x64x160xf32, #tpu.memory_space<vmem>>, vector<1x64x160xf32>
    %438 = vector.shape_cast %437 : vector<1x64x160xf32> to vector<64x160xf32>
    %cst_203 = arith.constant dense<0.000000e+00> : vector<64x128xf32>
    %439 = tpu.matmul %438, %436, %cst_203 {dimension_numbers = #tpu.dot_dimension_numbers<[1], [0], [0], [1], [0, 0, 1, 1], [], []>} : vector<64x160xf32>, vector<160x128xf32>, vector<64x128xf32> -> vector<64x128xf32>
    %c8_204 = arith.constant 8 : index
    %c0_205 = arith.constant 0 : index
    %c0_206 = arith.constant 0 : index
    %440 = vector.load %arg6[%c8_204, %c0_205, %c0_206] : memref<16x64x1xf32, #tpu.memory_space<vmem>>, vector<1x64x1xf32>
    %441 = vector.shape_cast %440 : vector<1x64x1xf32> to vector<64x1xf32>
    %442 = vector.broadcast %441 : vector<64x1xf32> to vector<64x128xf32>
    %443 = arith.addf %439, %442 : vector<64x128xf32>
    %444 = vector.extract_strided_slice %443 {offsets = [0, 0], sizes = [32, 128], strides = [1, 1]} : vector<64x128xf32> to vector<32x128xf32>
    %445 = math.tanh %444 : vector<32x128xf32>
    %446 = vector.extract_strided_slice %443 {offsets = [32, 0], sizes = [32, 128], strides = [1, 1]} : vector<64x128xf32> to vector<32x128xf32>
    %447 = arith.negf %446 : vector<32x128xf32>
    %448 = math.exp %447 : vector<32x128xf32>
    %cst_207 = arith.constant 1.000000e+00 : f32
    %449 = vector.broadcast %cst_207 : f32 to vector<32x128xf32>
    %450 = arith.addf %449, %448 : vector<32x128xf32>
    %451 = arith.divf %449, %450 : vector<32x128xf32>
    %452 = arith.mulf %445, %451 : vector<32x128xf32>
    %c8_208 = arith.constant 8 : index
    %c0_209 = arith.constant 0 : index
    %c0_210 = arith.constant 0 : index
    %453 = vector.load %arg7[%c8_208, %c0_209, %c0_210] : memref<16x64x32xf32, #tpu.memory_space<vmem>>, vector<1x64x32xf32>
    %454 = vector.shape_cast %453 : vector<1x64x32xf32> to vector<64x32xf32>
    %cst_211 = arith.constant dense<0.000000e+00> : vector<64x128xf32>
    %455 = tpu.matmul %454, %452, %cst_211 {dimension_numbers = #tpu.dot_dimension_numbers<[1], [0], [0], [1], [0, 0, 1, 1], [], []>} : vector<64x32xf32>, vector<32x128xf32>, vector<64x128xf32> -> vector<64x128xf32>
    %c8_212 = arith.constant 8 : index
    %c0_213 = arith.constant 0 : index
    %c0_214 = arith.constant 0 : index
    %456 = vector.load %arg8[%c8_212, %c0_213, %c0_214] : memref<16x64x1xf32, #tpu.memory_space<vmem>>, vector<1x64x1xf32>
    %457 = vector.shape_cast %456 : vector<1x64x1xf32> to vector<64x1xf32>
    %458 = vector.broadcast %457 : vector<64x1xf32> to vector<64x128xf32>
    %459 = arith.addf %455, %458 : vector<64x128xf32>
    %460 = vector.extract_strided_slice %459 {offsets = [0, 0], sizes = [32, 128], strides = [1, 1]} : vector<64x128xf32> to vector<32x128xf32>
    %461 = arith.addf %422, %460 : vector<32x128xf32>
    %462 = arith.mulf %461, %3 : vector<32x128xf32>
    %463 = vector.extract_strided_slice %459 {offsets = [32, 0], sizes = [32, 128], strides = [1, 1]} : vector<64x128xf32> to vector<32x128xf32>
    %464 = arith.addf %423, %463 : vector<32x128xf32>
    %c2_i32_215 = arith.constant 2 : i32
    %465 = tpu.dynamic_rotate %462 by %c2_i32_215 dim 1 : vector<32x128xf32>, i32 -> vector<32x128xf32>
    %466 = vector.broadcast %17 : vector<1x128xf32> to vector<32x128xf32>
    %467 = arith.mulf %465, %466 : vector<32x128xf32>
    %c1_i32_216 = arith.constant 1 : i32
    %468 = tpu.dynamic_rotate %462 by %c1_i32_216 dim 1 : vector<32x128xf32>, i32 -> vector<32x128xf32>
    %469 = vector.broadcast %28 : vector<1x128xf32> to vector<32x128xf32>
    %470 = arith.mulf %468, %469 : vector<32x128xf32>
    %c127_i32_217 = arith.constant 127 : i32
    %471 = tpu.dynamic_rotate %462 by %c127_i32_217 dim 1 : vector<32x128xf32>, i32 -> vector<32x128xf32>
    %472 = vector.broadcast %39 : vector<1x128xf32> to vector<32x128xf32>
    %473 = arith.mulf %471, %472 : vector<32x128xf32>
    %c126_i32_218 = arith.constant 126 : i32
    %474 = tpu.dynamic_rotate %462 by %c126_i32_218 dim 1 : vector<32x128xf32>, i32 -> vector<32x128xf32>
    %475 = vector.broadcast %50 : vector<1x128xf32> to vector<32x128xf32>
    %476 = arith.mulf %474, %475 : vector<32x128xf32>
    %477 = tpu.concatenate %467, %470, %462, %473, %476 in 0 : vector<32x128xf32>, vector<32x128xf32>, vector<32x128xf32>, vector<32x128xf32>, vector<32x128xf32> -> vector<160x128xf32>
    %c9 = arith.constant 9 : index
    %c0_219 = arith.constant 0 : index
    %c0_220 = arith.constant 0 : index
    %478 = vector.load %arg5[%c9, %c0_219, %c0_220] : memref<16x64x160xf32, #tpu.memory_space<vmem>>, vector<1x64x160xf32>
    %479 = vector.shape_cast %478 : vector<1x64x160xf32> to vector<64x160xf32>
    %cst_221 = arith.constant dense<0.000000e+00> : vector<64x128xf32>
    %480 = tpu.matmul %479, %477, %cst_221 {dimension_numbers = #tpu.dot_dimension_numbers<[1], [0], [0], [1], [0, 0, 1, 1], [], []>} : vector<64x160xf32>, vector<160x128xf32>, vector<64x128xf32> -> vector<64x128xf32>
    %c9_222 = arith.constant 9 : index
    %c0_223 = arith.constant 0 : index
    %c0_224 = arith.constant 0 : index
    %481 = vector.load %arg6[%c9_222, %c0_223, %c0_224] : memref<16x64x1xf32, #tpu.memory_space<vmem>>, vector<1x64x1xf32>
    %482 = vector.shape_cast %481 : vector<1x64x1xf32> to vector<64x1xf32>
    %483 = vector.broadcast %482 : vector<64x1xf32> to vector<64x128xf32>
    %484 = arith.addf %480, %483 : vector<64x128xf32>
    %485 = vector.extract_strided_slice %484 {offsets = [0, 0], sizes = [32, 128], strides = [1, 1]} : vector<64x128xf32> to vector<32x128xf32>
    %486 = math.tanh %485 : vector<32x128xf32>
    %487 = vector.extract_strided_slice %484 {offsets = [32, 0], sizes = [32, 128], strides = [1, 1]} : vector<64x128xf32> to vector<32x128xf32>
    %488 = arith.negf %487 : vector<32x128xf32>
    %489 = math.exp %488 : vector<32x128xf32>
    %cst_225 = arith.constant 1.000000e+00 : f32
    %490 = vector.broadcast %cst_225 : f32 to vector<32x128xf32>
    %491 = arith.addf %490, %489 : vector<32x128xf32>
    %492 = arith.divf %490, %491 : vector<32x128xf32>
    %493 = arith.mulf %486, %492 : vector<32x128xf32>
    %c9_226 = arith.constant 9 : index
    %c0_227 = arith.constant 0 : index
    %c0_228 = arith.constant 0 : index
    %494 = vector.load %arg7[%c9_226, %c0_227, %c0_228] : memref<16x64x32xf32, #tpu.memory_space<vmem>>, vector<1x64x32xf32>
    %495 = vector.shape_cast %494 : vector<1x64x32xf32> to vector<64x32xf32>
    %cst_229 = arith.constant dense<0.000000e+00> : vector<64x128xf32>
    %496 = tpu.matmul %495, %493, %cst_229 {dimension_numbers = #tpu.dot_dimension_numbers<[1], [0], [0], [1], [0, 0, 1, 1], [], []>} : vector<64x32xf32>, vector<32x128xf32>, vector<64x128xf32> -> vector<64x128xf32>
    %c9_230 = arith.constant 9 : index
    %c0_231 = arith.constant 0 : index
    %c0_232 = arith.constant 0 : index
    %497 = vector.load %arg8[%c9_230, %c0_231, %c0_232] : memref<16x64x1xf32, #tpu.memory_space<vmem>>, vector<1x64x1xf32>
    %498 = vector.shape_cast %497 : vector<1x64x1xf32> to vector<64x1xf32>
    %499 = vector.broadcast %498 : vector<64x1xf32> to vector<64x128xf32>
    %500 = arith.addf %496, %499 : vector<64x128xf32>
    %501 = vector.extract_strided_slice %500 {offsets = [0, 0], sizes = [32, 128], strides = [1, 1]} : vector<64x128xf32> to vector<32x128xf32>
    %502 = arith.addf %462, %501 : vector<32x128xf32>
    %503 = arith.mulf %502, %3 : vector<32x128xf32>
    %504 = vector.extract_strided_slice %500 {offsets = [32, 0], sizes = [32, 128], strides = [1, 1]} : vector<64x128xf32> to vector<32x128xf32>
    %505 = arith.addf %464, %504 : vector<32x128xf32>
    %c2_i32_233 = arith.constant 2 : i32
    %506 = tpu.dynamic_rotate %503 by %c2_i32_233 dim 1 : vector<32x128xf32>, i32 -> vector<32x128xf32>
    %507 = vector.broadcast %17 : vector<1x128xf32> to vector<32x128xf32>
    %508 = arith.mulf %506, %507 : vector<32x128xf32>
    %c1_i32_234 = arith.constant 1 : i32
    %509 = tpu.dynamic_rotate %503 by %c1_i32_234 dim 1 : vector<32x128xf32>, i32 -> vector<32x128xf32>
    %510 = vector.broadcast %28 : vector<1x128xf32> to vector<32x128xf32>
    %511 = arith.mulf %509, %510 : vector<32x128xf32>
    %c127_i32_235 = arith.constant 127 : i32
    %512 = tpu.dynamic_rotate %503 by %c127_i32_235 dim 1 : vector<32x128xf32>, i32 -> vector<32x128xf32>
    %513 = vector.broadcast %39 : vector<1x128xf32> to vector<32x128xf32>
    %514 = arith.mulf %512, %513 : vector<32x128xf32>
    %c126_i32_236 = arith.constant 126 : i32
    %515 = tpu.dynamic_rotate %503 by %c126_i32_236 dim 1 : vector<32x128xf32>, i32 -> vector<32x128xf32>
    %516 = vector.broadcast %50 : vector<1x128xf32> to vector<32x128xf32>
    %517 = arith.mulf %515, %516 : vector<32x128xf32>
    %518 = tpu.concatenate %508, %511, %503, %514, %517 in 0 : vector<32x128xf32>, vector<32x128xf32>, vector<32x128xf32>, vector<32x128xf32>, vector<32x128xf32> -> vector<160x128xf32>
    %c10 = arith.constant 10 : index
    %c0_237 = arith.constant 0 : index
    %c0_238 = arith.constant 0 : index
    %519 = vector.load %arg5[%c10, %c0_237, %c0_238] : memref<16x64x160xf32, #tpu.memory_space<vmem>>, vector<1x64x160xf32>
    %520 = vector.shape_cast %519 : vector<1x64x160xf32> to vector<64x160xf32>
    %cst_239 = arith.constant dense<0.000000e+00> : vector<64x128xf32>
    %521 = tpu.matmul %520, %518, %cst_239 {dimension_numbers = #tpu.dot_dimension_numbers<[1], [0], [0], [1], [0, 0, 1, 1], [], []>} : vector<64x160xf32>, vector<160x128xf32>, vector<64x128xf32> -> vector<64x128xf32>
    %c10_240 = arith.constant 10 : index
    %c0_241 = arith.constant 0 : index
    %c0_242 = arith.constant 0 : index
    %522 = vector.load %arg6[%c10_240, %c0_241, %c0_242] : memref<16x64x1xf32, #tpu.memory_space<vmem>>, vector<1x64x1xf32>
    %523 = vector.shape_cast %522 : vector<1x64x1xf32> to vector<64x1xf32>
    %524 = vector.broadcast %523 : vector<64x1xf32> to vector<64x128xf32>
    %525 = arith.addf %521, %524 : vector<64x128xf32>
    %526 = vector.extract_strided_slice %525 {offsets = [0, 0], sizes = [32, 128], strides = [1, 1]} : vector<64x128xf32> to vector<32x128xf32>
    %527 = math.tanh %526 : vector<32x128xf32>
    %528 = vector.extract_strided_slice %525 {offsets = [32, 0], sizes = [32, 128], strides = [1, 1]} : vector<64x128xf32> to vector<32x128xf32>
    %529 = arith.negf %528 : vector<32x128xf32>
    %530 = math.exp %529 : vector<32x128xf32>
    %cst_243 = arith.constant 1.000000e+00 : f32
    %531 = vector.broadcast %cst_243 : f32 to vector<32x128xf32>
    %532 = arith.addf %531, %530 : vector<32x128xf32>
    %533 = arith.divf %531, %532 : vector<32x128xf32>
    %534 = arith.mulf %527, %533 : vector<32x128xf32>
    %c10_244 = arith.constant 10 : index
    %c0_245 = arith.constant 0 : index
    %c0_246 = arith.constant 0 : index
    %535 = vector.load %arg7[%c10_244, %c0_245, %c0_246] : memref<16x64x32xf32, #tpu.memory_space<vmem>>, vector<1x64x32xf32>
    %536 = vector.shape_cast %535 : vector<1x64x32xf32> to vector<64x32xf32>
    %cst_247 = arith.constant dense<0.000000e+00> : vector<64x128xf32>
    %537 = tpu.matmul %536, %534, %cst_247 {dimension_numbers = #tpu.dot_dimension_numbers<[1], [0], [0], [1], [0, 0, 1, 1], [], []>} : vector<64x32xf32>, vector<32x128xf32>, vector<64x128xf32> -> vector<64x128xf32>
    %c10_248 = arith.constant 10 : index
    %c0_249 = arith.constant 0 : index
    %c0_250 = arith.constant 0 : index
    %538 = vector.load %arg8[%c10_248, %c0_249, %c0_250] : memref<16x64x1xf32, #tpu.memory_space<vmem>>, vector<1x64x1xf32>
    %539 = vector.shape_cast %538 : vector<1x64x1xf32> to vector<64x1xf32>
    %540 = vector.broadcast %539 : vector<64x1xf32> to vector<64x128xf32>
    %541 = arith.addf %537, %540 : vector<64x128xf32>
    %542 = vector.extract_strided_slice %541 {offsets = [0, 0], sizes = [32, 128], strides = [1, 1]} : vector<64x128xf32> to vector<32x128xf32>
    %543 = arith.addf %503, %542 : vector<32x128xf32>
    %544 = arith.mulf %543, %3 : vector<32x128xf32>
    %545 = vector.extract_strided_slice %541 {offsets = [32, 0], sizes = [32, 128], strides = [1, 1]} : vector<64x128xf32> to vector<32x128xf32>
    %546 = arith.addf %505, %545 : vector<32x128xf32>
    %c2_i32_251 = arith.constant 2 : i32
    %547 = tpu.dynamic_rotate %544 by %c2_i32_251 dim 1 : vector<32x128xf32>, i32 -> vector<32x128xf32>
    %548 = vector.broadcast %17 : vector<1x128xf32> to vector<32x128xf32>
    %549 = arith.mulf %547, %548 : vector<32x128xf32>
    %c1_i32_252 = arith.constant 1 : i32
    %550 = tpu.dynamic_rotate %544 by %c1_i32_252 dim 1 : vector<32x128xf32>, i32 -> vector<32x128xf32>
    %551 = vector.broadcast %28 : vector<1x128xf32> to vector<32x128xf32>
    %552 = arith.mulf %550, %551 : vector<32x128xf32>
    %c127_i32_253 = arith.constant 127 : i32
    %553 = tpu.dynamic_rotate %544 by %c127_i32_253 dim 1 : vector<32x128xf32>, i32 -> vector<32x128xf32>
    %554 = vector.broadcast %39 : vector<1x128xf32> to vector<32x128xf32>
    %555 = arith.mulf %553, %554 : vector<32x128xf32>
    %c126_i32_254 = arith.constant 126 : i32
    %556 = tpu.dynamic_rotate %544 by %c126_i32_254 dim 1 : vector<32x128xf32>, i32 -> vector<32x128xf32>
    %557 = vector.broadcast %50 : vector<1x128xf32> to vector<32x128xf32>
    %558 = arith.mulf %556, %557 : vector<32x128xf32>
    %559 = tpu.concatenate %549, %552, %544, %555, %558 in 0 : vector<32x128xf32>, vector<32x128xf32>, vector<32x128xf32>, vector<32x128xf32>, vector<32x128xf32> -> vector<160x128xf32>
    %c11 = arith.constant 11 : index
    %c0_255 = arith.constant 0 : index
    %c0_256 = arith.constant 0 : index
    %560 = vector.load %arg5[%c11, %c0_255, %c0_256] : memref<16x64x160xf32, #tpu.memory_space<vmem>>, vector<1x64x160xf32>
    %561 = vector.shape_cast %560 : vector<1x64x160xf32> to vector<64x160xf32>
    %cst_257 = arith.constant dense<0.000000e+00> : vector<64x128xf32>
    %562 = tpu.matmul %561, %559, %cst_257 {dimension_numbers = #tpu.dot_dimension_numbers<[1], [0], [0], [1], [0, 0, 1, 1], [], []>} : vector<64x160xf32>, vector<160x128xf32>, vector<64x128xf32> -> vector<64x128xf32>
    %c11_258 = arith.constant 11 : index
    %c0_259 = arith.constant 0 : index
    %c0_260 = arith.constant 0 : index
    %563 = vector.load %arg6[%c11_258, %c0_259, %c0_260] : memref<16x64x1xf32, #tpu.memory_space<vmem>>, vector<1x64x1xf32>
    %564 = vector.shape_cast %563 : vector<1x64x1xf32> to vector<64x1xf32>
    %565 = vector.broadcast %564 : vector<64x1xf32> to vector<64x128xf32>
    %566 = arith.addf %562, %565 : vector<64x128xf32>
    %567 = vector.extract_strided_slice %566 {offsets = [0, 0], sizes = [32, 128], strides = [1, 1]} : vector<64x128xf32> to vector<32x128xf32>
    %568 = math.tanh %567 : vector<32x128xf32>
    %569 = vector.extract_strided_slice %566 {offsets = [32, 0], sizes = [32, 128], strides = [1, 1]} : vector<64x128xf32> to vector<32x128xf32>
    %570 = arith.negf %569 : vector<32x128xf32>
    %571 = math.exp %570 : vector<32x128xf32>
    %cst_261 = arith.constant 1.000000e+00 : f32
    %572 = vector.broadcast %cst_261 : f32 to vector<32x128xf32>
    %573 = arith.addf %572, %571 : vector<32x128xf32>
    %574 = arith.divf %572, %573 : vector<32x128xf32>
    %575 = arith.mulf %568, %574 : vector<32x128xf32>
    %c11_262 = arith.constant 11 : index
    %c32_263 = arith.constant 32 : index
    %c0_264 = arith.constant 0 : index
    %576 = vector.load %arg7[%c11_262, %c32_263, %c0_264] : memref<16x64x32xf32, #tpu.memory_space<vmem>>, vector<1x32x32xf32>
    %577 = vector.shape_cast %576 : vector<1x32x32xf32> to vector<32x32xf32>
    %cst_265 = arith.constant dense<0.000000e+00> : vector<32x128xf32>
    %578 = tpu.matmul %577, %575, %cst_265 {dimension_numbers = #tpu.dot_dimension_numbers<[1], [0], [0], [1], [0, 0, 1, 1], [], []>} : vector<32x32xf32>, vector<32x128xf32>, vector<32x128xf32> -> vector<32x128xf32>
    %c11_266 = arith.constant 11 : index
    %c32_267 = arith.constant 32 : index
    %c0_268 = arith.constant 0 : index
    %579 = vector.load %arg8[%c11_266, %c32_267, %c0_268] : memref<16x64x1xf32, #tpu.memory_space<vmem>>, vector<1x32x1xf32>
    %580 = vector.shape_cast %579 : vector<1x32x1xf32> to vector<32x1xf32>
    %581 = vector.broadcast %580 : vector<32x1xf32> to vector<32x128xf32>
    %582 = arith.addf %578, %581 : vector<32x128xf32>
    %583 = arith.addf %546, %582 : vector<32x128xf32>
    %584 = arith.mulf %583, %3 : vector<32x128xf32>
    %c2_269 = arith.constant 2 : index
    %c0_270 = arith.constant 0 : index
    %c0_271 = arith.constant 0 : index
    %585 = vector.load %arg9[%c2_269, %c0_270, %c0_271] : memref<4x8x32xf32, #tpu.memory_space<vmem>>, vector<1x8x32xf32>
    %586 = vector.shape_cast %585 : vector<1x8x32xf32> to vector<8x32xf32>
    %cst_272 = arith.constant dense<0.000000e+00> : vector<8x128xf32>
    %587 = tpu.matmul %586, %584, %cst_272 {dimension_numbers = #tpu.dot_dimension_numbers<[1], [0], [0], [1], [0, 0, 1, 1], [], []>} : vector<8x32xf32>, vector<32x128xf32>, vector<8x128xf32> -> vector<8x128xf32>
    %c2_273 = arith.constant 2 : index
    %c0_274 = arith.constant 0 : index
    %c0_275 = arith.constant 0 : index
    %588 = vector.load %arg10[%c2_273, %c0_274, %c0_275] : memref<4x8x1xf32, #tpu.memory_space<vmem>>, vector<1x8x1xf32>
    %589 = vector.shape_cast %588 : vector<1x8x1xf32> to vector<8x1xf32>
    %590 = vector.broadcast %589 : vector<8x1xf32> to vector<8x128xf32>
    %591 = arith.addf %587, %590 : vector<8x128xf32>
    %592 = arith.mulf %591, %5 : vector<8x128xf32>
    %593 = arith.mulf %234, %5 : vector<8x128xf32>
    %594 = arith.addf %592, %593 : vector<8x128xf32>
    %c3_276 = arith.constant 3 : index
    %c0_277 = arith.constant 0 : index
    %c0_278 = arith.constant 0 : index
    %595 = vector.load %arg3[%c3_276, %c0_277, %c0_278] : memref<4x32x8xf32, #tpu.memory_space<vmem>>, vector<1x32x8xf32>
    %596 = vector.shape_cast %595 : vector<1x32x8xf32> to vector<32x8xf32>
    %cst_279 = arith.constant dense<0.000000e+00> : vector<32x128xf32>
    %597 = tpu.matmul %596, %594, %cst_279 {dimension_numbers = #tpu.dot_dimension_numbers<[1], [0], [0], [1], [0, 0, 1, 1], [], []>} : vector<32x8xf32>, vector<8x128xf32>, vector<32x128xf32> -> vector<32x128xf32>
    %c3_280 = arith.constant 3 : index
    %c0_281 = arith.constant 0 : index
    %c0_282 = arith.constant 0 : index
    %598 = vector.load %arg4[%c3_280, %c0_281, %c0_282] : memref<4x32x1xf32, #tpu.memory_space<vmem>>, vector<1x32x1xf32>
    %599 = vector.shape_cast %598 : vector<1x32x1xf32> to vector<32x1xf32>
    %600 = vector.broadcast %599 : vector<32x1xf32> to vector<32x128xf32>
    %601 = arith.addf %597, %600 : vector<32x128xf32>
    %602 = arith.mulf %601, %3 : vector<32x128xf32>
    %cst_283 = arith.constant 0.000000e+00 : f32
    %603 = vector.broadcast %cst_283 : f32 to vector<32x128xf32>
    %c2_i32_284 = arith.constant 2 : i32
    %604 = tpu.dynamic_rotate %602 by %c2_i32_284 dim 1 : vector<32x128xf32>, i32 -> vector<32x128xf32>
    %605 = vector.broadcast %17 : vector<1x128xf32> to vector<32x128xf32>
    %606 = arith.mulf %604, %605 : vector<32x128xf32>
    %c1_i32_285 = arith.constant 1 : i32
    %607 = tpu.dynamic_rotate %602 by %c1_i32_285 dim 1 : vector<32x128xf32>, i32 -> vector<32x128xf32>
    %608 = vector.broadcast %28 : vector<1x128xf32> to vector<32x128xf32>
    %609 = arith.mulf %607, %608 : vector<32x128xf32>
    %c127_i32_286 = arith.constant 127 : i32
    %610 = tpu.dynamic_rotate %602 by %c127_i32_286 dim 1 : vector<32x128xf32>, i32 -> vector<32x128xf32>
    %611 = vector.broadcast %39 : vector<1x128xf32> to vector<32x128xf32>
    %612 = arith.mulf %610, %611 : vector<32x128xf32>
    %c126_i32_287 = arith.constant 126 : i32
    %613 = tpu.dynamic_rotate %602 by %c126_i32_287 dim 1 : vector<32x128xf32>, i32 -> vector<32x128xf32>
    %614 = vector.broadcast %50 : vector<1x128xf32> to vector<32x128xf32>
    %615 = arith.mulf %613, %614 : vector<32x128xf32>
    %616 = tpu.concatenate %606, %609, %602, %612, %615 in 0 : vector<32x128xf32>, vector<32x128xf32>, vector<32x128xf32>, vector<32x128xf32>, vector<32x128xf32> -> vector<160x128xf32>
    %c12 = arith.constant 12 : index
    %c0_288 = arith.constant 0 : index
    %c0_289 = arith.constant 0 : index
    %617 = vector.load %arg5[%c12, %c0_288, %c0_289] : memref<16x64x160xf32, #tpu.memory_space<vmem>>, vector<1x64x160xf32>
    %618 = vector.shape_cast %617 : vector<1x64x160xf32> to vector<64x160xf32>
    %cst_290 = arith.constant dense<0.000000e+00> : vector<64x128xf32>
    %619 = tpu.matmul %618, %616, %cst_290 {dimension_numbers = #tpu.dot_dimension_numbers<[1], [0], [0], [1], [0, 0, 1, 1], [], []>} : vector<64x160xf32>, vector<160x128xf32>, vector<64x128xf32> -> vector<64x128xf32>
    %c12_291 = arith.constant 12 : index
    %c0_292 = arith.constant 0 : index
    %c0_293 = arith.constant 0 : index
    %620 = vector.load %arg6[%c12_291, %c0_292, %c0_293] : memref<16x64x1xf32, #tpu.memory_space<vmem>>, vector<1x64x1xf32>
    %621 = vector.shape_cast %620 : vector<1x64x1xf32> to vector<64x1xf32>
    %622 = vector.broadcast %621 : vector<64x1xf32> to vector<64x128xf32>
    %623 = arith.addf %619, %622 : vector<64x128xf32>
    %624 = vector.extract_strided_slice %623 {offsets = [0, 0], sizes = [32, 128], strides = [1, 1]} : vector<64x128xf32> to vector<32x128xf32>
    %625 = math.tanh %624 : vector<32x128xf32>
    %626 = vector.extract_strided_slice %623 {offsets = [32, 0], sizes = [32, 128], strides = [1, 1]} : vector<64x128xf32> to vector<32x128xf32>
    %627 = arith.negf %626 : vector<32x128xf32>
    %628 = math.exp %627 : vector<32x128xf32>
    %cst_294 = arith.constant 1.000000e+00 : f32
    %629 = vector.broadcast %cst_294 : f32 to vector<32x128xf32>
    %630 = arith.addf %629, %628 : vector<32x128xf32>
    %631 = arith.divf %629, %630 : vector<32x128xf32>
    %632 = arith.mulf %625, %631 : vector<32x128xf32>
    %c12_295 = arith.constant 12 : index
    %c0_296 = arith.constant 0 : index
    %c0_297 = arith.constant 0 : index
    %633 = vector.load %arg7[%c12_295, %c0_296, %c0_297] : memref<16x64x32xf32, #tpu.memory_space<vmem>>, vector<1x64x32xf32>
    %634 = vector.shape_cast %633 : vector<1x64x32xf32> to vector<64x32xf32>
    %cst_298 = arith.constant dense<0.000000e+00> : vector<64x128xf32>
    %635 = tpu.matmul %634, %632, %cst_298 {dimension_numbers = #tpu.dot_dimension_numbers<[1], [0], [0], [1], [0, 0, 1, 1], [], []>} : vector<64x32xf32>, vector<32x128xf32>, vector<64x128xf32> -> vector<64x128xf32>
    %c12_299 = arith.constant 12 : index
    %c0_300 = arith.constant 0 : index
    %c0_301 = arith.constant 0 : index
    %636 = vector.load %arg8[%c12_299, %c0_300, %c0_301] : memref<16x64x1xf32, #tpu.memory_space<vmem>>, vector<1x64x1xf32>
    %637 = vector.shape_cast %636 : vector<1x64x1xf32> to vector<64x1xf32>
    %638 = vector.broadcast %637 : vector<64x1xf32> to vector<64x128xf32>
    %639 = arith.addf %635, %638 : vector<64x128xf32>
    %640 = vector.extract_strided_slice %639 {offsets = [0, 0], sizes = [32, 128], strides = [1, 1]} : vector<64x128xf32> to vector<32x128xf32>
    %641 = arith.addf %602, %640 : vector<32x128xf32>
    %642 = arith.mulf %641, %3 : vector<32x128xf32>
    %643 = vector.extract_strided_slice %639 {offsets = [32, 0], sizes = [32, 128], strides = [1, 1]} : vector<64x128xf32> to vector<32x128xf32>
    %644 = arith.addf %603, %643 : vector<32x128xf32>
    %c2_i32_302 = arith.constant 2 : i32
    %645 = tpu.dynamic_rotate %642 by %c2_i32_302 dim 1 : vector<32x128xf32>, i32 -> vector<32x128xf32>
    %646 = vector.broadcast %17 : vector<1x128xf32> to vector<32x128xf32>
    %647 = arith.mulf %645, %646 : vector<32x128xf32>
    %c1_i32_303 = arith.constant 1 : i32
    %648 = tpu.dynamic_rotate %642 by %c1_i32_303 dim 1 : vector<32x128xf32>, i32 -> vector<32x128xf32>
    %649 = vector.broadcast %28 : vector<1x128xf32> to vector<32x128xf32>
    %650 = arith.mulf %648, %649 : vector<32x128xf32>
    %c127_i32_304 = arith.constant 127 : i32
    %651 = tpu.dynamic_rotate %642 by %c127_i32_304 dim 1 : vector<32x128xf32>, i32 -> vector<32x128xf32>
    %652 = vector.broadcast %39 : vector<1x128xf32> to vector<32x128xf32>
    %653 = arith.mulf %651, %652 : vector<32x128xf32>
    %c126_i32_305 = arith.constant 126 : i32
    %654 = tpu.dynamic_rotate %642 by %c126_i32_305 dim 1 : vector<32x128xf32>, i32 -> vector<32x128xf32>
    %655 = vector.broadcast %50 : vector<1x128xf32> to vector<32x128xf32>
    %656 = arith.mulf %654, %655 : vector<32x128xf32>
    %657 = tpu.concatenate %647, %650, %642, %653, %656 in 0 : vector<32x128xf32>, vector<32x128xf32>, vector<32x128xf32>, vector<32x128xf32>, vector<32x128xf32> -> vector<160x128xf32>
    %c13 = arith.constant 13 : index
    %c0_306 = arith.constant 0 : index
    %c0_307 = arith.constant 0 : index
    %658 = vector.load %arg5[%c13, %c0_306, %c0_307] : memref<16x64x160xf32, #tpu.memory_space<vmem>>, vector<1x64x160xf32>
    %659 = vector.shape_cast %658 : vector<1x64x160xf32> to vector<64x160xf32>
    %cst_308 = arith.constant dense<0.000000e+00> : vector<64x128xf32>
    %660 = tpu.matmul %659, %657, %cst_308 {dimension_numbers = #tpu.dot_dimension_numbers<[1], [0], [0], [1], [0, 0, 1, 1], [], []>} : vector<64x160xf32>, vector<160x128xf32>, vector<64x128xf32> -> vector<64x128xf32>
    %c13_309 = arith.constant 13 : index
    %c0_310 = arith.constant 0 : index
    %c0_311 = arith.constant 0 : index
    %661 = vector.load %arg6[%c13_309, %c0_310, %c0_311] : memref<16x64x1xf32, #tpu.memory_space<vmem>>, vector<1x64x1xf32>
    %662 = vector.shape_cast %661 : vector<1x64x1xf32> to vector<64x1xf32>
    %663 = vector.broadcast %662 : vector<64x1xf32> to vector<64x128xf32>
    %664 = arith.addf %660, %663 : vector<64x128xf32>
    %665 = vector.extract_strided_slice %664 {offsets = [0, 0], sizes = [32, 128], strides = [1, 1]} : vector<64x128xf32> to vector<32x128xf32>
    %666 = math.tanh %665 : vector<32x128xf32>
    %667 = vector.extract_strided_slice %664 {offsets = [32, 0], sizes = [32, 128], strides = [1, 1]} : vector<64x128xf32> to vector<32x128xf32>
    %668 = arith.negf %667 : vector<32x128xf32>
    %669 = math.exp %668 : vector<32x128xf32>
    %cst_312 = arith.constant 1.000000e+00 : f32
    %670 = vector.broadcast %cst_312 : f32 to vector<32x128xf32>
    %671 = arith.addf %670, %669 : vector<32x128xf32>
    %672 = arith.divf %670, %671 : vector<32x128xf32>
    %673 = arith.mulf %666, %672 : vector<32x128xf32>
    %c13_313 = arith.constant 13 : index
    %c0_314 = arith.constant 0 : index
    %c0_315 = arith.constant 0 : index
    %674 = vector.load %arg7[%c13_313, %c0_314, %c0_315] : memref<16x64x32xf32, #tpu.memory_space<vmem>>, vector<1x64x32xf32>
    %675 = vector.shape_cast %674 : vector<1x64x32xf32> to vector<64x32xf32>
    %cst_316 = arith.constant dense<0.000000e+00> : vector<64x128xf32>
    %676 = tpu.matmul %675, %673, %cst_316 {dimension_numbers = #tpu.dot_dimension_numbers<[1], [0], [0], [1], [0, 0, 1, 1], [], []>} : vector<64x32xf32>, vector<32x128xf32>, vector<64x128xf32> -> vector<64x128xf32>
    %c13_317 = arith.constant 13 : index
    %c0_318 = arith.constant 0 : index
    %c0_319 = arith.constant 0 : index
    %677 = vector.load %arg8[%c13_317, %c0_318, %c0_319] : memref<16x64x1xf32, #tpu.memory_space<vmem>>, vector<1x64x1xf32>
    %678 = vector.shape_cast %677 : vector<1x64x1xf32> to vector<64x1xf32>
    %679 = vector.broadcast %678 : vector<64x1xf32> to vector<64x128xf32>
    %680 = arith.addf %676, %679 : vector<64x128xf32>
    %681 = vector.extract_strided_slice %680 {offsets = [0, 0], sizes = [32, 128], strides = [1, 1]} : vector<64x128xf32> to vector<32x128xf32>
    %682 = arith.addf %642, %681 : vector<32x128xf32>
    %683 = arith.mulf %682, %3 : vector<32x128xf32>
    %684 = vector.extract_strided_slice %680 {offsets = [32, 0], sizes = [32, 128], strides = [1, 1]} : vector<64x128xf32> to vector<32x128xf32>
    %685 = arith.addf %644, %684 : vector<32x128xf32>
    %c2_i32_320 = arith.constant 2 : i32
    %686 = tpu.dynamic_rotate %683 by %c2_i32_320 dim 1 : vector<32x128xf32>, i32 -> vector<32x128xf32>
    %687 = vector.broadcast %17 : vector<1x128xf32> to vector<32x128xf32>
    %688 = arith.mulf %686, %687 : vector<32x128xf32>
    %c1_i32_321 = arith.constant 1 : i32
    %689 = tpu.dynamic_rotate %683 by %c1_i32_321 dim 1 : vector<32x128xf32>, i32 -> vector<32x128xf32>
    %690 = vector.broadcast %28 : vector<1x128xf32> to vector<32x128xf32>
    %691 = arith.mulf %689, %690 : vector<32x128xf32>
    %c127_i32_322 = arith.constant 127 : i32
    %692 = tpu.dynamic_rotate %683 by %c127_i32_322 dim 1 : vector<32x128xf32>, i32 -> vector<32x128xf32>
    %693 = vector.broadcast %39 : vector<1x128xf32> to vector<32x128xf32>
    %694 = arith.mulf %692, %693 : vector<32x128xf32>
    %c126_i32_323 = arith.constant 126 : i32
    %695 = tpu.dynamic_rotate %683 by %c126_i32_323 dim 1 : vector<32x128xf32>, i32 -> vector<32x128xf32>
    %696 = vector.broadcast %50 : vector<1x128xf32> to vector<32x128xf32>
    %697 = arith.mulf %695, %696 : vector<32x128xf32>
    %698 = tpu.concatenate %688, %691, %683, %694, %697 in 0 : vector<32x128xf32>, vector<32x128xf32>, vector<32x128xf32>, vector<32x128xf32>, vector<32x128xf32> -> vector<160x128xf32>
    %c14 = arith.constant 14 : index
    %c0_324 = arith.constant 0 : index
    %c0_325 = arith.constant 0 : index
    %699 = vector.load %arg5[%c14, %c0_324, %c0_325] : memref<16x64x160xf32, #tpu.memory_space<vmem>>, vector<1x64x160xf32>
    %700 = vector.shape_cast %699 : vector<1x64x160xf32> to vector<64x160xf32>
    %cst_326 = arith.constant dense<0.000000e+00> : vector<64x128xf32>
    %701 = tpu.matmul %700, %698, %cst_326 {dimension_numbers = #tpu.dot_dimension_numbers<[1], [0], [0], [1], [0, 0, 1, 1], [], []>} : vector<64x160xf32>, vector<160x128xf32>, vector<64x128xf32> -> vector<64x128xf32>
    %c14_327 = arith.constant 14 : index
    %c0_328 = arith.constant 0 : index
    %c0_329 = arith.constant 0 : index
    %702 = vector.load %arg6[%c14_327, %c0_328, %c0_329] : memref<16x64x1xf32, #tpu.memory_space<vmem>>, vector<1x64x1xf32>
    %703 = vector.shape_cast %702 : vector<1x64x1xf32> to vector<64x1xf32>
    %704 = vector.broadcast %703 : vector<64x1xf32> to vector<64x128xf32>
    %705 = arith.addf %701, %704 : vector<64x128xf32>
    %706 = vector.extract_strided_slice %705 {offsets = [0, 0], sizes = [32, 128], strides = [1, 1]} : vector<64x128xf32> to vector<32x128xf32>
    %707 = math.tanh %706 : vector<32x128xf32>
    %708 = vector.extract_strided_slice %705 {offsets = [32, 0], sizes = [32, 128], strides = [1, 1]} : vector<64x128xf32> to vector<32x128xf32>
    %709 = arith.negf %708 : vector<32x128xf32>
    %710 = math.exp %709 : vector<32x128xf32>
    %cst_330 = arith.constant 1.000000e+00 : f32
    %711 = vector.broadcast %cst_330 : f32 to vector<32x128xf32>
    %712 = arith.addf %711, %710 : vector<32x128xf32>
    %713 = arith.divf %711, %712 : vector<32x128xf32>
    %714 = arith.mulf %707, %713 : vector<32x128xf32>
    %c14_331 = arith.constant 14 : index
    %c0_332 = arith.constant 0 : index
    %c0_333 = arith.constant 0 : index
    %715 = vector.load %arg7[%c14_331, %c0_332, %c0_333] : memref<16x64x32xf32, #tpu.memory_space<vmem>>, vector<1x64x32xf32>
    %716 = vector.shape_cast %715 : vector<1x64x32xf32> to vector<64x32xf32>
    %cst_334 = arith.constant dense<0.000000e+00> : vector<64x128xf32>
    %717 = tpu.matmul %716, %714, %cst_334 {dimension_numbers = #tpu.dot_dimension_numbers<[1], [0], [0], [1], [0, 0, 1, 1], [], []>} : vector<64x32xf32>, vector<32x128xf32>, vector<64x128xf32> -> vector<64x128xf32>
    %c14_335 = arith.constant 14 : index
    %c0_336 = arith.constant 0 : index
    %c0_337 = arith.constant 0 : index
    %718 = vector.load %arg8[%c14_335, %c0_336, %c0_337] : memref<16x64x1xf32, #tpu.memory_space<vmem>>, vector<1x64x1xf32>
    %719 = vector.shape_cast %718 : vector<1x64x1xf32> to vector<64x1xf32>
    %720 = vector.broadcast %719 : vector<64x1xf32> to vector<64x128xf32>
    %721 = arith.addf %717, %720 : vector<64x128xf32>
    %722 = vector.extract_strided_slice %721 {offsets = [0, 0], sizes = [32, 128], strides = [1, 1]} : vector<64x128xf32> to vector<32x128xf32>
    %723 = arith.addf %683, %722 : vector<32x128xf32>
    %724 = arith.mulf %723, %3 : vector<32x128xf32>
    %725 = vector.extract_strided_slice %721 {offsets = [32, 0], sizes = [32, 128], strides = [1, 1]} : vector<64x128xf32> to vector<32x128xf32>
    %726 = arith.addf %685, %725 : vector<32x128xf32>
    %c2_i32_338 = arith.constant 2 : i32
    %727 = tpu.dynamic_rotate %724 by %c2_i32_338 dim 1 : vector<32x128xf32>, i32 -> vector<32x128xf32>
    %728 = vector.broadcast %17 : vector<1x128xf32> to vector<32x128xf32>
    %729 = arith.mulf %727, %728 : vector<32x128xf32>
    %c1_i32_339 = arith.constant 1 : i32
    %730 = tpu.dynamic_rotate %724 by %c1_i32_339 dim 1 : vector<32x128xf32>, i32 -> vector<32x128xf32>
    %731 = vector.broadcast %28 : vector<1x128xf32> to vector<32x128xf32>
    %732 = arith.mulf %730, %731 : vector<32x128xf32>
    %c127_i32_340 = arith.constant 127 : i32
    %733 = tpu.dynamic_rotate %724 by %c127_i32_340 dim 1 : vector<32x128xf32>, i32 -> vector<32x128xf32>
    %734 = vector.broadcast %39 : vector<1x128xf32> to vector<32x128xf32>
    %735 = arith.mulf %733, %734 : vector<32x128xf32>
    %c126_i32_341 = arith.constant 126 : i32
    %736 = tpu.dynamic_rotate %724 by %c126_i32_341 dim 1 : vector<32x128xf32>, i32 -> vector<32x128xf32>
    %737 = vector.broadcast %50 : vector<1x128xf32> to vector<32x128xf32>
    %738 = arith.mulf %736, %737 : vector<32x128xf32>
    %739 = tpu.concatenate %729, %732, %724, %735, %738 in 0 : vector<32x128xf32>, vector<32x128xf32>, vector<32x128xf32>, vector<32x128xf32>, vector<32x128xf32> -> vector<160x128xf32>
    %c15 = arith.constant 15 : index
    %c0_342 = arith.constant 0 : index
    %c0_343 = arith.constant 0 : index
    %740 = vector.load %arg5[%c15, %c0_342, %c0_343] : memref<16x64x160xf32, #tpu.memory_space<vmem>>, vector<1x64x160xf32>
    %741 = vector.shape_cast %740 : vector<1x64x160xf32> to vector<64x160xf32>
    %cst_344 = arith.constant dense<0.000000e+00> : vector<64x128xf32>
    %742 = tpu.matmul %741, %739, %cst_344 {dimension_numbers = #tpu.dot_dimension_numbers<[1], [0], [0], [1], [0, 0, 1, 1], [], []>} : vector<64x160xf32>, vector<160x128xf32>, vector<64x128xf32> -> vector<64x128xf32>
    %c15_345 = arith.constant 15 : index
    %c0_346 = arith.constant 0 : index
    %c0_347 = arith.constant 0 : index
    %743 = vector.load %arg6[%c15_345, %c0_346, %c0_347] : memref<16x64x1xf32, #tpu.memory_space<vmem>>, vector<1x64x1xf32>
    %744 = vector.shape_cast %743 : vector<1x64x1xf32> to vector<64x1xf32>
    %745 = vector.broadcast %744 : vector<64x1xf32> to vector<64x128xf32>
    %746 = arith.addf %742, %745 : vector<64x128xf32>
    %747 = vector.extract_strided_slice %746 {offsets = [0, 0], sizes = [32, 128], strides = [1, 1]} : vector<64x128xf32> to vector<32x128xf32>
    %748 = math.tanh %747 : vector<32x128xf32>
    %749 = vector.extract_strided_slice %746 {offsets = [32, 0], sizes = [32, 128], strides = [1, 1]} : vector<64x128xf32> to vector<32x128xf32>
    %750 = arith.negf %749 : vector<32x128xf32>
    %751 = math.exp %750 : vector<32x128xf32>
    %cst_348 = arith.constant 1.000000e+00 : f32
    %752 = vector.broadcast %cst_348 : f32 to vector<32x128xf32>
    %753 = arith.addf %752, %751 : vector<32x128xf32>
    %754 = arith.divf %752, %753 : vector<32x128xf32>
    %755 = arith.mulf %748, %754 : vector<32x128xf32>
    %c15_349 = arith.constant 15 : index
    %c32_350 = arith.constant 32 : index
    %c0_351 = arith.constant 0 : index
    %756 = vector.load %arg7[%c15_349, %c32_350, %c0_351] : memref<16x64x32xf32, #tpu.memory_space<vmem>>, vector<1x32x32xf32>
    %757 = vector.shape_cast %756 : vector<1x32x32xf32> to vector<32x32xf32>
    %cst_352 = arith.constant dense<0.000000e+00> : vector<32x128xf32>
    %758 = tpu.matmul %757, %755, %cst_352 {dimension_numbers = #tpu.dot_dimension_numbers<[1], [0], [0], [1], [0, 0, 1, 1], [], []>} : vector<32x32xf32>, vector<32x128xf32>, vector<32x128xf32> -> vector<32x128xf32>
    %c15_353 = arith.constant 15 : index
    %c32_354 = arith.constant 32 : index
    %c0_355 = arith.constant 0 : index
    %759 = vector.load %arg8[%c15_353, %c32_354, %c0_355] : memref<16x64x1xf32, #tpu.memory_space<vmem>>, vector<1x32x1xf32>
    %760 = vector.shape_cast %759 : vector<1x32x1xf32> to vector<32x1xf32>
    %761 = vector.broadcast %760 : vector<32x1xf32> to vector<32x128xf32>
    %762 = arith.addf %758, %761 : vector<32x128xf32>
    %763 = arith.addf %726, %762 : vector<32x128xf32>
    %764 = arith.mulf %763, %3 : vector<32x128xf32>
    %c3_356 = arith.constant 3 : index
    %c0_357 = arith.constant 0 : index
    %c0_358 = arith.constant 0 : index
    %765 = vector.load %arg9[%c3_356, %c0_357, %c0_358] : memref<4x8x32xf32, #tpu.memory_space<vmem>>, vector<1x8x32xf32>
    %766 = vector.shape_cast %765 : vector<1x8x32xf32> to vector<8x32xf32>
    %cst_359 = arith.constant dense<0.000000e+00> : vector<8x128xf32>
    %767 = tpu.matmul %766, %764, %cst_359 {dimension_numbers = #tpu.dot_dimension_numbers<[1], [0], [0], [1], [0, 0, 1, 1], [], []>} : vector<8x32xf32>, vector<32x128xf32>, vector<8x128xf32> -> vector<8x128xf32>
    %c3_360 = arith.constant 3 : index
    %c0_361 = arith.constant 0 : index
    %c0_362 = arith.constant 0 : index
    %768 = vector.load %arg10[%c3_360, %c0_361, %c0_362] : memref<4x8x1xf32, #tpu.memory_space<vmem>>, vector<1x8x1xf32>
    %769 = vector.shape_cast %768 : vector<1x8x1xf32> to vector<8x1xf32>
    %770 = vector.broadcast %769 : vector<8x1xf32> to vector<8x128xf32>
    %771 = arith.addf %767, %770 : vector<8x128xf32>
    %772 = arith.mulf %771, %5 : vector<8x128xf32>
    %773 = arith.mulf %414, %5 : vector<8x128xf32>
    %774 = arith.addf %772, %773 : vector<8x128xf32>
    %775 = tpu.concatenate %774, %594 in 0 : vector<8x128xf32>, vector<8x128xf32> -> vector<16x128xf32>
    %c0_363 = arith.constant 0 : index
    %c0_364 = arith.constant 0 : index
    %c0_365 = arith.constant 0 : index
    %776 = vector.load %arg11[%c0_363, %c0_364, %c0_365] : memref<1x16x128xf32, #tpu.memory_space<vmem>>, vector<1x16x128xf32>
    %777 = vector.shape_cast %776 : vector<1x16x128xf32> to vector<16x128xf32>
    %778 = vector.shape_cast %775 : vector<16x128xf32> to vector<1x16x128xf32>
    tpu.vector_store %arg11[%c0_363, %c0_364, %c0_365], %778 {strides = array<i32>} : memref<1x16x128xf32, #tpu.memory_space<vmem>>, vector<1x16x128xf32>,
    return
  }
  func.func @transform_0(%arg0: i32) -> (i32, i32, i32) {
    %c0_i32 = arith.constant 0 : i32
    %c0_i32_0 = arith.constant 0 : i32
    %c0_i32_1 = arith.constant 0 : i32
    return %arg0, %c0_i32, %c0_i32_0 : i32, i32, i32
  }
  func.func @transform_1(%arg0: i32) -> (i32, i32, i32) {
    %c0_i32 = arith.constant 0 : i32
    %c0_i32_0 = arith.constant 0 : i32
    %c0_i32_1 = arith.constant 0 : i32
    return %arg0, %c0_i32, %c0_i32_0 : i32, i32, i32
  }
  func.func @transform_2(%arg0: i32) -> (i32, i32, i32) {
    %c0_i32 = arith.constant 0 : i32
    %c0_i32_0 = arith.constant 0 : i32
    %c0_i32_1 = arith.constant 0 : i32
    %c0_i32_2 = arith.constant 0 : i32
    return %c0_i32, %c0_i32_0, %c0_i32_1 : i32, i32, i32
  }
  func.func @transform_3(%arg0: i32) -> (i32, i32, i32) {
    %c0_i32 = arith.constant 0 : i32
    %c0_i32_0 = arith.constant 0 : i32
    %c0_i32_1 = arith.constant 0 : i32
    %c0_i32_2 = arith.constant 0 : i32
    return %c0_i32, %c0_i32_0, %c0_i32_1 : i32, i32, i32
  }
  func.func @transform_4(%arg0: i32) -> (i32, i32, i32) {
    %c0_i32 = arith.constant 0 : i32
    %c0_i32_0 = arith.constant 0 : i32
    %c0_i32_1 = arith.constant 0 : i32
    %c0_i32_2 = arith.constant 0 : i32
    return %c0_i32, %c0_i32_0, %c0_i32_1 : i32, i32, i32
  }
  func.func @transform_5(%arg0: i32) -> (i32, i32, i32) {
    %c0_i32 = arith.constant 0 : i32
    %c0_i32_0 = arith.constant 0 : i32
    %c0_i32_1 = arith.constant 0 : i32
    %c0_i32_2 = arith.constant 0 : i32
    return %c0_i32, %c0_i32_0, %c0_i32_1 : i32, i32, i32
  }
  func.func @transform_6(%arg0: i32) -> (i32, i32, i32) {
    %c0_i32 = arith.constant 0 : i32
    %c0_i32_0 = arith.constant 0 : i32
    %c0_i32_1 = arith.constant 0 : i32
    %c0_i32_2 = arith.constant 0 : i32
    return %c0_i32, %c0_i32_0, %c0_i32_1 : i32, i32, i32
  }
  func.func @transform_7(%arg0: i32) -> (i32, i32, i32) {
    %c0_i32 = arith.constant 0 : i32
    %c0_i32_0 = arith.constant 0 : i32
    %c0_i32_1 = arith.constant 0 : i32
    %c0_i32_2 = arith.constant 0 : i32
    return %c0_i32, %c0_i32_0, %c0_i32_1 : i32, i32, i32
  }
  func.func @transform_8(%arg0: i32) -> (i32, i32, i32) {
    %c0_i32 = arith.constant 0 : i32
    %c0_i32_0 = arith.constant 0 : i32
    %c0_i32_1 = arith.constant 0 : i32
    %c0_i32_2 = arith.constant 0 : i32
    return %c0_i32, %c0_i32_0, %c0_i32_1 : i32, i32, i32
  }
  func.func @transform_9(%arg0: i32) -> (i32, i32, i32) {
    %c0_i32 = arith.constant 0 : i32
    %c0_i32_0 = arith.constant 0 : i32
    %c0_i32_1 = arith.constant 0 : i32
    %c0_i32_2 = arith.constant 0 : i32
    return %c0_i32, %c0_i32_0, %c0_i32_1 : i32, i32, i32
  }
  func.func @transform_10(%arg0: i32) -> (i32, i32, i32) {
    %c0_i32 = arith.constant 0 : i32
    %c0_i32_0 = arith.constant 0 : i32
    %c0_i32_1 = arith.constant 0 : i32
    return %arg0, %c0_i32, %c0_i32_0 : i32, i32, i32
  }
}

</mosaic_0001>

<llo_original>
// kernel: tpu_custom_call.1
$region0: #{tpu_custom_call.1}
  #allocation0 [shape = 'u32[]', space=smem, size = 0x4, offset = 0x4, fixed_abs, tag = 'smem constant byte address 0x4 - core index']
  #allocation1 [shape = 'u32[144,128]{1,0:T(1,128)}', space=vmem, size = 0x12000, scoped, tag = 'internal scratch']
  %s0 = inlined_call_operand.vmem [shape: f32[2,16,128], index: 0, kind: input, shape index: {}]
  %s1 = inlined_call_operand.vmem [shape: f32[2,1,128], index: 1, kind: input, shape index: {}]
  %s2 = inlined_call_operand.vmem [shape: f32[4,32,8], index: 2, kind: input, shape index: {}]
  %s3 = inlined_call_operand.vmem [shape: f32[4,32,1], index: 3, kind: input, shape index: {}]
  %s4 = inlined_call_operand.vmem [shape: f32[16,64,160], index: 4, kind: input, shape index: {}]
  %s5 = inlined_call_operand.vmem [shape: f32[16,64,1], index: 5, kind: input, shape index: {}]
  %s6 = inlined_call_operand.vmem [shape: f32[16,64,32], index: 6, kind: input, shape index: {}]
  %s7 = inlined_call_operand.vmem [shape: f32[16,64,1], index: 7, kind: input, shape index: {}]
  %s8 = inlined_call_operand.vmem [shape: f32[4,8,32], index: 8, kind: input, shape index: {}]
  %s9 = inlined_call_operand.vmem [shape: f32[4,8,1], index: 9, kind: input, shape index: {}]
  %s10 = inlined_call_operand.hbm [shape: f32[2,16,128], index: 10, kind: output, shape index: {}]
  %s11 = sld [smem:[#allocation0]]
  $region73: #{tpu_custom_call.1} parent=0
    _
  %s13 = ssub.s32 1, %s11
  %s14 = scalar_select 0, %s13, %s11
  $region1: #{tpu_custom_call.1} parent=0
    #allocation2 [shape = 'u8[16384]{0}', space=vmem, size = 0x4000, scoped, tag = 'output window, operand 0']
    #allocation3 [shape = 's32[2]{0}', space=sflag, size = 0x8, scoped, tag = 'scoped memory for tpu_custom_call.1']
    %15 = vsyncpa [#allocation3], 0
    %s16 = scalar_lea.sflag [#allocation3], 1
    %17 = vsyncpa %s16, 0
    loop: start=0, step=1, limit=4
    $region2: #{tpu_custom_call.1} parent=1 // loop_pre_header
      _
    $region3: #{tpu_custom_call.1} parent=1 // loop_header
      %s19 = sphi 0, %s23
      %p20 = scmp.ge.s32.totalorder %s19, 4
      %s29 = sphi 0, %s31
      %s32 = sphi 0, %s29
      %s33 = sphi 0, %s32
      %s49 = sphi 0, %s33
      %s55 = sphi 0, %s57
      %s58 = sphi 0, %s55
      %s59 = sphi 0, %s58
      %s75 = sphi 0, %s59
      %s79 = sphi 0, %s79
      %s81 = sphi 0, %s79
      %s82 = sphi 0, %s81
      %s96 = sphi 0, %s82
      %s100 = sphi 0, %s100
      %s102 = sphi 0, %s100
      %s103 = sphi 0, %s102
      %s117 = sphi 0, %s103
      %s121 = sphi 0, %s121
      %s123 = sphi 0, %s121
      %s124 = sphi 0, %s123
      %s138 = sphi 0, %s124
      %s142 = sphi 0, %s142
      %s144 = sphi 0, %s142
      %s145 = sphi 0, %s144
      %s159 = sphi 0, %s145
      %s163 = sphi 0, %s163
      %s165 = sphi 0, %s163
      %s166 = sphi 0, %s165
      %s180 = sphi 0, %s166
      %s184 = sphi 0, %s184
      %s186 = sphi 0, %s184
      %s187 = sphi 0, %s186
      %s201 = sphi 0, %s187
      %s205 = sphi 0, %s205
      %s207 = sphi 0, %s205
      %s208 = sphi 0, %s207
      %s222 = sphi 0, %s208
      %s226 = sphi 0, %s226
      %s228 = sphi 0, %s226
      %s229 = sphi 0, %s228
      %s243 = sphi 0, %s229
      %s249 = sphi 0, %s251
      %s252 = sphi 0, %s249
      %s253 = sphi 0, %s252
      %s269 = sphi 0, %s253
    $region4: #{tpu_custom_call.1} parent=1 // loop_header_branch
      %22 = sbr.rel (%p20) target = $region8
    $region5: #{tpu_custom_call.1} parent=1 // loop_body
      %s24 = ssub.s32 %s19, 1
      %s25 = ssub.s32 %s19, 2
      %s26 = sadd.s32 %s19, 1
      %s27 = ssub.s32 %s19, %s26
      %p28 = scmp.eq.s32.totalorder %s27, 0
      %s30 = sadd.s32 %s29, 1
      %s31 = scalar_select %p28, %s29, %s30
      %p34 = pneg %p28
      %p35 = scmp.eq.s32.totalorder %s19, 1
      %p36 = por %p34, %p35
      %p37 = scmp.ne.s32.totalorder %s29, %s32
      %p38 = scmp.eq.s32.totalorder %s19, 0
      %p39 = por %p37, %p38
      %p40 = scmp.ne.s32.totalorder %s29, %s32
      %p41 = scmp.eq.s32.totalorder %s24, 1
      %p42 = por %p40, %p41
      %p43 = scmp.ne.s32.totalorder %s32, %s33
      %p44 = scmp.eq.s32.totalorder %s24, 0
      %p45 = por %p43, %p44
      %p46 = scmp.ne.s32.totalorder %s32, %s33
      %p47 = scmp.eq.s32.totalorder %s25, 1
      %p48 = por %p46, %p47
      %p50 = scmp.ne.s32.totalorder %s33, %s49
      %p51 = scmp.eq.s32.totalorder %s25, 0
      %p52 = por %p50, %p51
      %s53 = ssub.s32 %s19, %s26
      %p54 = scmp.eq.s32.totalorder %s53, 0
      %s56 = sadd.s32 %s55, 1
      %s57 = scalar_select %p54, %s55, %s56
      %p60 = pneg %p54
      %p61 = scmp.eq.s32.totalorder %s19, 1
      %p62 = por %p60, %p61
      %p63 = scmp.ne.s32.totalorder %s55, %s58
      %p64 = scmp.eq.s32.totalorder %s19, 0
      %p65 = por %p63, %p64
      %p66 = scmp.ne.s32.totalorder %s55, %s58
      %p67 = scmp.eq.s32.totalorder %s24, 1
      %p68 = por %p66, %p67
      %p69 = scmp.ne.s32.totalorder %s58, %s59
      %p70 = scmp.eq.s32.totalorder %s24, 0
      %p71 = por %p69, %p70
      %p72 = scmp.ne.s32.totalorder %s58, %s59
      %p73 = scmp.eq.s32.totalorder %s25, 1
      %p74 = por %p72, %p73
      %p76 = scmp.ne.s32.totalorder %s59, %s75
      %p77 = scmp.eq.s32.totalorder %s25, 0
      %p78 = por %p76, %p77
      %s80 = sadd.s32 %s79, 1
      %p83 = scmp.eq.s32.totalorder %s19, 1
      %p84 = scmp.ne.s32.totalorder %s79, %s81
      %p85 = scmp.eq.s32.totalorder %s19, 0
      %p86 = por %p84, %p85
      %p87 = scmp.ne.s32.totalorder %s79, %s81
      %p88 = scmp.eq.s32.totalorder %s24, 1
      %p89 = por %p87, %p88
      %p90 = scmp.ne.s32.totalorder %s81, %s82
      %p91 = scmp.eq.s32.totalorder %s24, 0
      %p92 = por %p90, %p91
      %p93 = scmp.ne.s32.totalorder %s81, %s82
      %p94 = scmp.eq.s32.totalorder %s25, 1
      %p95 = por %p93, %p94
      %p97 = scmp.ne.s32.totalorder %s82, %s96
      %p98 = scmp.eq.s32.totalorder %s25, 0
      %p99 = por %p97, %p98
      %s101 = sadd.s32 %s100, 1
      %p104 = scmp.eq.s32.totalorder %s19, 1
      %p105 = scmp.ne.s32.totalorder %s100, %s102
      %p106 = scmp.eq.s32.totalorder %s19, 0
      %p107 = por %p105, %p106
      %p108 = scmp.ne.s32.totalorder %s100, %s102
      %p109 = scmp.eq.s32.totalorder %s24, 1
      %p110 = por %p108, %p109
      %p111 = scmp.ne.s32.totalorder %s102, %s103
      %p112 = scmp.eq.s32.totalorder %s24, 0
      %p113 = por %p111, %p112
      %p114 = scmp.ne.s32.totalorder %s102, %s103
      %p115 = scmp.eq.s32.totalorder %s25, 1
      %p116 = por %p114, %p115
      %p118 = scmp.ne.s32.totalorder %s103, %s117
      %p119 = scmp.eq.s32.totalorder %s25, 0
      %p120 = por %p118, %p119
      %s122 = sadd.s32 %s121, 1
      %p125 = scmp.eq.s32.totalorder %s19, 1
      %p126 = scmp.ne.s32.totalorder %s121, %s123
      %p127 = scmp.eq.s32.totalorder %s19, 0
      %p128 = por %p126, %p127
      %p129 = scmp.ne.s32.totalorder %s121, %s123
      %p130 = scmp.eq.s32.totalorder %s24, 1
      %p131 = por %p129, %p130
      %p132 = scmp.ne.s32.totalorder %s123, %s124
      %p133 = scmp.eq.s32.totalorder %s24, 0
      %p134 = por %p132, %p133
      %p135 = scmp.ne.s32.totalorder %s123, %s124
      %p136 = scmp.eq.s32.totalorder %s25, 1
      %p137 = por %p135, %p136
      %p139 = scmp.ne.s32.totalorder %s124, %s138
      %p140 = scmp.eq.s32.totalorder %s25, 0
      %p141 = por %p139, %p140
      %s143 = sadd.s32 %s142, 1
      %p146 = scmp.eq.s32.totalorder %s19, 1
      %p147 = scmp.ne.s32.totalorder %s142, %s144
      %p148 = scmp.eq.s32.totalorder %s19, 0
      %p149 = por %p147, %p148
      %p150 = scmp.ne.s32.totalorder %s142, %s144
      %p151 = scmp.eq.s32.totalorder %s24, 1
      %p152 = por %p150, %p151
      %p153 = scmp.ne.s32.totalorder %s144, %s145
      %p154 = scmp.eq.s32.totalorder %s24, 0
      %p155 = por %p153, %p154
      %p156 = scmp.ne.s32.totalorder %s144, %s145
      %p157 = scmp.eq.s32.totalorder %s25, 1
      %p158 = por %p156, %p157
      %p160 = scmp.ne.s32.totalorder %s145, %s159
      %p161 = scmp.eq.s32.totalorder %s25, 0
      %p162 = por %p160, %p161
      %s164 = sadd.s32 %s163, 1
      %p167 = scmp.eq.s32.totalorder %s19, 1
      %p168 = scmp.ne.s32.totalorder %s163, %s165
      %p169 = scmp.eq.s32.totalorder %s19, 0
      %p170 = por %p168, %p169
      %p171 = scmp.ne.s32.totalorder %s163, %s165
      %p172 = scmp.eq.s32.totalorder %s24, 1
      %p173 = por %p171, %p172
      %p174 = scmp.ne.s32.totalorder %s165, %s166
      %p175 = scmp.eq.s32.totalorder %s24, 0
      %p176 = por %p174, %p175
      %p177 = scmp.ne.s32.totalorder %s165, %s166
      %p178 = scmp.eq.s32.totalorder %s25, 1
      %p179 = por %p177, %p178
      %p181 = scmp.ne.s32.totalorder %s166, %s180
      %p182 = scmp.eq.s32.totalorder %s25, 0
      %p183 = por %p181, %p182
      %s185 = sadd.s32 %s184, 1
      %p188 = scmp.eq.s32.totalorder %s19, 1
      %p189 = scmp.ne.s32.totalorder %s184, %s186
      %p190 = scmp.eq.s32.totalorder %s19, 0
      %p191 = por %p189, %p190
      %p192 = scmp.ne.s32.totalorder %s184, %s186
      %p193 = scmp.eq.s32.totalorder %s24, 1
      %p194 = por %p192, %p193
      %p195 = scmp.ne.s32.totalorder %s186, %s187
      %p196 = scmp.eq.s32.totalorder %s24, 0
      %p197 = por %p195, %p196
      %p198 = scmp.ne.s32.totalorder %s186, %s187
      %p199 = scmp.eq.s32.totalorder %s25, 1
      %p200 = por %p198, %p199
      %p202 = scmp.ne.s32.totalorder %s187, %s201
      %p203 = scmp.eq.s32.totalorder %s25, 0
      %p204 = por %p202, %p203
      %s206 = sadd.s32 %s205, 1
      %p209 = scmp.eq.s32.totalorder %s19, 1
      %p210 = scmp.ne.s32.totalorder %s205, %s207
      %p211 = scmp.eq.s32.totalorder %s19, 0
      %p212 = por %p210, %p211
      %p213 = scmp.ne.s32.totalorder %s205, %s207
      %p214 = scmp.eq.s32.totalorder %s24, 1
      %p215 = por %p213, %p214
      %p216 = scmp.ne.s32.totalorder %s207, %s208
      %p217 = scmp.eq.s32.totalorder %s24, 0
      %p218 = por %p216, %p217
      %p219 = scmp.ne.s32.totalorder %s207, %s208
      %p220 = scmp.eq.s32.totalorder %s25, 1
      %p221 = por %p219, %p220
      %p223 = scmp.ne.s32.totalorder %s208, %s222
      %p224 = scmp.eq.s32.totalorder %s25, 0
      %p225 = por %p223, %p224
      %s227 = sadd.s32 %s226, 1
      %p230 = scmp.eq.s32.totalorder %s19, 1
      %p231 = scmp.ne.s32.totalorder %s226, %s228
      %p232 = scmp.eq.s32.totalorder %s19, 0
      %p233 = por %p231, %p232
      %p234 = scmp.ne.s32.totalorder %s226, %s228
      %p235 = scmp.eq.s32.totalorder %s24, 1
      %p236 = por %p234, %p235
      %p237 = scmp.ne.s32.totalorder %s228, %s229
      %p238 = scmp.eq.s32.totalorder %s24, 0
      %p239 = por %p237, %p238
      %p240 = scmp.ne.s32.totalorder %s228, %s229
      %p241 = scmp.eq.s32.totalorder %s25, 1
      %p242 = por %p240, %p241
      %p244 = scmp.ne.s32.totalorder %s229, %s243
      %p245 = scmp.eq.s32.totalorder %s25, 0
      %p246 = por %p244, %p245
      %s247 = ssub.s32 %s19, %s26
      %p248 = scmp.eq.s32.totalorder %s247, 0
      %s250 = sadd.s32 %s249, 1
      %s251 = scalar_select %p248, %s249, %s250
      %p254 = pneg %p248
      %p255 = scmp.eq.s32.totalorder %s19, 1
      %p256 = por %p254, %p255
      %p257 = scmp.ne.s32.totalorder %s249, %s252
      %p258 = scmp.eq.s32.totalorder %s19, 0
      %p259 = por %p257, %p258
      %p260 = scmp.ne.s32.totalorder %s249, %s252
      %p261 = scmp.eq.s32.totalorder %s24, 1
      %p262 = por %p260, %p261
      %p263 = scmp.ne.s32.totalorder %s252, %s253
      %p264 = scmp.eq.s32.totalorder %s24, 0
      %p265 = por %p263, %p264
      %p266 = scmp.ne.s32.totalorder %s252, %s253
      %p267 = scmp.eq.s32.totalorder %s25, 1
      %p268 = por %p266, %p267
      %p270 = scmp.ne.s32.totalorder %s253, %s269
      %p271 = scmp.eq.s32.totalorder %s25, 0
      %p272 = por %p270, %p271
      %p273 = scmp.le.s32.totalorder 1, %s19
      %p274 = scmp.lt.s32.totalorder %s19, 3
      %p275 = pnand %p273, %p274
      %p276 = pneg %p275
      // Predicated region
      $region9: #{tpu_custom_call.1} parent=5 // pred_check
        _
      $region10: #{tpu_custom_call.1} parent=5 // pred_check_branch
        %278 = sbr.rel (%p275) target = $region12
      $region11: #{tpu_custom_call.1} parent=5 // pred_region
        %s279 = ssub.s32 %s19, 1
        // Predicated region
        $region13: #{tpu_custom_call.1} parent=11 // pred_check
          %p280 = pneg %p92
        $region14: #{tpu_custom_call.1} parent=11 // pred_check_branch
          %282 = sbr.rel (%p280) target = $region16
        $region15: #{tpu_custom_call.1} parent=11 // pred_region
          _
        $region16: #{tpu_custom_call.1} parent=11 // pred_fallthru
          _
        // Predicated region
        $region17: #{tpu_custom_call.1} parent=11 // pred_check
          %p283 = pneg %p113
        $region18: #{tpu_custom_call.1} parent=11 // pred_check_branch
          %285 = sbr.rel (%p283) target = $region20
        $region19: #{tpu_custom_call.1} parent=11 // pred_region
          _
        $region20: #{tpu_custom_call.1} parent=11 // pred_fallthru
          _
        // Predicated region
        $region21: #{tpu_custom_call.1} parent=11 // pred_check
          %p286 = pneg %p134
        $region22: #{tpu_custom_call.1} parent=11 // pred_check_branch
          %288 = sbr.rel (%p286) target = $region24
        $region23: #{tpu_custom_call.1} parent=11 // pred_region
          _
        $region24: #{tpu_custom_call.1} parent=11 // pred_fallthru
          _
        // Predicated region
        $region25: #{tpu_custom_call.1} parent=11 // pred_check
          %p289 = pneg %p155
        $region26: #{tpu_custom_call.1} parent=11 // pred_check_branch
          %291 = sbr.rel (%p289) target = $region28
        $region27: #{tpu_custom_call.1} parent=11 // pred_region
          _
        $region28: #{tpu_custom_call.1} parent=11 // pred_fallthru
          _
        // Predicated region
        $region29: #{tpu_custom_call.1} parent=11 // pred_check
          %p292 = pneg %p176
        $region30: #{tpu_custom_call.1} parent=11 // pred_check_branch
          %294 = sbr.rel (%p292) target = $region32
        $region31: #{tpu_custom_call.1} parent=11 // pred_region
          _
        $region32: #{tpu_custom_call.1} parent=11 // pred_fallthru
          _
        // Predicated region
        $region33: #{tpu_custom_call.1} parent=11 // pred_check
          %p295 = pneg %p197
        $region34: #{tpu_custom_call.1} parent=11 // pred_check_branch
          %297 = sbr.rel (%p295) target = $region36
        $region35: #{tpu_custom_call.1} parent=11 // pred_region
          _
        $region36: #{tpu_custom_call.1} parent=11 // pred_fallthru
          _
        // Predicated region
        $region37: #{tpu_custom_call.1} parent=11 // pred_check
          %p298 = pneg %p218
        $region38: #{tpu_custom_call.1} parent=11 // pred_check_branch
          %300 = sbr.rel (%p298) target = $region40
        $region39: #{tpu_custom_call.1} parent=11 // pred_region
          _
        $region40: #{tpu_custom_call.1} parent=11 // pred_fallthru
          _
        // Predicated region
        $region41: #{tpu_custom_call.1} parent=11 // pred_check
          %p301 = pneg %p239
        $region42: #{tpu_custom_call.1} parent=11 // pred_check_branch
          %303 = sbr.rel (%p301) target = $region44
        $region43: #{tpu_custom_call.1} parent=11 // pred_region
          _
        $region44: #{tpu_custom_call.1} parent=11 // pred_fallthru
          _
      $region12: #{tpu_custom_call.1} parent=5 // pred_fallthru
        _
      %p304 = scmp.lt.s32.totalorder %s19, 2
      // Predicated region
      $region45: #{tpu_custom_call.1} parent=5 // pred_check
        %p305 = pneg %p304
      $region46: #{tpu_custom_call.1} parent=5 // pred_check_branch
        %307 = sbr.rel (%p305) target = $region48
      $region47: #{tpu_custom_call.1} parent=5 // pred_region
        // Predicated region
        $region49: #{tpu_custom_call.1} parent=47 // pred_check
          %p308 = pneg %p39
        $region50: #{tpu_custom_call.1} parent=47 // pred_check_branch
          %310 = sbr.rel (%p308) target = $region52
        $region51: #{tpu_custom_call.1} parent=47 // pred_region
          %p311 = scmp.lt.s32.totalorder %s19, 1
          %s312 = scalar_select %p311, %s19, 1
          %s313 = smul.addr %s312, 2
          %s314 = smul.addr %s313, 8
          %s315 = scalar_lea.vmem %s0, %s314
        $region52: #{tpu_custom_call.1} parent=47 // pred_fallthru
          _
        // Predicated region
        $region53: #{tpu_custom_call.1} parent=47 // pred_check
          %p316 = pneg %p65
        $region54: #{tpu_custom_call.1} parent=47 // pred_check_branch
          %318 = sbr.rel (%p316) target = $region56
        $region55: #{tpu_custom_call.1} parent=47 // pred_region
          %p319 = scmp.lt.s32.totalorder %s19, 1
          %s320 = scalar_select %p319, %s19, 1
          %s321 = scalar_lea.vmem %s1, %s320
        $region56: #{tpu_custom_call.1} parent=47 // pred_fallthru
          _
      $region48: #{tpu_custom_call.1} parent=5 // pred_fallthru
        _
      %p322 = scmp.le.s32.totalorder 1, %s19
      %p323 = scmp.lt.s32.totalorder %s19, 3
      %p324 = pnand %p322, %p323
      %p325 = pneg %p324
      // Predicated region
      $region57: #{tpu_custom_call.1} parent=5 // pred_check
        _
      $region58: #{tpu_custom_call.1} parent=5 // pred_check_branch
        %327 = sbr.rel (%p324) target = $region60
      $region59: #{tpu_custom_call.1} parent=5 // pred_region
        %s328 = ssub.s32 %s19, 1
        %p329 = scmp.lt.s32.totalorder %s24, 1
        %s330 = scalar_select %p329, %s24, 1
        %s331 = smul.addr %s330, 2
        %s332 = smul.addr %s331, 8
        %s333 = scalar_lea.vmem %s0, %s332
        %p334 = pneg %p45
        %p335 = pneg %p42
        %p336 = scmp.lt.s32.totalorder %s24, 1
        %s337 = scalar_select %p336, %s24, 1
        %s338 = scalar_lea.vmem %s1, %s337
        %p339 = pneg %p71
        %p340 = pneg %p68
        %p341 = pneg %p92
        %p342 = pneg %p89
        %p343 = pneg %p113
        %p344 = pneg %p110
        %p345 = pneg %p134
        %p346 = pneg %p131
        %p347 = pneg %p155
        %p348 = pneg %p152
        %p349 = pneg %p176
        %p350 = pneg %p173
        %p351 = pneg %p197
        %p352 = pneg %p194
        %p353 = pneg %p218
        %p354 = pneg %p215
        %p355 = pneg %p239
        %p356 = pneg %p236
        %p357 = pneg %p265
        %p358 = pneg %p262
        %s359 = sand.u32 %s252, 1
        %s360 = scalar_lea.sflag [#allocation3], %s359
        %s361 = sand.u32 %s252, 1
        %s362 = smul.addr %s361, 16
        %s363 = scalar_lea.vmem [#allocation2], %s362
        %p364 = scmp.lt.s32.totalorder %s24, 1
        %s365 = scalar_select %p364, %s24, 1
        %s366 = smul.addr %s365, 2
        %s367 = smul.addr %s366, 8
        %s368 = scalar_lea.vmem %s0, %s367
        %p369 = scmp.lt.s32.totalorder %s24, 1
        %s370 = scalar_select %p369, %s24, 1
        %s371 = scalar_lea.vmem %s1, %s370
        %v372 = vld [vmem:[%s371] sm:$0x1]
        %v374 = vlaneseq
        %v375 = vshrl.u32 %v374, 7
        %v376 = vsub.s32 0, %v375
        %v377 = vrot.slane %v372, %v376
        %v379 = vlaneseq
        %v380 = vand.u32 %v379, 127
        %v381 = vadd.s32 %v380, 4294967294
        %vm382 = vcmp.ge.s32.totalorder %v381, 0
        %vm383 = vcmp.lt.s32.totalorder %v381, 128
        %vm384 = vmand %vm382, %vm383
        %v385 = vsel %vm384, 1, 0
        %v386 = vcvt.s32.f32 %v385
        %v387 = vadd.s32 %v380, 4294967295
        %vm388 = vcmp.ge.s32.totalorder %v387, 0
        %vm389 = vcmp.lt.s32.totalorder %v387, 128
        %vm390 = vmand %vm388, %vm389
        %v391 = vsel %vm390, 1, 0
        %v392 = vcvt.s32.f32 %v391
        %v393 = vadd.s32 %v380, 1
        %vm394 = vcmp.ge.s32.totalorder %v393, 0
        %vm395 = vcmp.lt.s32.totalorder %v393, 128
        %vm396 = vmand %vm394, %vm395
        %v397 = vsel %vm396, 1, 0
        %v398 = vcvt.s32.f32 %v397
        %v399 = vadd.s32 %v380, 2
        %vm400 = vcmp.ge.s32.totalorder %v399, 0
        %vm401 = vcmp.lt.s32.totalorder %v399, 128
        %vm402 = vmand %vm400, %vm401
        %v403 = vsel %vm402, 1, 0
        %v404 = vcvt.s32.f32 %v403
        %v405 = vld [vmem:[%s368] sm:$0xff]
        %v406 = vld [vmem:[%s368 + $0x8] sm:$0xff]
        %v407 = vld [vmem:[%s2] sm:$0xff]
        %v408 = vld [vmem:[%s2 + $0x8] sm:$0xff]
        %v409 = vld [vmem:[%s2 + $0x10] sm:$0xff]
        %v410 = vld [vmem:[%s2 + $0x18] sm:$0xff]
        %v411 = vld [vmem:[%s3] sm:$0xff]
        %v412 = vld [vmem:[%s3 + $0x8] sm:$0xff]
        %v413 = vld [vmem:[%s3 + $0x10] sm:$0xff]
        %v414 = vld [vmem:[%s3 + $0x18] sm:$0xff]
        %416 = vset.pattern.permute.xlu0 0
        %417 = vperm.xlu0 %416, %v411
        %v418 = vpop.permute.xlu0 %417
        %421 = vset.pattern.permute.xlu0 0
        %422 = vperm.xlu0 %421, %v412
        %v423 = vpop.permute.xlu0 %422
        %426 = vset.pattern.permute.xlu0 0
        %427 = vperm.xlu0 %426, %v413
        %v428 = vpop.permute.xlu0 %427
        %431 = vset.pattern.permute.xlu0 0
        %432 = vperm.xlu0 %431, %v414
        %v433 = vpop.permute.xlu0 %432
        %vm435 = vcmask 64512
        %v437 = vsel %vm435, %v407, 0
        %v440 = vsel %vm435, %v408, 0
        %v443 = vsel %vm435, %v409, 0
        %v446 = vsel %vm435, %v410, 0
        %448 = vmatprep.subr.mxu0 0.0
        %449 = vmatpush1.msra.mxu0 %v405
        %450 = vmatprep.subr.mxu0 0.0
        %451 = vmatpush1.msra.mxu0 0.0
        %452 = vmatprep.subr.mxu0 0.0
        %453 = vmatpush1.msra.mxu0 0.0
        %454 = vmatprep.subr.mxu0 0.0
        %455 = vmatpush1.msra.mxu0 0.0
        %456 = vmatprep.subr.mxu0 0.0
        %457 = vmatpush1.msra.mxu0 0.0
        %458 = vmatprep.subr.mxu0 0.0
        %459 = vmatpush1.msra.mxu0 0.0
        %460 = vmatprep.subr.mxu0 0.0
        %461 = vmatpush1.msra.mxu0 0.0
        %462 = vmatprep.subr.mxu0 0.0
        %463 = vmatpush1.msra.mxu0 0.0
        %464 = vmatprep.subr.mxu0 0.0
        %465 = vmatpush1.msra.mxu0 0.0
        %466 = vmatprep.subr.mxu0 0.0
        %467 = vmatpush1.msra.mxu0 0.0
        %468 = vmatprep.subr.mxu0 0.0
        %469 = vmatpush1.msra.mxu0 0.0
        %470 = vmatprep.subr.mxu0 0.0
        %471 = vmatpush1.msra.mxu0 0.0
        %472 = vmatprep.subr.mxu0 0.0
        %473 = vmatpush1.msra.mxu0 0.0
        %474 = vmatprep.subr.mxu0 0.0
        %475 = vmatpush1.msra.mxu0 0.0
        %476 = vmatprep.subr.mxu0 0.0
        %477 = vmatpush1.msra.mxu0 0.0
        %478 = vmatprep.subr.mxu0 0.0
        %479 = vmatpush1.msra.mxu0 0.0
        %480 = vmatprep.subr.mxu0 0.0
        %481 = vmatpush1.msra.mxu0 0.0
        %482 = vmatprep.subr.mxu0 0.0
        %483 = vmatpush1.msra.mxu0 0.0
        %484 = vmatprep.subr.mxu0 0.0
        %485 = vmatpush1.msra.mxu0 0.0
        %486 = vmatprep.subr.mxu0 0.0
        %487 = vmatpush1.msra.mxu0 0.0
        %488 = vmatprep.subr.mxu0 0.0
        %489 = vmatpush1.msra.mxu0 0.0
        %490 = vmatprep.subr.mxu0 0.0
        %491 = vmatpush1.msra.mxu0 0.0
        %492 = vmatprep.subr.mxu0 0.0
        %493 = vmatpush1.msra.mxu0 0.0
        %494 = vmatprep.subr.mxu0 0.0
        %495 = vmatpush1.msra.mxu0 0.0
        %496 = vmatprep.subr.mxu0 0.0
        %497 = vmatpush1.msra.mxu0 0.0
        %498 = vmatprep.subr.mxu0 0.0
        %499 = vmatpush1.msra.mxu0 0.0
        %500 = vmatprep.subr.mxu0 0.0
        %501 = vmatpush1.msra.mxu0 0.0
        %502 = vmatprep.subr.mxu0 0.0
        %503 = vmatpush1.msra.mxu0 0.0
        %504 = vmatprep.subr.mxu0 0.0
        %505 = vmatpush1.msra.mxu0 0.0
        %506 = vmatprep.subr.mxu0 0.0
        %507 = vmatpush1.msra.mxu0 0.0
        %508 = vmatprep.subr.mxu0 0.0
        %509 = vmatpush1.msra.mxu0 0.0
        %510 = vmatprep.subr.mxu0 0.0
        %511 = vmatpush1.msra.mxu0 0.0
        %512 = vmatprep.mubr.f32.mxu0 0.0
        %513 = vmatmul.mubr.f32.gmra.mrb[0].mxu0 %v437
        %v514 = vpop.f32.mrb[0].mxu0
        %v515 = vadd.f32 %v418, %v514
        %v516 = vpop.f32.mrb[0].mxu0
        %517 = vmatprep.mubr.f32.mxu0 0.0
        %518 = vmatmul.mubr.f32.gmra.mrb[0].mxu0 %v440
        %v519 = vpop.f32.mrb[0].mxu0
        %v520 = vadd.f32 %v423, %v519
        %v521 = vpop.f32.mrb[0].mxu0
        %522 = vmatprep.mubr.f32.mxu0 0.0
        %523 = vmatmul.mubr.f32.gmra.mrb[0].mxu0 %v443
        %v524 = vpop.f32.mrb[0].mxu0
        %v525 = vadd.f32 %v428, %v524
        %v526 = vpop.f32.mrb[0].mxu0
        %527 = vmatprep.mubr.f32.mxu0 0.0
        %528 = vmatmul.mubr.f32.gmra.mrb[0].mxu0 %v446
        %v529 = vpop.f32.mrb[0].mxu0
        %v530 = vadd.f32 %v433, %v529
        %v531 = vpop.f32.mrb[0].mxu0
        %532 = vdwg.mxu0
        %v533 = vmul.f32 %v515, %v377
        %v534 = vmul.f32 %v520, %v377
        %v535 = vmul.f32 %v525, %v377
        %v536 = vmul.f32 %v530, %v377
        %537 = vrot.lane.b32.xlu0 %v533, 2
        %v538 = vpop.permute.xlu0 %537
        %539 = vrot.lane.b32.xlu0 %v534, 2
        %v540 = vpop.permute.xlu0 %539
        %541 = vrot.lane.b32.xlu0 %v535, 2
        %v542 = vpop.permute.xlu0 %541
        %543 = vrot.lane.b32.xlu0 %v536, 2
        %v544 = vpop.permute.xlu0 %543
        %v545 = vmul.f32 %v538, %v386
        %v546 = vmul.f32 %v540, %v386
        %v547 = vmul.f32 %v542, %v386
        %v548 = vmul.f32 %v544, %v386
        %549 = vrot.lane.b32.xlu0 %v533, 1
        %v550 = vpop.permute.xlu0 %549
        %551 = vrot.lane.b32.xlu0 %v534, 1
        %v552 = vpop.permute.xlu0 %551
        %553 = vrot.lane.b32.xlu0 %v535, 1
        %v554 = vpop.permute.xlu0 %553
        %555 = vrot.lane.b32.xlu0 %v536, 1
        %v556 = vpop.permute.xlu0 %555
        %v557 = vmul.f32 %v550, %v392
        %v558 = vmul.f32 %v552, %v392
        %v559 = vmul.f32 %v554, %v392
        %v560 = vmul.f32 %v556, %v392
        %561 = vrot.lane.b32.xlu0 %v533, 127
        %v562 = vpop.permute.xlu0 %561
        %563 = vrot.lane.b32.xlu0 %v534, 127
        %v564 = vpop.permute.xlu0 %563
        %565 = vrot.lane.b32.xlu0 %v535, 127
        %v566 = vpop.permute.xlu0 %565
        %567 = vrot.lane.b32.xlu0 %v536, 127
        %v568 = vpop.permute.xlu0 %567
        %v569 = vmul.f32 %v562, %v398
        %v570 = vmul.f32 %v564, %v398
        %v571 = vmul.f32 %v566, %v398
        %v572 = vmul.f32 %v568, %v398
        %573 = vrot.lane.b32.xlu0 %v533, 126
        %v574 = vpop.permute.xlu0 %573
        %575 = vrot.lane.b32.xlu0 %v534, 126
        %v576 = vpop.permute.xlu0 %575
        %577 = vrot.lane.b32.xlu0 %v535, 126
        %v578 = vpop.permute.xlu0 %577
        %579 = vrot.lane.b32.xlu0 %v536, 126
        %v580 = vpop.permute.xlu0 %579
        %v581 = vmul.f32 %v574, %v404
        %v582 = vmul.f32 %v576, %v404
        %v583 = vmul.f32 %v578, %v404
        %v584 = vmul.f32 %v580, %v404
        %v585 = vld [vmem:[%s4] sm:$0xff]
        %v586 = vld [vmem:[%s4 + $0x8] sm:$0xff]
        %v587 = vld [vmem:[%s4 + $0x10] sm:$0xff]
        %v588 = vld [vmem:[%s4 + $0x18] sm:$0xff]
        %v589 = vld [vmem:[%s4 + $0x20] sm:$0xff]
        %v590 = vld [vmem:[%s4 + $0x28] sm:$0xff]
        %v591 = vld [vmem:[%s4 + $0x30] sm:$0xff]
        %v592 = vld [vmem:[%s4 + $0x38] sm:$0xff]
        %v593 = vld [vmem:[%s4 + $0x40] sm:$0xff]
        %v594 = vld [vmem:[%s4 + $0x48] sm:$0xff]
        %v595 = vld [vmem:[%s4 + $0x50] sm:$0xff]
        %v596 = vld [vmem:[%s4 + $0x58] sm:$0xff]
        %v597 = vld [vmem:[%s4 + $0x60] sm:$0xff]
        %v598 = vld [vmem:[%s4 + $0x68] sm:$0xff]
        %v599 = vld [vmem:[%s4 + $0x70] sm:$0xff]
        %v600 = vld [vmem:[%s4 + $0x78] sm:$0xff]
        %v601 = vld [vmem:[%s5] sm:$0xff]
        %v602 = vld [vmem:[%s5 + $0x8] sm:$0xff]
        %v603 = vld [vmem:[%s5 + $0x10] sm:$0xff]
        %v604 = vld [vmem:[%s5 + $0x18] sm:$0xff]
        %v605 = vld [vmem:[%s5 + $0x20] sm:$0xff]
        %v606 = vld [vmem:[%s5 + $0x28] sm:$0xff]
        %v607 = vld [vmem:[%s5 + $0x30] sm:$0xff]
        %v608 = vld [vmem:[%s5 + $0x38] sm:$0xff]
        %610 = vset.pattern.permute.xlu0 0
        %611 = vperm.xlu0 %610, %v601
        %v612 = vpop.permute.xlu0 %611
        %615 = vset.pattern.permute.xlu0 0
        %616 = vperm.xlu0 %615, %v602
        %v617 = vpop.permute.xlu0 %616
        %620 = vset.pattern.permute.xlu0 0
        %621 = vperm.xlu0 %620, %v603
        %v622 = vpop.permute.xlu0 %621
        %625 = vset.pattern.permute.xlu0 0
        %626 = vperm.xlu0 %625, %v604
        %v627 = vpop.permute.xlu0 %626
        %630 = vset.pattern.permute.xlu0 0
        %631 = vperm.xlu0 %630, %v605
        %v632 = vpop.permute.xlu0 %631
        %635 = vset.pattern.permute.xlu0 0
        %636 = vperm.xlu0 %635, %v606
        %v637 = vpop.permute.xlu0 %636
        %640 = vset.pattern.permute.xlu0 0
        %641 = vperm.xlu0 %640, %v607
        %v642 = vpop.permute.xlu0 %641
        %645 = vset.pattern.permute.xlu0 0
        %646 = vperm.xlu0 %645, %v608
        %v647 = vpop.permute.xlu0 %646
        %vm649 = vcmask 261120
        %v651 = vsel %vm649, %v586, 0
        %v654 = vsel %vm649, %v588, 0
        %v657 = vsel %vm649, %v590, 0
        %v660 = vsel %vm649, %v592, 0
        %v663 = vsel %vm649, %v594, 0
        %v666 = vsel %vm649, %v596, 0
        %v669 = vsel %vm649, %v598, 0
        %v672 = vsel %vm649, %v600, 0
        %674 = vmatprep.subr.mxu0 0.0
        %675 = vmatpush1.msra.mxu0 %v545
        %676 = vmatprep.subr.mxu0 0.0
        %677 = vmatpush1.msra.mxu0 %v546
        %678 = vmatprep.subr.mxu0 0.0
        %679 = vmatpush1.msra.mxu0 %v547
        %680 = vmatprep.subr.mxu0 0.0
        %681 = vmatpush1.msra.mxu0 %v548
        %682 = vmatprep.subr.mxu0 0.0
        %683 = vmatpush1.msra.mxu0 %v557
        %684 = vmatprep.subr.mxu0 0.0
        %685 = vmatpush1.msra.mxu0 %v558
        %686 = vmatprep.subr.mxu0 0.0
        %687 = vmatpush1.msra.mxu0 %v559
        %688 = vmatprep.subr.mxu0 0.0
        %689 = vmatpush1.msra.mxu0 %v560
        %690 = vmatprep.subr.mxu0 0.0
        %691 = vmatpush1.msra.mxu0 %v533
        %692 = vmatprep.subr.mxu0 0.0
        %693 = vmatpush1.msra.mxu0 %v534
        %694 = vmatprep.subr.mxu0 0.0
        %695 = vmatpush1.msra.mxu0 %v535
        %696 = vmatprep.subr.mxu0 0.0
        %697 = vmatpush1.msra.mxu0 %v536
        %698 = vmatprep.subr.mxu0 0.0
        %699 = vmatpush1.msra.mxu0 %v569
        %700 = vmatprep.subr.mxu0 0.0
        %701 = vmatpush1.msra.mxu0 %v570
        %702 = vmatprep.subr.mxu0 0.0
        %703 = vmatpush1.msra.mxu0 %v571
        %704 = vmatprep.subr.mxu0 0.0
        %705 = vmatpush1.msra.mxu0 %v572
        %706 = vmatprep.subr.mxu0 0.0
        %707 = vmatpush1.msra.mxu0 %v581
        %708 = vmatprep.subr.mxu0 0.0
        %709 = vmatpush1.msra.mxu0 %v582
        %710 = vmatprep.subr.mxu0 0.0
        %711 = vmatpush1.msra.mxu0 %v583
        %712 = vmatprep.subr.mxu0 0.0
        %713 = vmatpush1.msra.mxu0 %v584
        %714 = vmatprep.subr.mxu0 0.0
        %715 = vmatpush1.msra.mxu0 0.0
        %716 = vmatprep.subr.mxu0 0.0
        %717 = vmatpush1.msra.mxu0 0.0
        %718 = vmatprep.subr.mxu0 0.0
        %719 = vmatpush1.msra.mxu0 0.0
        %720 = vmatprep.subr.mxu0 0.0
        %721 = vmatpush1.msra.mxu0 0.0
        %722 = vmatprep.subr.mxu0 0.0
        %723 = vmatpush1.msra.mxu0 0.0
        %724 = vmatprep.subr.mxu0 0.0
        %725 = vmatpush1.msra.mxu0 0.0
        %726 = vmatprep.subr.mxu0 0.0
        %727 = vmatpush1.msra.mxu0 0.0
        %728 = vmatprep.subr.mxu0 0.0
        %729 = vmatpush1.msra.mxu0 0.0
        %730 = vmatprep.subr.mxu0 0.0
        %731 = vmatpush1.msra.mxu0 0.0
        %732 = vmatprep.subr.mxu0 0.0
        %733 = vmatpush1.msra.mxu0 0.0
        %734 = vmatprep.subr.mxu0 0.0
        %735 = vmatpush1.msra.mxu0 0.0
        %736 = vmatprep.subr.mxu0 0.0
        %737 = vmatpush1.msra.mxu0 0.0
        %738 = vmatprep.mubr.f32.mxu0 %v651
        %739 = vmatmul.mubr.f32.gmra.mrb[0].mxu0 %v585
        %v740 = vpop.f32.mrb[0].mxu0
        %v741 = vadd.f32 %v612, %v740
        %v742 = vpop.f32.mrb[0].mxu0
        %743 = vmatprep.mubr.f32.mxu0 %v654
        %744 = vmatmul.mubr.f32.gmra.mrb[0].mxu0 %v587
        %v745 = vpop.f32.mrb[0].mxu0
        %v746 = vadd.f32 %v617, %v745
        %v747 = vpop.f32.mrb[0].mxu0
        %748 = vmatprep.mubr.f32.mxu0 %v657
        %749 = vmatmul.mubr.f32.gmra.mrb[0].mxu0 %v589
        %v750 = vpop.f32.mrb[0].mxu0
        %v751 = vadd.f32 %v622, %v750
        %v752 = vpop.f32.mrb[0].mxu0
        %753 = vmatprep.mubr.f32.mxu0 %v660
        %754 = vmatmul.mubr.f32.gmra.mrb[0].mxu0 %v591
        %v755 = vpop.f32.mrb[0].mxu0
        %v756 = vadd.f32 %v627, %v755
        %v757 = vpop.f32.mrb[0].mxu0
        %758 = vmatprep.mubr.f32.mxu0 %v663
        %759 = vmatmul.mubr.f32.gmra.mrb[0].mxu0 %v593
        %v760 = vpop.f32.mrb[0].mxu0
        %v761 = vadd.f32 %v632, %v760
        %v762 = vpop.f32.mrb[0].mxu0
        %763 = vmatprep.mubr.f32.mxu0 %v666
        %764 = vmatmul.mubr.f32.gmra.mrb[0].mxu0 %v595
        %v765 = vpop.f32.mrb[0].mxu0
        %v766 = vadd.f32 %v637, %v765
        %v767 = vpop.f32.mrb[0].mxu0
        %768 = vmatprep.mubr.f32.mxu0 %v669
        %769 = vmatmul.mubr.f32.gmra.mrb[0].mxu0 %v597
        %v770 = vpop.f32.mrb[0].mxu0
        %v771 = vadd.f32 %v642, %v770
        %v772 = vpop.f32.mrb[0].mxu0
        %773 = vmatprep.mubr.f32.mxu0 %v672
        %774 = vmatmul.mubr.f32.gmra.mrb[0].mxu0 %v599
        %v775 = vpop.f32.mrb[0].mxu0
        %v776 = vadd.f32 %v647, %v775
        %v777 = vpop.f32.mrb[0].mxu0
        %778 = vdwg.mxu0
        %v779 = vtanh.pop %v741
        %v780 = vtanh.pop %v746
        %v781 = vtanh.pop %v751
        %v782 = vtanh.pop %v756
        %v783 = vxor.u32 %v761, 2147483648
        %v784 = vxor.u32 %v766, 2147483648
        %v785 = vxor.u32 %v771, 2147483648
        %v786 = vxor.u32 %v776, 2147483648
        %v787 = vmul.f32 %v783, 1.442695
        %v788 = vpow.pop %v787
        %v789 = vmul.f32 %v784, 1.442695
        %v790 = vpow.pop %v789
        %v791 = vmul.f32 %v785, 1.442695
        %v792 = vpow.pop %v791
        %v793 = vmul.f32 %v786, 1.442695
        %v794 = vpow.pop %v793
        %v795 = vadd.f32 %v788, 1.0
        %v796 = vadd.f32 %v790, 1.0
        %v797 = vadd.f32 %v792, 1.0
        %v798 = vadd.f32 %v794, 1.0
        %v799 = vrcp.pop %v795
        %v800 = vmul.f32 1.0, %v799
        %v801 = vrcp.pop %v796
        %v802 = vmul.f32 1.0, %v801
        %v803 = vrcp.pop %v797
        %v804 = vmul.f32 1.0, %v803
        %v805 = vrcp.pop %v798
        %v806 = vmul.f32 1.0, %v805
        %v807 = vmul.f32 %v779, %v800
        %v808 = vmul.f32 %v780, %v802
        %v809 = vmul.f32 %v781, %v804
        %v810 = vmul.f32 %v782, %v806
        %v811 = vld [vmem:[%s6] sm:$0xff]
        %v812 = vld [vmem:[%s6 + $0x8] sm:$0xff]
        %v813 = vld [vmem:[%s6 + $0x10] sm:$0xff]
        %v814 = vld [vmem:[%s6 + $0x18] sm:$0xff]
        %v815 = vld [vmem:[%s6 + $0x20] sm:$0xff]
        %v816 = vld [vmem:[%s6 + $0x28] sm:$0xff]
        %v817 = vld [vmem:[%s6 + $0x30] sm:$0xff]
        %v818 = vld [vmem:[%s6 + $0x38] sm:$0xff]
        %v819 = vld [vmem:[%s7] sm:$0xff]
        %v820 = vld [vmem:[%s7 + $0x8] sm:$0xff]
        %v821 = vld [vmem:[%s7 + $0x10] sm:$0xff]
        %v822 = vld [vmem:[%s7 + $0x18] sm:$0xff]
        %v823 = vld [vmem:[%s7 + $0x20] sm:$0xff]
        %v824 = vld [vmem:[%s7 + $0x28] sm:$0xff]
        %v825 = vld [vmem:[%s7 + $0x30] sm:$0xff]
        %v826 = vld [vmem:[%s7 + $0x38] sm:$0xff]
        %828 = vset.pattern.permute.xlu0 0
        %829 = vperm.xlu0 %828, %v819
        %v830 = vpop.permute.xlu0 %829
        %833 = vset.pattern.permute.xlu0 0
        %834 = vperm.xlu0 %833, %v820
        %v835 = vpop.permute.xlu0 %834
        %838 = vset.pattern.permute.xlu0 0
        %839 = vperm.xlu0 %838, %v821
        %v840 = vpop.permute.xlu0 %839
        %843 = vset.pattern.permute.xlu0 0
        %844 = vperm.xlu0 %843, %v822
        %v845 = vpop.permute.xlu0 %844
        %848 = vset.pattern.permute.xlu0 0
        %849 = vperm.xlu0 %848, %v823
        %v850 = vpop.permute.xlu0 %849
        %853 = vset.pattern.permute.xlu0 0
        %854 = vperm.xlu0 %853, %v824
        %v855 = vpop.permute.xlu0 %854
        %858 = vset.pattern.permute.xlu0 0
        %859 = vperm.xlu0 %858, %v825
        %v860 = vpop.permute.xlu0 %859
        %863 = vset.pattern.permute.xlu0 0
        %864 = vperm.xlu0 %863, %v826
        %v865 = vpop.permute.xlu0 %864
        %v868 = vsel %vm649, %v811, 0
        %v871 = vsel %vm649, %v812, 0
        %v874 = vsel %vm649, %v813, 0
        %v877 = vsel %vm649, %v814, 0
        %v880 = vsel %vm649, %v815, 0
        %v883 = vsel %vm649, %v816, 0
        %v886 = vsel %vm649, %v817, 0
        %v889 = vsel %vm649, %v818, 0
        %891 = vmatprep.subr.mxu0 0.0
        %892 = vmatpush1.msra.mxu0 %v807
        %893 = vmatprep.subr.mxu0 0.0
        %894 = vmatpush1.msra.mxu0 %v808
        %895 = vmatprep.subr.mxu0 0.0
        %896 = vmatpush1.msra.mxu0 %v809
        %897 = vmatprep.subr.mxu0 0.0
        %898 = vmatpush1.msra.mxu0 %v810
        %899 = vmatprep.subr.mxu0 0.0
        %900 = vmatpush1.msra.mxu0 0.0
        %901 = vmatprep.subr.mxu0 0.0
        %902 = vmatpush1.msra.mxu0 0.0
        %903 = vmatprep.subr.mxu0 0.0
        %904 = vmatpush1.msra.mxu0 0.0
        %905 = vmatprep.subr.mxu0 0.0
        %906 = vmatpush1.msra.mxu0 0.0
        %907 = vmatprep.subr.mxu0 0.0
        %908 = vmatpush1.msra.mxu0 0.0
        %909 = vmatprep.subr.mxu0 0.0
        %910 = vmatpush1.msra.mxu0 0.0
        %911 = vmatprep.subr.mxu0 0.0
        %912 = vmatpush1.msra.mxu0 0.0
        %913 = vmatprep.subr.mxu0 0.0
        %914 = vmatpush1.msra.mxu0 0.0
        %915 = vmatprep.subr.mxu0 0.0
        %916 = vmatpush1.msra.mxu0 0.0
        %917 = vmatprep.subr.mxu0 0.0
        %918 = vmatpush1.msra.mxu0 0.0
        %919 = vmatprep.subr.mxu0 0.0
        %920 = vmatpush1.msra.mxu0 0.0
        %921 = vmatprep.subr.mxu0 0.0
        %922 = vmatpush1.msra.mxu0 0.0
        %923 = vmatprep.subr.mxu0 0.0
        %924 = vmatpush1.msra.mxu0 0.0
        %925 = vmatprep.subr.mxu0 0.0
        %926 = vmatpush1.msra.mxu0 0.0
        %927 = vmatprep.subr.mxu0 0.0
        %928 = vmatpush1.msra.mxu0 0.0
        %929 = vmatprep.subr.mxu0 0.0
        %930 = vmatpush1.msra.mxu0 0.0
        %931 = vmatprep.subr.mxu0 0.0
        %932 = vmatpush1.msra.mxu0 0.0
        %933 = vmatprep.subr.mxu0 0.0
        %934 = vmatpush1.msra.mxu0 0.0
        %935 = vmatprep.subr.mxu0 0.0
        %936 = vmatpush1.msra.mxu0 0.0
        %937 = vmatprep.subr.mxu0 0.0
        %938 = vmatpush1.msra.mxu0 0.0
        %939 = vmatprep.subr.mxu0 0.0
        %940 = vmatpush1.msra.mxu0 0.0
        %941 = vmatprep.subr.mxu0 0.0
        %942 = vmatpush1.msra.mxu0 0.0
        %943 = vmatprep.subr.mxu0 0.0
        %944 = vmatpush1.msra.mxu0 0.0
        %945 = vmatprep.subr.mxu0 0.0
        %946 = vmatpush1.msra.mxu0 0.0
        %947 = vmatprep.subr.mxu0 0.0
        %948 = vmatpush1.msra.mxu0 0.0
        %949 = vmatprep.subr.mxu0 0.0
        %950 = vmatpush1.msra.mxu0 0.0
        %951 = vmatprep.subr.mxu0 0.0
        %952 = vmatpush1.msra.mxu0 0.0
        %953 = vmatprep.subr.mxu0 0.0
        %954 = vmatpush1.msra.mxu0 0.0
        %955 = vmatprep.mubr.f32.mxu0 0.0
        %956 = vmatmul.mubr.f32.gmra.mrb[0].mxu0 %v868
        %v957 = vpop.f32.mrb[0].mxu0
        %v958 = vadd.f32 %v830, %v957
        %v959 = vpop.f32.mrb[0].mxu0
        %960 = vmatprep.mubr.f32.mxu0 0.0
        %961 = vmatmul.mubr.f32.gmra.mrb[0].mxu0 %v871
        %v962 = vpop.f32.mrb[0].mxu0
        %v963 = vadd.f32 %v835, %v962
        %v964 = vpop.f32.mrb[0].mxu0
        %965 = vmatprep.mubr.f32.mxu0 0.0
        %966 = vmatmul.mubr.f32.gmra.mrb[0].mxu0 %v874
        %v967 = vpop.f32.mrb[0].mxu0
        %v968 = vadd.f32 %v840, %v967
        %v969 = vpop.f32.mrb[0].mxu0
        %970 = vmatprep.mubr.f32.mxu0 0.0
        %971 = vmatmul.mubr.f32.gmra.mrb[0].mxu0 %v877
        %v972 = vpop.f32.mrb[0].mxu0
        %v973 = vadd.f32 %v845, %v972
        %v974 = vpop.f32.mrb[0].mxu0
        %975 = vmatprep.mubr.f32.mxu0 0.0
        %976 = vmatmul.mubr.f32.gmra.mrb[0].mxu0 %v880
        %v977 = vpop.f32.mrb[0].mxu0
        %v978 = vadd.f32 %v850, %v977
        %v979 = vpop.f32.mrb[0].mxu0
        %980 = vmatprep.mubr.f32.mxu0 0.0
        %981 = vmatmul.mubr.f32.gmra.mrb[0].mxu0 %v883
        %v982 = vpop.f32.mrb[0].mxu0
        %v983 = vadd.f32 %v855, %v982
        %v984 = vpop.f32.mrb[0].mxu0
        %985 = vmatprep.mubr.f32.mxu0 0.0
        %986 = vmatmul.mubr.f32.gmra.mrb[0].mxu0 %v886
        %v987 = vpop.f32.mrb[0].mxu0
        %v988 = vadd.f32 %v860, %v987
        %v989 = vpop.f32.mrb[0].mxu0
        %990 = vmatprep.mubr.f32.mxu0 0.0
        %991 = vmatmul.mubr.f32.gmra.mrb[0].mxu0 %v889
        %v992 = vpop.f32.mrb[0].mxu0
        %v993 = vadd.f32 %v865, %v992
        %v994 = vpop.f32.mrb[0].mxu0
        %995 = vdwg.mxu0
        %v996 = vadd.f32 %v533, %v958
        %v997 = vadd.f32 %v534, %v963
        %v998 = vadd.f32 %v535, %v968
        %v999 = vadd.f32 %v536, %v973
        %v1000 = vmul.f32 %v996, %v377
        %v1001 = vmul.f32 %v997, %v377
        %v1002 = vmul.f32 %v998, %v377
        %v1003 = vmul.f32 %v999, %v377
        %v1004 = vadd.f32 %v978, 0.0
        %v1005 = vadd.f32 %v983, 0.0
        %v1006 = vadd.f32 %v988, 0.0
        %v1007 = vadd.f32 %v993, 0.0
        %1008 = vrot.lane.b32.xlu0 %v1000, 2
        %v1009 = vpop.permute.xlu0 %1008
        %1010 = vrot.lane.b32.xlu0 %v1001, 2
        %v1011 = vpop.permute.xlu0 %1010
        %1012 = vrot.lane.b32.xlu0 %v1002, 2
        %v1013 = vpop.permute.xlu0 %1012
        %1014 = vrot.lane.b32.xlu0 %v1003, 2
        %v1015 = vpop.permute.xlu0 %1014
        %v1016 = vmul.f32 %v1009, %v386
        %v1017 = vmul.f32 %v1011, %v386
        %v1018 = vmul.f32 %v1013, %v386
        %v1019 = vmul.f32 %v1015, %v386
        %1020 = vrot.lane.b32.xlu0 %v1000, 1
        %v1021 = vpop.permute.xlu0 %1020
        %1022 = vrot.lane.b32.xlu0 %v1001, 1
        %v1023 = vpop.permute.xlu0 %1022
        %1024 = vrot.lane.b32.xlu0 %v1002, 1
        %v1025 = vpop.permute.xlu0 %1024
        %1026 = vrot.lane.b32.xlu0 %v1003, 1
        %v1027 = vpop.permute.xlu0 %1026
        %v1028 = vmul.f32 %v1021, %v392
        %v1029 = vmul.f32 %v1023, %v392
        %v1030 = vmul.f32 %v1025, %v392
        %v1031 = vmul.f32 %v1027, %v392
        %1032 = vrot.lane.b32.xlu0 %v1000, 127
        %v1033 = vpop.permute.xlu0 %1032
        %1034 = vrot.lane.b32.xlu0 %v1001, 127
        %v1035 = vpop.permute.xlu0 %1034
        %1036 = vrot.lane.b32.xlu0 %v1002, 127
        %v1037 = vpop.permute.xlu0 %1036
        %1038 = vrot.lane.b32.xlu0 %v1003, 127
        %v1039 = vpop.permute.xlu0 %1038
        %v1040 = vmul.f32 %v1033, %v398
        %v1041 = vmul.f32 %v1035, %v398
        %v1042 = vmul.f32 %v1037, %v398
        %v1043 = vmul.f32 %v1039, %v398
        %1044 = vrot.lane.b32.xlu0 %v1000, 126
        %v1045 = vpop.permute.xlu0 %1044
        %1046 = vrot.lane.b32.xlu0 %v1001, 126
        %v1047 = vpop.permute.xlu0 %1046
        %1048 = vrot.lane.b32.xlu0 %v1002, 126
        %v1049 = vpop.permute.xlu0 %1048
        %1050 = vrot.lane.b32.xlu0 %v1003, 126
        %v1051 = vpop.permute.xlu0 %1050
        %v1052 = vmul.f32 %v1045, %v404
        %v1053 = vmul.f32 %v1047, %v404
        %v1054 = vmul.f32 %v1049, %v404
        %v1055 = vmul.f32 %v1051, %v404
        %s1056 = scalar_lea.vmem %s4, 128
        %v1057 = vld [vmem:[%s1056] sm:$0xff]
        %v1058 = vld [vmem:[%s1056 + $0x8] sm:$0xff]
        %v1059 = vld [vmem:[%s1056 + $0x10] sm:$0xff]
        %v1060 = vld [vmem:[%s1056 + $0x18] sm:$0xff]
        %v1061 = vld [vmem:[%s1056 + $0x20] sm:$0xff]
        %v1062 = vld [vmem:[%s1056 + $0x28] sm:$0xff]
        %v1063 = vld [vmem:[%s1056 + $0x30] sm:$0xff]
        %v1064 = vld [vmem:[%s1056 + $0x38] sm:$0xff]
        %v1065 = vld [vmem:[%s1056 + $0x40] sm:$0xff]
        %v1066 = vld [vmem:[%s1056 + $0x48] sm:$0xff]
        %v1067 = vld [vmem:[%s1056 + $0x50] sm:$0xff]
        %v1068 = vld [vmem:[%s1056 + $0x58] sm:$0xff]
        %v1069 = vld [vmem:[%s1056 + $0x60] sm:$0xff]
        %v1070 = vld [vmem:[%s1056 + $0x68] sm:$0xff]
        %v1071 = vld [vmem:[%s1056 + $0x70] sm:$0xff]
        %v1072 = vld [vmem:[%s1056 + $0x78] sm:$0xff]
        %s1073 = scalar_lea.vmem %s5, 64
        %v1074 = vld [vmem:[%s1073] sm:$0xff]
        %v1075 = vld [vmem:[%s1073 + $0x8] sm:$0xff]
        %v1076 = vld [vmem:[%s1073 + $0x10] sm:$0xff]
        %v1077 = vld [vmem:[%s1073 + $0x18] sm:$0xff]
        %v1078 = vld [vmem:[%s1073 + $0x20] sm:$0xff]
        %v1079 = vld [vmem:[%s1073 + $0x28] sm:$0xff]
        %v1080 = vld [vmem:[%s1073 + $0x30] sm:$0xff]
        %v1081 = vld [vmem:[%s1073 + $0x38] sm:$0xff]
        %1083 = vset.pattern.permute.xlu0 0
        %1084 = vperm.xlu0 %1083, %v1074
        %v1085 = vpop.permute.xlu0 %1084
        %1088 = vset.pattern.permute.xlu0 0
        %1089 = vperm.xlu0 %1088, %v1075
        %v1090 = vpop.permute.xlu0 %1089
        %1093 = vset.pattern.permute.xlu0 0
        %1094 = vperm.xlu0 %1093, %v1076
        %v1095 = vpop.permute.xlu0 %1094
        %1098 = vset.pattern.permute.xlu0 0
        %1099 = vperm.xlu0 %1098, %v1077
        %v1100 = vpop.permute.xlu0 %1099
        %1103 = vset.pattern.permute.xlu0 0
        %1104 = vperm.xlu0 %1103, %v1078
        %v1105 = vpop.permute.xlu0 %1104
        %1108 = vset.pattern.permute.xlu0 0
        %1109 = vperm.xlu0 %1108, %v1079
        %v1110 = vpop.permute.xlu0 %1109
        %1113 = vset.pattern.permute.xlu0 0
        %1114 = vperm.xlu0 %1113, %v1080
        %v1115 = vpop.permute.xlu0 %1114
        %1118 = vset.pattern.permute.xlu0 0
        %1119 = vperm.xlu0 %1118, %v1081
        %v1120 = vpop.permute.xlu0 %1119
        %v1123 = vsel %vm649, %v1058, 0
        %v1126 = vsel %vm649, %v1060, 0
        %v1129 = vsel %vm649, %v1062, 0
        %v1132 = vsel %vm649, %v1064, 0
        %v1135 = vsel %vm649, %v1066, 0
        %v1138 = vsel %vm649, %v1068, 0
        %v1141 = vsel %vm649, %v1070, 0
        %v1144 = vsel %vm649, %v1072, 0
        %1146 = vmatprep.subr.mxu0 0.0
        %1147 = vmatpush1.msra.mxu0 %v1016
        %1148 = vmatprep.subr.mxu0 0.0
        %1149 = vmatpush1.msra.mxu0 %v1017
        %1150 = vmatprep.subr.mxu0 0.0
        %1151 = vmatpush1.msra.mxu0 %v1018
        %1152 = vmatprep.subr.mxu0 0.0
        %1153 = vmatpush1.msra.mxu0 %v1019
        %1154 = vmatprep.subr.mxu0 0.0
        %1155 = vmatpush1.msra.mxu0 %v1028
        %1156 = vmatprep.subr.mxu0 0.0
        %1157 = vmatpush1.msra.mxu0 %v1029
        %1158 = vmatprep.subr.mxu0 0.0
        %1159 = vmatpush1.msra.mxu0 %v1030
        %1160 = vmatprep.subr.mxu0 0.0
        %1161 = vmatpush1.msra.mxu0 %v1031
        %1162 = vmatprep.subr.mxu0 0.0
        %1163 = vmatpush1.msra.mxu0 %v1000
        %1164 = vmatprep.subr.mxu0 0.0
        %1165 = vmatpush1.msra.mxu0 %v1001
        %1166 = vmatprep.subr.mxu0 0.0
        %1167 = vmatpush1.msra.mxu0 %v1002
        %1168 = vmatprep.subr.mxu0 0.0
        %1169 = vmatpush1.msra.mxu0 %v1003
        %1170 = vmatprep.subr.mxu0 0.0
        %1171 = vmatpush1.msra.mxu0 %v1040
        %1172 = vmatprep.subr.mxu0 0.0
        %1173 = vmatpush1.msra.mxu0 %v1041
        %1174 = vmatprep.subr.mxu0 0.0
        %1175 = vmatpush1.msra.mxu0 %v1042
        %1176 = vmatprep.subr.mxu0 0.0
        %1177 = vmatpush1.msra.mxu0 %v1043
        %1178 = vmatprep.subr.mxu0 0.0
        %1179 = vmatpush1.msra.mxu0 %v1052
        %1180 = vmatprep.subr.mxu0 0.0
        %1181 = vmatpush1.msra.mxu0 %v1053
        %1182 = vmatprep.subr.mxu0 0.0
        %1183 = vmatpush1.msra.mxu0 %v1054
        %1184 = vmatprep.subr.mxu0 0.0
        %1185 = vmatpush1.msra.mxu0 %v1055
        %1186 = vmatprep.subr.mxu0 0.0
        %1187 = vmatpush1.msra.mxu0 0.0
        %1188 = vmatprep.subr.mxu0 0.0
        %1189 = vmatpush1.msra.mxu0 0.0
        %1190 = vmatprep.subr.mxu0 0.0
        %1191 = vmatpush1.msra.mxu0 0.0
        %1192 = vmatprep.subr.mxu0 0.0
        %1193 = vmatpush1.msra.mxu0 0.0
        %1194 = vmatprep.subr.mxu0 0.0
        %1195 = vmatpush1.msra.mxu0 0.0
        %1196 = vmatprep.subr.mxu0 0.0
        %1197 = vmatpush1.msra.mxu0 0.0
        %1198 = vmatprep.subr.mxu0 0.0
        %1199 = vmatpush1.msra.mxu0 0.0
        %1200 = vmatprep.subr.mxu0 0.0
        %1201 = vmatpush1.msra.mxu0 0.0
        %1202 = vmatprep.subr.mxu0 0.0
        %1203 = vmatpush1.msra.mxu0 0.0
        %1204 = vmatprep.subr.mxu0 0.0
        %1205 = vmatpush1.msra.mxu0 0.0
        %1206 = vmatprep.subr.mxu0 0.0
        %1207 = vmatpush1.msra.mxu0 0.0
        %1208 = vmatprep.subr.mxu0 0.0
        %1209 = vmatpush1.msra.mxu0 0.0
        %1210 = vmatprep.mubr.f32.mxu0 %v1123
        %1211 = vmatmul.mubr.f32.gmra.mrb[0].mxu0 %v1057
        %v1212 = vpop.f32.mrb[0].mxu0
        %v1213 = vadd.f32 %v1085, %v1212
        %v1214 = vpop.f32.mrb[0].mxu0
        %1215 = vmatprep.mubr.f32.mxu0 %v1126
        %1216 = vmatmul.mubr.f32.gmra.mrb[0].mxu0 %v1059
        %v1217 = vpop.f32.mrb[0].mxu0
        %v1218 = vadd.f32 %v1090, %v1217
        %v1219 = vpop.f32.mrb[0].mxu0
        %1220 = vmatprep.mubr.f32.mxu0 %v1129
        %1221 = vmatmul.mubr.f32.gmra.mrb[0].mxu0 %v1061
        %v1222 = vpop.f32.mrb[0].mxu0
        %v1223 = vadd.f32 %v1095, %v1222
        %v1224 = vpop.f32.mrb[0].mxu0
        %1225 = vmatprep.mubr.f32.mxu0 %v1132
        %1226 = vmatmul.mubr.f32.gmra.mrb[0].mxu0 %v1063
        %v1227 = vpop.f32.mrb[0].mxu0
        %v1228 = vadd.f32 %v1100, %v1227
        %v1229 = vpop.f32.mrb[0].mxu0
        %1230 = vmatprep.mubr.f32.mxu0 %v1135
        %1231 = vmatmul.mubr.f32.gmra.mrb[0].mxu0 %v1065
        %v1232 = vpop.f32.mrb[0].mxu0
        %v1233 = vadd.f32 %v1105, %v1232
        %v1234 = vpop.f32.mrb[0].mxu0
        %1235 = vmatprep.mubr.f32.mxu0 %v1138
        %1236 = vmatmul.mubr.f32.gmra.mrb[0].mxu0 %v1067
        %v1237 = vpop.f32.mrb[0].mxu0
        %v1238 = vadd.f32 %v1110, %v1237
        %v1239 = vpop.f32.mrb[0].mxu0
        %1240 = vmatprep.mubr.f32.mxu0 %v1141
        %1241 = vmatmul.mubr.f32.gmra.mrb[0].mxu0 %v1069
        %v1242 = vpop.f32.mrb[0].mxu0
        %v1243 = vadd.f32 %v1115, %v1242
        %v1244 = vpop.f32.mrb[0].mxu0
        %1245 = vmatprep.mubr.f32.mxu0 %v1144
        %1246 = vmatmul.mubr.f32.gmra.mrb[0].mxu0 %v1071
        %v1247 = vpop.f32.mrb[0].mxu0
        %v1248 = vadd.f32 %v1120, %v1247
        %v1249 = vpop.f32.mrb[0].mxu0
        %1250 = vdwg.mxu0
        %v1251 = vtanh.pop %v1213
        %v1252 = vtanh.pop %v1218
        %v1253 = vtanh.pop %v1223
        %v1254 = vtanh.pop %v1228
        %v1255 = vxor.u32 %v1233, 2147483648
        %v1256 = vxor.u32 %v1238, 2147483648
        %v1257 = vxor.u32 %v1243, 2147483648
        %v1258 = vxor.u32 %v1248, 2147483648
        %v1259 = vmul.f32 %v1255, 1.442695
        %v1260 = vpow.pop %v1259
        %v1261 = vmul.f32 %v1256, 1.442695
        %v1262 = vpow.pop %v1261
        %v1263 = vmul.f32 %v1257, 1.442695
        %v1264 = vpow.pop %v1263
        %v1265 = vmul.f32 %v1258, 1.442695
        %v1266 = vpow.pop %v1265
        %v1267 = vadd.f32 %v1260, 1.0
        %v1268 = vadd.f32 %v1262, 1.0
        %v1269 = vadd.f32 %v1264, 1.0
        %v1270 = vadd.f32 %v1266, 1.0
        %v1271 = vrcp.pop %v1267
        %v1272 = vmul.f32 1.0, %v1271
        %v1273 = vrcp.pop %v1268
        %v1274 = vmul.f32 1.0, %v1273
        %v1275 = vrcp.pop %v1269
        %v1276 = vmul.f32 1.0, %v1275
        %v1277 = vrcp.pop %v1270
        %v1278 = vmul.f32 1.0, %v1277
        %v1279 = vmul.f32 %v1251, %v1272
        %v1280 = vmul.f32 %v1252, %v1274
        %v1281 = vmul.f32 %v1253, %v1276
        %v1282 = vmul.f32 %v1254, %v1278
        %s1283 = scalar_lea.vmem %s6, 64
        %v1284 = vld [vmem:[%s1283] sm:$0xff]
        %v1285 = vld [vmem:[%s1283 + $0x8] sm:$0xff]
        %v1286 = vld [vmem:[%s1283 + $0x10] sm:$0xff]
        %v1287 = vld [vmem:[%s1283 + $0x18] sm:$0xff]
        %v1288 = vld [vmem:[%s1283 + $0x20] sm:$0xff]
        %v1289 = vld [vmem:[%s1283 + $0x28] sm:$0xff]
        %v1290 = vld [vmem:[%s1283 + $0x30] sm:$0xff]
        %v1291 = vld [vmem:[%s1283 + $0x38] sm:$0xff]
        %s1292 = scalar_lea.vmem %s7, 64
        %v1293 = vld [vmem:[%s1292] sm:$0xff]
        %v1294 = vld [vmem:[%s1292 + $0x8] sm:$0xff]
        %v1295 = vld [vmem:[%s1292 + $0x10] sm:$0xff]
        %v1296 = vld [vmem:[%s1292 + $0x18] sm:$0xff]
        %v1297 = vld [vmem:[%s1292 + $0x20] sm:$0xff]
        %v1298 = vld [vmem:[%s1292 + $0x28] sm:$0xff]
        %v1299 = vld [vmem:[%s1292 + $0x30] sm:$0xff]
        %v1300 = vld [vmem:[%s1292 + $0x38] sm:$0xff]
        %1302 = vset.pattern.permute.xlu0 0
        %1303 = vperm.xlu0 %1302, %v1293
        %v1304 = vpop.permute.xlu0 %1303
        %1307 = vset.pattern.permute.xlu0 0
        %1308 = vperm.xlu0 %1307, %v1294
        %v1309 = vpop.permute.xlu0 %1308
        %1312 = vset.pattern.permute.xlu0 0
        %1313 = vperm.xlu0 %1312, %v1295
        %v1314 = vpop.permute.xlu0 %1313
        %1317 = vset.pattern.permute.xlu0 0
        %1318 = vperm.xlu0 %1317, %v1296
        %v1319 = vpop.permute.xlu0 %1318
        %1322 = vset.pattern.permute.xlu0 0
        %1323 = vperm.xlu0 %1322, %v1297
        %v1324 = vpop.permute.xlu0 %1323
        %1327 = vset.pattern.permute.xlu0 0
        %1328 = vperm.xlu0 %1327, %v1298
        %v1329 = vpop.permute.xlu0 %1328
        %1332 = vset.pattern.permute.xlu0 0
        %1333 = vperm.xlu0 %1332, %v1299
        %v1334 = vpop.permute.xlu0 %1333
        %1337 = vset.pattern.permute.xlu0 0
        %1338 = vperm.xlu0 %1337, %v1300
        %v1339 = vpop.permute.xlu0 %1338
        %v1342 = vsel %vm649, %v1284, 0
        %v1345 = vsel %vm649, %v1285, 0
        %v1348 = vsel %vm649, %v1286, 0
        %v1351 = vsel %vm649, %v1287, 0
        %v1354 = vsel %vm649, %v1288, 0
        %v1357 = vsel %vm649, %v1289, 0
        %v1360 = vsel %vm649, %v1290, 0
        %v1363 = vsel %vm649, %v1291, 0
        %1365 = vmatprep.subr.mxu0 0.0
        %1366 = vmatpush1.msra.mxu0 %v1279
        %1367 = vmatprep.subr.mxu0 0.0
        %1368 = vmatpush1.msra.mxu0 %v1280
        %1369 = vmatprep.subr.mxu0 0.0
        %1370 = vmatpush1.msra.mxu0 %v1281
        %1371 = vmatprep.subr.mxu0 0.0
        %1372 = vmatpush1.msra.mxu0 %v1282
        %1373 = vmatprep.subr.mxu0 0.0
        %1374 = vmatpush1.msra.mxu0 0.0
        %1375 = vmatprep.subr.mxu0 0.0
        %1376 = vmatpush1.msra.mxu0 0.0
        %1377 = vmatprep.subr.mxu0 0.0
        %1378 = vmatpush1.msra.mxu0 0.0
        %1379 = vmatprep.subr.mxu0 0.0
        %1380 = vmatpush1.msra.mxu0 0.0
        %1381 = vmatprep.subr.mxu0 0.0
        %1382 = vmatpush1.msra.mxu0 0.0
        %1383 = vmatprep.subr.mxu0 0.0
        %1384 = vmatpush1.msra.mxu0 0.0
        %1385 = vmatprep.subr.mxu0 0.0
        %1386 = vmatpush1.msra.mxu0 0.0
        %1387 = vmatprep.subr.mxu0 0.0
        %1388 = vmatpush1.msra.mxu0 0.0
        %1389 = vmatprep.subr.mxu0 0.0
        %1390 = vmatpush1.msra.mxu0 0.0
        %1391 = vmatprep.subr.mxu0 0.0
        %1392 = vmatpush1.msra.mxu0 0.0
        %1393 = vmatprep.subr.mxu0 0.0
        %1394 = vmatpush1.msra.mxu0 0.0
        %1395 = vmatprep.subr.mxu0 0.0
        %1396 = vmatpush1.msra.mxu0 0.0
        %1397 = vmatprep.subr.mxu0 0.0
        %1398 = vmatpush1.msra.mxu0 0.0
        %1399 = vmatprep.subr.mxu0 0.0
        %1400 = vmatpush1.msra.mxu0 0.0
        %1401 = vmatprep.subr.mxu0 0.0
        %1402 = vmatpush1.msra.mxu0 0.0
        %1403 = vmatprep.subr.mxu0 0.0
        %1404 = vmatpush1.msra.mxu0 0.0
        %1405 = vmatprep.subr.mxu0 0.0
        %1406 = vmatpush1.msra.mxu0 0.0
        %1407 = vmatprep.subr.mxu0 0.0
        %1408 = vmatpush1.msra.mxu0 0.0
        %1409 = vmatprep.subr.mxu0 0.0
        %1410 = vmatpush1.msra.mxu0 0.0
        %1411 = vmatprep.subr.mxu0 0.0
        %1412 = vmatpush1.msra.mxu0 0.0
        %1413 = vmatprep.subr.mxu0 0.0
        %1414 = vmatpush1.msra.mxu0 0.0
        %1415 = vmatprep.subr.mxu0 0.0
        %1416 = vmatpush1.msra.mxu0 0.0
        %1417 = vmatprep.subr.mxu0 0.0
        %1418 = vmatpush1.msra.mxu0 0.0
        %1419 = vmatprep.subr.mxu0 0.0
        %1420 = vmatpush1.msra.mxu0 0.0
        %1421 = vmatprep.subr.mxu0 0.0
        %1422 = vmatpush1.msra.mxu0 0.0
        %1423 = vmatprep.subr.mxu0 0.0
        %1424 = vmatpush1.msra.mxu0 0.0
        %1425 = vmatprep.subr.mxu0 0.0
        %1426 = vmatpush1.msra.mxu0 0.0
        %1427 = vmatprep.subr.mxu0 0.0
        %1428 = vmatpush1.msra.mxu0 0.0
        %1429 = vmatprep.mubr.f32.mxu0 0.0
        %1430 = vmatmul.mubr.f32.gmra.mrb[0].mxu0 %v1342
        %v1431 = vpop.f32.mrb[0].mxu0
        %v1432 = vadd.f32 %v1304, %v1431
        %v1433 = vpop.f32.mrb[0].mxu0
        %1434 = vmatprep.mubr.f32.mxu0 0.0
        %1435 = vmatmul.mubr.f32.gmra.mrb[0].mxu0 %v1345
        %v1436 = vpop.f32.mrb[0].mxu0
        %v1437 = vadd.f32 %v1309, %v1436
        %v1438 = vpop.f32.mrb[0].mxu0
        %1439 = vmatprep.mubr.f32.mxu0 0.0
        %1440 = vmatmul.mubr.f32.gmra.mrb[0].mxu0 %v1348
        %v1441 = vpop.f32.mrb[0].mxu0
        %v1442 = vadd.f32 %v1314, %v1441
        %v1443 = vpop.f32.mrb[0].mxu0
        %1444 = vmatprep.mubr.f32.mxu0 0.0
        %1445 = vmatmul.mubr.f32.gmra.mrb[0].mxu0 %v1351
        %v1446 = vpop.f32.mrb[0].mxu0
        %v1447 = vadd.f32 %v1319, %v1446
        %v1448 = vpop.f32.mrb[0].mxu0
        %1449 = vmatprep.mubr.f32.mxu0 0.0
        %1450 = vmatmul.mubr.f32.gmra.mrb[0].mxu0 %v1354
        %v1451 = vpop.f32.mrb[0].mxu0
        %v1452 = vadd.f32 %v1324, %v1451
        %v1453 = vpop.f32.mrb[0].mxu0
        %1454 = vmatprep.mubr.f32.mxu0 0.0
        %1455 = vmatmul.mubr.f32.gmra.mrb[0].mxu0 %v1357
        %v1456 = vpop.f32.mrb[0].mxu0
        %v1457 = vadd.f32 %v1329, %v1456
        %v1458 = vpop.f32.mrb[0].mxu0
        %1459 = vmatprep.mubr.f32.mxu0 0.0
        %1460 = vmatmul.mubr.f32.gmra.mrb[0].mxu0 %v1360
        %v1461 = vpop.f32.mrb[0].mxu0
        %v1462 = vadd.f32 %v1334, %v1461
        %v1463 = vpop.f32.mrb[0].mxu0
        %1464 = vmatprep.mubr.f32.mxu0 0.0
        %1465 = vmatmul.mubr.f32.gmra.mrb[0].mxu0 %v1363
        %v1466 = vpop.f32.mrb[0].mxu0
        %v1467 = vadd.f32 %v1339, %v1466
        %v1468 = vpop.f32.mrb[0].mxu0
        %1469 = vdwg.mxu0
        %v1470 = vadd.f32 %v1000, %v1432
        %v1471 = vadd.f32 %v1001, %v1437
        %v1472 = vadd.f32 %v1002, %v1442
        %v1473 = vadd.f32 %v1003, %v1447
        %v1474 = vmul.f32 %v1470, %v377
        %v1475 = vmul.f32 %v1471, %v377
        %v1476 = vmul.f32 %v1472, %v377
        %v1477 = vmul.f32 %v1473, %v377
        %v1478 = vadd.f32 %v1004, %v1452
        %v1479 = vadd.f32 %v1005, %v1457
        %v1480 = vadd.f32 %v1006, %v1462
        %v1481 = vadd.f32 %v1007, %v1467
        %1482 = vrot.lane.b32.xlu0 %v1474, 2
        %v1483 = vpop.permute.xlu0 %1482
        %1484 = vrot.lane.b32.xlu0 %v1475, 2
        %v1485 = vpop.permute.xlu0 %1484
        %1486 = vrot.lane.b32.xlu0 %v1476, 2
        %v1487 = vpop.permute.xlu0 %1486
        %1488 = vrot.lane.b32.xlu0 %v1477, 2
        %v1489 = vpop.permute.xlu0 %1488
        %v1490 = vmul.f32 %v1483, %v386
        %v1491 = vmul.f32 %v1485, %v386
        %v1492 = vmul.f32 %v1487, %v386
        %v1493 = vmul.f32 %v1489, %v386
        %1494 = vrot.lane.b32.xlu0 %v1474, 1
        %v1495 = vpop.permute.xlu0 %1494
        %1496 = vrot.lane.b32.xlu0 %v1475, 1
        %v1497 = vpop.permute.xlu0 %1496
        %1498 = vrot.lane.b32.xlu0 %v1476, 1
        %v1499 = vpop.permute.xlu0 %1498
        %1500 = vrot.lane.b32.xlu0 %v1477, 1
        %v1501 = vpop.permute.xlu0 %1500
        %v1502 = vmul.f32 %v1495, %v392
        %v1503 = vmul.f32 %v1497, %v392
        %v1504 = vmul.f32 %v1499, %v392
        %v1505 = vmul.f32 %v1501, %v392
        %1506 = vrot.lane.b32.xlu0 %v1474, 127
        %v1507 = vpop.permute.xlu0 %1506
        %1508 = vrot.lane.b32.xlu0 %v1475, 127
        %v1509 = vpop.permute.xlu0 %1508
        %1510 = vrot.lane.b32.xlu0 %v1476, 127
        %v1511 = vpop.permute.xlu0 %1510
        %1512 = vrot.lane.b32.xlu0 %v1477, 127
        %v1513 = vpop.permute.xlu0 %1512
        %v1514 = vmul.f32 %v1507, %v398
        %v1515 = vmul.f32 %v1509, %v398
        %v1516 = vmul.f32 %v1511, %v398
        %v1517 = vmul.f32 %v1513, %v398
        %1518 = vrot.lane.b32.xlu0 %v1474, 126
        %v1519 = vpop.permute.xlu0 %1518
        %1520 = vrot.lane.b32.xlu0 %v1475, 126
        %v1521 = vpop.permute.xlu0 %1520
        %1522 = vrot.lane.b32.xlu0 %v1476, 126
        %v1523 = vpop.permute.xlu0 %1522
        %1524 = vrot.lane.b32.xlu0 %v1477, 126
        %v1525 = vpop.permute.xlu0 %1524
        %v1526 = vmul.f32 %v1519, %v404
        %v1527 = vmul.f32 %v1521, %v404
        %v1528 = vmul.f32 %v1523, %v404
        %v1529 = vmul.f32 %v1525, %v404
        %s1530 = scalar_lea.vmem %s4, 256
        %v1531 = vld [vmem:[%s1530] sm:$0xff]
        %v1532 = vld [vmem:[%s1530 + $0x8] sm:$0xff]
        %v1533 = vld [vmem:[%s1530 + $0x10] sm:$0xff]
        %v1534 = vld [vmem:[%s1530 + $0x18] sm:$0xff]
        %v1535 = vld [vmem:[%s1530 + $0x20] sm:$0xff]
        %v1536 = vld [vmem:[%s1530 + $0x28] sm:$0xff]
        %v1537 = vld [vmem:[%s1530 + $0x30] sm:$0xff]
        %v1538 = vld [vmem:[%s1530 + $0x38] sm:$0xff]
        %v1539 = vld [vmem:[%s1530 + $0x40] sm:$0xff]
        %v1540 = vld [vmem:[%s1530 + $0x48] sm:$0xff]
        %v1541 = vld [vmem:[%s1530 + $0x50] sm:$0xff]
        %v1542 = vld [vmem:[%s1530 + $0x58] sm:$0xff]
        %v1543 = vld [vmem:[%s1530 + $0x60] sm:$0xff]
        %v1544 = vld [vmem:[%s1530 + $0x68] sm:$0xff]
        %v1545 = vld [vmem:[%s1530 + $0x70] sm:$0xff]
        %v1546 = vld [vmem:[%s1530 + $0x78] sm:$0xff]
        %s1547 = scalar_lea.vmem %s5, 128
        %v1548 = vld [vmem:[%s1547] sm:$0xff]
        %v1549 = vld [vmem:[%s1547 + $0x8] sm:$0xff]
        %v1550 = vld [vmem:[%s1547 + $0x10] sm:$0xff]
        %v1551 = vld [vmem:[%s1547 + $0x18] sm:$0xff]
        %v1552 = vld [vmem:[%s1547 + $0x20] sm:$0xff]
        %v1553 = vld [vmem:[%s1547 + $0x28] sm:$0xff]
        %v1554 = vld [vmem:[%s1547 + $0x30] sm:$0xff]
        %v1555 = vld [vmem:[%s1547 + $0x38] sm:$0xff]
        %1557 = vset.pattern.permute.xlu0 0
        %1558 = vperm.xlu0 %1557, %v1548
        %v1559 = vpop.permute.xlu0 %1558
        %1562 = vset.pattern.permute.xlu0 0
        %1563 = vperm.xlu0 %1562, %v1549
        %v1564 = vpop.permute.xlu0 %1563
        %1567 = vset.pattern.permute.xlu0 0
        %1568 = vperm.xlu0 %1567, %v1550
        %v1569 = vpop.permute.xlu0 %1568
        %1572 = vset.pattern.permute.xlu0 0
        %1573 = vperm.xlu0 %1572, %v1551
        %v1574 = vpop.permute.xlu0 %1573
        %1577 = vset.pattern.permute.xlu0 0
        %1578 = vperm.xlu0 %1577, %v1552
        %v1579 = vpop.permute.xlu0 %1578
        %1582 = vset.pattern.permute.xlu0 0
        %1583 = vperm.xlu0 %1582, %v1553
        %v1584 = vpop.permute.xlu0 %1583
        %1587 = vset.pattern.permute.xlu0 0
        %1588 = vperm.xlu0 %1587, %v1554
        %v1589 = vpop.permute.xlu0 %1588
        %1592 = vset.pattern.permute.xlu0 0
        %1593 = vperm.xlu0 %1592, %v1555
        %v1594 = vpop.permute.xlu0 %1593
        %v1597 = vsel %vm649, %v1532, 0
        %v1600 = vsel %vm649, %v1534, 0
        %v1603 = vsel %vm649, %v1536, 0
        %v1606 = vsel %vm649, %v1538, 0
        %v1609 = vsel %vm649, %v1540, 0
        %v1612 = vsel %vm649, %v1542, 0
        %v1615 = vsel %vm649, %v1544, 0
        %v1618 = vsel %vm649, %v1546, 0
        %1620 = vmatprep.subr.mxu0 0.0
        %1621 = vmatpush1.msra.mxu0 %v1490
        %1622 = vmatprep.subr.mxu0 0.0
        %1623 = vmatpush1.msra.mxu0 %v1491
        %1624 = vmatprep.subr.mxu0 0.0
        %1625 = vmatpush1.msra.mxu0 %v1492
        %1626 = vmatprep.subr.mxu0 0.0
        %1627 = vmatpush1.msra.mxu0 %v1493
        %1628 = vmatprep.subr.mxu0 0.0
        %1629 = vmatpush1.msra.mxu0 %v1502
        %1630 = vmatprep.subr.mxu0 0.0
        %1631 = vmatpush1.msra.mxu0 %v1503
        %1632 = vmatprep.subr.mxu0 0.0
        %1633 = vmatpush1.msra.mxu0 %v1504
        %1634 = vmatprep.subr.mxu0 0.0
        %1635 = vmatpush1.msra.mxu0 %v1505
        %1636 = vmatprep.subr.mxu0 0.0
        %1637 = vmatpush1.msra.mxu0 %v1474
        %1638 = vmatprep.subr.mxu0 0.0
        %1639 = vmatpush1.msra.mxu0 %v1475
        %1640 = vmatprep.subr.mxu0 0.0
        %1641 = vmatpush1.msra.mxu0 %v1476
        %1642 = vmatprep.subr.mxu0 0.0
        %1643 = vmatpush1.msra.mxu0 %v1477
        %1644 = vmatprep.subr.mxu0 0.0
        %1645 = vmatpush1.msra.mxu0 %v1514
        %1646 = vmatprep.subr.mxu0 0.0
        %1647 = vmatpush1.msra.mxu0 %v1515
        %1648 = vmatprep.subr.mxu0 0.0
        %1649 = vmatpush1.msra.mxu0 %v1516
        %1650 = vmatprep.subr.mxu0 0.0
        %1651 = vmatpush1.msra.mxu0 %v1517
        %1652 = vmatprep.subr.mxu0 0.0
        %1653 = vmatpush1.msra.mxu0 %v1526
        %1654 = vmatprep.subr.mxu0 0.0
        %1655 = vmatpush1.msra.mxu0 %v1527
        %1656 = vmatprep.subr.mxu0 0.0
        %1657 = vmatpush1.msra.mxu0 %v1528
        %1658 = vmatprep.subr.mxu0 0.0
        %1659 = vmatpush1.msra.mxu0 %v1529
        %1660 = vmatprep.subr.mxu0 0.0
        %1661 = vmatpush1.msra.mxu0 0.0
        %1662 = vmatprep.subr.mxu0 0.0
        %1663 = vmatpush1.msra.mxu0 0.0
        %1664 = vmatprep.subr.mxu0 0.0
        %1665 = vmatpush1.msra.mxu0 0.0
        %1666 = vmatprep.subr.mxu0 0.0
        %1667 = vmatpush1.msra.mxu0 0.0
        %1668 = vmatprep.subr.mxu0 0.0
        %1669 = vmatpush1.msra.mxu0 0.0
        %1670 = vmatprep.subr.mxu0 0.0
        %1671 = vmatpush1.msra.mxu0 0.0
        %1672 = vmatprep.subr.mxu0 0.0
        %1673 = vmatpush1.msra.mxu0 0.0
        %1674 = vmatprep.subr.mxu0 0.0
        %1675 = vmatpush1.msra.mxu0 0.0
        %1676 = vmatprep.subr.mxu0 0.0
        %1677 = vmatpush1.msra.mxu0 0.0
        %1678 = vmatprep.subr.mxu0 0.0
        %1679 = vmatpush1.msra.mxu0 0.0
        %1680 = vmatprep.subr.mxu0 0.0
        %1681 = vmatpush1.msra.mxu0 0.0
        %1682 = vmatprep.subr.mxu0 0.0
        %1683 = vmatpush1.msra.mxu0 0.0
        %1684 = vmatprep.mubr.f32.mxu0 %v1597
        %1685 = vmatmul.mubr.f32.gmra.mrb[0].mxu0 %v1531
        %v1686 = vpop.f32.mrb[0].mxu0
        %v1687 = vadd.f32 %v1559, %v1686
        %v1688 = vpop.f32.mrb[0].mxu0
        %1689 = vmatprep.mubr.f32.mxu0 %v1600
        %1690 = vmatmul.mubr.f32.gmra.mrb[0].mxu0 %v1533
        %v1691 = vpop.f32.mrb[0].mxu0
        %v1692 = vadd.f32 %v1564, %v1691
        %v1693 = vpop.f32.mrb[0].mxu0
        %1694 = vmatprep.mubr.f32.mxu0 %v1603
        %1695 = vmatmul.mubr.f32.gmra.mrb[0].mxu0 %v1535
        %v1696 = vpop.f32.mrb[0].mxu0
        %v1697 = vadd.f32 %v1569, %v1696
        %v1698 = vpop.f32.mrb[0].mxu0
        %1699 = vmatprep.mubr.f32.mxu0 %v1606
        %1700 = vmatmul.mubr.f32.gmra.mrb[0].mxu0 %v1537
        %v1701 = vpop.f32.mrb[0].mxu0
        %v1702 = vadd.f32 %v1574, %v1701
        %v1703 = vpop.f32.mrb[0].mxu0
        %1704 = vmatprep.mubr.f32.mxu0 %v1609
        %1705 = vmatmul.mubr.f32.gmra.mrb[0].mxu0 %v1539
        %v1706 = vpop.f32.mrb[0].mxu0
        %v1707 = vadd.f32 %v1579, %v1706
        %v1708 = vpop.f32.mrb[0].mxu0
        %1709 = vmatprep.mubr.f32.mxu0 %v1612
        %1710 = vmatmul.mubr.f32.gmra.mrb[0].mxu0 %v1541
        %v1711 = vpop.f32.mrb[0].mxu0
        %v1712 = vadd.f32 %v1584, %v1711
        %v1713 = vpop.f32.mrb[0].mxu0
        %1714 = vmatprep.mubr.f32.mxu0 %v1615
        %1715 = vmatmul.mubr.f32.gmra.mrb[0].mxu0 %v1543
        %v1716 = vpop.f32.mrb[0].mxu0
        %v1717 = vadd.f32 %v1589, %v1716
        %v1718 = vpop.f32.mrb[0].mxu0
        %1719 = vmatprep.mubr.f32.mxu0 %v1618
        %1720 = vmatmul.mubr.f32.gmra.mrb[0].mxu0 %v1545
        %v1721 = vpop.f32.mrb[0].mxu0
        %v1722 = vadd.f32 %v1594, %v1721
        %v1723 = vpop.f32.mrb[0].mxu0
        %1724 = vdwg.mxu0
        %v1725 = vtanh.pop %v1687
        %v1726 = vtanh.pop %v1692
        %v1727 = vtanh.pop %v1697
        %v1728 = vtanh.pop %v1702
        %v1729 = vxor.u32 %v1707, 2147483648
        %v1730 = vxor.u32 %v1712, 2147483648
        %v1731 = vxor.u32 %v1717, 2147483648
        %v1732 = vxor.u32 %v1722, 2147483648
        %v1733 = vmul.f32 %v1729, 1.442695
        %v1734 = vpow.pop %v1733
        %v1735 = vmul.f32 %v1730, 1.442695
        %v1736 = vpow.pop %v1735
        %v1737 = vmul.f32 %v1731, 1.442695
        %v1738 = vpow.pop %v1737
        %v1739 = vmul.f32 %v1732, 1.442695
        %v1740 = vpow.pop %v1739
        %v1741 = vadd.f32 %v1734, 1.0
        %v1742 = vadd.f32 %v1736, 1.0
        %v1743 = vadd.f32 %v1738, 1.0
        %v1744 = vadd.f32 %v1740, 1.0
        %v1745 = vrcp.pop %v1741
        %v1746 = vmul.f32 1.0, %v1745
        %v1747 = vrcp.pop %v1742
        %v1748 = vmul.f32 1.0, %v1747
        %v1749 = vrcp.pop %v1743
        %v1750 = vmul.f32 1.0, %v1749
        %v1751 = vrcp.pop %v1744
        %v1752 = vmul.f32 1.0, %v1751
        %v1753 = vmul.f32 %v1725, %v1746
        %v1754 = vmul.f32 %v1726, %v1748
        %v1755 = vmul.f32 %v1727, %v1750
        %v1756 = vmul.f32 %v1728, %v1752
        %s1757 = scalar_lea.vmem %s6, 128
        %v1758 = vld [vmem:[%s1757] sm:$0xff]
        %v1759 = vld [vmem:[%s1757 + $0x8] sm:$0xff]
        %v1760 = vld [vmem:[%s1757 + $0x10] sm:$0xff]
        %v1761 = vld [vmem:[%s1757 + $0x18] sm:$0xff]
        %v1762 = vld [vmem:[%s1757 + $0x20] sm:$0xff]
        %v1763 = vld [vmem:[%s1757 + $0x28] sm:$0xff]
        %v1764 = vld [vmem:[%s1757 + $0x30] sm:$0xff]
        %v1765 = vld [vmem:[%s1757 + $0x38] sm:$0xff]
        %s1766 = scalar_lea.vmem %s7, 128
        %v1767 = vld [vmem:[%s1766] sm:$0xff]
        %v1768 = vld [vmem:[%s1766 + $0x8] sm:$0xff]
        %v1769 = vld [vmem:[%s1766 + $0x10] sm:$0xff]
        %v1770 = vld [vmem:[%s1766 + $0x18] sm:$0xff]
        %v1771 = vld [vmem:[%s1766 + $0x20] sm:$0xff]
        %v1772 = vld [vmem:[%s1766 + $0x28] sm:$0xff]
        %v1773 = vld [vmem:[%s1766 + $0x30] sm:$0xff]
        %v1774 = vld [vmem:[%s1766 + $0x38] sm:$0xff]
        %1776 = vset.pattern.permute.xlu0 0
        %1777 = vperm.xlu0 %1776, %v1767
        %v1778 = vpop.permute.xlu0 %1777
        %1781 = vset.pattern.permute.xlu0 0
        %1782 = vperm.xlu0 %1781, %v1768
        %v1783 = vpop.permute.xlu0 %1782
        %1786 = vset.pattern.permute.xlu0 0
        %1787 = vperm.xlu0 %1786, %v1769
        %v1788 = vpop.permute.xlu0 %1787
        %1791 = vset.pattern.permute.xlu0 0
        %1792 = vperm.xlu0 %1791, %v1770
        %v1793 = vpop.permute.xlu0 %1792
        %1796 = vset.pattern.permute.xlu0 0
        %1797 = vperm.xlu0 %1796, %v1771
        %v1798 = vpop.permute.xlu0 %1797
        %1801 = vset.pattern.permute.xlu0 0
        %1802 = vperm.xlu0 %1801, %v1772
        %v1803 = vpop.permute.xlu0 %1802
        %1806 = vset.pattern.permute.xlu0 0
        %1807 = vperm.xlu0 %1806, %v1773
        %v1808 = vpop.permute.xlu0 %1807
        %1811 = vset.pattern.permute.xlu0 0
        %1812 = vperm.xlu0 %1811, %v1774
        %v1813 = vpop.permute.xlu0 %1812
        %v1816 = vsel %vm649, %v1758, 0
        %v1819 = vsel %vm649, %v1759, 0
        %v1822 = vsel %vm649, %v1760, 0
        %v1825 = vsel %vm649, %v1761, 0
        %v1828 = vsel %vm649, %v1762, 0
        %v1831 = vsel %vm649, %v1763, 0
        %v1834 = vsel %vm649, %v1764, 0
        %v1837 = vsel %vm649, %v1765, 0
        %1839 = vmatprep.subr.mxu0 0.0
        %1840 = vmatpush1.msra.mxu0 %v1753
        %1841 = vmatprep.subr.mxu0 0.0
        %1842 = vmatpush1.msra.mxu0 %v1754
        %1843 = vmatprep.subr.mxu0 0.0
        %1844 = vmatpush1.msra.mxu0 %v1755
        %1845 = vmatprep.subr.mxu0 0.0
        %1846 = vmatpush1.msra.mxu0 %v1756
        %1847 = vmatprep.subr.mxu0 0.0
        %1848 = vmatpush1.msra.mxu0 0.0
        %1849 = vmatprep.subr.mxu0 0.0
        %1850 = vmatpush1.msra.mxu0 0.0
        %1851 = vmatprep.subr.mxu0 0.0
        %1852 = vmatpush1.msra.mxu0 0.0
        %1853 = vmatprep.subr.mxu0 0.0
        %1854 = vmatpush1.msra.mxu0 0.0
        %1855 = vmatprep.subr.mxu0 0.0
        %1856 = vmatpush1.msra.mxu0 0.0
        %1857 = vmatprep.subr.mxu0 0.0
        %1858 = vmatpush1.msra.mxu0 0.0
        %1859 = vmatprep.subr.mxu0 0.0
        %1860 = vmatpush1.msra.mxu0 0.0
        %1861 = vmatprep.subr.mxu0 0.0
        %1862 = vmatpush1.msra.mxu0 0.0
        %1863 = vmatprep.subr.mxu0 0.0
        %1864 = vmatpush1.msra.mxu0 0.0
        %1865 = vmatprep.subr.mxu0 0.0
        %1866 = vmatpush1.msra.mxu0 0.0
        %1867 = vmatprep.subr.mxu0 0.0
        %1868 = vmatpush1.msra.mxu0 0.0
        %1869 = vmatprep.subr.mxu0 0.0
        %1870 = vmatpush1.msra.mxu0 0.0
        %1871 = vmatprep.subr.mxu0 0.0
        %1872 = vmatpush1.msra.mxu0 0.0
        %1873 = vmatprep.subr.mxu0 0.0
        %1874 = vmatpush1.msra.mxu0 0.0
        %1875 = vmatprep.subr.mxu0 0.0
        %1876 = vmatpush1.msra.mxu0 0.0
        %1877 = vmatprep.subr.mxu0 0.0
        %1878 = vmatpush1.msra.mxu0 0.0
        %1879 = vmatprep.subr.mxu0 0.0
        %1880 = vmatpush1.msra.mxu0 0.0
        %1881 = vmatprep.subr.mxu0 0.0
        %1882 = vmatpush1.msra.mxu0 0.0
        %1883 = vmatprep.subr.mxu0 0.0
        %1884 = vmatpush1.msra.mxu0 0.0
        %1885 = vmatprep.subr.mxu0 0.0
        %1886 = vmatpush1.msra.mxu0 0.0
        %1887 = vmatprep.subr.mxu0 0.0
        %1888 = vmatpush1.msra.mxu0 0.0
        %1889 = vmatprep.subr.mxu0 0.0
        %1890 = vmatpush1.msra.mxu0 0.0
        %1891 = vmatprep.subr.mxu0 0.0
        %1892 = vmatpush1.msra.mxu0 0.0
        %1893 = vmatprep.subr.mxu0 0.0
        %1894 = vmatpush1.msra.mxu0 0.0
        %1895 = vmatprep.subr.mxu0 0.0
        %1896 = vmatpush1.msra.mxu0 0.0
        %1897 = vmatprep.subr.mxu0 0.0
        %1898 = vmatpush1.msra.mxu0 0.0
        %1899 = vmatprep.subr.mxu0 0.0
        %1900 = vmatpush1.msra.mxu0 0.0
        %1901 = vmatprep.subr.mxu0 0.0
        %1902 = vmatpush1.msra.mxu0 0.0
        %1903 = vmatprep.mubr.f32.mxu0 0.0
        %1904 = vmatmul.mubr.f32.gmra.mrb[0].mxu0 %v1816
        %v1905 = vpop.f32.mrb[0].mxu0
        %v1906 = vadd.f32 %v1778, %v1905
        %v1907 = vpop.f32.mrb[0].mxu0
        %1908 = vmatprep.mubr.f32.mxu0 0.0
        %1909 = vmatmul.mubr.f32.gmra.mrb[0].mxu0 %v1819
        %v1910 = vpop.f32.mrb[0].mxu0
        %v1911 = vadd.f32 %v1783, %v1910
        %v1912 = vpop.f32.mrb[0].mxu0
        %1913 = vmatprep.mubr.f32.mxu0 0.0
        %1914 = vmatmul.mubr.f32.gmra.mrb[0].mxu0 %v1822
        %v1915 = vpop.f32.mrb[0].mxu0
        %v1916 = vadd.f32 %v1788, %v1915
        %v1917 = vpop.f32.mrb[0].mxu0
        %1918 = vmatprep.mubr.f32.mxu0 0.0
        %1919 = vmatmul.mubr.f32.gmra.mrb[0].mxu0 %v1825
        %v1920 = vpop.f32.mrb[0].mxu0
        %v1921 = vadd.f32 %v1793, %v1920
        %v1922 = vpop.f32.mrb[0].mxu0
        %1923 = vmatprep.mubr.f32.mxu0 0.0
        %1924 = vmatmul.mubr.f32.gmra.mrb[0].mxu0 %v1828
        %v1925 = vpop.f32.mrb[0].mxu0
        %v1926 = vadd.f32 %v1798, %v1925
        %v1927 = vpop.f32.mrb[0].mxu0
        %1928 = vmatprep.mubr.f32.mxu0 0.0
        %1929 = vmatmul.mubr.f32.gmra.mrb[0].mxu0 %v1831
        %v1930 = vpop.f32.mrb[0].mxu0
        %v1931 = vadd.f32 %v1803, %v1930
        %v1932 = vpop.f32.mrb[0].mxu0
        %1933 = vmatprep.mubr.f32.mxu0 0.0
        %1934 = vmatmul.mubr.f32.gmra.mrb[0].mxu0 %v1834
        %v1935 = vpop.f32.mrb[0].mxu0
        %v1936 = vadd.f32 %v1808, %v1935
        %v1937 = vpop.f32.mrb[0].mxu0
        %1938 = vmatprep.mubr.f32.mxu0 0.0
        %1939 = vmatmul.mubr.f32.gmra.mrb[0].mxu0 %v1837
        %v1940 = vpop.f32.mrb[0].mxu0
        %v1941 = vadd.f32 %v1813, %v1940
        %v1942 = vpop.f32.mrb[0].mxu0
        %1943 = vdwg.mxu0
        %v1944 = vadd.f32 %v1474, %v1906
        %v1945 = vadd.f32 %v1475, %v1911
        %v1946 = vadd.f32 %v1476, %v1916
        %v1947 = vadd.f32 %v1477, %v1921
        %v1948 = vmul.f32 %v1944, %v377
        %v1949 = vmul.f32 %v1945, %v377
        %v1950 = vmul.f32 %v1946, %v377
        %v1951 = vmul.f32 %v1947, %v377
        %v1952 = vadd.f32 %v1478, %v1926
        %v1953 = vadd.f32 %v1479, %v1931
        %v1954 = vadd.f32 %v1480, %v1936
        %v1955 = vadd.f32 %v1481, %v1941
        %1956 = vrot.lane.b32.xlu0 %v1948, 2
        %v1957 = vpop.permute.xlu0 %1956
        %1958 = vrot.lane.b32.xlu0 %v1949, 2
        %v1959 = vpop.permute.xlu0 %1958
        %1960 = vrot.lane.b32.xlu0 %v1950, 2
        %v1961 = vpop.permute.xlu0 %1960
        %1962 = vrot.lane.b32.xlu0 %v1951, 2
        %v1963 = vpop.permute.xlu0 %1962
        %v1964 = vmul.f32 %v1957, %v386
        %v1965 = vmul.f32 %v1959, %v386
        %v1966 = vmul.f32 %v1961, %v386
        %v1967 = vmul.f32 %v1963, %v386
        %1968 = vrot.lane.b32.xlu0 %v1948, 1
        %v1969 = vpop.permute.xlu0 %1968
        %1970 = vrot.lane.b32.xlu0 %v1949, 1
        %v1971 = vpop.permute.xlu0 %1970
        %1972 = vrot.lane.b32.xlu0 %v1950, 1
        %v1973 = vpop.permute.xlu0 %1972
        %1974 = vrot.lane.b32.xlu0 %v1951, 1
        %v1975 = vpop.permute.xlu0 %1974
        %v1976 = vmul.f32 %v1969, %v392
        %v1977 = vmul.f32 %v1971, %v392
        %v1978 = vmul.f32 %v1973, %v392
        %v1979 = vmul.f32 %v1975, %v392
        %1980 = vrot.lane.b32.xlu0 %v1948, 127
        %v1981 = vpop.permute.xlu0 %1980
        %1982 = vrot.lane.b32.xlu0 %v1949, 127
        %v1983 = vpop.permute.xlu0 %1982
        %1984 = vrot.lane.b32.xlu0 %v1950, 127
        %v1985 = vpop.permute.xlu0 %1984
        %1986 = vrot.lane.b32.xlu0 %v1951, 127
        %v1987 = vpop.permute.xlu0 %1986
        %v1988 = vmul.f32 %v1981, %v398
        %v1989 = vmul.f32 %v1983, %v398
        %v1990 = vmul.f32 %v1985, %v398
        %v1991 = vmul.f32 %v1987, %v398
        %1992 = vrot.lane.b32.xlu0 %v1948, 126
        %v1993 = vpop.permute.xlu0 %1992
        %1994 = vrot.lane.b32.xlu0 %v1949, 126
        %v1995 = vpop.permute.xlu0 %1994
        %1996 = vrot.lane.b32.xlu0 %v1950, 126
        %v1997 = vpop.permute.xlu0 %1996
        %1998 = vrot.lane.b32.xlu0 %v1951, 126
        %v1999 = vpop.permute.xlu0 %1998
        %v2000 = vmul.f32 %v1993, %v404
        %v2001 = vmul.f32 %v1995, %v404
        %v2002 = vmul.f32 %v1997, %v404
        %v2003 = vmul.f32 %v1999, %v404
        %s2004 = scalar_lea.vmem %s4, 384
        %v2005 = vld [vmem:[%s2004] sm:$0xff]
        %v2006 = vld [vmem:[%s2004 + $0x8] sm:$0xff]
        %v2007 = vld [vmem:[%s2004 + $0x10] sm:$0xff]
        %v2008 = vld [vmem:[%s2004 + $0x18] sm:$0xff]
        %v2009 = vld [vmem:[%s2004 + $0x20] sm:$0xff]
        %v2010 = vld [vmem:[%s2004 + $0x28] sm:$0xff]
        %v2011 = vld [vmem:[%s2004 + $0x30] sm:$0xff]
        %v2012 = vld [vmem:[%s2004 + $0x38] sm:$0xff]
        %v2013 = vld [vmem:[%s2004 + $0x40] sm:$0xff]
        %v2014 = vld [vmem:[%s2004 + $0x48] sm:$0xff]
        %v2015 = vld [vmem:[%s2004 + $0x50] sm:$0xff]
        %v2016 = vld [vmem:[%s2004 + $0x58] sm:$0xff]
        %v2017 = vld [vmem:[%s2004 + $0x60] sm:$0xff]
        %v2018 = vld [vmem:[%s2004 + $0x68] sm:$0xff]
        %v2019 = vld [vmem:[%s2004 + $0x70] sm:$0xff]
        %v2020 = vld [vmem:[%s2004 + $0x78] sm:$0xff]
        %s2021 = scalar_lea.vmem %s5, 192
        %v2022 = vld [vmem:[%s2021] sm:$0xff]
        %v2023 = vld [vmem:[%s2021 + $0x8] sm:$0xff]
        %v2024 = vld [vmem:[%s2021 + $0x10] sm:$0xff]
        %v2025 = vld [vmem:[%s2021 + $0x18] sm:$0xff]
        %v2026 = vld [vmem:[%s2021 + $0x20] sm:$0xff]
        %v2027 = vld [vmem:[%s2021 + $0x28] sm:$0xff]
        %v2028 = vld [vmem:[%s2021 + $0x30] sm:$0xff]
        %v2029 = vld [vmem:[%s2021 + $0x38] sm:$0xff]
        %2031 = vset.pattern.permute.xlu0 0
        %2032 = vperm.xlu0 %2031, %v2022
        %v2033 = vpop.permute.xlu0 %2032
        %2036 = vset.pattern.permute.xlu0 0
        %2037 = vperm.xlu0 %2036, %v2023
        %v2038 = vpop.permute.xlu0 %2037
        %2041 = vset.pattern.permute.xlu0 0
        %2042 = vperm.xlu0 %2041, %v2024
        %v2043 = vpop.permute.xlu0 %2042
        %2046 = vset.pattern.permute.xlu0 0
        %2047 = vperm.xlu0 %2046, %v2025
        %v2048 = vpop.permute.xlu0 %2047
        %2051 = vset.pattern.permute.xlu0 0
        %2052 = vperm.xlu0 %2051, %v2026
        %v2053 = vpop.permute.xlu0 %2052
        %2056 = vset.pattern.permute.xlu0 0
        %2057 = vperm.xlu0 %2056, %v2027
        %v2058 = vpop.permute.xlu0 %2057
        %2061 = vset.pattern.permute.xlu0 0
        %2062 = vperm.xlu0 %2061, %v2028
        %v2063 = vpop.permute.xlu0 %2062
        %2066 = vset.pattern.permute.xlu0 0
        %2067 = vperm.xlu0 %2066, %v2029
        %v2068 = vpop.permute.xlu0 %2067
        %v2071 = vsel %vm649, %v2006, 0
        %v2074 = vsel %vm649, %v2008, 0
        %v2077 = vsel %vm649, %v2010, 0
        %v2080 = vsel %vm649, %v2012, 0
        %v2083 = vsel %vm649, %v2014, 0
        %v2086 = vsel %vm649, %v2016, 0
        %v2089 = vsel %vm649, %v2018, 0
        %v2092 = vsel %vm649, %v2020, 0
        %2094 = vmatprep.subr.mxu0 0.0
        %2095 = vmatpush1.msra.mxu0 %v1964
        %2096 = vmatprep.subr.mxu0 0.0
        %2097 = vmatpush1.msra.mxu0 %v1965
        %2098 = vmatprep.subr.mxu0 0.0
        %2099 = vmatpush1.msra.mxu0 %v1966
        %2100 = vmatprep.subr.mxu0 0.0
        %2101 = vmatpush1.msra.mxu0 %v1967
        %2102 = vmatprep.subr.mxu0 0.0
        %2103 = vmatpush1.msra.mxu0 %v1976
        %2104 = vmatprep.subr.mxu0 0.0
        %2105 = vmatpush1.msra.mxu0 %v1977
        %2106 = vmatprep.subr.mxu0 0.0
        %2107 = vmatpush1.msra.mxu0 %v1978
        %2108 = vmatprep.subr.mxu0 0.0
        %2109 = vmatpush1.msra.mxu0 %v1979
        %2110 = vmatprep.subr.mxu0 0.0
        %2111 = vmatpush1.msra.mxu0 %v1948
        %2112 = vmatprep.subr.mxu0 0.0
        %2113 = vmatpush1.msra.mxu0 %v1949
        %2114 = vmatprep.subr.mxu0 0.0
        %2115 = vmatpush1.msra.mxu0 %v1950
        %2116 = vmatprep.subr.mxu0 0.0
        %2117 = vmatpush1.msra.mxu0 %v1951
        %2118 = vmatprep.subr.mxu0 0.0
        %2119 = vmatpush1.msra.mxu0 %v1988
        %2120 = vmatprep.subr.mxu0 0.0
        %2121 = vmatpush1.msra.mxu0 %v1989
        %2122 = vmatprep.subr.mxu0 0.0
        %2123 = vmatpush1.msra.mxu0 %v1990
        %2124 = vmatprep.subr.mxu0 0.0
        %2125 = vmatpush1.msra.mxu0 %v1991
        %2126 = vmatprep.subr.mxu0 0.0
        %2127 = vmatpush1.msra.mxu0 %v2000
        %2128 = vmatprep.subr.mxu0 0.0
        %2129 = vmatpush1.msra.mxu0 %v2001
        %2130 = vmatprep.subr.mxu0 0.0
        %2131 = vmatpush1.msra.mxu0 %v2002
        %2132 = vmatprep.subr.mxu0 0.0
        %2133 = vmatpush1.msra.mxu0 %v2003
        %2134 = vmatprep.subr.mxu0 0.0
        %2135 = vmatpush1.msra.mxu0 0.0
        %2136 = vmatprep.subr.mxu0 0.0
        %2137 = vmatpush1.msra.mxu0 0.0
        %2138 = vmatprep.subr.mxu0 0.0
        %2139 = vmatpush1.msra.mxu0 0.0
        %2140 = vmatprep.subr.mxu0 0.0
        %2141 = vmatpush1.msra.mxu0 0.0
        %2142 = vmatprep.subr.mxu0 0.0
        %2143 = vmatpush1.msra.mxu0 0.0
        %2144 = vmatprep.subr.mxu0 0.0
        %2145 = vmatpush1.msra.mxu0 0.0
        %2146 = vmatprep.subr.mxu0 0.0
        %2147 = vmatpush1.msra.mxu0 0.0
        %2148 = vmatprep.subr.mxu0 0.0
        %2149 = vmatpush1.msra.mxu0 0.0
        %2150 = vmatprep.subr.mxu0 0.0
        %2151 = vmatpush1.msra.mxu0 0.0
        %2152 = vmatprep.subr.mxu0 0.0
        %2153 = vmatpush1.msra.mxu0 0.0
        %2154 = vmatprep.subr.mxu0 0.0
        %2155 = vmatpush1.msra.mxu0 0.0
        %2156 = vmatprep.subr.mxu0 0.0
        %2157 = vmatpush1.msra.mxu0 0.0
        %2158 = vmatprep.mubr.f32.mxu0 %v2071
        %2159 = vmatmul.mubr.f32.gmra.mrb[0].mxu0 %v2005
        %v2160 = vpop.f32.mrb[0].mxu0
        %v2161 = vadd.f32 %v2033, %v2160
        %v2162 = vpop.f32.mrb[0].mxu0
        %2163 = vmatprep.mubr.f32.mxu0 %v2074
        %2164 = vmatmul.mubr.f32.gmra.mrb[0].mxu0 %v2007
        %v2165 = vpop.f32.mrb[0].mxu0
        %v2166 = vadd.f32 %v2038, %v2165
        %v2167 = vpop.f32.mrb[0].mxu0
        %2168 = vmatprep.mubr.f32.mxu0 %v2077
        %2169 = vmatmul.mubr.f32.gmra.mrb[0].mxu0 %v2009
        %v2170 = vpop.f32.mrb[0].mxu0
        %v2171 = vadd.f32 %v2043, %v2170
        %v2172 = vpop.f32.mrb[0].mxu0
        %2173 = vmatprep.mubr.f32.mxu0 %v2080
        %2174 = vmatmul.mubr.f32.gmra.mrb[0].mxu0 %v2011
        %v2175 = vpop.f32.mrb[0].mxu0
        %v2176 = vadd.f32 %v2048, %v2175
        %v2177 = vpop.f32.mrb[0].mxu0
        %2178 = vmatprep.mubr.f32.mxu0 %v2083
        %2179 = vmatmul.mubr.f32.gmra.mrb[0].mxu0 %v2013
        %v2180 = vpop.f32.mrb[0].mxu0
        %v2181 = vadd.f32 %v2053, %v2180
        %v2182 = vpop.f32.mrb[0].mxu0
        %2183 = vmatprep.mubr.f32.mxu0 %v2086
        %2184 = vmatmul.mubr.f32.gmra.mrb[0].mxu0 %v2015
        %v2185 = vpop.f32.mrb[0].mxu0
        %v2186 = vadd.f32 %v2058, %v2185
        %v2187 = vpop.f32.mrb[0].mxu0
        %2188 = vmatprep.mubr.f32.mxu0 %v2089
        %2189 = vmatmul.mubr.f32.gmra.mrb[0].mxu0 %v2017
        %v2190 = vpop.f32.mrb[0].mxu0
        %v2191 = vadd.f32 %v2063, %v2190
        %v2192 = vpop.f32.mrb[0].mxu0
        %2193 = vmatprep.mubr.f32.mxu0 %v2092
        %2194 = vmatmul.mubr.f32.gmra.mrb[0].mxu0 %v2019
        %v2195 = vpop.f32.mrb[0].mxu0
        %v2196 = vadd.f32 %v2068, %v2195
        %v2197 = vpop.f32.mrb[0].mxu0
        %2198 = vdwg.mxu0
        %v2199 = vtanh.pop %v2161
        %v2200 = vtanh.pop %v2166
        %v2201 = vtanh.pop %v2171
        %v2202 = vtanh.pop %v2176
        %v2203 = vxor.u32 %v2181, 2147483648
        %v2204 = vxor.u32 %v2186, 2147483648
        %v2205 = vxor.u32 %v2191, 2147483648
        %v2206 = vxor.u32 %v2196, 2147483648
        %v2207 = vmul.f32 %v2203, 1.442695
        %v2208 = vpow.pop %v2207
        %v2209 = vmul.f32 %v2204, 1.442695
        %v2210 = vpow.pop %v2209
        %v2211 = vmul.f32 %v2205, 1.442695
        %v2212 = vpow.pop %v2211
        %v2213 = vmul.f32 %v2206, 1.442695
        %v2214 = vpow.pop %v2213
        %v2215 = vadd.f32 %v2208, 1.0
        %v2216 = vadd.f32 %v2210, 1.0
        %v2217 = vadd.f32 %v2212, 1.0
        %v2218 = vadd.f32 %v2214, 1.0
        %v2219 = vrcp.pop %v2215
        %v2220 = vmul.f32 1.0, %v2219
        %v2221 = vrcp.pop %v2216
        %v2222 = vmul.f32 1.0, %v2221
        %v2223 = vrcp.pop %v2217
        %v2224 = vmul.f32 1.0, %v2223
        %v2225 = vrcp.pop %v2218
        %v2226 = vmul.f32 1.0, %v2225
        %v2227 = vmul.f32 %v2199, %v2220
        %v2228 = vmul.f32 %v2200, %v2222
        %v2229 = vmul.f32 %v2201, %v2224
        %v2230 = vmul.f32 %v2202, %v2226
        %s2231 = scalar_lea.vmem %s6, 192
        %v2232 = vld [vmem:[%s2231 + $0x20] sm:$0xff]
        %v2233 = vld [vmem:[%s2231 + $0x28] sm:$0xff]
        %v2234 = vld [vmem:[%s2231 + $0x30] sm:$0xff]
        %v2235 = vld [vmem:[%s2231 + $0x38] sm:$0xff]
        %s2236 = scalar_lea.vmem %s7, 192
        %v2237 = vld [vmem:[%s2236 + $0x20] sm:$0xff]
        %v2238 = vld [vmem:[%s2236 + $0x28] sm:$0xff]
        %v2239 = vld [vmem:[%s2236 + $0x30] sm:$0xff]
        %v2240 = vld [vmem:[%s2236 + $0x38] sm:$0xff]
        %2242 = vset.pattern.permute.xlu0 0
        %2243 = vperm.xlu0 %2242, %v2237
        %v2244 = vpop.permute.xlu0 %2243
        %2247 = vset.pattern.permute.xlu0 0
        %2248 = vperm.xlu0 %2247, %v2238
        %v2249 = vpop.permute.xlu0 %2248
        %2252 = vset.pattern.permute.xlu0 0
        %2253 = vperm.xlu0 %2252, %v2239
        %v2254 = vpop.permute.xlu0 %2253
        %2257 = vset.pattern.permute.xlu0 0
        %2258 = vperm.xlu0 %2257, %v2240
        %v2259 = vpop.permute.xlu0 %2258
        %v2262 = vsel %vm649, %v2232, 0
        %v2265 = vsel %vm649, %v2233, 0
        %v2268 = vsel %vm649, %v2234, 0
        %v2271 = vsel %vm649, %v2235, 0
        %2273 = vmatprep.subr.mxu0 0.0
        %2274 = vmatpush1.msra.mxu0 %v2227
        %2275 = vmatprep.subr.mxu0 0.0
        %2276 = vmatpush1.msra.mxu0 %v2228
        %2277 = vmatprep.subr.mxu0 0.0
        %2278 = vmatpush1.msra.mxu0 %v2229
        %2279 = vmatprep.subr.mxu0 0.0
        %2280 = vmatpush1.msra.mxu0 %v2230
        %2281 = vmatprep.subr.mxu0 0.0
        %2282 = vmatpush1.msra.mxu0 0.0
        %2283 = vmatprep.subr.mxu0 0.0
        %2284 = vmatpush1.msra.mxu0 0.0
        %2285 = vmatprep.subr.mxu0 0.0
        %2286 = vmatpush1.msra.mxu0 0.0
        %2287 = vmatprep.subr.mxu0 0.0
        %2288 = vmatpush1.msra.mxu0 0.0
        %2289 = vmatprep.subr.mxu0 0.0
        %2290 = vmatpush1.msra.mxu0 0.0
        %2291 = vmatprep.subr.mxu0 0.0
        %2292 = vmatpush1.msra.mxu0 0.0
        %2293 = vmatprep.subr.mxu0 0.0
        %2294 = vmatpush1.msra.mxu0 0.0
        %2295 = vmatprep.subr.mxu0 0.0
        %2296 = vmatpush1.msra.mxu0 0.0
        %2297 = vmatprep.subr.mxu0 0.0
        %2298 = vmatpush1.msra.mxu0 0.0
        %2299 = vmatprep.subr.mxu0 0.0
        %2300 = vmatpush1.msra.mxu0 0.0
        %2301 = vmatprep.subr.mxu0 0.0
        %2302 = vmatpush1.msra.mxu0 0.0
        %2303 = vmatprep.subr.mxu0 0.0
        %2304 = vmatpush1.msra.mxu0 0.0
        %2305 = vmatprep.subr.mxu0 0.0
        %2306 = vmatpush1.msra.mxu0 0.0
        %2307 = vmatprep.subr.mxu0 0.0
        %2308 = vmatpush1.msra.mxu0 0.0
        %2309 = vmatprep.subr.mxu0 0.0
        %2310 = vmatpush1.msra.mxu0 0.0
        %2311 = vmatprep.subr.mxu0 0.0
        %2312 = vmatpush1.msra.mxu0 0.0
        %2313 = vmatprep.subr.mxu0 0.0
        %2314 = vmatpush1.msra.mxu0 0.0
        %2315 = vmatprep.subr.mxu0 0.0
        %2316 = vmatpush1.msra.mxu0 0.0
        %2317 = vmatprep.subr.mxu0 0.0
        %2318 = vmatpush1.msra.mxu0 0.0
        %2319 = vmatprep.subr.mxu0 0.0
        %2320 = vmatpush1.msra.mxu0 0.0
        %2321 = vmatprep.subr.mxu0 0.0
        %2322 = vmatpush1.msra.mxu0 0.0
        %2323 = vmatprep.subr.mxu0 0.0
        %2324 = vmatpush1.msra.mxu0 0.0
        %2325 = vmatprep.subr.mxu0 0.0
        %2326 = vmatpush1.msra.mxu0 0.0
        %2327 = vmatprep.subr.mxu0 0.0
        %2328 = vmatpush1.msra.mxu0 0.0
        %2329 = vmatprep.subr.mxu0 0.0
        %2330 = vmatpush1.msra.mxu0 0.0
        %2331 = vmatprep.subr.mxu0 0.0
        %2332 = vmatpush1.msra.mxu0 0.0
        %2333 = vmatprep.subr.mxu0 0.0
        %2334 = vmatpush1.msra.mxu0 0.0
        %2335 = vmatprep.subr.mxu0 0.0
        %2336 = vmatpush1.msra.mxu0 0.0
        %2337 = vmatprep.mubr.f32.mxu0 0.0
        %2338 = vmatmul.mubr.f32.gmra.mrb[0].mxu0 %v2262
        %v2339 = vpop.f32.mrb[0].mxu0
        %v2340 = vadd.f32 %v2244, %v2339
        %v2341 = vpop.f32.mrb[0].mxu0
        %2342 = vmatprep.mubr.f32.mxu0 0.0
        %2343 = vmatmul.mubr.f32.gmra.mrb[0].mxu0 %v2265
        %v2344 = vpop.f32.mrb[0].mxu0
        %v2345 = vadd.f32 %v2249, %v2344
        %v2346 = vpop.f32.mrb[0].mxu0
        %2347 = vmatprep.mubr.f32.mxu0 0.0
        %2348 = vmatmul.mubr.f32.gmra.mrb[0].mxu0 %v2268
        %v2349 = vpop.f32.mrb[0].mxu0
        %v2350 = vadd.f32 %v2254, %v2349
        %v2351 = vpop.f32.mrb[0].mxu0
        %2352 = vmatprep.mubr.f32.mxu0 0.0
        %2353 = vmatmul.mubr.f32.gmra.mrb[0].mxu0 %v2271
        %v2354 = vpop.f32.mrb[0].mxu0
        %v2355 = vadd.f32 %v2259, %v2354
        %v2356 = vpop.f32.mrb[0].mxu0
        %2357 = vdwg.mxu0
        %v2358 = vadd.f32 %v1952, %v2340
        %v2359 = vadd.f32 %v1953, %v2345
        %v2360 = vadd.f32 %v1954, %v2350
        %v2361 = vadd.f32 %v1955, %v2355
        %v2362 = vmul.f32 %v2358, %v377
        %v2363 = vmul.f32 %v2359, %v377
        %v2364 = vmul.f32 %v2360, %v377
        %v2365 = vmul.f32 %v2361, %v377
        %v2366 = vld [vmem:[%s8] sm:$0xff]
        %v2367 = vld [vmem:[%s9] sm:$0xff]
        %2369 = vset.pattern.permute.xlu0 0
        %2370 = vperm.xlu0 %2369, %v2367
        %v2371 = vpop.permute.xlu0 %2370
        %v2374 = vsel %vm649, %v2366, 0
        %2376 = vmatprep.subr.mxu0 0.0
        %2377 = vmatpush1.msra.mxu0 %v2362
        %2378 = vmatprep.subr.mxu0 0.0
        %2379 = vmatpush1.msra.mxu0 %v2363
        %2380 = vmatprep.subr.mxu0 0.0
        %2381 = vmatpush1.msra.mxu0 %v2364
        %2382 = vmatprep.subr.mxu0 0.0
        %2383 = vmatpush1.msra.mxu0 %v2365
        %2384 = vmatprep.subr.mxu0 0.0
        %2385 = vmatpush1.msra.mxu0 0.0
        %2386 = vmatprep.subr.mxu0 0.0
        %2387 = vmatpush1.msra.mxu0 0.0
        %2388 = vmatprep.subr.mxu0 0.0
        %2389 = vmatpush1.msra.mxu0 0.0
        %2390 = vmatprep.subr.mxu0 0.0
        %2391 = vmatpush1.msra.mxu0 0.0
        %2392 = vmatprep.subr.mxu0 0.0
        %2393 = vmatpush1.msra.mxu0 0.0
        %2394 = vmatprep.subr.mxu0 0.0
        %2395 = vmatpush1.msra.mxu0 0.0
        %2396 = vmatprep.subr.mxu0 0.0
        %2397 = vmatpush1.msra.mxu0 0.0
        %2398 = vmatprep.subr.mxu0 0.0
        %2399 = vmatpush1.msra.mxu0 0.0
        %2400 = vmatprep.subr.mxu0 0.0
        %2401 = vmatpush1.msra.mxu0 0.0
        %2402 = vmatprep.subr.mxu0 0.0
        %2403 = vmatpush1.msra.mxu0 0.0
        %2404 = vmatprep.subr.mxu0 0.0
        %2405 = vmatpush1.msra.mxu0 0.0
        %2406 = vmatprep.subr.mxu0 0.0
        %2407 = vmatpush1.msra.mxu0 0.0
        %2408 = vmatprep.subr.mxu0 0.0
        %2409 = vmatpush1.msra.mxu0 0.0
        %2410 = vmatprep.subr.mxu0 0.0
        %2411 = vmatpush1.msra.mxu0 0.0
        %2412 = vmatprep.subr.mxu0 0.0
        %2413 = vmatpush1.msra.mxu0 0.0
        %2414 = vmatprep.subr.mxu0 0.0
        %2415 = vmatpush1.msra.mxu0 0.0
        %2416 = vmatprep.subr.mxu0 0.0
        %2417 = vmatpush1.msra.mxu0 0.0
        %2418 = vmatprep.subr.mxu0 0.0
        %2419 = vmatpush1.msra.mxu0 0.0
        %2420 = vmatprep.subr.mxu0 0.0
        %2421 = vmatpush1.msra.mxu0 0.0
        %2422 = vmatprep.subr.mxu0 0.0
        %2423 = vmatpush1.msra.mxu0 0.0
        %2424 = vmatprep.subr.mxu0 0.0
        %2425 = vmatpush1.msra.mxu0 0.0
        %2426 = vmatprep.subr.mxu0 0.0
        %2427 = vmatpush1.msra.mxu0 0.0
        %2428 = vmatprep.subr.mxu0 0.0
        %2429 = vmatpush1.msra.mxu0 0.0
        %2430 = vmatprep.subr.mxu0 0.0
        %2431 = vmatpush1.msra.mxu0 0.0
        %2432 = vmatprep.subr.mxu0 0.0
        %2433 = vmatpush1.msra.mxu0 0.0
        %2434 = vmatprep.subr.mxu0 0.0
        %2435 = vmatpush1.msra.mxu0 0.0
        %2436 = vmatprep.subr.mxu0 0.0
        %2437 = vmatpush1.msra.mxu0 0.0
        %2438 = vmatprep.subr.mxu0 0.0
        %2439 = vmatpush1.msra.mxu0 0.0
        %2440 = vmatprep.mubr.f32.mxu0 0.0
        %2441 = vmatmul.mubr.f32.gmra.mrb[0].mxu0 %v2374
        %v2442 = vpop.f32.mrb[0].mxu0
        %v2443 = vadd.f32 %v2371, %v2442
        %v2444 = vpop.f32.mrb[0].mxu0
        %2445 = vdwg.mxu0
        %v2446 = vmul.f32 %v2443, %v377
        %v2447 = vmul.f32 %v406, %v377
        %v2448 = vadd.f32 %v2446, %v2447
        %s2449 = scalar_lea.vmem %s2, 32
        %v2450 = vld [vmem:[%s2449] sm:$0xff]
        %v2451 = vld [vmem:[%s2449 + $0x8] sm:$0xff]
        %v2452 = vld [vmem:[%s2449 + $0x10] sm:$0xff]
        %v2453 = vld [vmem:[%s2449 + $0x18] sm:$0xff]
        %s2454 = scalar_lea.vmem %s3, 32
        %v2455 = vld [vmem:[%s2454] sm:$0xff]
        %v2456 = vld [vmem:[%s2454 + $0x8] sm:$0xff]
        %v2457 = vld [vmem:[%s2454 + $0x10] sm:$0xff]
        %v2458 = vld [vmem:[%s2454 + $0x18] sm:$0xff]
        %2460 = vset.pattern.permute.xlu0 0
        %2461 = vperm.xlu0 %2460, %v2455
        %v2462 = vpop.permute.xlu0 %2461
        %2465 = vset.pattern.permute.xlu0 0
        %2466 = vperm.xlu0 %2465, %v2456
        %v2467 = vpop.permute.xlu0 %2466
        %2470 = vset.pattern.permute.xlu0 0
        %2471 = vperm.xlu0 %2470, %v2457
        %v2472 = vpop.permute.xlu0 %2471
        %2475 = vset.pattern.permute.xlu0 0
        %2476 = vperm.xlu0 %2475, %v2458
        %v2477 = vpop.permute.xlu0 %2476
        %v2480 = vsel %vm435, %v2450, 0
        %v2483 = vsel %vm435, %v2451, 0
        %v2486 = vsel %vm435, %v2452, 0
        %v2489 = vsel %vm435, %v2453, 0
        %2491 = vmatprep.subr.mxu0 0.0
        %2492 = vmatpush1.msra.mxu0 %v2448
        %2493 = vmatprep.subr.mxu0 0.0
        %2494 = vmatpush1.msra.mxu0 0.0
        %2495 = vmatprep.subr.mxu0 0.0
        %2496 = vmatpush1.msra.mxu0 0.0
        %2497 = vmatprep.subr.mxu0 0.0
        %2498 = vmatpush1.msra.mxu0 0.0
        %2499 = vmatprep.subr.mxu0 0.0
        %2500 = vmatpush1.msra.mxu0 0.0
        %2501 = vmatprep.subr.mxu0 0.0
        %2502 = vmatpush1.msra.mxu0 0.0
        %2503 = vmatprep.subr.mxu0 0.0
        %2504 = vmatpush1.msra.mxu0 0.0
        %2505 = vmatprep.subr.mxu0 0.0
        %2506 = vmatpush1.msra.mxu0 0.0
        %2507 = vmatprep.subr.mxu0 0.0
        %2508 = vmatpush1.msra.mxu0 0.0
        %2509 = vmatprep.subr.mxu0 0.0
        %2510 = vmatpush1.msra.mxu0 0.0
        %2511 = vmatprep.subr.mxu0 0.0
        %2512 = vmatpush1.msra.mxu0 0.0
        %2513 = vmatprep.subr.mxu0 0.0
        %2514 = vmatpush1.msra.mxu0 0.0
        %2515 = vmatprep.subr.mxu0 0.0
        %2516 = vmatpush1.msra.mxu0 0.0
        %2517 = vmatprep.subr.mxu0 0.0
        %2518 = vmatpush1.msra.mxu0 0.0
        %2519 = vmatprep.subr.mxu0 0.0
        %2520 = vmatpush1.msra.mxu0 0.0
        %2521 = vmatprep.subr.mxu0 0.0
        %2522 = vmatpush1.msra.mxu0 0.0
        %2523 = vmatprep.subr.mxu0 0.0
        %2524 = vmatpush1.msra.mxu0 0.0
        %2525 = vmatprep.subr.mxu0 0.0
        %2526 = vmatpush1.msra.mxu0 0.0
        %2527 = vmatprep.subr.mxu0 0.0
        %2528 = vmatpush1.msra.mxu0 0.0
        %2529 = vmatprep.subr.mxu0 0.0
        %2530 = vmatpush1.msra.mxu0 0.0
        %2531 = vmatprep.subr.mxu0 0.0
        %2532 = vmatpush1.msra.mxu0 0.0
        %2533 = vmatprep.subr.mxu0 0.0
        %2534 = vmatpush1.msra.mxu0 0.0
        %2535 = vmatprep.subr.mxu0 0.0
        %2536 = vmatpush1.msra.mxu0 0.0
        %2537 = vmatprep.subr.mxu0 0.0
        %2538 = vmatpush1.msra.mxu0 0.0
        %2539 = vmatprep.subr.mxu0 0.0
        %2540 = vmatpush1.msra.mxu0 0.0
        %2541 = vmatprep.subr.mxu0 0.0
        %2542 = vmatpush1.msra.mxu0 0.0
        %2543 = vmatprep.subr.mxu0 0.0
        %2544 = vmatpush1.msra.mxu0 0.0
        %2545 = vmatprep.subr.mxu0 0.0
        %2546 = vmatpush1.msra.mxu0 0.0
        %2547 = vmatprep.subr.mxu0 0.0
        %2548 = vmatpush1.msra.mxu0 0.0
        %2549 = vmatprep.subr.mxu0 0.0
        %2550 = vmatpush1.msra.mxu0 0.0
        %2551 = vmatprep.subr.mxu0 0.0
        %2552 = vmatpush1.msra.mxu0 0.0
        %2553 = vmatprep.subr.mxu0 0.0
        %2554 = vmatpush1.msra.mxu0 0.0
        %2555 = vmatprep.mubr.f32.mxu0 0.0
        %2556 = vmatmul.mubr.f32.gmra.mrb[0].mxu0 %v2480
        %v2557 = vpop.f32.mrb[0].mxu0
        %v2558 = vadd.f32 %v2462, %v2557
        %v2559 = vpop.f32.mrb[0].mxu0
        %2560 = vmatprep.mubr.f32.mxu0 0.0
        %2561 = vmatmul.mubr.f32.gmra.mrb[0].mxu0 %v2483
        %v2562 = vpop.f32.mrb[0].mxu0
        %v2563 = vadd.f32 %v2467, %v2562
        %v2564 = vpop.f32.mrb[0].mxu0
        %2565 = vmatprep.mubr.f32.mxu0 0.0
        %2566 = vmatmul.mubr.f32.gmra.mrb[0].mxu0 %v2486
        %v2567 = vpop.f32.mrb[0].mxu0
        %v2568 = vadd.f32 %v2472, %v2567
        %v2569 = vpop.f32.mrb[0].mxu0
        %2570 = vmatprep.mubr.f32.mxu0 0.0
        %2571 = vmatmul.mubr.f32.gmra.mrb[0].mxu0 %v2489
        %v2572 = vpop.f32.mrb[0].mxu0
        %v2573 = vadd.f32 %v2477, %v2572
        %v2574 = vpop.f32.mrb[0].mxu0
        %2575 = vdwg.mxu0
        %v2576 = vmul.f32 %v2558, %v377
        %v2577 = vmul.f32 %v2563, %v377
        %v2578 = vmul.f32 %v2568, %v377
        %v2579 = vmul.f32 %v2573, %v377
        %2580 = vrot.lane.b32.xlu0 %v2576, 2
        %v2581 = vpop.permute.xlu0 %2580
        %2582 = vrot.lane.b32.xlu0 %v2577, 2
        %v2583 = vpop.permute.xlu0 %2582
        %2584 = vrot.lane.b32.xlu0 %v2578, 2
        %v2585 = vpop.permute.xlu0 %2584
        %2586 = vrot.lane.b32.xlu0 %v2579, 2
        %v2587 = vpop.permute.xlu0 %2586
        %v2588 = vmul.f32 %v2581, %v386
        %v2589 = vmul.f32 %v2583, %v386
        %v2590 = vmul.f32 %v2585, %v386
        %v2591 = vmul.f32 %v2587, %v386
        %2592 = vrot.lane.b32.xlu0 %v2576, 1
        %v2593 = vpop.permute.xlu0 %2592
        %2594 = vrot.lane.b32.xlu0 %v2577, 1
        %v2595 = vpop.permute.xlu0 %2594
        %2596 = vrot.lane.b32.xlu0 %v2578, 1
        %v2597 = vpop.permute.xlu0 %2596
        %2598 = vrot.lane.b32.xlu0 %v2579, 1
        %v2599 = vpop.permute.xlu0 %2598
        %v2600 = vmul.f32 %v2593, %v392
        %v2601 = vmul.f32 %v2595, %v392
        %v2602 = vmul.f32 %v2597, %v392
        %v2603 = vmul.f32 %v2599, %v392
        %2604 = vrot.lane.b32.xlu0 %v2576, 127
        %v2605 = vpop.permute.xlu0 %2604
        %2606 = vrot.lane.b32.xlu0 %v2577, 127
        %v2607 = vpop.permute.xlu0 %2606
        %2608 = vrot.lane.b32.xlu0 %v2578, 127
        %v2609 = vpop.permute.xlu0 %2608
        %2610 = vrot.lane.b32.xlu0 %v2579, 127
        %v2611 = vpop.permute.xlu0 %2610
        %v2612 = vmul.f32 %v2605, %v398
        %v2613 = vmul.f32 %v2607, %v398
        %v2614 = vmul.f32 %v2609, %v398
        %v2615 = vmul.f32 %v2611, %v398
        %2616 = vrot.lane.b32.xlu0 %v2576, 126
        %v2617 = vpop.permute.xlu0 %2616
        %2618 = vrot.lane.b32.xlu0 %v2577, 126
        %v2619 = vpop.permute.xlu0 %2618
        %2620 = vrot.lane.b32.xlu0 %v2578, 126
        %v2621 = vpop.permute.xlu0 %2620
        %2622 = vrot.lane.b32.xlu0 %v2579, 126
        %v2623 = vpop.permute.xlu0 %2622
        %v2624 = vmul.f32 %v2617, %v404
        %v2625 = vmul.f32 %v2619, %v404
        %v2626 = vmul.f32 %v2621, %v404
        %v2627 = vmul.f32 %v2623, %v404
        %s2628 = scalar_lea.vmem %s4, 512
        %v2629 = vld [vmem:[%s2628] sm:$0xff]
        %v2630 = vld [vmem:[%s2628 + $0x8] sm:$0xff]
        %v2631 = vld [vmem:[%s2628 + $0x10] sm:$0xff]
        %v2632 = vld [vmem:[%s2628 + $0x18] sm:$0xff]
        %v2633 = vld [vmem:[%s2628 + $0x20] sm:$0xff]
        %v2634 = vld [vmem:[%s2628 + $0x28] sm:$0xff]
        %v2635 = vld [vmem:[%s2628 + $0x30] sm:$0xff]
        %v2636 = vld [vmem:[%s2628 + $0x38] sm:$0xff]
        %v2637 = vld [vmem:[%s2628 + $0x40] sm:$0xff]
        %v2638 = vld [vmem:[%s2628 + $0x48] sm:$0xff]
        %v2639 = vld [vmem:[%s2628 + $0x50] sm:$0xff]
        %v2640 = vld [vmem:[%s2628 + $0x58] sm:$0xff]
        %v2641 = vld [vmem:[%s2628 + $0x60] sm:$0xff]
        %v2642 = vld [vmem:[%s2628 + $0x68] sm:$0xff]
        %v2643 = vld [vmem:[%s2628 + $0x70] sm:$0xff]
        %v2644 = vld [vmem:[%s2628 + $0x78] sm:$0xff]
        %s2645 = scalar_lea.vmem %s5, 256
        %v2646 = vld [vmem:[%s2645] sm:$0xff]
        %v2647 = vld [vmem:[%s2645 + $0x8] sm:$0xff]
        %v2648 = vld [vmem:[%s2645 + $0x10] sm:$0xff]
        %v2649 = vld [vmem:[%s2645 + $0x18] sm:$0xff]
        %v2650 = vld [vmem:[%s2645 + $0x20] sm:$0xff]
        %v2651 = vld [vmem:[%s2645 + $0x28] sm:$0xff]
        %v2652 = vld [vmem:[%s2645 + $0x30] sm:$0xff]
        %v2653 = vld [vmem:[%s2645 + $0x38] sm:$0xff]
        %2655 = vset.pattern.permute.xlu0 0
        %2656 = vperm.xlu0 %2655, %v2646
        %v2657 = vpop.permute.xlu0 %2656
        %2660 = vset.pattern.permute.xlu0 0
        %2661 = vperm.xlu0 %2660, %v2647
        %v2662 = vpop.permute.xlu0 %2661
        %2665 = vset.pattern.permute.xlu0 0
        %2666 = vperm.xlu0 %2665, %v2648
        %v2667 = vpop.permute.xlu0 %2666
        %2670 = vset.pattern.permute.xlu0 0
        %2671 = vperm.xlu0 %2670, %v2649
        %v2672 = vpop.permute.xlu0 %2671
        %2675 = vset.pattern.permute.xlu0 0
        %2676 = vperm.xlu0 %2675, %v2650
        %v2677 = vpop.permute.xlu0 %2676
        %2680 = vset.pattern.permute.xlu0 0
        %2681 = vperm.xlu0 %2680, %v2651
        %v2682 = vpop.permute.xlu0 %2681
        %2685 = vset.pattern.permute.xlu0 0
        %2686 = vperm.xlu0 %2685, %v2652
        %v2687 = vpop.permute.xlu0 %2686
        %2690 = vset.pattern.permute.xlu0 0
        %2691 = vperm.xlu0 %2690, %v2653
        %v2692 = vpop.permute.xlu0 %2691
        %v2695 = vsel %vm649, %v2630, 0
        %v2698 = vsel %vm649, %v2632, 0
        %v2701 = vsel %vm649, %v2634, 0
        %v2704 = vsel %vm649, %v2636, 0
        %v2707 = vsel %vm649, %v2638, 0
        %v2710 = vsel %vm649, %v2640, 0
        %v2713 = vsel %vm649, %v2642, 0
        %v2716 = vsel %vm649, %v2644, 0
        %2718 = vmatprep.subr.mxu0 0.0
        %2719 = vmatpush1.msra.mxu0 %v2588
        %2720 = vmatprep.subr.mxu0 0.0
        %2721 = vmatpush1.msra.mxu0 %v2589
        %2722 = vmatprep.subr.mxu0 0.0
        %2723 = vmatpush1.msra.mxu0 %v2590
        %2724 = vmatprep.subr.mxu0 0.0
        %2725 = vmatpush1.msra.mxu0 %v2591
        %2726 = vmatprep.subr.mxu0 0.0
        %2727 = vmatpush1.msra.mxu0 %v2600
        %2728 = vmatprep.subr.mxu0 0.0
        %2729 = vmatpush1.msra.mxu0 %v2601
        %2730 = vmatprep.subr.mxu0 0.0
        %2731 = vmatpush1.msra.mxu0 %v2602
        %2732 = vmatprep.subr.mxu0 0.0
        %2733 = vmatpush1.msra.mxu0 %v2603
        %2734 = vmatprep.subr.mxu0 0.0
        %2735 = vmatpush1.msra.mxu0 %v2576
        %2736 = vmatprep.subr.mxu0 0.0
        %2737 = vmatpush1.msra.mxu0 %v2577
        %2738 = vmatprep.subr.mxu0 0.0
        %2739 = vmatpush1.msra.mxu0 %v2578
        %2740 = vmatprep.subr.mxu0 0.0
        %2741 = vmatpush1.msra.mxu0 %v2579
        %2742 = vmatprep.subr.mxu0 0.0
        %2743 = vmatpush1.msra.mxu0 %v2612
        %2744 = vmatprep.subr.mxu0 0.0
        %2745 = vmatpush1.msra.mxu0 %v2613
        %2746 = vmatprep.subr.mxu0 0.0
        %2747 = vmatpush1.msra.mxu0 %v2614
        %2748 = vmatprep.subr.mxu0 0.0
        %2749 = vmatpush1.msra.mxu0 %v2615
        %2750 = vmatprep.subr.mxu0 0.0
        %2751 = vmatpush1.msra.mxu0 %v2624
        %2752 = vmatprep.subr.mxu0 0.0
        %2753 = vmatpush1.msra.mxu0 %v2625
        %2754 = vmatprep.subr.mxu0 0.0
        %2755 = vmatpush1.msra.mxu0 %v2626
        %2756 = vmatprep.subr.mxu0 0.0
        %2757 = vmatpush1.msra.mxu0 %v2627
        %2758 = vmatprep.subr.mxu0 0.0
        %2759 = vmatpush1.msra.mxu0 0.0
        %2760 = vmatprep.subr.mxu0 0.0
        %2761 = vmatpush1.msra.mxu0 0.0
        %2762 = vmatprep.subr.mxu0 0.0
        %2763 = vmatpush1.msra.mxu0 0.0
        %2764 = vmatprep.subr.mxu0 0.0
        %2765 = vmatpush1.msra.mxu0 0.0
        %2766 = vmatprep.subr.mxu0 0.0
        %2767 = vmatpush1.msra.mxu0 0.0
        %2768 = vmatprep.subr.mxu0 0.0
        %2769 = vmatpush1.msra.mxu0 0.0
        %2770 = vmatprep.subr.mxu0 0.0
        %2771 = vmatpush1.msra.mxu0 0.0
        %2772 = vmatprep.subr.mxu0 0.0
        %2773 = vmatpush1.msra.mxu0 0.0
        %2774 = vmatprep.subr.mxu0 0.0
        %2775 = vmatpush1.msra.mxu0 0.0
        %2776 = vmatprep.subr.mxu0 0.0
        %2777 = vmatpush1.msra.mxu0 0.0
        %2778 = vmatprep.subr.mxu0 0.0
        %2779 = vmatpush1.msra.mxu0 0.0
        %2780 = vmatprep.subr.mxu0 0.0
        %2781 = vmatpush1.msra.mxu0 0.0
        %2782 = vmatprep.mubr.f32.mxu0 %v2695
        %2783 = vmatmul.mubr.f32.gmra.mrb[0].mxu0 %v2629
        %v2784 = vpop.f32.mrb[0].mxu0
        %v2785 = vadd.f32 %v2657, %v2784
        %v2786 = vpop.f32.mrb[0].mxu0
        %2787 = vmatprep.mubr.f32.mxu0 %v2698
        %2788 = vmatmul.mubr.f32.gmra.mrb[0].mxu0 %v2631
        %v2789 = vpop.f32.mrb[0].mxu0
        %v2790 = vadd.f32 %v2662, %v2789
        %v2791 = vpop.f32.mrb[0].mxu0
        %2792 = vmatprep.mubr.f32.mxu0 %v2701
        %2793 = vmatmul.mubr.f32.gmra.mrb[0].mxu0 %v2633
        %v2794 = vpop.f32.mrb[0].mxu0
        %v2795 = vadd.f32 %v2667, %v2794
        %v2796 = vpop.f32.mrb[0].mxu0
        %2797 = vmatprep.mubr.f32.mxu0 %v2704
        %2798 = vmatmul.mubr.f32.gmra.mrb[0].mxu0 %v2635
        %v2799 = vpop.f32.mrb[0].mxu0
        %v2800 = vadd.f32 %v2672, %v2799
        %v2801 = vpop.f32.mrb[0].mxu0
        %2802 = vmatprep.mubr.f32.mxu0 %v2707
        %2803 = vmatmul.mubr.f32.gmra.mrb[0].mxu0 %v2637
        %v2804 = vpop.f32.mrb[0].mxu0
        %v2805 = vadd.f32 %v2677, %v2804
        %v2806 = vpop.f32.mrb[0].mxu0
        %2807 = vmatprep.mubr.f32.mxu0 %v2710
        %2808 = vmatmul.mubr.f32.gmra.mrb[0].mxu0 %v2639
        %v2809 = vpop.f32.mrb[0].mxu0
        %v2810 = vadd.f32 %v2682, %v2809
        %v2811 = vpop.f32.mrb[0].mxu0
        %2812 = vmatprep.mubr.f32.mxu0 %v2713
        %2813 = vmatmul.mubr.f32.gmra.mrb[0].mxu0 %v2641
        %v2814 = vpop.f32.mrb[0].mxu0
        %v2815 = vadd.f32 %v2687, %v2814
        %v2816 = vpop.f32.mrb[0].mxu0
        %2817 = vmatprep.mubr.f32.mxu0 %v2716
        %2818 = vmatmul.mubr.f32.gmra.mrb[0].mxu0 %v2643
        %v2819 = vpop.f32.mrb[0].mxu0
        %v2820 = vadd.f32 %v2692, %v2819
        %v2821 = vpop.f32.mrb[0].mxu0
        %2822 = vdwg.mxu0
        %v2823 = vtanh.pop %v2785
        %v2824 = vtanh.pop %v2790
        %v2825 = vtanh.pop %v2795
        %v2826 = vtanh.pop %v2800
        %v2827 = vxor.u32 %v2805, 2147483648
        %v2828 = vxor.u32 %v2810, 2147483648
        %v2829 = vxor.u32 %v2815, 2147483648
        %v2830 = vxor.u32 %v2820, 2147483648
        %v2831 = vmul.f32 %v2827, 1.442695
        %v2832 = vpow.pop %v2831
        %v2833 = vmul.f32 %v2828, 1.442695
        %v2834 = vpow.pop %v2833
        %v2835 = vmul.f32 %v2829, 1.442695
        %v2836 = vpow.pop %v2835
        %v2837 = vmul.f32 %v2830, 1.442695
        %v2838 = vpow.pop %v2837
        %v2839 = vadd.f32 %v2832, 1.0
        %v2840 = vadd.f32 %v2834, 1.0
        %v2841 = vadd.f32 %v2836, 1.0
        %v2842 = vadd.f32 %v2838, 1.0
        %v2843 = vrcp.pop %v2839
        %v2844 = vmul.f32 1.0, %v2843
        %v2845 = vrcp.pop %v2840
        %v2846 = vmul.f32 1.0, %v2845
        %v2847 = vrcp.pop %v2841
        %v2848 = vmul.f32 1.0, %v2847
        %v2849 = vrcp.pop %v2842
        %v2850 = vmul.f32 1.0, %v2849
        %v2851 = vmul.f32 %v2823, %v2844
        %v2852 = vmul.f32 %v2824, %v2846
        %v2853 = vmul.f32 %v2825, %v2848
        %v2854 = vmul.f32 %v2826, %v2850
        %s2855 = scalar_lea.vmem %s6, 256
        %v2856 = vld [vmem:[%s2855] sm:$0xff]
        %v2857 = vld [vmem:[%s2855 + $0x8] sm:$0xff]
        %v2858 = vld [vmem:[%s2855 + $0x10] sm:$0xff]
        %v2859 = vld [vmem:[%s2855 + $0x18] sm:$0xff]
        %v2860 = vld [vmem:[%s2855 + $0x20] sm:$0xff]
        %v2861 = vld [vmem:[%s2855 + $0x28] sm:$0xff]
        %v2862 = vld [vmem:[%s2855 + $0x30] sm:$0xff]
        %v2863 = vld [vmem:[%s2855 + $0x38] sm:$0xff]
        %s2864 = scalar_lea.vmem %s7, 256
        %v2865 = vld [vmem:[%s2864] sm:$0xff]
        %v2866 = vld [vmem:[%s2864 + $0x8] sm:$0xff]
        %v2867 = vld [vmem:[%s2864 + $0x10] sm:$0xff]
        %v2868 = vld [vmem:[%s2864 + $0x18] sm:$0xff]
        %v2869 = vld [vmem:[%s2864 + $0x20] sm:$0xff]
        %v2870 = vld [vmem:[%s2864 + $0x28] sm:$0xff]
        %v2871 = vld [vmem:[%s2864 + $0x30] sm:$0xff]
        %v2872 = vld [vmem:[%s2864 + $0x38] sm:$0xff]
        %2874 = vset.pattern.permute.xlu0 0
        %2875 = vperm.xlu0 %2874, %v2865
        %v2876 = vpop.permute.xlu0 %2875
        %2879 = vset.pattern.permute.xlu0 0
        %2880 = vperm.xlu0 %2879, %v2866
        %v2881 = vpop.permute.xlu0 %2880
        %2884 = vset.pattern.permute.xlu0 0
        %2885 = vperm.xlu0 %2884, %v2867
        %v2886 = vpop.permute.xlu0 %2885
        %2889 = vset.pattern.permute.xlu0 0
        %2890 = vperm.xlu0 %2889, %v2868
        %v2891 = vpop.permute.xlu0 %2890
        %2894 = vset.pattern.permute.xlu0 0
        %2895 = vperm.xlu0 %2894, %v2869
        %v2896 = vpop.permute.xlu0 %2895
        %2899 = vset.pattern.permute.xlu0 0
        %2900 = vperm.xlu0 %2899, %v2870
        %v2901 = vpop.permute.xlu0 %2900
        %2904 = vset.pattern.permute.xlu0 0
        %2905 = vperm.xlu0 %2904, %v2871
        %v2906 = vpop.permute.xlu0 %2905
        %2909 = vset.pattern.permute.xlu0 0
        %2910 = vperm.xlu0 %2909, %v2872
        %v2911 = vpop.permute.xlu0 %2910
        %v2914 = vsel %vm649, %v2856, 0
        %v2917 = vsel %vm649, %v2857, 0
        %v2920 = vsel %vm649, %v2858, 0
        %v2923 = vsel %vm649, %v2859, 0
        %v2926 = vsel %vm649, %v2860, 0
        %v2929 = vsel %vm649, %v2861, 0
        %v2932 = vsel %vm649, %v2862, 0
        %v2935 = vsel %vm649, %v2863, 0
        %2937 = vmatprep.subr.mxu0 0.0
        %2938 = vmatpush1.msra.mxu0 %v2851
        %2939 = vmatprep.subr.mxu0 0.0
        %2940 = vmatpush1.msra.mxu0 %v2852
        %2941 = vmatprep.subr.mxu0 0.0
        %2942 = vmatpush1.msra.mxu0 %v2853
        %2943 = vmatprep.subr.mxu0 0.0
        %2944 = vmatpush1.msra.mxu0 %v2854
        %2945 = vmatprep.subr.mxu0 0.0
        %2946 = vmatpush1.msra.mxu0 0.0
        %2947 = vmatprep.subr.mxu0 0.0
        %2948 = vmatpush1.msra.mxu0 0.0
        %2949 = vmatprep.subr.mxu0 0.0
        %2950 = vmatpush1.msra.mxu0 0.0
        %2951 = vmatprep.subr.mxu0 0.0
        %2952 = vmatpush1.msra.mxu0 0.0
        %2953 = vmatprep.subr.mxu0 0.0
        %2954 = vmatpush1.msra.mxu0 0.0
        %2955 = vmatprep.subr.mxu0 0.0
        %2956 = vmatpush1.msra.mxu0 0.0
        %2957 = vmatprep.subr.mxu0 0.0
        %2958 = vmatpush1.msra.mxu0 0.0
        %2959 = vmatprep.subr.mxu0 0.0
        %2960 = vmatpush1.msra.mxu0 0.0
        %2961 = vmatprep.subr.mxu0 0.0
        %2962 = vmatpush1.msra.mxu0 0.0
        %2963 = vmatprep.subr.mxu0 0.0
        %2964 = vmatpush1.msra.mxu0 0.0
        %2965 = vmatprep.subr.mxu0 0.0
        %2966 = vmatpush1.msra.mxu0 0.0
        %2967 = vmatprep.subr.mxu0 0.0
        %2968 = vmatpush1.msra.mxu0 0.0
        %2969 = vmatprep.subr.mxu0 0.0
        %2970 = vmatpush1.msra.mxu0 0.0
        %2971 = vmatprep.subr.mxu0 0.0
        %2972 = vmatpush1.msra.mxu0 0.0
        %2973 = vmatprep.subr.mxu0 0.0
        %2974 = vmatpush1.msra.mxu0 0.0
        %2975 = vmatprep.subr.mxu0 0.0
        %2976 = vmatpush1.msra.mxu0 0.0
        %2977 = vmatprep.subr.mxu0 0.0
        %2978 = vmatpush1.msra.mxu0 0.0
        %2979 = vmatprep.subr.mxu0 0.0
        %2980 = vmatpush1.msra.mxu0 0.0
        %2981 = vmatprep.subr.mxu0 0.0
        %2982 = vmatpush1.msra.mxu0 0.0
        %2983 = vmatprep.subr.mxu0 0.0
        %2984 = vmatpush1.msra.mxu0 0.0
        %2985 = vmatprep.subr.mxu0 0.0
        %2986 = vmatpush1.msra.mxu0 0.0
        %2987 = vmatprep.subr.mxu0 0.0
        %2988 = vmatpush1.msra.mxu0 0.0
        %2989 = vmatprep.subr.mxu0 0.0
        %2990 = vmatpush1.msra.mxu0 0.0
        %2991 = vmatprep.subr.mxu0 0.0
        %2992 = vmatpush1.msra.mxu0 0.0
        %2993 = vmatprep.subr.mxu0 0.0
        %2994 = vmatpush1.msra.mxu0 0.0
        %2995 = vmatprep.subr.mxu0 0.0
        %2996 = vmatpush1.msra.mxu0 0.0
        %2997 = vmatprep.subr.mxu0 0.0
        %2998 = vmatpush1.msra.mxu0 0.0
        %2999 = vmatprep.subr.mxu0 0.0
        %3000 = vmatpush1.msra.mxu0 0.0
        %3001 = vmatprep.mubr.f32.mxu0 0.0
        %3002 = vmatmul.mubr.f32.gmra.mrb[0].mxu0 %v2914
        %v3003 = vpop.f32.mrb[0].mxu0
        %v3004 = vadd.f32 %v2876, %v3003
        %v3005 = vpop.f32.mrb[0].mxu0
        %3006 = vmatprep.mubr.f32.mxu0 0.0
        %3007 = vmatmul.mubr.f32.gmra.mrb[0].mxu0 %v2917
        %v3008 = vpop.f32.mrb[0].mxu0
        %v3009 = vadd.f32 %v2881, %v3008
        %v3010 = vpop.f32.mrb[0].mxu0
        %3011 = vmatprep.mubr.f32.mxu0 0.0
        %3012 = vmatmul.mubr.f32.gmra.mrb[0].mxu0 %v2920
        %v3013 = vpop.f32.mrb[0].mxu0
        %v3014 = vadd.f32 %v2886, %v3013
        %v3015 = vpop.f32.mrb[0].mxu0
        %3016 = vmatprep.mubr.f32.mxu0 0.0
        %3017 = vmatmul.mubr.f32.gmra.mrb[0].mxu0 %v2923
        %v3018 = vpop.f32.mrb[0].mxu0
        %v3019 = vadd.f32 %v2891, %v3018
        %v3020 = vpop.f32.mrb[0].mxu0
        %3021 = vmatprep.mubr.f32.mxu0 0.0
        %3022 = vmatmul.mubr.f32.gmra.mrb[0].mxu0 %v2926
        %v3023 = vpop.f32.mrb[0].mxu0
        %v3024 = vadd.f32 %v2896, %v3023
        %v3025 = vpop.f32.mrb[0].mxu0
        %3026 = vmatprep.mubr.f32.mxu0 0.0
        %3027 = vmatmul.mubr.f32.gmra.mrb[0].mxu0 %v2929
        %v3028 = vpop.f32.mrb[0].mxu0
        %v3029 = vadd.f32 %v2901, %v3028
        %v3030 = vpop.f32.mrb[0].mxu0
        %3031 = vmatprep.mubr.f32.mxu0 0.0
        %3032 = vmatmul.mubr.f32.gmra.mrb[0].mxu0 %v2932
        %v3033 = vpop.f32.mrb[0].mxu0
        %v3034 = vadd.f32 %v2906, %v3033
        %v3035 = vpop.f32.mrb[0].mxu0
        %3036 = vmatprep.mubr.f32.mxu0 0.0
        %3037 = vmatmul.mubr.f32.gmra.mrb[0].mxu0 %v2935
        %v3038 = vpop.f32.mrb[0].mxu0
        %v3039 = vadd.f32 %v2911, %v3038
        %v3040 = vpop.f32.mrb[0].mxu0
        %3041 = vdwg.mxu0
        %v3042 = vadd.f32 %v2576, %v3004
        %v3043 = vadd.f32 %v2577, %v3009
        %v3044 = vadd.f32 %v2578, %v3014
        %v3045 = vadd.f32 %v2579, %v3019
        %v3046 = vmul.f32 %v3042, %v377
        %v3047 = vmul.f32 %v3043, %v377
        %v3048 = vmul.f32 %v3044, %v377
        %v3049 = vmul.f32 %v3045, %v377
        %v3050 = vadd.f32 %v3024, 0.0
        %v3051 = vadd.f32 %v3029, 0.0
        %v3052 = vadd.f32 %v3034, 0.0
        %v3053 = vadd.f32 %v3039, 0.0
        %3054 = vrot.lane.b32.xlu0 %v3046, 2
        %v3055 = vpop.permute.xlu0 %3054
        %3056 = vrot.lane.b32.xlu0 %v3047, 2
        %v3057 = vpop.permute.xlu0 %3056
        %3058 = vrot.lane.b32.xlu0 %v3048, 2
        %v3059 = vpop.permute.xlu0 %3058
        %3060 = vrot.lane.b32.xlu0 %v3049, 2
        %v3061 = vpop.permute.xlu0 %3060
        %v3062 = vmul.f32 %v3055, %v386
        %v3063 = vmul.f32 %v3057, %v386
        %v3064 = vmul.f32 %v3059, %v386
        %v3065 = vmul.f32 %v3061, %v386
        %3066 = vrot.lane.b32.xlu0 %v3046, 1
        %v3067 = vpop.permute.xlu0 %3066
        %3068 = vrot.lane.b32.xlu0 %v3047, 1
        %v3069 = vpop.permute.xlu0 %3068
        %3070 = vrot.lane.b32.xlu0 %v3048, 1
        %v3071 = vpop.permute.xlu0 %3070
        %3072 = vrot.lane.b32.xlu0 %v3049, 1
        %v3073 = vpop.permute.xlu0 %3072
        %v3074 = vmul.f32 %v3067, %v392
        %v3075 = vmul.f32 %v3069, %v392
        %v3076 = vmul.f32 %v3071, %v392
        %v3077 = vmul.f32 %v3073, %v392
        %3078 = vrot.lane.b32.xlu0 %v3046, 127
        %v3079 = vpop.permute.xlu0 %3078
        %3080 = vrot.lane.b32.xlu0 %v3047, 127
        %v3081 = vpop.permute.xlu0 %3080
        %3082 = vrot.lane.b32.xlu0 %v3048, 127
        %v3083 = vpop.permute.xlu0 %3082
        %3084 = vrot.lane.b32.xlu0 %v3049, 127
        %v3085 = vpop.permute.xlu0 %3084
        %v3086 = vmul.f32 %v3079, %v398
        %v3087 = vmul.f32 %v3081, %v398
        %v3088 = vmul.f32 %v3083, %v398
        %v3089 = vmul.f32 %v3085, %v398
        %3090 = vrot.lane.b32.xlu0 %v3046, 126
        %v3091 = vpop.permute.xlu0 %3090
        %3092 = vrot.lane.b32.xlu0 %v3047, 126
        %v3093 = vpop.permute.xlu0 %3092
        %3094 = vrot.lane.b32.xlu0 %v3048, 126
        %v3095 = vpop.permute.xlu0 %3094
        %3096 = vrot.lane.b32.xlu0 %v3049, 126
        %v3097 = vpop.permute.xlu0 %3096
        %v3098 = vmul.f32 %v3091, %v404
        %v3099 = vmul.f32 %v3093, %v404
        %v3100 = vmul.f32 %v3095, %v404
        %v3101 = vmul.f32 %v3097, %v404
        %s3102 = scalar_lea.vmem %s4, 640
        %v3103 = vld [vmem:[%s3102] sm:$0xff]
        %v3104 = vld [vmem:[%s3102 + $0x8] sm:$0xff]
        %v3105 = vld [vmem:[%s3102 + $0x10] sm:$0xff]
        %v3106 = vld [vmem:[%s3102 + $0x18] sm:$0xff]
        %v3107 = vld [vmem:[%s3102 + $0x20] sm:$0xff]
        %v3108 = vld [vmem:[%s3102 + $0x28] sm:$0xff]
        %v3109 = vld [vmem:[%s3102 + $0x30] sm:$0xff]
        %v3110 = vld [vmem:[%s3102 + $0x38] sm:$0xff]
        %v3111 = vld [vmem:[%s3102 + $0x40] sm:$0xff]
        %v3112 = vld [vmem:[%s3102 + $0x48] sm:$0xff]
        %v3113 = vld [vmem:[%s3102 + $0x50] sm:$0xff]
        %v3114 = vld [vmem:[%s3102 + $0x58] sm:$0xff]
        %v3115 = vld [vmem:[%s3102 + $0x60] sm:$0xff]
        %v3116 = vld [vmem:[%s3102 + $0x68] sm:$0xff]
        %v3117 = vld [vmem:[%s3102 + $0x70] sm:$0xff]
        %v3118 = vld [vmem:[%s3102 + $0x78] sm:$0xff]
        %s3119 = scalar_lea.vmem %s5, 320
        %v3120 = vld [vmem:[%s3119] sm:$0xff]
        %v3121 = vld [vmem:[%s3119 + $0x8] sm:$0xff]
        %v3122 = vld [vmem:[%s3119 + $0x10] sm:$0xff]
        %v3123 = vld [vmem:[%s3119 + $0x18] sm:$0xff]
        %v3124 = vld [vmem:[%s3119 + $0x20] sm:$0xff]
        %v3125 = vld [vmem:[%s3119 + $0x28] sm:$0xff]
        %v3126 = vld [vmem:[%s3119 + $0x30] sm:$0xff]
        %v3127 = vld [vmem:[%s3119 + $0x38] sm:$0xff]
        %3129 = vset.pattern.permute.xlu0 0
        %3130 = vperm.xlu0 %3129, %v3120
        %v3131 = vpop.permute.xlu0 %3130
        %3134 = vset.pattern.permute.xlu0 0
        %3135 = vperm.xlu0 %3134, %v3121
        %v3136 = vpop.permute.xlu0 %3135
        %3139 = vset.pattern.permute.xlu0 0
        %3140 = vperm.xlu0 %3139, %v3122
        %v3141 = vpop.permute.xlu0 %3140
        %3144 = vset.pattern.permute.xlu0 0
        %3145 = vperm.xlu0 %3144, %v3123
        %v3146 = vpop.permute.xlu0 %3145
        %3149 = vset.pattern.permute.xlu0 0
        %3150 = vperm.xlu0 %3149, %v3124
        %v3151 = vpop.permute.xlu0 %3150
        %3154 = vset.pattern.permute.xlu0 0
        %3155 = vperm.xlu0 %3154, %v3125
        %v3156 = vpop.permute.xlu0 %3155
        %3159 = vset.pattern.permute.xlu0 0
        %3160 = vperm.xlu0 %3159, %v3126
        %v3161 = vpop.permute.xlu0 %3160
        %3164 = vset.pattern.permute.xlu0 0
        %3165 = vperm.xlu0 %3164, %v3127
        %v3166 = vpop.permute.xlu0 %3165
        %v3169 = vsel %vm649, %v3104, 0
        %v3172 = vsel %vm649, %v3106, 0
        %v3175 = vsel %vm649, %v3108, 0
        %v3178 = vsel %vm649, %v3110, 0
        %v3181 = vsel %vm649, %v3112, 0
        %v3184 = vsel %vm649, %v3114, 0
        %v3187 = vsel %vm649, %v3116, 0
        %v3190 = vsel %vm649, %v3118, 0
        %3192 = vmatprep.subr.mxu0 0.0
        %3193 = vmatpush1.msra.mxu0 %v3062
        %3194 = vmatprep.subr.mxu0 0.0
        %3195 = vmatpush1.msra.mxu0 %v3063
        %3196 = vmatprep.subr.mxu0 0.0
        %3197 = vmatpush1.msra.mxu0 %v3064
        %3198 = vmatprep.subr.mxu0 0.0
        %3199 = vmatpush1.msra.mxu0 %v3065
        %3200 = vmatprep.subr.mxu0 0.0
        %3201 = vmatpush1.msra.mxu0 %v3074
        %3202 = vmatprep.subr.mxu0 0.0
        %3203 = vmatpush1.msra.mxu0 %v3075
        %3204 = vmatprep.subr.mxu0 0.0
        %3205 = vmatpush1.msra.mxu0 %v3076
        %3206 = vmatprep.subr.mxu0 0.0
        %3207 = vmatpush1.msra.mxu0 %v3077
        %3208 = vmatprep.subr.mxu0 0.0
        %3209 = vmatpush1.msra.mxu0 %v3046
        %3210 = vmatprep.subr.mxu0 0.0
        %3211 = vmatpush1.msra.mxu0 %v3047
        %3212 = vmatprep.subr.mxu0 0.0
        %3213 = vmatpush1.msra.mxu0 %v3048
        %3214 = vmatprep.subr.mxu0 0.0
        %3215 = vmatpush1.msra.mxu0 %v3049
        %3216 = vmatprep.subr.mxu0 0.0
        %3217 = vmatpush1.msra.mxu0 %v3086
        %3218 = vmatprep.subr.mxu0 0.0
        %3219 = vmatpush1.msra.mxu0 %v3087
        %3220 = vmatprep.subr.mxu0 0.0
        %3221 = vmatpush1.msra.mxu0 %v3088
        %3222 = vmatprep.subr.mxu0 0.0
        %3223 = vmatpush1.msra.mxu0 %v3089
        %3224 = vmatprep.subr.mxu0 0.0
        %3225 = vmatpush1.msra.mxu0 %v3098
        %3226 = vmatprep.subr.mxu0 0.0
        %3227 = vmatpush1.msra.mxu0 %v3099
        %3228 = vmatprep.subr.mxu0 0.0
        %3229 = vmatpush1.msra.mxu0 %v3100
        %3230 = vmatprep.subr.mxu0 0.0
        %3231 = vmatpush1.msra.mxu0 %v3101
        %3232 = vmatprep.subr.mxu0 0.0
        %3233 = vmatpush1.msra.mxu0 0.0
        %3234 = vmatprep.subr.mxu0 0.0
        %3235 = vmatpush1.msra.mxu0 0.0
        %3236 = vmatprep.subr.mxu0 0.0
        %3237 = vmatpush1.msra.mxu0 0.0
        %3238 = vmatprep.subr.mxu0 0.0
        %3239 = vmatpush1.msra.mxu0 0.0
        %3240 = vmatprep.subr.mxu0 0.0
        %3241 = vmatpush1.msra.mxu0 0.0
        %3242 = vmatprep.subr.mxu0 0.0
        %3243 = vmatpush1.msra.mxu0 0.0
        %3244 = vmatprep.subr.mxu0 0.0
        %3245 = vmatpush1.msra.mxu0 0.0
        %3246 = vmatprep.subr.mxu0 0.0
        %3247 = vmatpush1.msra.mxu0 0.0
        %3248 = vmatprep.subr.mxu0 0.0
        %3249 = vmatpush1.msra.mxu0 0.0
        %3250 = vmatprep.subr.mxu0 0.0
        %3251 = vmatpush1.msra.mxu0 0.0
        %3252 = vmatprep.subr.mxu0 0.0
        %3253 = vmatpush1.msra.mxu0 0.0
        %3254 = vmatprep.subr.mxu0 0.0
        %3255 = vmatpush1.msra.mxu0 0.0
        %3256 = vmatprep.mubr.f32.mxu0 %v3169
        %3257 = vmatmul.mubr.f32.gmra.mrb[0].mxu0 %v3103
        %v3258 = vpop.f32.mrb[0].mxu0
        %v3259 = vadd.f32 %v3131, %v3258
        %v3260 = vpop.f32.mrb[0].mxu0
        %3261 = vmatprep.mubr.f32.mxu0 %v3172
        %3262 = vmatmul.mubr.f32.gmra.mrb[0].mxu0 %v3105
        %v3263 = vpop.f32.mrb[0].mxu0
        %v3264 = vadd.f32 %v3136, %v3263
        %v3265 = vpop.f32.mrb[0].mxu0
        %3266 = vmatprep.mubr.f32.mxu0 %v3175
        %3267 = vmatmul.mubr.f32.gmra.mrb[0].mxu0 %v3107
        %v3268 = vpop.f32.mrb[0].mxu0
        %v3269 = vadd.f32 %v3141, %v3268
        %v3270 = vpop.f32.mrb[0].mxu0
        %3271 = vmatprep.mubr.f32.mxu0 %v3178
        %3272 = vmatmul.mubr.f32.gmra.mrb[0].mxu0 %v3109
        %v3273 = vpop.f32.mrb[0].mxu0
        %v3274 = vadd.f32 %v3146, %v3273
        %v3275 = vpop.f32.mrb[0].mxu0
        %3276 = vmatprep.mubr.f32.mxu0 %v3181
        %3277 = vmatmul.mubr.f32.gmra.mrb[0].mxu0 %v3111
        %v3278 = vpop.f32.mrb[0].mxu0
        %v3279 = vadd.f32 %v3151, %v3278
        %v3280 = vpop.f32.mrb[0].mxu0
        %3281 = vmatprep.mubr.f32.mxu0 %v3184
        %3282 = vmatmul.mubr.f32.gmra.mrb[0].mxu0 %v3113
        %v3283 = vpop.f32.mrb[0].mxu0
        %v3284 = vadd.f32 %v3156, %v3283
        %v3285 = vpop.f32.mrb[0].mxu0
        %3286 = vmatprep.mubr.f32.mxu0 %v3187
        %3287 = vmatmul.mubr.f32.gmra.mrb[0].mxu0 %v3115
        %v3288 = vpop.f32.mrb[0].mxu0
        %v3289 = vadd.f32 %v3161, %v3288
        %v3290 = vpop.f32.mrb[0].mxu0
        %3291 = vmatprep.mubr.f32.mxu0 %v3190
        %3292 = vmatmul.mubr.f32.gmra.mrb[0].mxu0 %v3117
        %v3293 = vpop.f32.mrb[0].mxu0
        %v3294 = vadd.f32 %v3166, %v3293
        %v3295 = vpop.f32.mrb[0].mxu0
        %3296 = vdwg.mxu0
        %v3297 = vtanh.pop %v3259
        %v3298 = vtanh.pop %v3264
        %v3299 = vtanh.pop %v3269
        %v3300 = vtanh.pop %v3274
        %v3301 = vxor.u32 %v3279, 2147483648
        %v3302 = vxor.u32 %v3284, 2147483648
        %v3303 = vxor.u32 %v3289, 2147483648
        %v3304 = vxor.u32 %v3294, 2147483648
        %v3305 = vmul.f32 %v3301, 1.442695
        %v3306 = vpow.pop %v3305
        %v3307 = vmul.f32 %v3302, 1.442695
        %v3308 = vpow.pop %v3307
        %v3309 = vmul.f32 %v3303, 1.442695
        %v3310 = vpow.pop %v3309
        %v3311 = vmul.f32 %v3304, 1.442695
        %v3312 = vpow.pop %v3311
        %v3313 = vadd.f32 %v3306, 1.0
        %v3314 = vadd.f32 %v3308, 1.0
        %v3315 = vadd.f32 %v3310, 1.0
        %v3316 = vadd.f32 %v3312, 1.0
        %v3317 = vrcp.pop %v3313
        %v3318 = vmul.f32 1.0, %v3317
        %v3319 = vrcp.pop %v3314
        %v3320 = vmul.f32 1.0, %v3319
        %v3321 = vrcp.pop %v3315
        %v3322 = vmul.f32 1.0, %v3321
        %v3323 = vrcp.pop %v3316
        %v3324 = vmul.f32 1.0, %v3323
        %v3325 = vmul.f32 %v3297, %v3318
        %v3326 = vmul.f32 %v3298, %v3320
        %v3327 = vmul.f32 %v3299, %v3322
        %v3328 = vmul.f32 %v3300, %v3324
        %s3329 = scalar_lea.vmem %s6, 320
        %v3330 = vld [vmem:[%s3329] sm:$0xff]
        %v3331 = vld [vmem:[%s3329 + $0x8] sm:$0xff]
        %v3332 = vld [vmem:[%s3329 + $0x10] sm:$0xff]
        %v3333 = vld [vmem:[%s3329 + $0x18] sm:$0xff]
        %v3334 = vld [vmem:[%s3329 + $0x20] sm:$0xff]
        %v3335 = vld [vmem:[%s3329 + $0x28] sm:$0xff]
        %v3336 = vld [vmem:[%s3329 + $0x30] sm:$0xff]
        %v3337 = vld [vmem:[%s3329 + $0x38] sm:$0xff]
        %s3338 = scalar_lea.vmem %s7, 320
        %v3339 = vld [vmem:[%s3338] sm:$0xff]
        %v3340 = vld [vmem:[%s3338 + $0x8] sm:$0xff]
        %v3341 = vld [vmem:[%s3338 + $0x10] sm:$0xff]
        %v3342 = vld [vmem:[%s3338 + $0x18] sm:$0xff]
        %v3343 = vld [vmem:[%s3338 + $0x20] sm:$0xff]
        %v3344 = vld [vmem:[%s3338 + $0x28] sm:$0xff]
        %v3345 = vld [vmem:[%s3338 + $0x30] sm:$0xff]
        %v3346 = vld [vmem:[%s3338 + $0x38] sm:$0xff]
        %3348 = vset.pattern.permute.xlu0 0
        %3349 = vperm.xlu0 %3348, %v3339
        %v3350 = vpop.permute.xlu0 %3349
        %3353 = vset.pattern.permute.xlu0 0
        %3354 = vperm.xlu0 %3353, %v3340
        %v3355 = vpop.permute.xlu0 %3354
        %3358 = vset.pattern.permute.xlu0 0
        %3359 = vperm.xlu0 %3358, %v3341
        %v3360 = vpop.permute.xlu0 %3359
        %3363 = vset.pattern.permute.xlu0 0
        %3364 = vperm.xlu0 %3363, %v3342
        %v3365 = vpop.permute.xlu0 %3364
        %3368 = vset.pattern.permute.xlu0 0
        %3369 = vperm.xlu0 %3368, %v3343
        %v3370 = vpop.permute.xlu0 %3369
        %3373 = vset.pattern.permute.xlu0 0
        %3374 = vperm.xlu0 %3373, %v3344
        %v3375 = vpop.permute.xlu0 %3374
        %3378 = vset.pattern.permute.xlu0 0
        %3379 = vperm.xlu0 %3378, %v3345
        %v3380 = vpop.permute.xlu0 %3379
        %3383 = vset.pattern.permute.xlu0 0
        %3384 = vperm.xlu0 %3383, %v3346
        %v3385 = vpop.permute.xlu0 %3384
        %v3388 = vsel %vm649, %v3330, 0
        %v3391 = vsel %vm649, %v3331, 0
        %v3394 = vsel %vm649, %v3332, 0
        %v3397 = vsel %vm649, %v3333, 0
        %v3400 = vsel %vm649, %v3334, 0
        %v3403 = vsel %vm649, %v3335, 0
        %v3406 = vsel %vm649, %v3336, 0
        %v3409 = vsel %vm649, %v3337, 0
        %3411 = vmatprep.subr.mxu0 0.0
        %3412 = vmatpush1.msra.mxu0 %v3325
        %3413 = vmatprep.subr.mxu0 0.0
        %3414 = vmatpush1.msra.mxu0 %v3326
        %3415 = vmatprep.subr.mxu0 0.0
        %3416 = vmatpush1.msra.mxu0 %v3327
        %3417 = vmatprep.subr.mxu0 0.0
        %3418 = vmatpush1.msra.mxu0 %v3328
        %3419 = vmatprep.subr.mxu0 0.0
        %3420 = vmatpush1.msra.mxu0 0.0
        %3421 = vmatprep.subr.mxu0 0.0
        %3422 = vmatpush1.msra.mxu0 0.0
        %3423 = vmatprep.subr.mxu0 0.0
        %3424 = vmatpush1.msra.mxu0 0.0
        %3425 = vmatprep.subr.mxu0 0.0
        %3426 = vmatpush1.msra.mxu0 0.0
        %3427 = vmatprep.subr.mxu0 0.0
        %3428 = vmatpush1.msra.mxu0 0.0
        %3429 = vmatprep.subr.mxu0 0.0
        %3430 = vmatpush1.msra.mxu0 0.0
        %3431 = vmatprep.subr.mxu0 0.0
        %3432 = vmatpush1.msra.mxu0 0.0
        %3433 = vmatprep.subr.mxu0 0.0
        %3434 = vmatpush1.msra.mxu0 0.0
        %3435 = vmatprep.subr.mxu0 0.0
        %3436 = vmatpush1.msra.mxu0 0.0
        %3437 = vmatprep.subr.mxu0 0.0
        %3438 = vmatpush1.msra.mxu0 0.0
        %3439 = vmatprep.subr.mxu0 0.0
        %3440 = vmatpush1.msra.mxu0 0.0
        %3441 = vmatprep.subr.mxu0 0.0
        %3442 = vmatpush1.msra.mxu0 0.0
        %3443 = vmatprep.subr.mxu0 0.0
        %3444 = vmatpush1.msra.mxu0 0.0
        %3445 = vmatprep.subr.mxu0 0.0
        %3446 = vmatpush1.msra.mxu0 0.0
        %3447 = vmatprep.subr.mxu0 0.0
        %3448 = vmatpush1.msra.mxu0 0.0
        %3449 = vmatprep.subr.mxu0 0.0
        %3450 = vmatpush1.msra.mxu0 0.0
        %3451 = vmatprep.subr.mxu0 0.0
        %3452 = vmatpush1.msra.mxu0 0.0
        %3453 = vmatprep.subr.mxu0 0.0
        %3454 = vmatpush1.msra.mxu0 0.0
        %3455 = vmatprep.subr.mxu0 0.0
        %3456 = vmatpush1.msra.mxu0 0.0
        %3457 = vmatprep.subr.mxu0 0.0
        %3458 = vmatpush1.msra.mxu0 0.0
        %3459 = vmatprep.subr.mxu0 0.0
        %3460 = vmatpush1.msra.mxu0 0.0
        %3461 = vmatprep.subr.mxu0 0.0
        %3462 = vmatpush1.msra.mxu0 0.0
        %3463 = vmatprep.subr.mxu0 0.0
        %3464 = vmatpush1.msra.mxu0 0.0
        %3465 = vmatprep.subr.mxu0 0.0
        %3466 = vmatpush1.msra.mxu0 0.0
        %3467 = vmatprep.subr.mxu0 0.0
        %3468 = vmatpush1.msra.mxu0 0.0
        %3469 = vmatprep.subr.mxu0 0.0
        %3470 = vmatpush1.msra.mxu0 0.0
        %3471 = vmatprep.subr.mxu0 0.0
        %3472 = vmatpush1.msra.mxu0 0.0
        %3473 = vmatprep.subr.mxu0 0.0
        %3474 = vmatpush1.msra.mxu0 0.0
        %3475 = vmatprep.mubr.f32.mxu0 0.0
        %3476 = vmatmul.mubr.f32.gmra.mrb[0].mxu0 %v3388
        %v3477 = vpop.f32.mrb[0].mxu0
        %v3478 = vadd.f32 %v3350, %v3477
        %v3479 = vpop.f32.mrb[0].mxu0
        %3480 = vmatprep.mubr.f32.mxu0 0.0
        %3481 = vmatmul.mubr.f32.gmra.mrb[0].mxu0 %v3391
        %v3482 = vpop.f32.mrb[0].mxu0
        %v3483 = vadd.f32 %v3355, %v3482
        %v3484 = vpop.f32.mrb[0].mxu0
        %3485 = vmatprep.mubr.f32.mxu0 0.0
        %3486 = vmatmul.mubr.f32.gmra.mrb[0].mxu0 %v3394
        %v3487 = vpop.f32.mrb[0].mxu0
        %v3488 = vadd.f32 %v3360, %v3487
        %v3489 = vpop.f32.mrb[0].mxu0
        %3490 = vmatprep.mubr.f32.mxu0 0.0
        %3491 = vmatmul.mubr.f32.gmra.mrb[0].mxu0 %v3397
        %v3492 = vpop.f32.mrb[0].mxu0
        %v3493 = vadd.f32 %v3365, %v3492
        %v3494 = vpop.f32.mrb[0].mxu0
        %3495 = vmatprep.mubr.f32.mxu0 0.0
        %3496 = vmatmul.mubr.f32.gmra.mrb[0].mxu0 %v3400
        %v3497 = vpop.f32.mrb[0].mxu0
        %v3498 = vadd.f32 %v3370, %v3497
        %v3499 = vpop.f32.mrb[0].mxu0
        %3500 = vmatprep.mubr.f32.mxu0 0.0
        %3501 = vmatmul.mubr.f32.gmra.mrb[0].mxu0 %v3403
        %v3502 = vpop.f32.mrb[0].mxu0
        %v3503 = vadd.f32 %v3375, %v3502
        %v3504 = vpop.f32.mrb[0].mxu0
        %3505 = vmatprep.mubr.f32.mxu0 0.0
        %3506 = vmatmul.mubr.f32.gmra.mrb[0].mxu0 %v3406
        %v3507 = vpop.f32.mrb[0].mxu0
        %v3508 = vadd.f32 %v3380, %v3507
        %v3509 = vpop.f32.mrb[0].mxu0
        %3510 = vmatprep.mubr.f32.mxu0 0.0
        %3511 = vmatmul.mubr.f32.gmra.mrb[0].mxu0 %v3409
        %v3512 = vpop.f32.mrb[0].mxu0
        %v3513 = vadd.f32 %v3385, %v3512
        %v3514 = vpop.f32.mrb[0].mxu0
        %3515 = vdwg.mxu0
        %v3516 = vadd.f32 %v3046, %v3478
        %v3517 = vadd.f32 %v3047, %v3483
        %v3518 = vadd.f32 %v3048, %v3488
        %v3519 = vadd.f32 %v3049, %v3493
        %v3520 = vmul.f32 %v3516, %v377
        %v3521 = vmul.f32 %v3517, %v377
        %v3522 = vmul.f32 %v3518, %v377
        %v3523 = vmul.f32 %v3519, %v377
        %v3524 = vadd.f32 %v3050, %v3498
        %v3525 = vadd.f32 %v3051, %v3503
        %v3526 = vadd.f32 %v3052, %v3508
        %v3527 = vadd.f32 %v3053, %v3513
        %3528 = vrot.lane.b32.xlu0 %v3520, 2
        %v3529 = vpop.permute.xlu0 %3528
        %3530 = vrot.lane.b32.xlu0 %v3521, 2
        %v3531 = vpop.permute.xlu0 %3530
        %3532 = vrot.lane.b32.xlu0 %v3522, 2
        %v3533 = vpop.permute.xlu0 %3532
        %3534 = vrot.lane.b32.xlu0 %v3523, 2
        %v3535 = vpop.permute.xlu0 %3534
        %v3536 = vmul.f32 %v3529, %v386
        %v3537 = vmul.f32 %v3531, %v386
        %v3538 = vmul.f32 %v3533, %v386
        %v3539 = vmul.f32 %v3535, %v386
        %3540 = vrot.lane.b32.xlu0 %v3520, 1
        %v3541 = vpop.permute.xlu0 %3540
        %3542 = vrot.lane.b32.xlu0 %v3521, 1
        %v3543 = vpop.permute.xlu0 %3542
        %3544 = vrot.lane.b32.xlu0 %v3522, 1
        %v3545 = vpop.permute.xlu0 %3544
        %3546 = vrot.lane.b32.xlu0 %v3523, 1
        %v3547 = vpop.permute.xlu0 %3546
        %v3548 = vmul.f32 %v3541, %v392
        %v3549 = vmul.f32 %v3543, %v392
        %v3550 = vmul.f32 %v3545, %v392
        %v3551 = vmul.f32 %v3547, %v392
        %3552 = vrot.lane.b32.xlu0 %v3520, 127
        %v3553 = vpop.permute.xlu0 %3552
        %3554 = vrot.lane.b32.xlu0 %v3521, 127
        %v3555 = vpop.permute.xlu0 %3554
        %3556 = vrot.lane.b32.xlu0 %v3522, 127
        %v3557 = vpop.permute.xlu0 %3556
        %3558 = vrot.lane.b32.xlu0 %v3523, 127
        %v3559 = vpop.permute.xlu0 %3558
        %v3560 = vmul.f32 %v3553, %v398
        %v3561 = vmul.f32 %v3555, %v398
        %v3562 = vmul.f32 %v3557, %v398
        %v3563 = vmul.f32 %v3559, %v398
        %3564 = vrot.lane.b32.xlu0 %v3520, 126
        %v3565 = vpop.permute.xlu0 %3564
        %3566 = vrot.lane.b32.xlu0 %v3521, 126
        %v3567 = vpop.permute.xlu0 %3566
        %3568 = vrot.lane.b32.xlu0 %v3522, 126
        %v3569 = vpop.permute.xlu0 %3568
        %3570 = vrot.lane.b32.xlu0 %v3523, 126
        %v3571 = vpop.permute.xlu0 %3570
        %v3572 = vmul.f32 %v3565, %v404
        %v3573 = vmul.f32 %v3567, %v404
        %v3574 = vmul.f32 %v3569, %v404
        %v3575 = vmul.f32 %v3571, %v404
        %s3576 = scalar_lea.vmem %s4, 768
        %v3577 = vld [vmem:[%s3576] sm:$0xff]
        %v3578 = vld [vmem:[%s3576 + $0x8] sm:$0xff]
        %v3579 = vld [vmem:[%s3576 + $0x10] sm:$0xff]
        %v3580 = vld [vmem:[%s3576 + $0x18] sm:$0xff]
        %v3581 = vld [vmem:[%s3576 + $0x20] sm:$0xff]
        %v3582 = vld [vmem:[%s3576 + $0x28] sm:$0xff]
        %v3583 = vld [vmem:[%s3576 + $0x30] sm:$0xff]
        %v3584 = vld [vmem:[%s3576 + $0x38] sm:$0xff]
        %v3585 = vld [vmem:[%s3576 + $0x40] sm:$0xff]
        %v3586 = vld [vmem:[%s3576 + $0x48] sm:$0xff]
        %v3587 = vld [vmem:[%s3576 + $0x50] sm:$0xff]
        %v3588 = vld [vmem:[%s3576 + $0x58] sm:$0xff]
        %v3589 = vld [vmem:[%s3576 + $0x60] sm:$0xff]
        %v3590 = vld [vmem:[%s3576 + $0x68] sm:$0xff]
        %v3591 = vld [vmem:[%s3576 + $0x70] sm:$0xff]
        %v3592 = vld [vmem:[%s3576 + $0x78] sm:$0xff]
        %s3593 = scalar_lea.vmem %s5, 384
        %v3594 = vld [vmem:[%s3593] sm:$0xff]
        %v3595 = vld [vmem:[%s3593 + $0x8] sm:$0xff]
        %v3596 = vld [vmem:[%s3593 + $0x10] sm:$0xff]
        %v3597 = vld [vmem:[%s3593 + $0x18] sm:$0xff]
        %v3598 = vld [vmem:[%s3593 + $0x20] sm:$0xff]
        %v3599 = vld [vmem:[%s3593 + $0x28] sm:$0xff]
        %v3600 = vld [vmem:[%s3593 + $0x30] sm:$0xff]
        %v3601 = vld [vmem:[%s3593 + $0x38] sm:$0xff]
        %3603 = vset.pattern.permute.xlu0 0
        %3604 = vperm.xlu0 %3603, %v3594
        %v3605 = vpop.permute.xlu0 %3604
        %3608 = vset.pattern.permute.xlu0 0
        %3609 = vperm.xlu0 %3608, %v3595
        %v3610 = vpop.permute.xlu0 %3609
        %3613 = vset.pattern.permute.xlu0 0
        %3614 = vperm.xlu0 %3613, %v3596
        %v3615 = vpop.permute.xlu0 %3614
        %3618 = vset.pattern.permute.xlu0 0
        %3619 = vperm.xlu0 %3618, %v3597
        %v3620 = vpop.permute.xlu0 %3619
        %3623 = vset.pattern.permute.xlu0 0
        %3624 = vperm.xlu0 %3623, %v3598
        %v3625 = vpop.permute.xlu0 %3624
        %3628 = vset.pattern.permute.xlu0 0
        %3629 = vperm.xlu0 %3628, %v3599
        %v3630 = vpop.permute.xlu0 %3629
        %3633 = vset.pattern.permute.xlu0 0
        %3634 = vperm.xlu0 %3633, %v3600
        %v3635 = vpop.permute.xlu0 %3634
        %3638 = vset.pattern.permute.xlu0 0
        %3639 = vperm.xlu0 %3638, %v3601
        %v3640 = vpop.permute.xlu0 %3639
        %v3643 = vsel %vm649, %v3578, 0
        %v3646 = vsel %vm649, %v3580, 0
        %v3649 = vsel %vm649, %v3582, 0
        %v3652 = vsel %vm649, %v3584, 0
        %v3655 = vsel %vm649, %v3586, 0
        %v3658 = vsel %vm649, %v3588, 0
        %v3661 = vsel %vm649, %v3590, 0
        %v3664 = vsel %vm649, %v3592, 0
        %3666 = vmatprep.subr.mxu0 0.0
        %3667 = vmatpush1.msra.mxu0 %v3536
        %3668 = vmatprep.subr.mxu0 0.0
        %3669 = vmatpush1.msra.mxu0 %v3537
        %3670 = vmatprep.subr.mxu0 0.0
        %3671 = vmatpush1.msra.mxu0 %v3538
        %3672 = vmatprep.subr.mxu0 0.0
        %3673 = vmatpush1.msra.mxu0 %v3539
        %3674 = vmatprep.subr.mxu0 0.0
        %3675 = vmatpush1.msra.mxu0 %v3548
        %3676 = vmatprep.subr.mxu0 0.0
        %3677 = vmatpush1.msra.mxu0 %v3549
        %3678 = vmatprep.subr.mxu0 0.0
        %3679 = vmatpush1.msra.mxu0 %v3550
        %3680 = vmatprep.subr.mxu0 0.0
        %3681 = vmatpush1.msra.mxu0 %v3551
        %3682 = vmatprep.subr.mxu0 0.0
        %3683 = vmatpush1.msra.mxu0 %v3520
        %3684 = vmatprep.subr.mxu0 0.0
        %3685 = vmatpush1.msra.mxu0 %v3521
        %3686 = vmatprep.subr.mxu0 0.0
        %3687 = vmatpush1.msra.mxu0 %v3522
        %3688 = vmatprep.subr.mxu0 0.0
        %3689 = vmatpush1.msra.mxu0 %v3523
        %3690 = vmatprep.subr.mxu0 0.0
        %3691 = vmatpush1.msra.mxu0 %v3560
        %3692 = vmatprep.subr.mxu0 0.0
        %3693 = vmatpush1.msra.mxu0 %v3561
        %3694 = vmatprep.subr.mxu0 0.0
        %3695 = vmatpush1.msra.mxu0 %v3562
        %3696 = vmatprep.subr.mxu0 0.0
        %3697 = vmatpush1.msra.mxu0 %v3563
        %3698 = vmatprep.subr.mxu0 0.0
        %3699 = vmatpush1.msra.mxu0 %v3572
        %3700 = vmatprep.subr.mxu0 0.0
        %3701 = vmatpush1.msra.mxu0 %v3573
        %3702 = vmatprep.subr.mxu0 0.0
        %3703 = vmatpush1.msra.mxu0 %v3574
        %3704 = vmatprep.subr.mxu0 0.0
        %3705 = vmatpush1.msra.mxu0 %v3575
        %3706 = vmatprep.subr.mxu0 0.0
        %3707 = vmatpush1.msra.mxu0 0.0
        %3708 = vmatprep.subr.mxu0 0.0
        %3709 = vmatpush1.msra.mxu0 0.0
        %3710 = vmatprep.subr.mxu0 0.0
        %3711 = vmatpush1.msra.mxu0 0.0
        %3712 = vmatprep.subr.mxu0 0.0
        %3713 = vmatpush1.msra.mxu0 0.0
        %3714 = vmatprep.subr.mxu0 0.0
        %3715 = vmatpush1.msra.mxu0 0.0
        %3716 = vmatprep.subr.mxu0 0.0
        %3717 = vmatpush1.msra.mxu0 0.0
        %3718 = vmatprep.subr.mxu0 0.0
        %3719 = vmatpush1.msra.mxu0 0.0
        %3720 = vmatprep.subr.mxu0 0.0
        %3721 = vmatpush1.msra.mxu0 0.0
        %3722 = vmatprep.subr.mxu0 0.0
        %3723 = vmatpush1.msra.mxu0 0.0
        %3724 = vmatprep.subr.mxu0 0.0
        %3725 = vmatpush1.msra.mxu0 0.0
        %3726 = vmatprep.subr.mxu0 0.0
        %3727 = vmatpush1.msra.mxu0 0.0
        %3728 = vmatprep.subr.mxu0 0.0
        %3729 = vmatpush1.msra.mxu0 0.0
        %3730 = vmatprep.mubr.f32.mxu0 %v3643
        %3731 = vmatmul.mubr.f32.gmra.mrb[0].mxu0 %v3577
        %v3732 = vpop.f32.mrb[0].mxu0
        %v3733 = vadd.f32 %v3605, %v3732
        %v3734 = vpop.f32.mrb[0].mxu0
        %3735 = vmatprep.mubr.f32.mxu0 %v3646
        %3736 = vmatmul.mubr.f32.gmra.mrb[0].mxu0 %v3579
        %v3737 = vpop.f32.mrb[0].mxu0
        %v3738 = vadd.f32 %v3610, %v3737
        %v3739 = vpop.f32.mrb[0].mxu0
        %3740 = vmatprep.mubr.f32.mxu0 %v3649
        %3741 = vmatmul.mubr.f32.gmra.mrb[0].mxu0 %v3581
        %v3742 = vpop.f32.mrb[0].mxu0
        %v3743 = vadd.f32 %v3615, %v3742
        %v3744 = vpop.f32.mrb[0].mxu0
        %3745 = vmatprep.mubr.f32.mxu0 %v3652
        %3746 = vmatmul.mubr.f32.gmra.mrb[0].mxu0 %v3583
        %v3747 = vpop.f32.mrb[0].mxu0
        %v3748 = vadd.f32 %v3620, %v3747
        %v3749 = vpop.f32.mrb[0].mxu0
        %3750 = vmatprep.mubr.f32.mxu0 %v3655
        %3751 = vmatmul.mubr.f32.gmra.mrb[0].mxu0 %v3585
        %v3752 = vpop.f32.mrb[0].mxu0
        %v3753 = vadd.f32 %v3625, %v3752
        %v3754 = vpop.f32.mrb[0].mxu0
        %3755 = vmatprep.mubr.f32.mxu0 %v3658
        %3756 = vmatmul.mubr.f32.gmra.mrb[0].mxu0 %v3587
        %v3757 = vpop.f32.mrb[0].mxu0
        %v3758 = vadd.f32 %v3630, %v3757
        %v3759 = vpop.f32.mrb[0].mxu0
        %3760 = vmatprep.mubr.f32.mxu0 %v3661
        %3761 = vmatmul.mubr.f32.gmra.mrb[0].mxu0 %v3589
        %v3762 = vpop.f32.mrb[0].mxu0
        %v3763 = vadd.f32 %v3635, %v3762
        %v3764 = vpop.f32.mrb[0].mxu0
        %3765 = vmatprep.mubr.f32.mxu0 %v3664
        %3766 = vmatmul.mubr.f32.gmra.mrb[0].mxu0 %v3591
        %v3767 = vpop.f32.mrb[0].mxu0
        %v3768 = vadd.f32 %v3640, %v3767
        %v3769 = vpop.f32.mrb[0].mxu0
        %3770 = vdwg.mxu0
        %v3771 = vtanh.pop %v3733
        %v3772 = vtanh.pop %v3738
        %v3773 = vtanh.pop %v3743
        %v3774 = vtanh.pop %v3748
        %v3775 = vxor.u32 %v3753, 2147483648
        %v3776 = vxor.u32 %v3758, 2147483648
        %v3777 = vxor.u32 %v3763, 2147483648
        %v3778 = vxor.u32 %v3768, 2147483648
        %v3779 = vmul.f32 %v3775, 1.442695
        %v3780 = vpow.pop %v3779
        %v3781 = vmul.f32 %v3776, 1.442695
        %v3782 = vpow.pop %v3781
        %v3783 = vmul.f32 %v3777, 1.442695
        %v3784 = vpow.pop %v3783
        %v3785 = vmul.f32 %v3778, 1.442695
        %v3786 = vpow.pop %v3785
        %v3787 = vadd.f32 %v3780, 1.0
        %v3788 = vadd.f32 %v3782, 1.0
        %v3789 = vadd.f32 %v3784, 1.0
        %v3790 = vadd.f32 %v3786, 1.0
        %v3791 = vrcp.pop %v3787
        %v3792 = vmul.f32 1.0, %v3791
        %v3793 = vrcp.pop %v3788
        %v3794 = vmul.f32 1.0, %v3793
        %v3795 = vrcp.pop %v3789
        %v3796 = vmul.f32 1.0, %v3795
        %v3797 = vrcp.pop %v3790
        %v3798 = vmul.f32 1.0, %v3797
        %v3799 = vmul.f32 %v3771, %v3792
        %v3800 = vmul.f32 %v3772, %v3794
        %v3801 = vmul.f32 %v3773, %v3796
        %v3802 = vmul.f32 %v3774, %v3798
        %s3803 = scalar_lea.vmem %s6, 384
        %v3804 = vld [vmem:[%s3803] sm:$0xff]
        %v3805 = vld [vmem:[%s3803 + $0x8] sm:$0xff]
        %v3806 = vld [vmem:[%s3803 + $0x10] sm:$0xff]
        %v3807 = vld [vmem:[%s3803 + $0x18] sm:$0xff]
        %v3808 = vld [vmem:[%s3803 + $0x20] sm:$0xff]
        %v3809 = vld [vmem:[%s3803 + $0x28] sm:$0xff]
        %v3810 = vld [vmem:[%s3803 + $0x30] sm:$0xff]
        %v3811 = vld [vmem:[%s3803 + $0x38] sm:$0xff]
        %s3812 = scalar_lea.vmem %s7, 384
        %v3813 = vld [vmem:[%s3812] sm:$0xff]
        %v3814 = vld [vmem:[%s3812 + $0x8] sm:$0xff]
        %v3815 = vld [vmem:[%s3812 + $0x10] sm:$0xff]
        %v3816 = vld [vmem:[%s3812 + $0x18] sm:$0xff]
        %v3817 = vld [vmem:[%s3812 + $0x20] sm:$0xff]
        %v3818 = vld [vmem:[%s3812 + $0x28] sm:$0xff]
        %v3819 = vld [vmem:[%s3812 + $0x30] sm:$0xff]
        %v3820 = vld [vmem:[%s3812 + $0x38] sm:$0xff]
        %3822 = vset.pattern.permute.xlu0 0
        %3823 = vperm.xlu0 %3822, %v3813
        %v3824 = vpop.permute.xlu0 %3823
        %3827 = vset.pattern.permute.xlu0 0
        %3828 = vperm.xlu0 %3827, %v3814
        %v3829 = vpop.permute.xlu0 %3828
        %3832 = vset.pattern.permute.xlu0 0
        %3833 = vperm.xlu0 %3832, %v3815
        %v3834 = vpop.permute.xlu0 %3833
        %3837 = vset.pattern.permute.xlu0 0
        %3838 = vperm.xlu0 %3837, %v3816
        %v3839 = vpop.permute.xlu0 %3838
        %3842 = vset.pattern.permute.xlu0 0
        %3843 = vperm.xlu0 %3842, %v3817
        %v3844 = vpop.permute.xlu0 %3843
        %3847 = vset.pattern.permute.xlu0 0
        %3848 = vperm.xlu0 %3847, %v3818
        %v3849 = vpop.permute.xlu0 %3848
        %3852 = vset.pattern.permute.xlu0 0
        %3853 = vperm.xlu0 %3852, %v3819
        %v3854 = vpop.permute.xlu0 %3853
        %3857 = vset.pattern.permute.xlu0 0
        %3858 = vperm.xlu0 %3857, %v3820
        %v3859 = vpop.permute.xlu0 %3858
        %v3862 = vsel %vm649, %v3804, 0
        %v3865 = vsel %vm649, %v3805, 0
        %v3868 = vsel %vm649, %v3806, 0
        %v3871 = vsel %vm649, %v3807, 0
        %v3874 = vsel %vm649, %v3808, 0
        %v3877 = vsel %vm649, %v3809, 0
        %v3880 = vsel %vm649, %v3810, 0
        %v3883 = vsel %vm649, %v3811, 0
        %3885 = vmatprep.subr.mxu0 0.0
        %3886 = vmatpush1.msra.mxu0 %v3799
        %3887 = vmatprep.subr.mxu0 0.0
        %3888 = vmatpush1.msra.mxu0 %v3800
        %3889 = vmatprep.subr.mxu0 0.0
        %3890 = vmatpush1.msra.mxu0 %v3801
        %3891 = vmatprep.subr.mxu0 0.0
        %3892 = vmatpush1.msra.mxu0 %v3802
        %3893 = vmatprep.subr.mxu0 0.0
        %3894 = vmatpush1.msra.mxu0 0.0
        %3895 = vmatprep.subr.mxu0 0.0
        %3896 = vmatpush1.msra.mxu0 0.0
        %3897 = vmatprep.subr.mxu0 0.0
        %3898 = vmatpush1.msra.mxu0 0.0
        %3899 = vmatprep.subr.mxu0 0.0
        %3900 = vmatpush1.msra.mxu0 0.0
        %3901 = vmatprep.subr.mxu0 0.0
        %3902 = vmatpush1.msra.mxu0 0.0
        %3903 = vmatprep.subr.mxu0 0.0
        %3904 = vmatpush1.msra.mxu0 0.0
        %3905 = vmatprep.subr.mxu0 0.0
        %3906 = vmatpush1.msra.mxu0 0.0
        %3907 = vmatprep.subr.mxu0 0.0
        %3908 = vmatpush1.msra.mxu0 0.0
        %3909 = vmatprep.subr.mxu0 0.0
        %3910 = vmatpush1.msra.mxu0 0.0
        %3911 = vmatprep.subr.mxu0 0.0
        %3912 = vmatpush1.msra.mxu0 0.0
        %3913 = vmatprep.subr.mxu0 0.0
        %3914 = vmatpush1.msra.mxu0 0.0
        %3915 = vmatprep.subr.mxu0 0.0
        %3916 = vmatpush1.msra.mxu0 0.0
        %3917 = vmatprep.subr.mxu0 0.0
        %3918 = vmatpush1.msra.mxu0 0.0
        %3919 = vmatprep.subr.mxu0 0.0
        %3920 = vmatpush1.msra.mxu0 0.0
        %3921 = vmatprep.subr.mxu0 0.0
        %3922 = vmatpush1.msra.mxu0 0.0
        %3923 = vmatprep.subr.mxu0 0.0
        %3924 = vmatpush1.msra.mxu0 0.0
        %3925 = vmatprep.subr.mxu0 0.0
        %3926 = vmatpush1.msra.mxu0 0.0
        %3927 = vmatprep.subr.mxu0 0.0
        %3928 = vmatpush1.msra.mxu0 0.0
        %3929 = vmatprep.subr.mxu0 0.0
        %3930 = vmatpush1.msra.mxu0 0.0
        %3931 = vmatprep.subr.mxu0 0.0
        %3932 = vmatpush1.msra.mxu0 0.0
        %3933 = vmatprep.subr.mxu0 0.0
        %3934 = vmatpush1.msra.mxu0 0.0
        %3935 = vmatprep.subr.mxu0 0.0
        %3936 = vmatpush1.msra.mxu0 0.0
        %3937 = vmatprep.subr.mxu0 0.0
        %3938 = vmatpush1.msra.mxu0 0.0
        %3939 = vmatprep.subr.mxu0 0.0
        %3940 = vmatpush1.msra.mxu0 0.0
        %3941 = vmatprep.subr.mxu0 0.0
        %3942 = vmatpush1.msra.mxu0 0.0
        %3943 = vmatprep.subr.mxu0 0.0
        %3944 = vmatpush1.msra.mxu0 0.0
        %3945 = vmatprep.subr.mxu0 0.0
        %3946 = vmatpush1.msra.mxu0 0.0
        %3947 = vmatprep.subr.mxu0 0.0
        %3948 = vmatpush1.msra.mxu0 0.0
        %3949 = vmatprep.mubr.f32.mxu0 0.0
        %3950 = vmatmul.mubr.f32.gmra.mrb[0].mxu0 %v3862
        %v3951 = vpop.f32.mrb[0].mxu0
        %v3952 = vadd.f32 %v3824, %v3951
        %v3953 = vpop.f32.mrb[0].mxu0
        %3954 = vmatprep.mubr.f32.mxu0 0.0
        %3955 = vmatmul.mubr.f32.gmra.mrb[0].mxu0 %v3865
        %v3956 = vpop.f32.mrb[0].mxu0
        %v3957 = vadd.f32 %v3829, %v3956
        %v3958 = vpop.f32.mrb[0].mxu0
        %3959 = vmatprep.mubr.f32.mxu0 0.0
        %3960 = vmatmul.mubr.f32.gmra.mrb[0].mxu0 %v3868
        %v3961 = vpop.f32.mrb[0].mxu0
        %v3962 = vadd.f32 %v3834, %v3961
        %v3963 = vpop.f32.mrb[0].mxu0
        %3964 = vmatprep.mubr.f32.mxu0 0.0
        %3965 = vmatmul.mubr.f32.gmra.mrb[0].mxu0 %v3871
        %v3966 = vpop.f32.mrb[0].mxu0
        %v3967 = vadd.f32 %v3839, %v3966
        %v3968 = vpop.f32.mrb[0].mxu0
        %3969 = vmatprep.mubr.f32.mxu0 0.0
        %3970 = vmatmul.mubr.f32.gmra.mrb[0].mxu0 %v3874
        %v3971 = vpop.f32.mrb[0].mxu0
        %v3972 = vadd.f32 %v3844, %v3971
        %v3973 = vpop.f32.mrb[0].mxu0
        %3974 = vmatprep.mubr.f32.mxu0 0.0
        %3975 = vmatmul.mubr.f32.gmra.mrb[0].mxu0 %v3877
        %v3976 = vpop.f32.mrb[0].mxu0
        %v3977 = vadd.f32 %v3849, %v3976
        %v3978 = vpop.f32.mrb[0].mxu0
        %3979 = vmatprep.mubr.f32.mxu0 0.0
        %3980 = vmatmul.mubr.f32.gmra.mrb[0].mxu0 %v3880
        %v3981 = vpop.f32.mrb[0].mxu0
        %v3982 = vadd.f32 %v3854, %v3981
        %v3983 = vpop.f32.mrb[0].mxu0
        %3984 = vmatprep.mubr.f32.mxu0 0.0
        %3985 = vmatmul.mubr.f32.gmra.mrb[0].mxu0 %v3883
        %v3986 = vpop.f32.mrb[0].mxu0
        %v3987 = vadd.f32 %v3859, %v3986
        %v3988 = vpop.f32.mrb[0].mxu0
        %3989 = vdwg.mxu0
        %v3990 = vadd.f32 %v3520, %v3952
        %v3991 = vadd.f32 %v3521, %v3957
        %v3992 = vadd.f32 %v3522, %v3962
        %v3993 = vadd.f32 %v3523, %v3967
        %v3994 = vmul.f32 %v3990, %v377
        %v3995 = vmul.f32 %v3991, %v377
        %v3996 = vmul.f32 %v3992, %v377
        %v3997 = vmul.f32 %v3993, %v377
        %v3998 = vadd.f32 %v3524, %v3972
        %v3999 = vadd.f32 %v3525, %v3977
        %v4000 = vadd.f32 %v3526, %v3982
        %v4001 = vadd.f32 %v3527, %v3987
        %4002 = vrot.lane.b32.xlu0 %v3994, 2
        %v4003 = vpop.permute.xlu0 %4002
        %4004 = vrot.lane.b32.xlu0 %v3995, 2
        %v4005 = vpop.permute.xlu0 %4004
        %4006 = vrot.lane.b32.xlu0 %v3996, 2
        %v4007 = vpop.permute.xlu0 %4006
        %4008 = vrot.lane.b32.xlu0 %v3997, 2
        %v4009 = vpop.permute.xlu0 %4008
        %v4010 = vmul.f32 %v4003, %v386
        %v4011 = vmul.f32 %v4005, %v386
        %v4012 = vmul.f32 %v4007, %v386
        %v4013 = vmul.f32 %v4009, %v386
        %4014 = vrot.lane.b32.xlu0 %v3994, 1
        %v4015 = vpop.permute.xlu0 %4014
        %4016 = vrot.lane.b32.xlu0 %v3995, 1
        %v4017 = vpop.permute.xlu0 %4016
        %4018 = vrot.lane.b32.xlu0 %v3996, 1
        %v4019 = vpop.permute.xlu0 %4018
        %4020 = vrot.lane.b32.xlu0 %v3997, 1
        %v4021 = vpop.permute.xlu0 %4020
        %v4022 = vmul.f32 %v4015, %v392
        %v4023 = vmul.f32 %v4017, %v392
        %v4024 = vmul.f32 %v4019, %v392
        %v4025 = vmul.f32 %v4021, %v392
        %4026 = vrot.lane.b32.xlu0 %v3994, 127
        %v4027 = vpop.permute.xlu0 %4026
        %4028 = vrot.lane.b32.xlu0 %v3995, 127
        %v4029 = vpop.permute.xlu0 %4028
        %4030 = vrot.lane.b32.xlu0 %v3996, 127
        %v4031 = vpop.permute.xlu0 %4030
        %4032 = vrot.lane.b32.xlu0 %v3997, 127
        %v4033 = vpop.permute.xlu0 %4032
        %v4034 = vmul.f32 %v4027, %v398
        %v4035 = vmul.f32 %v4029, %v398
        %v4036 = vmul.f32 %v4031, %v398
        %v4037 = vmul.f32 %v4033, %v398
        %4038 = vrot.lane.b32.xlu0 %v3994, 126
        %v4039 = vpop.permute.xlu0 %4038
        %4040 = vrot.lane.b32.xlu0 %v3995, 126
        %v4041 = vpop.permute.xlu0 %4040
        %4042 = vrot.lane.b32.xlu0 %v3996, 126
        %v4043 = vpop.permute.xlu0 %4042
        %4044 = vrot.lane.b32.xlu0 %v3997, 126
        %v4045 = vpop.permute.xlu0 %4044
        %v4046 = vmul.f32 %v4039, %v404
        %v4047 = vmul.f32 %v4041, %v404
        %v4048 = vmul.f32 %v4043, %v404
        %v4049 = vmul.f32 %v4045, %v404
        %s4050 = scalar_lea.vmem %s4, 896
        %v4051 = vld [vmem:[%s4050] sm:$0xff]
        %v4052 = vld [vmem:[%s4050 + $0x8] sm:$0xff]
        %v4053 = vld [vmem:[%s4050 + $0x10] sm:$0xff]
        %v4054 = vld [vmem:[%s4050 + $0x18] sm:$0xff]
        %v4055 = vld [vmem:[%s4050 + $0x20] sm:$0xff]
        %v4056 = vld [vmem:[%s4050 + $0x28] sm:$0xff]
        %v4057 = vld [vmem:[%s4050 + $0x30] sm:$0xff]
        %v4058 = vld [vmem:[%s4050 + $0x38] sm:$0xff]
        %v4059 = vld [vmem:[%s4050 + $0x40] sm:$0xff]
        %v4060 = vld [vmem:[%s4050 + $0x48] sm:$0xff]
        %v4061 = vld [vmem:[%s4050 + $0x50] sm:$0xff]
        %v4062 = vld [vmem:[%s4050 + $0x58] sm:$0xff]
        %v4063 = vld [vmem:[%s4050 + $0x60] sm:$0xff]
        %v4064 = vld [vmem:[%s4050 + $0x68] sm:$0xff]
        %v4065 = vld [vmem:[%s4050 + $0x70] sm:$0xff]
        %v4066 = vld [vmem:[%s4050 + $0x78] sm:$0xff]
        %s4067 = scalar_lea.vmem %s5, 448
        %v4068 = vld [vmem:[%s4067] sm:$0xff]
        %v4069 = vld [vmem:[%s4067 + $0x8] sm:$0xff]
        %v4070 = vld [vmem:[%s4067 + $0x10] sm:$0xff]
        %v4071 = vld [vmem:[%s4067 + $0x18] sm:$0xff]
        %v4072 = vld [vmem:[%s4067 + $0x20] sm:$0xff]
        %v4073 = vld [vmem:[%s4067 + $0x28] sm:$0xff]
        %v4074 = vld [vmem:[%s4067 + $0x30] sm:$0xff]
        %v4075 = vld [vmem:[%s4067 + $0x38] sm:$0xff]
        %4077 = vset.pattern.permute.xlu0 0
        %4078 = vperm.xlu0 %4077, %v4068
        %v4079 = vpop.permute.xlu0 %4078
        %4082 = vset.pattern.permute.xlu0 0
        %4083 = vperm.xlu0 %4082, %v4069
        %v4084 = vpop.permute.xlu0 %4083
        %4087 = vset.pattern.permute.xlu0 0
        %4088 = vperm.xlu0 %4087, %v4070
        %v4089 = vpop.permute.xlu0 %4088
        %4092 = vset.pattern.permute.xlu0 0
        %4093 = vperm.xlu0 %4092, %v4071
        %v4094 = vpop.permute.xlu0 %4093
        %4097 = vset.pattern.permute.xlu0 0
        %4098 = vperm.xlu0 %4097, %v4072
        %v4099 = vpop.permute.xlu0 %4098
        %4102 = vset.pattern.permute.xlu0 0
        %4103 = vperm.xlu0 %4102, %v4073
        %v4104 = vpop.permute.xlu0 %4103
        %4107 = vset.pattern.permute.xlu0 0
        %4108 = vperm.xlu0 %4107, %v4074
        %v4109 = vpop.permute.xlu0 %4108
        %4112 = vset.pattern.permute.xlu0 0
        %4113 = vperm.xlu0 %4112, %v4075
        %v4114 = vpop.permute.xlu0 %4113
        %v4117 = vsel %vm649, %v4052, 0
        %v4120 = vsel %vm649, %v4054, 0
        %v4123 = vsel %vm649, %v4056, 0
        %v4126 = vsel %vm649, %v4058, 0
        %v4129 = vsel %vm649, %v4060, 0
        %v4132 = vsel %vm649, %v4062, 0
        %v4135 = vsel %vm649, %v4064, 0
        %v4138 = vsel %vm649, %v4066, 0
        %4140 = vmatprep.subr.mxu0 0.0
        %4141 = vmatpush1.msra.mxu0 %v4010
        %4142 = vmatprep.subr.mxu0 0.0
        %4143 = vmatpush1.msra.mxu0 %v4011
        %4144 = vmatprep.subr.mxu0 0.0
        %4145 = vmatpush1.msra.mxu0 %v4012
        %4146 = vmatprep.subr.mxu0 0.0
        %4147 = vmatpush1.msra.mxu0 %v4013
        %4148 = vmatprep.subr.mxu0 0.0
        %4149 = vmatpush1.msra.mxu0 %v4022
        %4150 = vmatprep.subr.mxu0 0.0
        %4151 = vmatpush1.msra.mxu0 %v4023
        %4152 = vmatprep.subr.mxu0 0.0
        %4153 = vmatpush1.msra.mxu0 %v4024
        %4154 = vmatprep.subr.mxu0 0.0
        %4155 = vmatpush1.msra.mxu0 %v4025
        %4156 = vmatprep.subr.mxu0 0.0
        %4157 = vmatpush1.msra.mxu0 %v3994
        %4158 = vmatprep.subr.mxu0 0.0
        %4159 = vmatpush1.msra.mxu0 %v3995
        %4160 = vmatprep.subr.mxu0 0.0
        %4161 = vmatpush1.msra.mxu0 %v3996
        %4162 = vmatprep.subr.mxu0 0.0
        %4163 = vmatpush1.msra.mxu0 %v3997
        %4164 = vmatprep.subr.mxu0 0.0
        %4165 = vmatpush1.msra.mxu0 %v4034
        %4166 = vmatprep.subr.mxu0 0.0
        %4167 = vmatpush1.msra.mxu0 %v4035
        %4168 = vmatprep.subr.mxu0 0.0
        %4169 = vmatpush1.msra.mxu0 %v4036
        %4170 = vmatprep.subr.mxu0 0.0
        %4171 = vmatpush1.msra.mxu0 %v4037
        %4172 = vmatprep.subr.mxu0 0.0
        %4173 = vmatpush1.msra.mxu0 %v4046
        %4174 = vmatprep.subr.mxu0 0.0
        %4175 = vmatpush1.msra.mxu0 %v4047
        %4176 = vmatprep.subr.mxu0 0.0
        %4177 = vmatpush1.msra.mxu0 %v4048
        %4178 = vmatprep.subr.mxu0 0.0
        %4179 = vmatpush1.msra.mxu0 %v4049
        %4180 = vmatprep.subr.mxu0 0.0
        %4181 = vmatpush1.msra.mxu0 0.0
        %4182 = vmatprep.subr.mxu0 0.0
        %4183 = vmatpush1.msra.mxu0 0.0
        %4184 = vmatprep.subr.mxu0 0.0
        %4185 = vmatpush1.msra.mxu0 0.0
        %4186 = vmatprep.subr.mxu0 0.0
        %4187 = vmatpush1.msra.mxu0 0.0
        %4188 = vmatprep.subr.mxu0 0.0
        %4189 = vmatpush1.msra.mxu0 0.0
        %4190 = vmatprep.subr.mxu0 0.0
        %4191 = vmatpush1.msra.mxu0 0.0
        %4192 = vmatprep.subr.mxu0 0.0
        %4193 = vmatpush1.msra.mxu0 0.0
        %4194 = vmatprep.subr.mxu0 0.0
        %4195 = vmatpush1.msra.mxu0 0.0
        %4196 = vmatprep.subr.mxu0 0.0
        %4197 = vmatpush1.msra.mxu0 0.0
        %4198 = vmatprep.subr.mxu0 0.0
        %4199 = vmatpush1.msra.mxu0 0.0
        %4200 = vmatprep.subr.mxu0 0.0
        %4201 = vmatpush1.msra.mxu0 0.0
        %4202 = vmatprep.subr.mxu0 0.0
        %4203 = vmatpush1.msra.mxu0 0.0
        %4204 = vmatprep.mubr.f32.mxu0 %v4117
        %4205 = vmatmul.mubr.f32.gmra.mrb[0].mxu0 %v4051
        %v4206 = vpop.f32.mrb[0].mxu0
        %v4207 = vadd.f32 %v4079, %v4206
        %v4208 = vpop.f32.mrb[0].mxu0
        %4209 = vmatprep.mubr.f32.mxu0 %v4120
        %4210 = vmatmul.mubr.f32.gmra.mrb[0].mxu0 %v4053
        %v4211 = vpop.f32.mrb[0].mxu0
        %v4212 = vadd.f32 %v4084, %v4211
        %v4213 = vpop.f32.mrb[0].mxu0
        %4214 = vmatprep.mubr.f32.mxu0 %v4123
        %4215 = vmatmul.mubr.f32.gmra.mrb[0].mxu0 %v4055
        %v4216 = vpop.f32.mrb[0].mxu0
        %v4217 = vadd.f32 %v4089, %v4216
        %v4218 = vpop.f32.mrb[0].mxu0
        %4219 = vmatprep.mubr.f32.mxu0 %v4126
        %4220 = vmatmul.mubr.f32.gmra.mrb[0].mxu0 %v4057
        %v4221 = vpop.f32.mrb[0].mxu0
        %v4222 = vadd.f32 %v4094, %v4221
        %v4223 = vpop.f32.mrb[0].mxu0
        %4224 = vmatprep.mubr.f32.mxu0 %v4129
        %4225 = vmatmul.mubr.f32.gmra.mrb[0].mxu0 %v4059
        %v4226 = vpop.f32.mrb[0].mxu0
        %v4227 = vadd.f32 %v4099, %v4226
        %v4228 = vpop.f32.mrb[0].mxu0
        %4229 = vmatprep.mubr.f32.mxu0 %v4132
        %4230 = vmatmul.mubr.f32.gmra.mrb[0].mxu0 %v4061
        %v4231 = vpop.f32.mrb[0].mxu0
        %v4232 = vadd.f32 %v4104, %v4231
        %v4233 = vpop.f32.mrb[0].mxu0
        %4234 = vmatprep.mubr.f32.mxu0 %v4135
        %4235 = vmatmul.mubr.f32.gmra.mrb[0].mxu0 %v4063
        %v4236 = vpop.f32.mrb[0].mxu0
        %v4237 = vadd.f32 %v4109, %v4236
        %v4238 = vpop.f32.mrb[0].mxu0
        %4239 = vmatprep.mubr.f32.mxu0 %v4138
        %4240 = vmatmul.mubr.f32.gmra.mrb[0].mxu0 %v4065
        %v4241 = vpop.f32.mrb[0].mxu0
        %v4242 = vadd.f32 %v4114, %v4241
        %v4243 = vpop.f32.mrb[0].mxu0
        %4244 = vdwg.mxu0
        %v4245 = vtanh.pop %v4207
        %v4246 = vtanh.pop %v4212
        %v4247 = vtanh.pop %v4217
        %v4248 = vtanh.pop %v4222
        %v4249 = vxor.u32 %v4227, 2147483648
        %v4250 = vxor.u32 %v4232, 2147483648
        %v4251 = vxor.u32 %v4237, 2147483648
        %v4252 = vxor.u32 %v4242, 2147483648
        %v4253 = vmul.f32 %v4249, 1.442695
        %v4254 = vpow.pop %v4253
        %v4255 = vmul.f32 %v4250, 1.442695
        %v4256 = vpow.pop %v4255
        %v4257 = vmul.f32 %v4251, 1.442695
        %v4258 = vpow.pop %v4257
        %v4259 = vmul.f32 %v4252, 1.442695
        %v4260 = vpow.pop %v4259
        %v4261 = vadd.f32 %v4254, 1.0
        %v4262 = vadd.f32 %v4256, 1.0
        %v4263 = vadd.f32 %v4258, 1.0
        %v4264 = vadd.f32 %v4260, 1.0
        %v4265 = vrcp.pop %v4261
        %v4266 = vmul.f32 1.0, %v4265
        %v4267 = vrcp.pop %v4262
        %v4268 = vmul.f32 1.0, %v4267
        %v4269 = vrcp.pop %v4263
        %v4270 = vmul.f32 1.0, %v4269
        %v4271 = vrcp.pop %v4264
        %v4272 = vmul.f32 1.0, %v4271
        %v4273 = vmul.f32 %v4245, %v4266
        %v4274 = vmul.f32 %v4246, %v4268
        %v4275 = vmul.f32 %v4247, %v4270
        %v4276 = vmul.f32 %v4248, %v4272
        %s4277 = scalar_lea.vmem %s6, 448
        %v4278 = vld [vmem:[%s4277 + $0x20] sm:$0xff]
        %v4279 = vld [vmem:[%s4277 + $0x28] sm:$0xff]
        %v4280 = vld [vmem:[%s4277 + $0x30] sm:$0xff]
        %v4281 = vld [vmem:[%s4277 + $0x38] sm:$0xff]
        %s4282 = scalar_lea.vmem %s7, 448
        %v4283 = vld [vmem:[%s4282 + $0x20] sm:$0xff]
        %v4284 = vld [vmem:[%s4282 + $0x28] sm:$0xff]
        %v4285 = vld [vmem:[%s4282 + $0x30] sm:$0xff]
        %v4286 = vld [vmem:[%s4282 + $0x38] sm:$0xff]
        %4288 = vset.pattern.permute.xlu0 0
        %4289 = vperm.xlu0 %4288, %v4283
        %v4290 = vpop.permute.xlu0 %4289
        %4293 = vset.pattern.permute.xlu0 0
        %4294 = vperm.xlu0 %4293, %v4284
        %v4295 = vpop.permute.xlu0 %4294
        %4298 = vset.pattern.permute.xlu0 0
        %4299 = vperm.xlu0 %4298, %v4285
        %v4300 = vpop.permute.xlu0 %4299
        %4303 = vset.pattern.permute.xlu0 0
        %4304 = vperm.xlu0 %4303, %v4286
        %v4305 = vpop.permute.xlu0 %4304
        %v4308 = vsel %vm649, %v4278, 0
        %v4311 = vsel %vm649, %v4279, 0
        %v4314 = vsel %vm649, %v4280, 0
        %v4317 = vsel %vm649, %v4281, 0
        %4319 = vmatprep.subr.mxu0 0.0
        %4320 = vmatpush1.msra.mxu0 %v4273
        %4321 = vmatprep.subr.mxu0 0.0
        %4322 = vmatpush1.msra.mxu0 %v4274
        %4323 = vmatprep.subr.mxu0 0.0
        %4324 = vmatpush1.msra.mxu0 %v4275
        %4325 = vmatprep.subr.mxu0 0.0
        %4326 = vmatpush1.msra.mxu0 %v4276
        %4327 = vmatprep.subr.mxu0 0.0
        %4328 = vmatpush1.msra.mxu0 0.0
        %4329 = vmatprep.subr.mxu0 0.0
        %4330 = vmatpush1.msra.mxu0 0.0
        %4331 = vmatprep.subr.mxu0 0.0
        %4332 = vmatpush1.msra.mxu0 0.0
        %4333 = vmatprep.subr.mxu0 0.0
        %4334 = vmatpush1.msra.mxu0 0.0
        %4335 = vmatprep.subr.mxu0 0.0
        %4336 = vmatpush1.msra.mxu0 0.0
        %4337 = vmatprep.subr.mxu0 0.0
        %4338 = vmatpush1.msra.mxu0 0.0
        %4339 = vmatprep.subr.mxu0 0.0
        %4340 = vmatpush1.msra.mxu0 0.0
        %4341 = vmatprep.subr.mxu0 0.0
        %4342 = vmatpush1.msra.mxu0 0.0
        %4343 = vmatprep.subr.mxu0 0.0
        %4344 = vmatpush1.msra.mxu0 0.0
        %4345 = vmatprep.subr.mxu0 0.0
        %4346 = vmatpush1.msra.mxu0 0.0
        %4347 = vmatprep.subr.mxu0 0.0
        %4348 = vmatpush1.msra.mxu0 0.0
        %4349 = vmatprep.subr.mxu0 0.0
        %4350 = vmatpush1.msra.mxu0 0.0
        %4351 = vmatprep.subr.mxu0 0.0
        %4352 = vmatpush1.msra.mxu0 0.0
        %4353 = vmatprep.subr.mxu0 0.0
        %4354 = vmatpush1.msra.mxu0 0.0
        %4355 = vmatprep.subr.mxu0 0.0
        %4356 = vmatpush1.msra.mxu0 0.0
        %4357 = vmatprep.subr.mxu0 0.0
        %4358 = vmatpush1.msra.mxu0 0.0
        %4359 = vmatprep.subr.mxu0 0.0
        %4360 = vmatpush1.msra.mxu0 0.0
        %4361 = vmatprep.subr.mxu0 0.0
        %4362 = vmatpush1.msra.mxu0 0.0
        %4363 = vmatprep.subr.mxu0 0.0
        %4364 = vmatpush1.msra.mxu0 0.0
        %4365 = vmatprep.subr.mxu0 0.0
        %4366 = vmatpush1.msra.mxu0 0.0
        %4367 = vmatprep.subr.mxu0 0.0
        %4368 = vmatpush1.msra.mxu0 0.0
        %4369 = vmatprep.subr.mxu0 0.0
        %4370 = vmatpush1.msra.mxu0 0.0
        %4371 = vmatprep.subr.mxu0 0.0
        %4372 = vmatpush1.msra.mxu0 0.0
        %4373 = vmatprep.subr.mxu0 0.0
        %4374 = vmatpush1.msra.mxu0 0.0
        %4375 = vmatprep.subr.mxu0 0.0
        %4376 = vmatpush1.msra.mxu0 0.0
        %4377 = vmatprep.subr.mxu0 0.0
        %4378 = vmatpush1.msra.mxu0 0.0
        %4379 = vmatprep.subr.mxu0 0.0
        %4380 = vmatpush1.msra.mxu0 0.0
        %4381 = vmatprep.subr.mxu0 0.0
        %4382 = vmatpush1.msra.mxu0 0.0
        %4383 = vmatprep.mubr.f32.mxu0 0.0
        %4384 = vmatmul.mubr.f32.gmra.mrb[0].mxu0 %v4308
        %v4385 = vpop.f32.mrb[0].mxu0
        %v4386 = vadd.f32 %v4290, %v4385
        %v4387 = vpop.f32.mrb[0].mxu0
        %4388 = vmatprep.mubr.f32.mxu0 0.0
        %4389 = vmatmul.mubr.f32.gmra.mrb[0].mxu0 %v4311
        %v4390 = vpop.f32.mrb[0].mxu0
        %v4391 = vadd.f32 %v4295, %v4390
        %v4392 = vpop.f32.mrb[0].mxu0
        %4393 = vmatprep.mubr.f32.mxu0 0.0
        %4394 = vmatmul.mubr.f32.gmra.mrb[0].mxu0 %v4314
        %v4395 = vpop.f32.mrb[0].mxu0
        %v4396 = vadd.f32 %v4300, %v4395
        %v4397 = vpop.f32.mrb[0].mxu0
        %4398 = vmatprep.mubr.f32.mxu0 0.0
        %4399 = vmatmul.mubr.f32.gmra.mrb[0].mxu0 %v4317
        %v4400 = vpop.f32.mrb[0].mxu0
        %v4401 = vadd.f32 %v4305, %v4400
        %v4402 = vpop.f32.mrb[0].mxu0
        %4403 = vdwg.mxu0
        %v4404 = vadd.f32 %v3998, %v4386
        %v4405 = vadd.f32 %v3999, %v4391
        %v4406 = vadd.f32 %v4000, %v4396
        %v4407 = vadd.f32 %v4001, %v4401
        %v4408 = vmul.f32 %v4404, %v377
        %v4409 = vmul.f32 %v4405, %v377
        %v4410 = vmul.f32 %v4406, %v377
        %v4411 = vmul.f32 %v4407, %v377
        %s4412 = scalar_lea.vmem %s8, 8
        %v4413 = vld [vmem:[%s4412] sm:$0xff]
        %s4414 = scalar_lea.vmem %s9, 8
        %v4415 = vld [vmem:[%s4414] sm:$0xff]
        %4417 = vset.pattern.permute.xlu0 0
        %4418 = vperm.xlu0 %4417, %v4415
        %v4419 = vpop.permute.xlu0 %4418
        %v4422 = vsel %vm649, %v4413, 0
        %4424 = vmatprep.subr.mxu0 0.0
        %4425 = vmatpush1.msra.mxu0 %v4408
        %4426 = vmatprep.subr.mxu0 0.0
        %4427 = vmatpush1.msra.mxu0 %v4409
        %4428 = vmatprep.subr.mxu0 0.0
        %4429 = vmatpush1.msra.mxu0 %v4410
        %4430 = vmatprep.subr.mxu0 0.0
        %4431 = vmatpush1.msra.mxu0 %v4411
        %4432 = vmatprep.subr.mxu0 0.0
        %4433 = vmatpush1.msra.mxu0 0.0
        %4434 = vmatprep.subr.mxu0 0.0
        %4435 = vmatpush1.msra.mxu0 0.0
        %4436 = vmatprep.subr.mxu0 0.0
        %4437 = vmatpush1.msra.mxu0 0.0
        %4438 = vmatprep.subr.mxu0 0.0
        %4439 = vmatpush1.msra.mxu0 0.0
        %4440 = vmatprep.subr.mxu0 0.0
        %4441 = vmatpush1.msra.mxu0 0.0
        %4442 = vmatprep.subr.mxu0 0.0
        %4443 = vmatpush1.msra.mxu0 0.0
        %4444 = vmatprep.subr.mxu0 0.0
        %4445 = vmatpush1.msra.mxu0 0.0
        %4446 = vmatprep.subr.mxu0 0.0
        %4447 = vmatpush1.msra.mxu0 0.0
        %4448 = vmatprep.subr.mxu0 0.0
        %4449 = vmatpush1.msra.mxu0 0.0
        %4450 = vmatprep.subr.mxu0 0.0
        %4451 = vmatpush1.msra.mxu0 0.0
        %4452 = vmatprep.subr.mxu0 0.0
        %4453 = vmatpush1.msra.mxu0 0.0
        %4454 = vmatprep.subr.mxu0 0.0
        %4455 = vmatpush1.msra.mxu0 0.0
        %4456 = vmatprep.subr.mxu0 0.0
        %4457 = vmatpush1.msra.mxu0 0.0
        %4458 = vmatprep.subr.mxu0 0.0
        %4459 = vmatpush1.msra.mxu0 0.0
        %4460 = vmatprep.subr.mxu0 0.0
        %4461 = vmatpush1.msra.mxu0 0.0
        %4462 = vmatprep.subr.mxu0 0.0
        %4463 = vmatpush1.msra.mxu0 0.0
        %4464 = vmatprep.subr.mxu0 0.0
        %4465 = vmatpush1.msra.mxu0 0.0
        %4466 = vmatprep.subr.mxu0 0.0
        %4467 = vmatpush1.msra.mxu0 0.0
        %4468 = vmatprep.subr.mxu0 0.0
        %4469 = vmatpush1.msra.mxu0 0.0
        %4470 = vmatprep.subr.mxu0 0.0
        %4471 = vmatpush1.msra.mxu0 0.0
        %4472 = vmatprep.subr.mxu0 0.0
        %4473 = vmatpush1.msra.mxu0 0.0
        %4474 = vmatprep.subr.mxu0 0.0
        %4475 = vmatpush1.msra.mxu0 0.0
        %4476 = vmatprep.subr.mxu0 0.0
        %4477 = vmatpush1.msra.mxu0 0.0
        %4478 = vmatprep.subr.mxu0 0.0
        %4479 = vmatpush1.msra.mxu0 0.0
        %4480 = vmatprep.subr.mxu0 0.0
        %4481 = vmatpush1.msra.mxu0 0.0
        %4482 = vmatprep.subr.mxu0 0.0
        %4483 = vmatpush1.msra.mxu0 0.0
        %4484 = vmatprep.subr.mxu0 0.0
        %4485 = vmatpush1.msra.mxu0 0.0
        %4486 = vmatprep.subr.mxu0 0.0
        %4487 = vmatpush1.msra.mxu0 0.0
        %4488 = vmatprep.mubr.f32.mxu0 0.0
        %4489 = vmatmul.mubr.f32.gmra.mrb[0].mxu0 %v4422
        %v4490 = vpop.f32.mrb[0].mxu0
        %v4491 = vadd.f32 %v4419, %v4490
        %v4492 = vpop.f32.mrb[0].mxu0
        %4493 = vdwg.mxu0
        %v4494 = vmul.f32 %v4491, %v377
        %v4495 = vmul.f32 %v405, %v377
        %v4496 = vadd.f32 %v4494, %v4495
        %s4497 = scalar_lea.vmem %s2, 64
        %v4498 = vld [vmem:[%s4497] sm:$0xff]
        %v4499 = vld [vmem:[%s4497 + $0x8] sm:$0xff]
        %v4500 = vld [vmem:[%s4497 + $0x10] sm:$0xff]
        %v4501 = vld [vmem:[%s4497 + $0x18] sm:$0xff]
        %s4502 = scalar_lea.vmem %s3, 64
        %v4503 = vld [vmem:[%s4502] sm:$0xff]
        %v4504 = vld [vmem:[%s4502 + $0x8] sm:$0xff]
        %v4505 = vld [vmem:[%s4502 + $0x10] sm:$0xff]
        %v4506 = vld [vmem:[%s4502 + $0x18] sm:$0xff]
        %4508 = vset.pattern.permute.xlu0 0
        %4509 = vperm.xlu0 %4508, %v4503
        %v4510 = vpop.permute.xlu0 %4509
        %4513 = vset.pattern.permute.xlu0 0
        %4514 = vperm.xlu0 %4513, %v4504
        %v4515 = vpop.permute.xlu0 %4514
        %4518 = vset.pattern.permute.xlu0 0
        %4519 = vperm.xlu0 %4518, %v4505
        %v4520 = vpop.permute.xlu0 %4519
        %4523 = vset.pattern.permute.xlu0 0
        %4524 = vperm.xlu0 %4523, %v4506
        %v4525 = vpop.permute.xlu0 %4524
        %v4528 = vsel %vm435, %v4498, 0
        %v4531 = vsel %vm435, %v4499, 0
        %v4534 = vsel %vm435, %v4500, 0
        %v4537 = vsel %vm435, %v4501, 0
        %4539 = vmatprep.subr.mxu0 0.0
        %4540 = vmatpush1.msra.mxu0 %v4496
        %4541 = vmatprep.subr.mxu0 0.0
        %4542 = vmatpush1.msra.mxu0 0.0
        %4543 = vmatprep.subr.mxu0 0.0
        %4544 = vmatpush1.msra.mxu0 0.0
        %4545 = vmatprep.subr.mxu0 0.0
        %4546 = vmatpush1.msra.mxu0 0.0
        %4547 = vmatprep.subr.mxu0 0.0
        %4548 = vmatpush1.msra.mxu0 0.0
        %4549 = vmatprep.subr.mxu0 0.0
        %4550 = vmatpush1.msra.mxu0 0.0
        %4551 = vmatprep.subr.mxu0 0.0
        %4552 = vmatpush1.msra.mxu0 0.0
        %4553 = vmatprep.subr.mxu0 0.0
        %4554 = vmatpush1.msra.mxu0 0.0
        %4555 = vmatprep.subr.mxu0 0.0
        %4556 = vmatpush1.msra.mxu0 0.0
        %4557 = vmatprep.subr.mxu0 0.0
        %4558 = vmatpush1.msra.mxu0 0.0
        %4559 = vmatprep.subr.mxu0 0.0
        %4560 = vmatpush1.msra.mxu0 0.0
        %4561 = vmatprep.subr.mxu0 0.0
        %4562 = vmatpush1.msra.mxu0 0.0
        %4563 = vmatprep.subr.mxu0 0.0
        %4564 = vmatpush1.msra.mxu0 0.0
        %4565 = vmatprep.subr.mxu0 0.0
        %4566 = vmatpush1.msra.mxu0 0.0
        %4567 = vmatprep.subr.mxu0 0.0
        %4568 = vmatpush1.msra.mxu0 0.0
        %4569 = vmatprep.subr.mxu0 0.0
        %4570 = vmatpush1.msra.mxu0 0.0
        %4571 = vmatprep.subr.mxu0 0.0
        %4572 = vmatpush1.msra.mxu0 0.0
        %4573 = vmatprep.subr.mxu0 0.0
        %4574 = vmatpush1.msra.mxu0 0.0
        %4575 = vmatprep.subr.mxu0 0.0
        %4576 = vmatpush1.msra.mxu0 0.0
        %4577 = vmatprep.subr.mxu0 0.0
        %4578 = vmatpush1.msra.mxu0 0.0
        %4579 = vmatprep.subr.mxu0 0.0
        %4580 = vmatpush1.msra.mxu0 0.0
        %4581 = vmatprep.subr.mxu0 0.0
        %4582 = vmatpush1.msra.mxu0 0.0
        %4583 = vmatprep.subr.mxu0 0.0
        %4584 = vmatpush1.msra.mxu0 0.0
        %4585 = vmatprep.subr.mxu0 0.0
        %4586 = vmatpush1.msra.mxu0 0.0
        %4587 = vmatprep.subr.mxu0 0.0
        %4588 = vmatpush1.msra.mxu0 0.0
        %4589 = vmatprep.subr.mxu0 0.0
        %4590 = vmatpush1.msra.mxu0 0.0
        %4591 = vmatprep.subr.mxu0 0.0
        %4592 = vmatpush1.msra.mxu0 0.0
        %4593 = vmatprep.subr.mxu0 0.0
        %4594 = vmatpush1.msra.mxu0 0.0
        %4595 = vmatprep.subr.mxu0 0.0
        %4596 = vmatpush1.msra.mxu0 0.0
        %4597 = vmatprep.subr.mxu0 0.0
        %4598 = vmatpush1.msra.mxu0 0.0
        %4599 = vmatprep.subr.mxu0 0.0
        %4600 = vmatpush1.msra.mxu0 0.0
        %4601 = vmatprep.subr.mxu0 0.0
        %4602 = vmatpush1.msra.mxu0 0.0
        %4603 = vmatprep.mubr.f32.mxu0 0.0
        %4604 = vmatmul.mubr.f32.gmra.mrb[0].mxu0 %v4528
        %v4605 = vpop.f32.mrb[0].mxu0
        %v4606 = vadd.f32 %v4510, %v4605
        %v4607 = vpop.f32.mrb[0].mxu0
        %4608 = vmatprep.mubr.f32.mxu0 0.0
        %4609 = vmatmul.mubr.f32.gmra.mrb[0].mxu0 %v4531
        %v4610 = vpop.f32.mrb[0].mxu0
        %v4611 = vadd.f32 %v4515, %v4610
        %v4612 = vpop.f32.mrb[0].mxu0
        %4613 = vmatprep.mubr.f32.mxu0 0.0
        %4614 = vmatmul.mubr.f32.gmra.mrb[0].mxu0 %v4534
        %v4615 = vpop.f32.mrb[0].mxu0
        %v4616 = vadd.f32 %v4520, %v4615
        %v4617 = vpop.f32.mrb[0].mxu0
        %4618 = vmatprep.mubr.f32.mxu0 0.0
        %4619 = vmatmul.mubr.f32.gmra.mrb[0].mxu0 %v4537
        %v4620 = vpop.f32.mrb[0].mxu0
        %v4621 = vadd.f32 %v4525, %v4620
        %v4622 = vpop.f32.mrb[0].mxu0
        %4623 = vdwg.mxu0
        %v4624 = vmul.f32 %v4606, %v377
        %v4625 = vmul.f32 %v4611, %v377
        %v4626 = vmul.f32 %v4616, %v377
        %v4627 = vmul.f32 %v4621, %v377
        %4628 = vrot.lane.b32.xlu0 %v4624, 2
        %v4629 = vpop.permute.xlu0 %4628
        %4630 = vrot.lane.b32.xlu0 %v4625, 2
        %v4631 = vpop.permute.xlu0 %4630
        %4632 = vrot.lane.b32.xlu0 %v4626, 2
        %v4633 = vpop.permute.xlu0 %4632
        %4634 = vrot.lane.b32.xlu0 %v4627, 2
        %v4635 = vpop.permute.xlu0 %4634
        %v4636 = vmul.f32 %v4629, %v386
        %v4637 = vmul.f32 %v4631, %v386
        %v4638 = vmul.f32 %v4633, %v386
        %v4639 = vmul.f32 %v4635, %v386
        %4640 = vrot.lane.b32.xlu0 %v4624, 1
        %v4641 = vpop.permute.xlu0 %4640
        %4642 = vrot.lane.b32.xlu0 %v4625, 1
        %v4643 = vpop.permute.xlu0 %4642
        %4644 = vrot.lane.b32.xlu0 %v4626, 1
        %v4645 = vpop.permute.xlu0 %4644
        %4646 = vrot.lane.b32.xlu0 %v4627, 1
        %v4647 = vpop.permute.xlu0 %4646
        %v4648 = vmul.f32 %v4641, %v392
        %v4649 = vmul.f32 %v4643, %v392
        %v4650 = vmul.f32 %v4645, %v392
        %v4651 = vmul.f32 %v4647, %v392
        %4652 = vrot.lane.b32.xlu0 %v4624, 127
        %v4653 = vpop.permute.xlu0 %4652
        %4654 = vrot.lane.b32.xlu0 %v4625, 127
        %v4655 = vpop.permute.xlu0 %4654
        %4656 = vrot.lane.b32.xlu0 %v4626, 127
        %v4657 = vpop.permute.xlu0 %4656
        %4658 = vrot.lane.b32.xlu0 %v4627, 127
        %v4659 = vpop.permute.xlu0 %4658
        %v4660 = vmul.f32 %v4653, %v398
        %v4661 = vmul.f32 %v4655, %v398
        %v4662 = vmul.f32 %v4657, %v398
        %v4663 = vmul.f32 %v4659, %v398
        %4664 = vrot.lane.b32.xlu0 %v4624, 126
        %v4665 = vpop.permute.xlu0 %4664
        %4666 = vrot.lane.b32.xlu0 %v4625, 126
        %v4667 = vpop.permute.xlu0 %4666
        %4668 = vrot.lane.b32.xlu0 %v4626, 126
        %v4669 = vpop.permute.xlu0 %4668
        %4670 = vrot.lane.b32.xlu0 %v4627, 126
        %v4671 = vpop.permute.xlu0 %4670
        %v4672 = vmul.f32 %v4665, %v404
        %v4673 = vmul.f32 %v4667, %v404
        %v4674 = vmul.f32 %v4669, %v404
        %v4675 = vmul.f32 %v4671, %v404
        %s4676 = scalar_lea.vmem %s4, 1024
        %v4677 = vld [vmem:[%s4676] sm:$0xff]
        %v4678 = vld [vmem:[%s4676 + $0x8] sm:$0xff]
        %v4679 = vld [vmem:[%s4676 + $0x10] sm:$0xff]
        %v4680 = vld [vmem:[%s4676 + $0x18] sm:$0xff]
        %v4681 = vld [vmem:[%s4676 + $0x20] sm:$0xff]
        %v4682 = vld [vmem:[%s4676 + $0x28] sm:$0xff]
        %v4683 = vld [vmem:[%s4676 + $0x30] sm:$0xff]
        %v4684 = vld [vmem:[%s4676 + $0x38] sm:$0xff]
        %v4685 = vld [vmem:[%s4676 + $0x40] sm:$0xff]
        %v4686 = vld [vmem:[%s4676 + $0x48] sm:$0xff]
        %v4687 = vld [vmem:[%s4676 + $0x50] sm:$0xff]
        %v4688 = vld [vmem:[%s4676 + $0x58] sm:$0xff]
        %v4689 = vld [vmem:[%s4676 + $0x60] sm:$0xff]
        %v4690 = vld [vmem:[%s4676 + $0x68] sm:$0xff]
        %v4691 = vld [vmem:[%s4676 + $0x70] sm:$0xff]
        %v4692 = vld [vmem:[%s4676 + $0x78] sm:$0xff]
        %s4693 = scalar_lea.vmem %s5, 512
        %v4694 = vld [vmem:[%s4693] sm:$0xff]
        %v4695 = vld [vmem:[%s4693 + $0x8] sm:$0xff]
        %v4696 = vld [vmem:[%s4693 + $0x10] sm:$0xff]
        %v4697 = vld [vmem:[%s4693 + $0x18] sm:$0xff]
        %v4698 = vld [vmem:[%s4693 + $0x20] sm:$0xff]
        %v4699 = vld [vmem:[%s4693 + $0x28] sm:$0xff]
        %v4700 = vld [vmem:[%s4693 + $0x30] sm:$0xff]
        %v4701 = vld [vmem:[%s4693 + $0x38] sm:$0xff]
        %4703 = vset.pattern.permute.xlu0 0
        %4704 = vperm.xlu0 %4703, %v4694
        %v4705 = vpop.permute.xlu0 %4704
        %4708 = vset.pattern.permute.xlu0 0
        %4709 = vperm.xlu0 %4708, %v4695
        %v4710 = vpop.permute.xlu0 %4709
        %4713 = vset.pattern.permute.xlu0 0
        %4714 = vperm.xlu0 %4713, %v4696
        %v4715 = vpop.permute.xlu0 %4714
        %4718 = vset.pattern.permute.xlu0 0
        %4719 = vperm.xlu0 %4718, %v4697
        %v4720 = vpop.permute.xlu0 %4719
        %4723 = vset.pattern.permute.xlu0 0
        %4724 = vperm.xlu0 %4723, %v4698
        %v4725 = vpop.permute.xlu0 %4724
        %4728 = vset.pattern.permute.xlu0 0
        %4729 = vperm.xlu0 %4728, %v4699
        %v4730 = vpop.permute.xlu0 %4729
        %4733 = vset.pattern.permute.xlu0 0
        %4734 = vperm.xlu0 %4733, %v4700
        %v4735 = vpop.permute.xlu0 %4734
        %4738 = vset.pattern.permute.xlu0 0
        %4739 = vperm.xlu0 %4738, %v4701
        %v4740 = vpop.permute.xlu0 %4739
        %v4743 = vsel %vm649, %v4678, 0
        %v4746 = vsel %vm649, %v4680, 0
        %v4749 = vsel %vm649, %v4682, 0
        %v4752 = vsel %vm649, %v4684, 0
        %v4755 = vsel %vm649, %v4686, 0
        %v4758 = vsel %vm649, %v4688, 0
        %v4761 = vsel %vm649, %v4690, 0
        %v4764 = vsel %vm649, %v4692, 0
        %4766 = vmatprep.subr.mxu0 0.0
        %4767 = vmatpush1.msra.mxu0 %v4636
        %4768 = vmatprep.subr.mxu0 0.0
        %4769 = vmatpush1.msra.mxu0 %v4637
        %4770 = vmatprep.subr.mxu0 0.0
        %4771 = vmatpush1.msra.mxu0 %v4638
        %4772 = vmatprep.subr.mxu0 0.0
        %4773 = vmatpush1.msra.mxu0 %v4639
        %4774 = vmatprep.subr.mxu0 0.0
        %4775 = vmatpush1.msra.mxu0 %v4648
        %4776 = vmatprep.subr.mxu0 0.0
        %4777 = vmatpush1.msra.mxu0 %v4649
        %4778 = vmatprep.subr.mxu0 0.0
        %4779 = vmatpush1.msra.mxu0 %v4650
        %4780 = vmatprep.subr.mxu0 0.0
        %4781 = vmatpush1.msra.mxu0 %v4651
        %4782 = vmatprep.subr.mxu0 0.0
        %4783 = vmatpush1.msra.mxu0 %v4624
        %4784 = vmatprep.subr.mxu0 0.0
        %4785 = vmatpush1.msra.mxu0 %v4625
        %4786 = vmatprep.subr.mxu0 0.0
        %4787 = vmatpush1.msra.mxu0 %v4626
        %4788 = vmatprep.subr.mxu0 0.0
        %4789 = vmatpush1.msra.mxu0 %v4627
        %4790 = vmatprep.subr.mxu0 0.0
        %4791 = vmatpush1.msra.mxu0 %v4660
        %4792 = vmatprep.subr.mxu0 0.0
        %4793 = vmatpush1.msra.mxu0 %v4661
        %4794 = vmatprep.subr.mxu0 0.0
        %4795 = vmatpush1.msra.mxu0 %v4662
        %4796 = vmatprep.subr.mxu0 0.0
        %4797 = vmatpush1.msra.mxu0 %v4663
        %4798 = vmatprep.subr.mxu0 0.0
        %4799 = vmatpush1.msra.mxu0 %v4672
        %4800 = vmatprep.subr.mxu0 0.0
        %4801 = vmatpush1.msra.mxu0 %v4673
        %4802 = vmatprep.subr.mxu0 0.0
        %4803 = vmatpush1.msra.mxu0 %v4674
        %4804 = vmatprep.subr.mxu0 0.0
        %4805 = vmatpush1.msra.mxu0 %v4675
        %4806 = vmatprep.subr.mxu0 0.0
        %4807 = vmatpush1.msra.mxu0 0.0
        %4808 = vmatprep.subr.mxu0 0.0
        %4809 = vmatpush1.msra.mxu0 0.0
        %4810 = vmatprep.subr.mxu0 0.0
        %4811 = vmatpush1.msra.mxu0 0.0
        %4812 = vmatprep.subr.mxu0 0.0
        %4813 = vmatpush1.msra.mxu0 0.0
        %4814 = vmatprep.subr.mxu0 0.0
        %4815 = vmatpush1.msra.mxu0 0.0
        %4816 = vmatprep.subr.mxu0 0.0
        %4817 = vmatpush1.msra.mxu0 0.0
        %4818 = vmatprep.subr.mxu0 0.0
        %4819 = vmatpush1.msra.mxu0 0.0
        %4820 = vmatprep.subr.mxu0 0.0
        %4821 = vmatpush1.msra.mxu0 0.0
        %4822 = vmatprep.subr.mxu0 0.0
        %4823 = vmatpush1.msra.mxu0 0.0
        %4824 = vmatprep.subr.mxu0 0.0
        %4825 = vmatpush1.msra.mxu0 0.0
        %4826 = vmatprep.subr.mxu0 0.0
        %4827 = vmatpush1.msra.mxu0 0.0
        %4828 = vmatprep.subr.mxu0 0.0
        %4829 = vmatpush1.msra.mxu0 0.0
        %4830 = vmatprep.mubr.f32.mxu0 %v4743
        %4831 = vmatmul.mubr.f32.gmra.mrb[0].mxu0 %v4677
        %v4832 = vpop.f32.mrb[0].mxu0
        %v4833 = vadd.f32 %v4705, %v4832
        %v4834 = vpop.f32.mrb[0].mxu0
        %4835 = vmatprep.mubr.f32.mxu0 %v4746
        %4836 = vmatmul.mubr.f32.gmra.mrb[0].mxu0 %v4679
        %v4837 = vpop.f32.mrb[0].mxu0
        %v4838 = vadd.f32 %v4710, %v4837
        %v4839 = vpop.f32.mrb[0].mxu0
        %4840 = vmatprep.mubr.f32.mxu0 %v4749
        %4841 = vmatmul.mubr.f32.gmra.mrb[0].mxu0 %v4681
        %v4842 = vpop.f32.mrb[0].mxu0
        %v4843 = vadd.f32 %v4715, %v4842
        %v4844 = vpop.f32.mrb[0].mxu0
        %4845 = vmatprep.mubr.f32.mxu0 %v4752
        %4846 = vmatmul.mubr.f32.gmra.mrb[0].mxu0 %v4683
        %v4847 = vpop.f32.mrb[0].mxu0
        %v4848 = vadd.f32 %v4720, %v4847
        %v4849 = vpop.f32.mrb[0].mxu0
        %4850 = vmatprep.mubr.f32.mxu0 %v4755
        %4851 = vmatmul.mubr.f32.gmra.mrb[0].mxu0 %v4685
        %v4852 = vpop.f32.mrb[0].mxu0
        %v4853 = vadd.f32 %v4725, %v4852
        %v4854 = vpop.f32.mrb[0].mxu0
        %4855 = vmatprep.mubr.f32.mxu0 %v4758
        %4856 = vmatmul.mubr.f32.gmra.mrb[0].mxu0 %v4687
        %v4857 = vpop.f32.mrb[0].mxu0
        %v4858 = vadd.f32 %v4730, %v4857
        %v4859 = vpop.f32.mrb[0].mxu0
        %4860 = vmatprep.mubr.f32.mxu0 %v4761
        %4861 = vmatmul.mubr.f32.gmra.mrb[0].mxu0 %v4689
        %v4862 = vpop.f32.mrb[0].mxu0
        %v4863 = vadd.f32 %v4735, %v4862
        %v4864 = vpop.f32.mrb[0].mxu0
        %4865 = vmatprep.mubr.f32.mxu0 %v4764
        %4866 = vmatmul.mubr.f32.gmra.mrb[0].mxu0 %v4691
        %v4867 = vpop.f32.mrb[0].mxu0
        %v4868 = vadd.f32 %v4740, %v4867
        %v4869 = vpop.f32.mrb[0].mxu0
        %4870 = vdwg.mxu0
        %v4871 = vtanh.pop %v4833
        %v4872 = vtanh.pop %v4838
        %v4873 = vtanh.pop %v4843
        %v4874 = vtanh.pop %v4848
        %v4875 = vxor.u32 %v4853, 2147483648
        %v4876 = vxor.u32 %v4858, 2147483648
        %v4877 = vxor.u32 %v4863, 2147483648
        %v4878 = vxor.u32 %v4868, 2147483648
        %v4879 = vmul.f32 %v4875, 1.442695
        %v4880 = vpow.pop %v4879
        %v4881 = vmul.f32 %v4876, 1.442695
        %v4882 = vpow.pop %v4881
        %v4883 = vmul.f32 %v4877, 1.442695
        %v4884 = vpow.pop %v4883
        %v4885 = vmul.f32 %v4878, 1.442695
        %v4886 = vpow.pop %v4885
        %v4887 = vadd.f32 %v4880, 1.0
        %v4888 = vadd.f32 %v4882, 1.0
        %v4889 = vadd.f32 %v4884, 1.0
        %v4890 = vadd.f32 %v4886, 1.0
        %v4891 = vrcp.pop %v4887
        %v4892 = vmul.f32 1.0, %v4891
        %v4893 = vrcp.pop %v4888
        %v4894 = vmul.f32 1.0, %v4893
        %v4895 = vrcp.pop %v4889
        %v4896 = vmul.f32 1.0, %v4895
        %v4897 = vrcp.pop %v4890
        %v4898 = vmul.f32 1.0, %v4897
        %v4899 = vmul.f32 %v4871, %v4892
        %v4900 = vmul.f32 %v4872, %v4894
        %v4901 = vmul.f32 %v4873, %v4896
        %v4902 = vmul.f32 %v4874, %v4898
        %s4903 = scalar_lea.vmem %s6, 512
        %v4904 = vld [vmem:[%s4903] sm:$0xff]
        %v4905 = vld [vmem:[%s4903 + $0x8] sm:$0xff]
        %v4906 = vld [vmem:[%s4903 + $0x10] sm:$0xff]
        %v4907 = vld [vmem:[%s4903 + $0x18] sm:$0xff]
        %v4908 = vld [vmem:[%s4903 + $0x20] sm:$0xff]
        %v4909 = vld [vmem:[%s4903 + $0x28] sm:$0xff]
        %v4910 = vld [vmem:[%s4903 + $0x30] sm:$0xff]
        %v4911 = vld [vmem:[%s4903 + $0x38] sm:$0xff]
        %s4912 = scalar_lea.vmem %s7, 512
        %v4913 = vld [vmem:[%s4912] sm:$0xff]
        %v4914 = vld [vmem:[%s4912 + $0x8] sm:$0xff]
        %v4915 = vld [vmem:[%s4912 + $0x10] sm:$0xff]
        %v4916 = vld [vmem:[%s4912 + $0x18] sm:$0xff]
        %v4917 = vld [vmem:[%s4912 + $0x20] sm:$0xff]
        %v4918 = vld [vmem:[%s4912 + $0x28] sm:$0xff]
        %v4919 = vld [vmem:[%s4912 + $0x30] sm:$0xff]
        %v4920 = vld [vmem:[%s4912 + $0x38] sm:$0xff]
        %4922 = vset.pattern.permute.xlu0 0
        %4923 = vperm.xlu0 %4922, %v4913
        %v4924 = vpop.permute.xlu0 %4923
        %4927 = vset.pattern.permute.xlu0 0
        %4928 = vperm.xlu0 %4927, %v4914
        %v4929 = vpop.permute.xlu0 %4928
        %4932 = vset.pattern.permute.xlu0 0
        %4933 = vperm.xlu0 %4932, %v4915
        %v4934 = vpop.permute.xlu0 %4933
        %4937 = vset.pattern.permute.xlu0 0
        %4938 = vperm.xlu0 %4937, %v4916
        %v4939 = vpop.permute.xlu0 %4938
        %4942 = vset.pattern.permute.xlu0 0
        %4943 = vperm.xlu0 %4942, %v4917
        %v4944 = vpop.permute.xlu0 %4943
        %4947 = vset.pattern.permute.xlu0 0
        %4948 = vperm.xlu0 %4947, %v4918
        %v4949 = vpop.permute.xlu0 %4948
        %4952 = vset.pattern.permute.xlu0 0
        %4953 = vperm.xlu0 %4952, %v4919
        %v4954 = vpop.permute.xlu0 %4953
        %4957 = vset.pattern.permute.xlu0 0
        %4958 = vperm.xlu0 %4957, %v4920
        %v4959 = vpop.permute.xlu0 %4958
        %v4962 = vsel %vm649, %v4904, 0
        %v4965 = vsel %vm649, %v4905, 0
        %v4968 = vsel %vm649, %v4906, 0
        %v4971 = vsel %vm649, %v4907, 0
        %v4974 = vsel %vm649, %v4908, 0
        %v4977 = vsel %vm649, %v4909, 0
        %v4980 = vsel %vm649, %v4910, 0
        %v4983 = vsel %vm649, %v4911, 0
        %4985 = vmatprep.subr.mxu0 0.0
        %4986 = vmatpush1.msra.mxu0 %v4899
        %4987 = vmatprep.subr.mxu0 0.0
        %4988 = vmatpush1.msra.mxu0 %v4900
        %4989 = vmatprep.subr.mxu0 0.0
        %4990 = vmatpush1.msra.mxu0 %v4901
        %4991 = vmatprep.subr.mxu0 0.0
        %4992 = vmatpush1.msra.mxu0 %v4902
        %4993 = vmatprep.subr.mxu0 0.0
        %4994 = vmatpush1.msra.mxu0 0.0
        %4995 = vmatprep.subr.mxu0 0.0
        %4996 = vmatpush1.msra.mxu0 0.0
        %4997 = vmatprep.subr.mxu0 0.0
        %4998 = vmatpush1.msra.mxu0 0.0
        %4999 = vmatprep.subr.mxu0 0.0
        %5000 = vmatpush1.msra.mxu0 0.0
        %5001 = vmatprep.subr.mxu0 0.0
        %5002 = vmatpush1.msra.mxu0 0.0
        %5003 = vmatprep.subr.mxu0 0.0
        %5004 = vmatpush1.msra.mxu0 0.0
        %5005 = vmatprep.subr.mxu0 0.0
        %5006 = vmatpush1.msra.mxu0 0.0
        %5007 = vmatprep.subr.mxu0 0.0
        %5008 = vmatpush1.msra.mxu0 0.0
        %5009 = vmatprep.subr.mxu0 0.0
        %5010 = vmatpush1.msra.mxu0 0.0
        %5011 = vmatprep.subr.mxu0 0.0
        %5012 = vmatpush1.msra.mxu0 0.0
        %5013 = vmatprep.subr.mxu0 0.0
        %5014 = vmatpush1.msra.mxu0 0.0
        %5015 = vmatprep.subr.mxu0 0.0
        %5016 = vmatpush1.msra.mxu0 0.0
        %5017 = vmatprep.subr.mxu0 0.0
        %5018 = vmatpush1.msra.mxu0 0.0
        %5019 = vmatprep.subr.mxu0 0.0
        %5020 = vmatpush1.msra.mxu0 0.0
        %5021 = vmatprep.subr.mxu0 0.0
        %5022 = vmatpush1.msra.mxu0 0.0
        %5023 = vmatprep.subr.mxu0 0.0
        %5024 = vmatpush1.msra.mxu0 0.0
        %5025 = vmatprep.subr.mxu0 0.0
        %5026 = vmatpush1.msra.mxu0 0.0
        %5027 = vmatprep.subr.mxu0 0.0
        %5028 = vmatpush1.msra.mxu0 0.0
        %5029 = vmatprep.subr.mxu0 0.0
        %5030 = vmatpush1.msra.mxu0 0.0
        %5031 = vmatprep.subr.mxu0 0.0
        %5032 = vmatpush1.msra.mxu0 0.0
        %5033 = vmatprep.subr.mxu0 0.0
        %5034 = vmatpush1.msra.mxu0 0.0
        %5035 = vmatprep.subr.mxu0 0.0
        %5036 = vmatpush1.msra.mxu0 0.0
        %5037 = vmatprep.subr.mxu0 0.0
        %5038 = vmatpush1.msra.mxu0 0.0
        %5039 = vmatprep.subr.mxu0 0.0
        %5040 = vmatpush1.msra.mxu0 0.0
        %5041 = vmatprep.subr.mxu0 0.0
        %5042 = vmatpush1.msra.mxu0 0.0
        %5043 = vmatprep.subr.mxu0 0.0
        %5044 = vmatpush1.msra.mxu0 0.0
        %5045 = vmatprep.subr.mxu0 0.0
        %5046 = vmatpush1.msra.mxu0 0.0
        %5047 = vmatprep.subr.mxu0 0.0
        %5048 = vmatpush1.msra.mxu0 0.0
        %5049 = vmatprep.mubr.f32.mxu0 0.0
        %5050 = vmatmul.mubr.f32.gmra.mrb[0].mxu0 %v4962
        %v5051 = vpop.f32.mrb[0].mxu0
        %v5052 = vadd.f32 %v4924, %v5051
        %v5053 = vpop.f32.mrb[0].mxu0
        %5054 = vmatprep.mubr.f32.mxu0 0.0
        %5055 = vmatmul.mubr.f32.gmra.mrb[0].mxu0 %v4965
        %v5056 = vpop.f32.mrb[0].mxu0
        %v5057 = vadd.f32 %v4929, %v5056
        %v5058 = vpop.f32.mrb[0].mxu0
        %5059 = vmatprep.mubr.f32.mxu0 0.0
        %5060 = vmatmul.mubr.f32.gmra.mrb[0].mxu0 %v4968
        %v5061 = vpop.f32.mrb[0].mxu0
        %v5062 = vadd.f32 %v4934, %v5061
        %v5063 = vpop.f32.mrb[0].mxu0
        %5064 = vmatprep.mubr.f32.mxu0 0.0
        %5065 = vmatmul.mubr.f32.gmra.mrb[0].mxu0 %v4971
        %v5066 = vpop.f32.mrb[0].mxu0
        %v5067 = vadd.f32 %v4939, %v5066
        %v5068 = vpop.f32.mrb[0].mxu0
        %5069 = vmatprep.mubr.f32.mxu0 0.0
        %5070 = vmatmul.mubr.f32.gmra.mrb[0].mxu0 %v4974
        %v5071 = vpop.f32.mrb[0].mxu0
        %v5072 = vadd.f32 %v4944, %v5071
        %v5073 = vpop.f32.mrb[0].mxu0
        %5074 = vmatprep.mubr.f32.mxu0 0.0
        %5075 = vmatmul.mubr.f32.gmra.mrb[0].mxu0 %v4977
        %v5076 = vpop.f32.mrb[0].mxu0
        %v5077 = vadd.f32 %v4949, %v5076
        %v5078 = vpop.f32.mrb[0].mxu0
        %5079 = vmatprep.mubr.f32.mxu0 0.0
        %5080 = vmatmul.mubr.f32.gmra.mrb[0].mxu0 %v4980
        %v5081 = vpop.f32.mrb[0].mxu0
        %v5082 = vadd.f32 %v4954, %v5081
        %v5083 = vpop.f32.mrb[0].mxu0
        %5084 = vmatprep.mubr.f32.mxu0 0.0
        %5085 = vmatmul.mubr.f32.gmra.mrb[0].mxu0 %v4983
        %v5086 = vpop.f32.mrb[0].mxu0
        %v5087 = vadd.f32 %v4959, %v5086
        %v5088 = vpop.f32.mrb[0].mxu0
        %5089 = vdwg.mxu0
        %v5090 = vadd.f32 %v4624, %v5052
        %v5091 = vadd.f32 %v4625, %v5057
        %v5092 = vadd.f32 %v4626, %v5062
        %v5093 = vadd.f32 %v4627, %v5067
        %v5094 = vmul.f32 %v5090, %v377
        %v5095 = vmul.f32 %v5091, %v377
        %v5096 = vmul.f32 %v5092, %v377
        %v5097 = vmul.f32 %v5093, %v377
        %v5098 = vadd.f32 %v5072, 0.0
        %v5099 = vadd.f32 %v5077, 0.0
        %v5100 = vadd.f32 %v5082, 0.0
        %v5101 = vadd.f32 %v5087, 0.0
        %5102 = vrot.lane.b32.xlu0 %v5094, 2
        %v5103 = vpop.permute.xlu0 %5102
        %5104 = vrot.lane.b32.xlu0 %v5095, 2
        %v5105 = vpop.permute.xlu0 %5104
        %5106 = vrot.lane.b32.xlu0 %v5096, 2
        %v5107 = vpop.permute.xlu0 %5106
        %5108 = vrot.lane.b32.xlu0 %v5097, 2
        %v5109 = vpop.permute.xlu0 %5108
        %v5110 = vmul.f32 %v5103, %v386
        %v5111 = vmul.f32 %v5105, %v386
        %v5112 = vmul.f32 %v5107, %v386
        %v5113 = vmul.f32 %v5109, %v386
        %5114 = vrot.lane.b32.xlu0 %v5094, 1
        %v5115 = vpop.permute.xlu0 %5114
        %5116 = vrot.lane.b32.xlu0 %v5095, 1
        %v5117 = vpop.permute.xlu0 %5116
        %5118 = vrot.lane.b32.xlu0 %v5096, 1
        %v5119 = vpop.permute.xlu0 %5118
        %5120 = vrot.lane.b32.xlu0 %v5097, 1
        %v5121 = vpop.permute.xlu0 %5120
        %v5122 = vmul.f32 %v5115, %v392
        %v5123 = vmul.f32 %v5117, %v392
        %v5124 = vmul.f32 %v5119, %v392
        %v5125 = vmul.f32 %v5121, %v392
        %5126 = vrot.lane.b32.xlu0 %v5094, 127
        %v5127 = vpop.permute.xlu0 %5126
        %5128 = vrot.lane.b32.xlu0 %v5095, 127
        %v5129 = vpop.permute.xlu0 %5128
        %5130 = vrot.lane.b32.xlu0 %v5096, 127
        %v5131 = vpop.permute.xlu0 %5130
        %5132 = vrot.lane.b32.xlu0 %v5097, 127
        %v5133 = vpop.permute.xlu0 %5132
        %v5134 = vmul.f32 %v5127, %v398
        %v5135 = vmul.f32 %v5129, %v398
        %v5136 = vmul.f32 %v5131, %v398
        %v5137 = vmul.f32 %v5133, %v398
        %5138 = vrot.lane.b32.xlu0 %v5094, 126
        %v5139 = vpop.permute.xlu0 %5138
        %5140 = vrot.lane.b32.xlu0 %v5095, 126
        %v5141 = vpop.permute.xlu0 %5140
        %5142 = vrot.lane.b32.xlu0 %v5096, 126
        %v5143 = vpop.permute.xlu0 %5142
        %5144 = vrot.lane.b32.xlu0 %v5097, 126
        %v5145 = vpop.permute.xlu0 %5144
        %v5146 = vmul.f32 %v5139, %v404
        %v5147 = vmul.f32 %v5141, %v404
        %v5148 = vmul.f32 %v5143, %v404
        %v5149 = vmul.f32 %v5145, %v404
        %s5150 = scalar_lea.vmem %s4, 1152
        %v5151 = vld [vmem:[%s5150] sm:$0xff]
        %v5152 = vld [vmem:[%s5150 + $0x8] sm:$0xff]
        %v5153 = vld [vmem:[%s5150 + $0x10] sm:$0xff]
        %v5154 = vld [vmem:[%s5150 + $0x18] sm:$0xff]
        %v5155 = vld [vmem:[%s5150 + $0x20] sm:$0xff]
        %v5156 = vld [vmem:[%s5150 + $0x28] sm:$0xff]
        %v5157 = vld [vmem:[%s5150 + $0x30] sm:$0xff]
        %v5158 = vld [vmem:[%s5150 + $0x38] sm:$0xff]
        %v5159 = vld [vmem:[%s5150 + $0x40] sm:$0xff]
        %v5160 = vld [vmem:[%s5150 + $0x48] sm:$0xff]
        %v5161 = vld [vmem:[%s5150 + $0x50] sm:$0xff]
        %v5162 = vld [vmem:[%s5150 + $0x58] sm:$0xff]
        %v5163 = vld [vmem:[%s5150 + $0x60] sm:$0xff]
        %v5164 = vld [vmem:[%s5150 + $0x68] sm:$0xff]
        %v5165 = vld [vmem:[%s5150 + $0x70] sm:$0xff]
        %v5166 = vld [vmem:[%s5150 + $0x78] sm:$0xff]
        %s5167 = scalar_lea.vmem %s5, 576
        %v5168 = vld [vmem:[%s5167] sm:$0xff]
        %v5169 = vld [vmem:[%s5167 + $0x8] sm:$0xff]
        %v5170 = vld [vmem:[%s5167 + $0x10] sm:$0xff]
        %v5171 = vld [vmem:[%s5167 + $0x18] sm:$0xff]
        %v5172 = vld [vmem:[%s5167 + $0x20] sm:$0xff]
        %v5173 = vld [vmem:[%s5167 + $0x28] sm:$0xff]
        %v5174 = vld [vmem:[%s5167 + $0x30] sm:$0xff]
        %v5175 = vld [vmem:[%s5167 + $0x38] sm:$0xff]
        %5177 = vset.pattern.permute.xlu0 0
        %5178 = vperm.xlu0 %5177, %v5168
        %v5179 = vpop.permute.xlu0 %5178
        %5182 = vset.pattern.permute.xlu0 0
        %5183 = vperm.xlu0 %5182, %v5169
        %v5184 = vpop.permute.xlu0 %5183
        %5187 = vset.pattern.permute.xlu0 0
        %5188 = vperm.xlu0 %5187, %v5170
        %v5189 = vpop.permute.xlu0 %5188
        %5192 = vset.pattern.permute.xlu0 0
        %5193 = vperm.xlu0 %5192, %v5171
        %v5194 = vpop.permute.xlu0 %5193
        %5197 = vset.pattern.permute.xlu0 0
        %5198 = vperm.xlu0 %5197, %v5172
        %v5199 = vpop.permute.xlu0 %5198
        %5202 = vset.pattern.permute.xlu0 0
        %5203 = vperm.xlu0 %5202, %v5173
        %v5204 = vpop.permute.xlu0 %5203
        %5207 = vset.pattern.permute.xlu0 0
        %5208 = vperm.xlu0 %5207, %v5174
        %v5209 = vpop.permute.xlu0 %5208
        %5212 = vset.pattern.permute.xlu0 0
        %5213 = vperm.xlu0 %5212, %v5175
        %v5214 = vpop.permute.xlu0 %5213
        %v5217 = vsel %vm649, %v5152, 0
        %v5220 = vsel %vm649, %v5154, 0
        %v5223 = vsel %vm649, %v5156, 0
        %v5226 = vsel %vm649, %v5158, 0
        %v5229 = vsel %vm649, %v5160, 0
        %v5232 = vsel %vm649, %v5162, 0
        %v5235 = vsel %vm649, %v5164, 0
        %v5238 = vsel %vm649, %v5166, 0
        %5240 = vmatprep.subr.mxu0 0.0
        %5241 = vmatpush1.msra.mxu0 %v5110
        %5242 = vmatprep.subr.mxu0 0.0
        %5243 = vmatpush1.msra.mxu0 %v5111
        %5244 = vmatprep.subr.mxu0 0.0
        %5245 = vmatpush1.msra.mxu0 %v5112
        %5246 = vmatprep.subr.mxu0 0.0
        %5247 = vmatpush1.msra.mxu0 %v5113
        %5248 = vmatprep.subr.mxu0 0.0
        %5249 = vmatpush1.msra.mxu0 %v5122
        %5250 = vmatprep.subr.mxu0 0.0
        %5251 = vmatpush1.msra.mxu0 %v5123
        %5252 = vmatprep.subr.mxu0 0.0
        %5253 = vmatpush1.msra.mxu0 %v5124
        %5254 = vmatprep.subr.mxu0 0.0
        %5255 = vmatpush1.msra.mxu0 %v5125
        %5256 = vmatprep.subr.mxu0 0.0
        %5257 = vmatpush1.msra.mxu0 %v5094
        %5258 = vmatprep.subr.mxu0 0.0
        %5259 = vmatpush1.msra.mxu0 %v5095
        %5260 = vmatprep.subr.mxu0 0.0
        %5261 = vmatpush1.msra.mxu0 %v5096
        %5262 = vmatprep.subr.mxu0 0.0
        %5263 = vmatpush1.msra.mxu0 %v5097
        %5264 = vmatprep.subr.mxu0 0.0
        %5265 = vmatpush1.msra.mxu0 %v5134
        %5266 = vmatprep.subr.mxu0 0.0
        %5267 = vmatpush1.msra.mxu0 %v5135
        %5268 = vmatprep.subr.mxu0 0.0
        %5269 = vmatpush1.msra.mxu0 %v5136
        %5270 = vmatprep.subr.mxu0 0.0
        %5271 = vmatpush1.msra.mxu0 %v5137
        %5272 = vmatprep.subr.mxu0 0.0
        %5273 = vmatpush1.msra.mxu0 %v5146
        %5274 = vmatprep.subr.mxu0 0.0
        %5275 = vmatpush1.msra.mxu0 %v5147
        %5276 = vmatprep.subr.mxu0 0.0
        %5277 = vmatpush1.msra.mxu0 %v5148
        %5278 = vmatprep.subr.mxu0 0.0
        %5279 = vmatpush1.msra.mxu0 %v5149
        %5280 = vmatprep.subr.mxu0 0.0
        %5281 = vmatpush1.msra.mxu0 0.0
        %5282 = vmatprep.subr.mxu0 0.0
        %5283 = vmatpush1.msra.mxu0 0.0
        %5284 = vmatprep.subr.mxu0 0.0
        %5285 = vmatpush1.msra.mxu0 0.0
        %5286 = vmatprep.subr.mxu0 0.0
        %5287 = vmatpush1.msra.mxu0 0.0
        %5288 = vmatprep.subr.mxu0 0.0
        %5289 = vmatpush1.msra.mxu0 0.0
        %5290 = vmatprep.subr.mxu0 0.0
        %5291 = vmatpush1.msra.mxu0 0.0
        %5292 = vmatprep.subr.mxu0 0.0
        %5293 = vmatpush1.msra.mxu0 0.0
        %5294 = vmatprep.subr.mxu0 0.0
        %5295 = vmatpush1.msra.mxu0 0.0
        %5296 = vmatprep.subr.mxu0 0.0
        %5297 = vmatpush1.msra.mxu0 0.0
        %5298 = vmatprep.subr.mxu0 0.0
        %5299 = vmatpush1.msra.mxu0 0.0
        %5300 = vmatprep.subr.mxu0 0.0
        %5301 = vmatpush1.msra.mxu0 0.0
        %5302 = vmatprep.subr.mxu0 0.0
        %5303 = vmatpush1.msra.mxu0 0.0
        %5304 = vmatprep.mubr.f32.mxu0 %v5217
        %5305 = vmatmul.mubr.f32.gmra.mrb[0].mxu0 %v5151
        %v5306 = vpop.f32.mrb[0].mxu0
        %v5307 = vadd.f32 %v5179, %v5306
        %v5308 = vpop.f32.mrb[0].mxu0
        %5309 = vmatprep.mubr.f32.mxu0 %v5220
        %5310 = vmatmul.mubr.f32.gmra.mrb[0].mxu0 %v5153
        %v5311 = vpop.f32.mrb[0].mxu0
        %v5312 = vadd.f32 %v5184, %v5311
        %v5313 = vpop.f32.mrb[0].mxu0
        %5314 = vmatprep.mubr.f32.mxu0 %v5223
        %5315 = vmatmul.mubr.f32.gmra.mrb[0].mxu0 %v5155
        %v5316 = vpop.f32.mrb[0].mxu0
        %v5317 = vadd.f32 %v5189, %v5316
        %v5318 = vpop.f32.mrb[0].mxu0
        %5319 = vmatprep.mubr.f32.mxu0 %v5226
        %5320 = vmatmul.mubr.f32.gmra.mrb[0].mxu0 %v5157
        %v5321 = vpop.f32.mrb[0].mxu0
        %v5322 = vadd.f32 %v5194, %v5321
        %v5323 = vpop.f32.mrb[0].mxu0
        %5324 = vmatprep.mubr.f32.mxu0 %v5229
        %5325 = vmatmul.mubr.f32.gmra.mrb[0].mxu0 %v5159
        %v5326 = vpop.f32.mrb[0].mxu0
        %v5327 = vadd.f32 %v5199, %v5326
        %v5328 = vpop.f32.mrb[0].mxu0
        %5329 = vmatprep.mubr.f32.mxu0 %v5232
        %5330 = vmatmul.mubr.f32.gmra.mrb[0].mxu0 %v5161
        %v5331 = vpop.f32.mrb[0].mxu0
        %v5332 = vadd.f32 %v5204, %v5331
        %v5333 = vpop.f32.mrb[0].mxu0
        %5334 = vmatprep.mubr.f32.mxu0 %v5235
        %5335 = vmatmul.mubr.f32.gmra.mrb[0].mxu0 %v5163
        %v5336 = vpop.f32.mrb[0].mxu0
        %v5337 = vadd.f32 %v5209, %v5336
        %v5338 = vpop.f32.mrb[0].mxu0
        %5339 = vmatprep.mubr.f32.mxu0 %v5238
        %5340 = vmatmul.mubr.f32.gmra.mrb[0].mxu0 %v5165
        %v5341 = vpop.f32.mrb[0].mxu0
        %v5342 = vadd.f32 %v5214, %v5341
        %v5343 = vpop.f32.mrb[0].mxu0
        %5344 = vdwg.mxu0
        %v5345 = vtanh.pop %v5307
        %v5346 = vtanh.pop %v5312
        %v5347 = vtanh.pop %v5317
        %v5348 = vtanh.pop %v5322
        %v5349 = vxor.u32 %v5327, 2147483648
        %v5350 = vxor.u32 %v5332, 2147483648
        %v5351 = vxor.u32 %v5337, 2147483648
        %v5352 = vxor.u32 %v5342, 2147483648
        %v5353 = vmul.f32 %v5349, 1.442695
        %v5354 = vpow.pop %v5353
        %v5355 = vmul.f32 %v5350, 1.442695
        %v5356 = vpow.pop %v5355
        %v5357 = vmul.f32 %v5351, 1.442695
        %v5358 = vpow.pop %v5357
        %v5359 = vmul.f32 %v5352, 1.442695
        %v5360 = vpow.pop %v5359
        %v5361 = vadd.f32 %v5354, 1.0
        %v5362 = vadd.f32 %v5356, 1.0
        %v5363 = vadd.f32 %v5358, 1.0
        %v5364 = vadd.f32 %v5360, 1.0
        %v5365 = vrcp.pop %v5361
        %v5366 = vmul.f32 1.0, %v5365
        %v5367 = vrcp.pop %v5362
        %v5368 = vmul.f32 1.0, %v5367
        %v5369 = vrcp.pop %v5363
        %v5370 = vmul.f32 1.0, %v5369
        %v5371 = vrcp.pop %v5364
        %v5372 = vmul.f32 1.0, %v5371
        %v5373 = vmul.f32 %v5345, %v5366
        %v5374 = vmul.f32 %v5346, %v5368
        %v5375 = vmul.f32 %v5347, %v5370
        %v5376 = vmul.f32 %v5348, %v5372
        %s5377 = scalar_lea.vmem %s6, 576
        %v5378 = vld [vmem:[%s5377] sm:$0xff]
        %v5379 = vld [vmem:[%s5377 + $0x8] sm:$0xff]
        %v5380 = vld [vmem:[%s5377 + $0x10] sm:$0xff]
        %v5381 = vld [vmem:[%s5377 + $0x18] sm:$0xff]
        %v5382 = vld [vmem:[%s5377 + $0x20] sm:$0xff]
        %v5383 = vld [vmem:[%s5377 + $0x28] sm:$0xff]
        %v5384 = vld [vmem:[%s5377 + $0x30] sm:$0xff]
        %v5385 = vld [vmem:[%s5377 + $0x38] sm:$0xff]
        %s5386 = scalar_lea.vmem %s7, 576
        %v5387 = vld [vmem:[%s5386] sm:$0xff]
        %v5388 = vld [vmem:[%s5386 + $0x8] sm:$0xff]
        %v5389 = vld [vmem:[%s5386 + $0x10] sm:$0xff]
        %v5390 = vld [vmem:[%s5386 + $0x18] sm:$0xff]
        %v5391 = vld [vmem:[%s5386 + $0x20] sm:$0xff]
        %v5392 = vld [vmem:[%s5386 + $0x28] sm:$0xff]
        %v5393 = vld [vmem:[%s5386 + $0x30] sm:$0xff]
        %v5394 = vld [vmem:[%s5386 + $0x38] sm:$0xff]
        %5396 = vset.pattern.permute.xlu0 0
        %5397 = vperm.xlu0 %5396, %v5387
        %v5398 = vpop.permute.xlu0 %5397
        %5401 = vset.pattern.permute.xlu0 0
        %5402 = vperm.xlu0 %5401, %v5388
        %v5403 = vpop.permute.xlu0 %5402
        %5406 = vset.pattern.permute.xlu0 0
        %5407 = vperm.xlu0 %5406, %v5389
        %v5408 = vpop.permute.xlu0 %5407
        %5411 = vset.pattern.permute.xlu0 0
        %5412 = vperm.xlu0 %5411, %v5390
        %v5413 = vpop.permute.xlu0 %5412
        %5416 = vset.pattern.permute.xlu0 0
        %5417 = vperm.xlu0 %5416, %v5391
        %v5418 = vpop.permute.xlu0 %5417
        %5421 = vset.pattern.permute.xlu0 0
        %5422 = vperm.xlu0 %5421, %v5392
        %v5423 = vpop.permute.xlu0 %5422
        %5426 = vset.pattern.permute.xlu0 0
        %5427 = vperm.xlu0 %5426, %v5393
        %v5428 = vpop.permute.xlu0 %5427
        %5431 = vset.pattern.permute.xlu0 0
        %5432 = vperm.xlu0 %5431, %v5394
        %v5433 = vpop.permute.xlu0 %5432
        %v5436 = vsel %vm649, %v5378, 0
        %v5439 = vsel %vm649, %v5379, 0
        %v5442 = vsel %vm649, %v5380, 0
        %v5445 = vsel %vm649, %v5381, 0
        %v5448 = vsel %vm649, %v5382, 0
        %v5451 = vsel %vm649, %v5383, 0
        %v5454 = vsel %vm649, %v5384, 0
        %v5457 = vsel %vm649, %v5385, 0
        %5459 = vmatprep.subr.mxu0 0.0
        %5460 = vmatpush1.msra.mxu0 %v5373
        %5461 = vmatprep.subr.mxu0 0.0
        %5462 = vmatpush1.msra.mxu0 %v5374
        %5463 = vmatprep.subr.mxu0 0.0
        %5464 = vmatpush1.msra.mxu0 %v5375
        %5465 = vmatprep.subr.mxu0 0.0
        %5466 = vmatpush1.msra.mxu0 %v5376
        %5467 = vmatprep.subr.mxu0 0.0
        %5468 = vmatpush1.msra.mxu0 0.0
        %5469 = vmatprep.subr.mxu0 0.0
        %5470 = vmatpush1.msra.mxu0 0.0
        %5471 = vmatprep.subr.mxu0 0.0
        %5472 = vmatpush1.msra.mxu0 0.0
        %5473 = vmatprep.subr.mxu0 0.0
        %5474 = vmatpush1.msra.mxu0 0.0
        %5475 = vmatprep.subr.mxu0 0.0
        %5476 = vmatpush1.msra.mxu0 0.0
        %5477 = vmatprep.subr.mxu0 0.0
        %5478 = vmatpush1.msra.mxu0 0.0
        %5479 = vmatprep.subr.mxu0 0.0
        %5480 = vmatpush1.msra.mxu0 0.0
        %5481 = vmatprep.subr.mxu0 0.0
        %5482 = vmatpush1.msra.mxu0 0.0
        %5483 = vmatprep.subr.mxu0 0.0
        %5484 = vmatpush1.msra.mxu0 0.0
        %5485 = vmatprep.subr.mxu0 0.0
        %5486 = vmatpush1.msra.mxu0 0.0
        %5487 = vmatprep.subr.mxu0 0.0
        %5488 = vmatpush1.msra.mxu0 0.0
        %5489 = vmatprep.subr.mxu0 0.0
        %5490 = vmatpush1.msra.mxu0 0.0
        %5491 = vmatprep.subr.mxu0 0.0
        %5492 = vmatpush1.msra.mxu0 0.0
        %5493 = vmatprep.subr.mxu0 0.0
        %5494 = vmatpush1.msra.mxu0 0.0
        %5495 = vmatprep.subr.mxu0 0.0
        %5496 = vmatpush1.msra.mxu0 0.0
        %5497 = vmatprep.subr.mxu0 0.0
        %5498 = vmatpush1.msra.mxu0 0.0
        %5499 = vmatprep.subr.mxu0 0.0
        %5500 = vmatpush1.msra.mxu0 0.0
        %5501 = vmatprep.subr.mxu0 0.0
        %5502 = vmatpush1.msra.mxu0 0.0
        %5503 = vmatprep.subr.mxu0 0.0
        %5504 = vmatpush1.msra.mxu0 0.0
        %5505 = vmatprep.subr.mxu0 0.0
        %5506 = vmatpush1.msra.mxu0 0.0
        %5507 = vmatprep.subr.mxu0 0.0
        %5508 = vmatpush1.msra.mxu0 0.0
        %5509 = vmatprep.subr.mxu0 0.0
        %5510 = vmatpush1.msra.mxu0 0.0
        %5511 = vmatprep.subr.mxu0 0.0
        %5512 = vmatpush1.msra.mxu0 0.0
        %5513 = vmatprep.subr.mxu0 0.0
        %5514 = vmatpush1.msra.mxu0 0.0
        %5515 = vmatprep.subr.mxu0 0.0
        %5516 = vmatpush1.msra.mxu0 0.0
        %5517 = vmatprep.subr.mxu0 0.0
        %5518 = vmatpush1.msra.mxu0 0.0
        %5519 = vmatprep.subr.mxu0 0.0
        %5520 = vmatpush1.msra.mxu0 0.0
        %5521 = vmatprep.subr.mxu0 0.0
        %5522 = vmatpush1.msra.mxu0 0.0
        %5523 = vmatprep.mubr.f32.mxu0 0.0
        %5524 = vmatmul.mubr.f32.gmra.mrb[0].mxu0 %v5436
        %v5525 = vpop.f32.mrb[0].mxu0
        %v5526 = vadd.f32 %v5398, %v5525
        %v5527 = vpop.f32.mrb[0].mxu0
        %5528 = vmatprep.mubr.f32.mxu0 0.0
        %5529 = vmatmul.mubr.f32.gmra.mrb[0].mxu0 %v5439
        %v5530 = vpop.f32.mrb[0].mxu0
        %v5531 = vadd.f32 %v5403, %v5530
        %v5532 = vpop.f32.mrb[0].mxu0
        %5533 = vmatprep.mubr.f32.mxu0 0.0
        %5534 = vmatmul.mubr.f32.gmra.mrb[0].mxu0 %v5442
        %v5535 = vpop.f32.mrb[0].mxu0
        %v5536 = vadd.f32 %v5408, %v5535
        %v5537 = vpop.f32.mrb[0].mxu0
        %5538 = vmatprep.mubr.f32.mxu0 0.0
        %5539 = vmatmul.mubr.f32.gmra.mrb[0].mxu0 %v5445
        %v5540 = vpop.f32.mrb[0].mxu0
        %v5541 = vadd.f32 %v5413, %v5540
        %v5542 = vpop.f32.mrb[0].mxu0
        %5543 = vmatprep.mubr.f32.mxu0 0.0
        %5544 = vmatmul.mubr.f32.gmra.mrb[0].mxu0 %v5448
        %v5545 = vpop.f32.mrb[0].mxu0
        %v5546 = vadd.f32 %v5418, %v5545
        %v5547 = vpop.f32.mrb[0].mxu0
        %5548 = vmatprep.mubr.f32.mxu0 0.0
        %5549 = vmatmul.mubr.f32.gmra.mrb[0].mxu0 %v5451
        %v5550 = vpop.f32.mrb[0].mxu0
        %v5551 = vadd.f32 %v5423, %v5550
        %v5552 = vpop.f32.mrb[0].mxu0
        %5553 = vmatprep.mubr.f32.mxu0 0.0
        %5554 = vmatmul.mubr.f32.gmra.mrb[0].mxu0 %v5454
        %v5555 = vpop.f32.mrb[0].mxu0
        %v5556 = vadd.f32 %v5428, %v5555
        %v5557 = vpop.f32.mrb[0].mxu0
        %5558 = vmatprep.mubr.f32.mxu0 0.0
        %5559 = vmatmul.mubr.f32.gmra.mrb[0].mxu0 %v5457
        %v5560 = vpop.f32.mrb[0].mxu0
        %v5561 = vadd.f32 %v5433, %v5560
        %v5562 = vpop.f32.mrb[0].mxu0
        %5563 = vdwg.mxu0
        %v5564 = vadd.f32 %v5094, %v5526
        %v5565 = vadd.f32 %v5095, %v5531
        %v5566 = vadd.f32 %v5096, %v5536
        %v5567 = vadd.f32 %v5097, %v5541
        %v5568 = vmul.f32 %v5564, %v377
        %v5569 = vmul.f32 %v5565, %v377
        %v5570 = vmul.f32 %v5566, %v377
        %v5571 = vmul.f32 %v5567, %v377
        %v5572 = vadd.f32 %v5098, %v5546
        %v5573 = vadd.f32 %v5099, %v5551
        %v5574 = vadd.f32 %v5100, %v5556
        %v5575 = vadd.f32 %v5101, %v5561
        %5576 = vrot.lane.b32.xlu0 %v5568, 2
        %v5577 = vpop.permute.xlu0 %5576
        %5578 = vrot.lane.b32.xlu0 %v5569, 2
        %v5579 = vpop.permute.xlu0 %5578
        %5580 = vrot.lane.b32.xlu0 %v5570, 2
        %v5581 = vpop.permute.xlu0 %5580
        %5582 = vrot.lane.b32.xlu0 %v5571, 2
        %v5583 = vpop.permute.xlu0 %5582
        %v5584 = vmul.f32 %v5577, %v386
        %v5585 = vmul.f32 %v5579, %v386
        %v5586 = vmul.f32 %v5581, %v386
        %v5587 = vmul.f32 %v5583, %v386
        %5588 = vrot.lane.b32.xlu0 %v5568, 1
        %v5589 = vpop.permute.xlu0 %5588
        %5590 = vrot.lane.b32.xlu0 %v5569, 1
        %v5591 = vpop.permute.xlu0 %5590
        %5592 = vrot.lane.b32.xlu0 %v5570, 1
        %v5593 = vpop.permute.xlu0 %5592
        %5594 = vrot.lane.b32.xlu0 %v5571, 1
        %v5595 = vpop.permute.xlu0 %5594
        %v5596 = vmul.f32 %v5589, %v392
        %v5597 = vmul.f32 %v5591, %v392
        %v5598 = vmul.f32 %v5593, %v392
        %v5599 = vmul.f32 %v5595, %v392
        %5600 = vrot.lane.b32.xlu0 %v5568, 127
        %v5601 = vpop.permute.xlu0 %5600
        %5602 = vrot.lane.b32.xlu0 %v5569, 127
        %v5603 = vpop.permute.xlu0 %5602
        %5604 = vrot.lane.b32.xlu0 %v5570, 127
        %v5605 = vpop.permute.xlu0 %5604
        %5606 = vrot.lane.b32.xlu0 %v5571, 127
        %v5607 = vpop.permute.xlu0 %5606
        %v5608 = vmul.f32 %v5601, %v398
        %v5609 = vmul.f32 %v5603, %v398
        %v5610 = vmul.f32 %v5605, %v398
        %v5611 = vmul.f32 %v5607, %v398
        %5612 = vrot.lane.b32.xlu0 %v5568, 126
        %v5613 = vpop.permute.xlu0 %5612
        %5614 = vrot.lane.b32.xlu0 %v5569, 126
        %v5615 = vpop.permute.xlu0 %5614
        %5616 = vrot.lane.b32.xlu0 %v5570, 126
        %v5617 = vpop.permute.xlu0 %5616
        %5618 = vrot.lane.b32.xlu0 %v5571, 126
        %v5619 = vpop.permute.xlu0 %5618
        %v5620 = vmul.f32 %v5613, %v404
        %v5621 = vmul.f32 %v5615, %v404
        %v5622 = vmul.f32 %v5617, %v404
        %v5623 = vmul.f32 %v5619, %v404
        %s5624 = scalar_lea.vmem %s4, 1280
        %v5625 = vld [vmem:[%s5624] sm:$0xff]
        %v5626 = vld [vmem:[%s5624 + $0x8] sm:$0xff]
        %v5627 = vld [vmem:[%s5624 + $0x10] sm:$0xff]
        %v5628 = vld [vmem:[%s5624 + $0x18] sm:$0xff]
        %v5629 = vld [vmem:[%s5624 + $0x20] sm:$0xff]
        %v5630 = vld [vmem:[%s5624 + $0x28] sm:$0xff]
        %v5631 = vld [vmem:[%s5624 + $0x30] sm:$0xff]
        %v5632 = vld [vmem:[%s5624 + $0x38] sm:$0xff]
        %v5633 = vld [vmem:[%s5624 + $0x40] sm:$0xff]
        %v5634 = vld [vmem:[%s5624 + $0x48] sm:$0xff]
        %v5635 = vld [vmem:[%s5624 + $0x50] sm:$0xff]
        %v5636 = vld [vmem:[%s5624 + $0x58] sm:$0xff]
        %v5637 = vld [vmem:[%s5624 + $0x60] sm:$0xff]
        %v5638 = vld [vmem:[%s5624 + $0x68] sm:$0xff]
        %v5639 = vld [vmem:[%s5624 + $0x70] sm:$0xff]
        %v5640 = vld [vmem:[%s5624 + $0x78] sm:$0xff]
        %s5641 = scalar_lea.vmem %s5, 640
        %v5642 = vld [vmem:[%s5641] sm:$0xff]
        %v5643 = vld [vmem:[%s5641 + $0x8] sm:$0xff]
        %v5644 = vld [vmem:[%s5641 + $0x10] sm:$0xff]
        %v5645 = vld [vmem:[%s5641 + $0x18] sm:$0xff]
        %v5646 = vld [vmem:[%s5641 + $0x20] sm:$0xff]
        %v5647 = vld [vmem:[%s5641 + $0x28] sm:$0xff]
        %v5648 = vld [vmem:[%s5641 + $0x30] sm:$0xff]
        %v5649 = vld [vmem:[%s5641 + $0x38] sm:$0xff]
        %5651 = vset.pattern.permute.xlu0 0
        %5652 = vperm.xlu0 %5651, %v5642
        %v5653 = vpop.permute.xlu0 %5652
        %5656 = vset.pattern.permute.xlu0 0
        %5657 = vperm.xlu0 %5656, %v5643
        %v5658 = vpop.permute.xlu0 %5657
        %5661 = vset.pattern.permute.xlu0 0
        %5662 = vperm.xlu0 %5661, %v5644
        %v5663 = vpop.permute.xlu0 %5662
        %5666 = vset.pattern.permute.xlu0 0
        %5667 = vperm.xlu0 %5666, %v5645
        %v5668 = vpop.permute.xlu0 %5667
        %5671 = vset.pattern.permute.xlu0 0
        %5672 = vperm.xlu0 %5671, %v5646
        %v5673 = vpop.permute.xlu0 %5672
        %5676 = vset.pattern.permute.xlu0 0
        %5677 = vperm.xlu0 %5676, %v5647
        %v5678 = vpop.permute.xlu0 %5677
        %5681 = vset.pattern.permute.xlu0 0
        %5682 = vperm.xlu0 %5681, %v5648
        %v5683 = vpop.permute.xlu0 %5682
        %5686 = vset.pattern.permute.xlu0 0
        %5687 = vperm.xlu0 %5686, %v5649
        %v5688 = vpop.permute.xlu0 %5687
        %v5691 = vsel %vm649, %v5626, 0
        %v5694 = vsel %vm649, %v5628, 0
        %v5697 = vsel %vm649, %v5630, 0
        %v5700 = vsel %vm649, %v5632, 0
        %v5703 = vsel %vm649, %v5634, 0
        %v5706 = vsel %vm649, %v5636, 0
        %v5709 = vsel %vm649, %v5638, 0
        %v5712 = vsel %vm649, %v5640, 0
        %5714 = vmatprep.subr.mxu0 0.0
        %5715 = vmatpush1.msra.mxu0 %v5584
        %5716 = vmatprep.subr.mxu0 0.0
        %5717 = vmatpush1.msra.mxu0 %v5585
        %5718 = vmatprep.subr.mxu0 0.0
        %5719 = vmatpush1.msra.mxu0 %v5586
        %5720 = vmatprep.subr.mxu0 0.0
        %5721 = vmatpush1.msra.mxu0 %v5587
        %5722 = vmatprep.subr.mxu0 0.0
        %5723 = vmatpush1.msra.mxu0 %v5596
        %5724 = vmatprep.subr.mxu0 0.0
        %5725 = vmatpush1.msra.mxu0 %v5597
        %5726 = vmatprep.subr.mxu0 0.0
        %5727 = vmatpush1.msra.mxu0 %v5598
        %5728 = vmatprep.subr.mxu0 0.0
        %5729 = vmatpush1.msra.mxu0 %v5599
        %5730 = vmatprep.subr.mxu0 0.0
        %5731 = vmatpush1.msra.mxu0 %v5568
        %5732 = vmatprep.subr.mxu0 0.0
        %5733 = vmatpush1.msra.mxu0 %v5569
        %5734 = vmatprep.subr.mxu0 0.0
        %5735 = vmatpush1.msra.mxu0 %v5570
        %5736 = vmatprep.subr.mxu0 0.0
        %5737 = vmatpush1.msra.mxu0 %v5571
        %5738 = vmatprep.subr.mxu0 0.0
        %5739 = vmatpush1.msra.mxu0 %v5608
        %5740 = vmatprep.subr.mxu0 0.0
        %5741 = vmatpush1.msra.mxu0 %v5609
        %5742 = vmatprep.subr.mxu0 0.0
        %5743 = vmatpush1.msra.mxu0 %v5610
        %5744 = vmatprep.subr.mxu0 0.0
        %5745 = vmatpush1.msra.mxu0 %v5611
        %5746 = vmatprep.subr.mxu0 0.0
        %5747 = vmatpush1.msra.mxu0 %v5620
        %5748 = vmatprep.subr.mxu0 0.0
        %5749 = vmatpush1.msra.mxu0 %v5621
        %5750 = vmatprep.subr.mxu0 0.0
        %5751 = vmatpush1.msra.mxu0 %v5622
        %5752 = vmatprep.subr.mxu0 0.0
        %5753 = vmatpush1.msra.mxu0 %v5623
        %5754 = vmatprep.subr.mxu0 0.0
        %5755 = vmatpush1.msra.mxu0 0.0
        %5756 = vmatprep.subr.mxu0 0.0
        %5757 = vmatpush1.msra.mxu0 0.0
        %5758 = vmatprep.subr.mxu0 0.0
        %5759 = vmatpush1.msra.mxu0 0.0
        %5760 = vmatprep.subr.mxu0 0.0
        %5761 = vmatpush1.msra.mxu0 0.0
        %5762 = vmatprep.subr.mxu0 0.0
        %5763 = vmatpush1.msra.mxu0 0.0
        %5764 = vmatprep.subr.mxu0 0.0
        %5765 = vmatpush1.msra.mxu0 0.0
        %5766 = vmatprep.subr.mxu0 0.0
        %5767 = vmatpush1.msra.mxu0 0.0
        %5768 = vmatprep.subr.mxu0 0.0
        %5769 = vmatpush1.msra.mxu0 0.0
        %5770 = vmatprep.subr.mxu0 0.0
        %5771 = vmatpush1.msra.mxu0 0.0
        %5772 = vmatprep.subr.mxu0 0.0
        %5773 = vmatpush1.msra.mxu0 0.0
        %5774 = vmatprep.subr.mxu0 0.0
        %5775 = vmatpush1.msra.mxu0 0.0
        %5776 = vmatprep.subr.mxu0 0.0
        %5777 = vmatpush1.msra.mxu0 0.0
        %5778 = vmatprep.mubr.f32.mxu0 %v5691
        %5779 = vmatmul.mubr.f32.gmra.mrb[0].mxu0 %v5625
        %v5780 = vpop.f32.mrb[0].mxu0
        %v5781 = vadd.f32 %v5653, %v5780
        %v5782 = vpop.f32.mrb[0].mxu0
        %5783 = vmatprep.mubr.f32.mxu0 %v5694
        %5784 = vmatmul.mubr.f32.gmra.mrb[0].mxu0 %v5627
        %v5785 = vpop.f32.mrb[0].mxu0
        %v5786 = vadd.f32 %v5658, %v5785
        %v5787 = vpop.f32.mrb[0].mxu0
        %5788 = vmatprep.mubr.f32.mxu0 %v5697
        %5789 = vmatmul.mubr.f32.gmra.mrb[0].mxu0 %v5629
        %v5790 = vpop.f32.mrb[0].mxu0
        %v5791 = vadd.f32 %v5663, %v5790
        %v5792 = vpop.f32.mrb[0].mxu0
        %5793 = vmatprep.mubr.f32.mxu0 %v5700
        %5794 = vmatmul.mubr.f32.gmra.mrb[0].mxu0 %v5631
        %v5795 = vpop.f32.mrb[0].mxu0
        %v5796 = vadd.f32 %v5668, %v5795
        %v5797 = vpop.f32.mrb[0].mxu0
        %5798 = vmatprep.mubr.f32.mxu0 %v5703
        %5799 = vmatmul.mubr.f32.gmra.mrb[0].mxu0 %v5633
        %v5800 = vpop.f32.mrb[0].mxu0
        %v5801 = vadd.f32 %v5673, %v5800
        %v5802 = vpop.f32.mrb[0].mxu0
        %5803 = vmatprep.mubr.f32.mxu0 %v5706
        %5804 = vmatmul.mubr.f32.gmra.mrb[0].mxu0 %v5635
        %v5805 = vpop.f32.mrb[0].mxu0
        %v5806 = vadd.f32 %v5678, %v5805
        %v5807 = vpop.f32.mrb[0].mxu0
        %5808 = vmatprep.mubr.f32.mxu0 %v5709
        %5809 = vmatmul.mubr.f32.gmra.mrb[0].mxu0 %v5637
        %v5810 = vpop.f32.mrb[0].mxu0
        %v5811 = vadd.f32 %v5683, %v5810
        %v5812 = vpop.f32.mrb[0].mxu0
        %5813 = vmatprep.mubr.f32.mxu0 %v5712
        %5814 = vmatmul.mubr.f32.gmra.mrb[0].mxu0 %v5639
        %v5815 = vpop.f32.mrb[0].mxu0
        %v5816 = vadd.f32 %v5688, %v5815
        %v5817 = vpop.f32.mrb[0].mxu0
        %5818 = vdwg.mxu0
        %v5819 = vtanh.pop %v5781
        %v5820 = vtanh.pop %v5786
        %v5821 = vtanh.pop %v5791
        %v5822 = vtanh.pop %v5796
        %v5823 = vxor.u32 %v5801, 2147483648
        %v5824 = vxor.u32 %v5806, 2147483648
        %v5825 = vxor.u32 %v5811, 2147483648
        %v5826 = vxor.u32 %v5816, 2147483648
        %v5827 = vmul.f32 %v5823, 1.442695
        %v5828 = vpow.pop %v5827
        %v5829 = vmul.f32 %v5824, 1.442695
        %v5830 = vpow.pop %v5829
        %v5831 = vmul.f32 %v5825, 1.442695
        %v5832 = vpow.pop %v5831
        %v5833 = vmul.f32 %v5826, 1.442695
        %v5834 = vpow.pop %v5833
        %v5835 = vadd.f32 %v5828, 1.0
        %v5836 = vadd.f32 %v5830, 1.0
        %v5837 = vadd.f32 %v5832, 1.0
        %v5838 = vadd.f32 %v5834, 1.0
        %v5839 = vrcp.pop %v5835
        %v5840 = vmul.f32 1.0, %v5839
        %v5841 = vrcp.pop %v5836
        %v5842 = vmul.f32 1.0, %v5841
        %v5843 = vrcp.pop %v5837
        %v5844 = vmul.f32 1.0, %v5843
        %v5845 = vrcp.pop %v5838
        %v5846 = vmul.f32 1.0, %v5845
        %v5847 = vmul.f32 %v5819, %v5840
        %v5848 = vmul.f32 %v5820, %v5842
        %v5849 = vmul.f32 %v5821, %v5844
        %v5850 = vmul.f32 %v5822, %v5846
        %s5851 = scalar_lea.vmem %s6, 640
        %v5852 = vld [vmem:[%s5851] sm:$0xff]
        %v5853 = vld [vmem:[%s5851 + $0x8] sm:$0xff]
        %v5854 = vld [vmem:[%s5851 + $0x10] sm:$0xff]
        %v5855 = vld [vmem:[%s5851 + $0x18] sm:$0xff]
        %v5856 = vld [vmem:[%s5851 + $0x20] sm:$0xff]
        %v5857 = vld [vmem:[%s5851 + $0x28] sm:$0xff]
        %v5858 = vld [vmem:[%s5851 + $0x30] sm:$0xff]
        %v5859 = vld [vmem:[%s5851 + $0x38] sm:$0xff]
        %s5860 = scalar_lea.vmem %s7, 640
        %v5861 = vld [vmem:[%s5860] sm:$0xff]
        %v5862 = vld [vmem:[%s5860 + $0x8] sm:$0xff]
        %v5863 = vld [vmem:[%s5860 + $0x10] sm:$0xff]
        %v5864 = vld [vmem:[%s5860 + $0x18] sm:$0xff]
        %v5865 = vld [vmem:[%s5860 + $0x20] sm:$0xff]
        %v5866 = vld [vmem:[%s5860 + $0x28] sm:$0xff]
        %v5867 = vld [vmem:[%s5860 + $0x30] sm:$0xff]
        %v5868 = vld [vmem:[%s5860 + $0x38] sm:$0xff]
        %5870 = vset.pattern.permute.xlu0 0
        %5871 = vperm.xlu0 %5870, %v5861
        %v5872 = vpop.permute.xlu0 %5871
        %5875 = vset.pattern.permute.xlu0 0
        %5876 = vperm.xlu0 %5875, %v5862
        %v5877 = vpop.permute.xlu0 %5876
        %5880 = vset.pattern.permute.xlu0 0
        %5881 = vperm.xlu0 %5880, %v5863
        %v5882 = vpop.permute.xlu0 %5881
        %5885 = vset.pattern.permute.xlu0 0
        %5886 = vperm.xlu0 %5885, %v5864
        %v5887 = vpop.permute.xlu0 %5886
        %5890 = vset.pattern.permute.xlu0 0
        %5891 = vperm.xlu0 %5890, %v5865
        %v5892 = vpop.permute.xlu0 %5891
        %5895 = vset.pattern.permute.xlu0 0
        %5896 = vperm.xlu0 %5895, %v5866
        %v5897 = vpop.permute.xlu0 %5896
        %5900 = vset.pattern.permute.xlu0 0
        %5901 = vperm.xlu0 %5900, %v5867
        %v5902 = vpop.permute.xlu0 %5901
        %5905 = vset.pattern.permute.xlu0 0
        %5906 = vperm.xlu0 %5905, %v5868
        %v5907 = vpop.permute.xlu0 %5906
        %v5910 = vsel %vm649, %v5852, 0
        %v5913 = vsel %vm649, %v5853, 0
        %v5916 = vsel %vm649, %v5854, 0
        %v5919 = vsel %vm649, %v5855, 0
        %v5922 = vsel %vm649, %v5856, 0
        %v5925 = vsel %vm649, %v5857, 0
        %v5928 = vsel %vm649, %v5858, 0
        %v5931 = vsel %vm649, %v5859, 0
        %5933 = vmatprep.subr.mxu0 0.0
        %5934 = vmatpush1.msra.mxu0 %v5847
        %5935 = vmatprep.subr.mxu0 0.0
        %5936 = vmatpush1.msra.mxu0 %v5848
        %5937 = vmatprep.subr.mxu0 0.0
        %5938 = vmatpush1.msra.mxu0 %v5849
        %5939 = vmatprep.subr.mxu0 0.0
        %5940 = vmatpush1.msra.mxu0 %v5850
        %5941 = vmatprep.subr.mxu0 0.0
        %5942 = vmatpush1.msra.mxu0 0.0
        %5943 = vmatprep.subr.mxu0 0.0
        %5944 = vmatpush1.msra.mxu0 0.0
        %5945 = vmatprep.subr.mxu0 0.0
        %5946 = vmatpush1.msra.mxu0 0.0
        %5947 = vmatprep.subr.mxu0 0.0
        %5948 = vmatpush1.msra.mxu0 0.0
        %5949 = vmatprep.subr.mxu0 0.0
        %5950 = vmatpush1.msra.mxu0 0.0
        %5951 = vmatprep.subr.mxu0 0.0
        %5952 = vmatpush1.msra.mxu0 0.0
        %5953 = vmatprep.subr.mxu0 0.0
        %5954 = vmatpush1.msra.mxu0 0.0
        %5955 = vmatprep.subr.mxu0 0.0
        %5956 = vmatpush1.msra.mxu0 0.0
        %5957 = vmatprep.subr.mxu0 0.0
        %5958 = vmatpush1.msra.mxu0 0.0
        %5959 = vmatprep.subr.mxu0 0.0
        %5960 = vmatpush1.msra.mxu0 0.0
        %5961 = vmatprep.subr.mxu0 0.0
        %5962 = vmatpush1.msra.mxu0 0.0
        %5963 = vmatprep.subr.mxu0 0.0
        %5964 = vmatpush1.msra.mxu0 0.0
        %5965 = vmatprep.subr.mxu0 0.0
        %5966 = vmatpush1.msra.mxu0 0.0
        %5967 = vmatprep.subr.mxu0 0.0
        %5968 = vmatpush1.msra.mxu0 0.0
        %5969 = vmatprep.subr.mxu0 0.0
        %5970 = vmatpush1.msra.mxu0 0.0
        %5971 = vmatprep.subr.mxu0 0.0
        %5972 = vmatpush1.msra.mxu0 0.0
        %5973 = vmatprep.subr.mxu0 0.0
        %5974 = vmatpush1.msra.mxu0 0.0
        %5975 = vmatprep.subr.mxu0 0.0
        %5976 = vmatpush1.msra.mxu0 0.0
        %5977 = vmatprep.subr.mxu0 0.0
        %5978 = vmatpush1.msra.mxu0 0.0
        %5979 = vmatprep.subr.mxu0 0.0
        %5980 = vmatpush1.msra.mxu0 0.0
        %5981 = vmatprep.subr.mxu0 0.0
        %5982 = vmatpush1.msra.mxu0 0.0
        %5983 = vmatprep.subr.mxu0 0.0
        %5984 = vmatpush1.msra.mxu0 0.0
        %5985 = vmatprep.subr.mxu0 0.0
        %5986 = vmatpush1.msra.mxu0 0.0
        %5987 = vmatprep.subr.mxu0 0.0
        %5988 = vmatpush1.msra.mxu0 0.0
        %5989 = vmatprep.subr.mxu0 0.0
        %5990 = vmatpush1.msra.mxu0 0.0
        %5991 = vmatprep.subr.mxu0 0.0
        %5992 = vmatpush1.msra.mxu0 0.0
        %5993 = vmatprep.subr.mxu0 0.0
        %5994 = vmatpush1.msra.mxu0 0.0
        %5995 = vmatprep.subr.mxu0 0.0
        %5996 = vmatpush1.msra.mxu0 0.0
        %5997 = vmatprep.mubr.f32.mxu0 0.0
        %5998 = vmatmul.mubr.f32.gmra.mrb[0].mxu0 %v5910
        %v5999 = vpop.f32.mrb[0].mxu0
        %v6000 = vadd.f32 %v5872, %v5999
        %v6001 = vpop.f32.mrb[0].mxu0
        %6002 = vmatprep.mubr.f32.mxu0 0.0
        %6003 = vmatmul.mubr.f32.gmra.mrb[0].mxu0 %v5913
        %v6004 = vpop.f32.mrb[0].mxu0
        %v6005 = vadd.f32 %v5877, %v6004
        %v6006 = vpop.f32.mrb[0].mxu0
        %6007 = vmatprep.mubr.f32.mxu0 0.0
        %6008 = vmatmul.mubr.f32.gmra.mrb[0].mxu0 %v5916
        %v6009 = vpop.f32.mrb[0].mxu0
        %v6010 = vadd.f32 %v5882, %v6009
        %v6011 = vpop.f32.mrb[0].mxu0
        %6012 = vmatprep.mubr.f32.mxu0 0.0
        %6013 = vmatmul.mubr.f32.gmra.mrb[0].mxu0 %v5919
        %v6014 = vpop.f32.mrb[0].mxu0
        %v6015 = vadd.f32 %v5887, %v6014
        %v6016 = vpop.f32.mrb[0].mxu0
        %6017 = vmatprep.mubr.f32.mxu0 0.0
        %6018 = vmatmul.mubr.f32.gmra.mrb[0].mxu0 %v5922
        %v6019 = vpop.f32.mrb[0].mxu0
        %v6020 = vadd.f32 %v5892, %v6019
        %v6021 = vpop.f32.mrb[0].mxu0
        %6022 = vmatprep.mubr.f32.mxu0 0.0
        %6023 = vmatmul.mubr.f32.gmra.mrb[0].mxu0 %v5925
        %v6024 = vpop.f32.mrb[0].mxu0
        %v6025 = vadd.f32 %v5897, %v6024
        %v6026 = vpop.f32.mrb[0].mxu0
        %6027 = vmatprep.mubr.f32.mxu0 0.0
        %6028 = vmatmul.mubr.f32.gmra.mrb[0].mxu0 %v5928
        %v6029 = vpop.f32.mrb[0].mxu0
        %v6030 = vadd.f32 %v5902, %v6029
        %v6031 = vpop.f32.mrb[0].mxu0
        %6032 = vmatprep.mubr.f32.mxu0 0.0
        %6033 = vmatmul.mubr.f32.gmra.mrb[0].mxu0 %v5931
        %v6034 = vpop.f32.mrb[0].mxu0
        %v6035 = vadd.f32 %v5907, %v6034
        %v6036 = vpop.f32.mrb[0].mxu0
        %6037 = vdwg.mxu0
        %v6038 = vadd.f32 %v5568, %v6000
        %v6039 = vadd.f32 %v5569, %v6005
        %v6040 = vadd.f32 %v5570, %v6010
        %v6041 = vadd.f32 %v5571, %v6015
        %v6042 = vmul.f32 %v6038, %v377
        %v6043 = vmul.f32 %v6039, %v377
        %v6044 = vmul.f32 %v6040, %v377
        %v6045 = vmul.f32 %v6041, %v377
        %v6046 = vadd.f32 %v5572, %v6020
        %v6047 = vadd.f32 %v5573, %v6025
        %v6048 = vadd.f32 %v5574, %v6030
        %v6049 = vadd.f32 %v5575, %v6035
        %6050 = vrot.lane.b32.xlu0 %v6042, 2
        %v6051 = vpop.permute.xlu0 %6050
        %6052 = vrot.lane.b32.xlu0 %v6043, 2
        %v6053 = vpop.permute.xlu0 %6052
        %6054 = vrot.lane.b32.xlu0 %v6044, 2
        %v6055 = vpop.permute.xlu0 %6054
        %6056 = vrot.lane.b32.xlu0 %v6045, 2
        %v6057 = vpop.permute.xlu0 %6056
        %v6058 = vmul.f32 %v6051, %v386
        %v6059 = vmul.f32 %v6053, %v386
        %v6060 = vmul.f32 %v6055, %v386
        %v6061 = vmul.f32 %v6057, %v386
        %6062 = vrot.lane.b32.xlu0 %v6042, 1
        %v6063 = vpop.permute.xlu0 %6062
        %6064 = vrot.lane.b32.xlu0 %v6043, 1
        %v6065 = vpop.permute.xlu0 %6064
        %6066 = vrot.lane.b32.xlu0 %v6044, 1
        %v6067 = vpop.permute.xlu0 %6066
        %6068 = vrot.lane.b32.xlu0 %v6045, 1
        %v6069 = vpop.permute.xlu0 %6068
        %v6070 = vmul.f32 %v6063, %v392
        %v6071 = vmul.f32 %v6065, %v392
        %v6072 = vmul.f32 %v6067, %v392
        %v6073 = vmul.f32 %v6069, %v392
        %6074 = vrot.lane.b32.xlu0 %v6042, 127
        %v6075 = vpop.permute.xlu0 %6074
        %6076 = vrot.lane.b32.xlu0 %v6043, 127
        %v6077 = vpop.permute.xlu0 %6076
        %6078 = vrot.lane.b32.xlu0 %v6044, 127
        %v6079 = vpop.permute.xlu0 %6078
        %6080 = vrot.lane.b32.xlu0 %v6045, 127
        %v6081 = vpop.permute.xlu0 %6080
        %v6082 = vmul.f32 %v6075, %v398
        %v6083 = vmul.f32 %v6077, %v398
        %v6084 = vmul.f32 %v6079, %v398
        %v6085 = vmul.f32 %v6081, %v398
        %6086 = vrot.lane.b32.xlu0 %v6042, 126
        %v6087 = vpop.permute.xlu0 %6086
        %6088 = vrot.lane.b32.xlu0 %v6043, 126
        %v6089 = vpop.permute.xlu0 %6088
        %6090 = vrot.lane.b32.xlu0 %v6044, 126
        %v6091 = vpop.permute.xlu0 %6090
        %6092 = vrot.lane.b32.xlu0 %v6045, 126
        %v6093 = vpop.permute.xlu0 %6092
        %v6094 = vmul.f32 %v6087, %v404
        %v6095 = vmul.f32 %v6089, %v404
        %v6096 = vmul.f32 %v6091, %v404
        %v6097 = vmul.f32 %v6093, %v404
        %s6098 = scalar_lea.vmem %s4, 1408
        %v6099 = vld [vmem:[%s6098] sm:$0xff]
        %v6100 = vld [vmem:[%s6098 + $0x8] sm:$0xff]
        %v6101 = vld [vmem:[%s6098 + $0x10] sm:$0xff]
        %v6102 = vld [vmem:[%s6098 + $0x18] sm:$0xff]
        %v6103 = vld [vmem:[%s6098 + $0x20] sm:$0xff]
        %v6104 = vld [vmem:[%s6098 + $0x28] sm:$0xff]
        %v6105 = vld [vmem:[%s6098 + $0x30] sm:$0xff]
        %v6106 = vld [vmem:[%s6098 + $0x38] sm:$0xff]
        %v6107 = vld [vmem:[%s6098 + $0x40] sm:$0xff]
        %v6108 = vld [vmem:[%s6098 + $0x48] sm:$0xff]
        %v6109 = vld [vmem:[%s6098 + $0x50] sm:$0xff]
        %v6110 = vld [vmem:[%s6098 + $0x58] sm:$0xff]
        %v6111 = vld [vmem:[%s6098 + $0x60] sm:$0xff]
        %v6112 = vld [vmem:[%s6098 + $0x68] sm:$0xff]
        %v6113 = vld [vmem:[%s6098 + $0x70] sm:$0xff]
        %v6114 = vld [vmem:[%s6098 + $0x78] sm:$0xff]
        %s6115 = scalar_lea.vmem %s5, 704
        %v6116 = vld [vmem:[%s6115] sm:$0xff]
        %v6117 = vld [vmem:[%s6115 + $0x8] sm:$0xff]
        %v6118 = vld [vmem:[%s6115 + $0x10] sm:$0xff]
        %v6119 = vld [vmem:[%s6115 + $0x18] sm:$0xff]
        %v6120 = vld [vmem:[%s6115 + $0x20] sm:$0xff]
        %v6121 = vld [vmem:[%s6115 + $0x28] sm:$0xff]
        %v6122 = vld [vmem:[%s6115 + $0x30] sm:$0xff]
        %v6123 = vld [vmem:[%s6115 + $0x38] sm:$0xff]
        %6125 = vset.pattern.permute.xlu0 0
        %6126 = vperm.xlu0 %6125, %v6116
        %v6127 = vpop.permute.xlu0 %6126
        %6130 = vset.pattern.permute.xlu0 0
        %6131 = vperm.xlu0 %6130, %v6117
        %v6132 = vpop.permute.xlu0 %6131
        %6135 = vset.pattern.permute.xlu0 0
        %6136 = vperm.xlu0 %6135, %v6118
        %v6137 = vpop.permute.xlu0 %6136
        %6140 = vset.pattern.permute.xlu0 0
        %6141 = vperm.xlu0 %6140, %v6119
        %v6142 = vpop.permute.xlu0 %6141
        %6145 = vset.pattern.permute.xlu0 0
        %6146 = vperm.xlu0 %6145, %v6120
        %v6147 = vpop.permute.xlu0 %6146
        %6150 = vset.pattern.permute.xlu0 0
        %6151 = vperm.xlu0 %6150, %v6121
        %v6152 = vpop.permute.xlu0 %6151
        %6155 = vset.pattern.permute.xlu0 0
        %6156 = vperm.xlu0 %6155, %v6122
        %v6157 = vpop.permute.xlu0 %6156
        %6160 = vset.pattern.permute.xlu0 0
        %6161 = vperm.xlu0 %6160, %v6123
        %v6162 = vpop.permute.xlu0 %6161
        %v6165 = vsel %vm649, %v6100, 0
        %v6168 = vsel %vm649, %v6102, 0
        %v6171 = vsel %vm649, %v6104, 0
        %v6174 = vsel %vm649, %v6106, 0
        %v6177 = vsel %vm649, %v6108, 0
        %v6180 = vsel %vm649, %v6110, 0
        %v6183 = vsel %vm649, %v6112, 0
        %v6186 = vsel %vm649, %v6114, 0
        %6188 = vmatprep.subr.mxu0 0.0
        %6189 = vmatpush1.msra.mxu0 %v6058
        %6190 = vmatprep.subr.mxu0 0.0
        %6191 = vmatpush1.msra.mxu0 %v6059
        %6192 = vmatprep.subr.mxu0 0.0
        %6193 = vmatpush1.msra.mxu0 %v6060
        %6194 = vmatprep.subr.mxu0 0.0
        %6195 = vmatpush1.msra.mxu0 %v6061
        %6196 = vmatprep.subr.mxu0 0.0
        %6197 = vmatpush1.msra.mxu0 %v6070
        %6198 = vmatprep.subr.mxu0 0.0
        %6199 = vmatpush1.msra.mxu0 %v6071
        %6200 = vmatprep.subr.mxu0 0.0
        %6201 = vmatpush1.msra.mxu0 %v6072
        %6202 = vmatprep.subr.mxu0 0.0
        %6203 = vmatpush1.msra.mxu0 %v6073
        %6204 = vmatprep.subr.mxu0 0.0
        %6205 = vmatpush1.msra.mxu0 %v6042
        %6206 = vmatprep.subr.mxu0 0.0
        %6207 = vmatpush1.msra.mxu0 %v6043
        %6208 = vmatprep.subr.mxu0 0.0
        %6209 = vmatpush1.msra.mxu0 %v6044
        %6210 = vmatprep.subr.mxu0 0.0
        %6211 = vmatpush1.msra.mxu0 %v6045
        %6212 = vmatprep.subr.mxu0 0.0
        %6213 = vmatpush1.msra.mxu0 %v6082
        %6214 = vmatprep.subr.mxu0 0.0
        %6215 = vmatpush1.msra.mxu0 %v6083
        %6216 = vmatprep.subr.mxu0 0.0
        %6217 = vmatpush1.msra.mxu0 %v6084
        %6218 = vmatprep.subr.mxu0 0.0
        %6219 = vmatpush1.msra.mxu0 %v6085
        %6220 = vmatprep.subr.mxu0 0.0
        %6221 = vmatpush1.msra.mxu0 %v6094
        %6222 = vmatprep.subr.mxu0 0.0
        %6223 = vmatpush1.msra.mxu0 %v6095
        %6224 = vmatprep.subr.mxu0 0.0
        %6225 = vmatpush1.msra.mxu0 %v6096
        %6226 = vmatprep.subr.mxu0 0.0
        %6227 = vmatpush1.msra.mxu0 %v6097
        %6228 = vmatprep.subr.mxu0 0.0
        %6229 = vmatpush1.msra.mxu0 0.0
        %6230 = vmatprep.subr.mxu0 0.0
        %6231 = vmatpush1.msra.mxu0 0.0
        %6232 = vmatprep.subr.mxu0 0.0
        %6233 = vmatpush1.msra.mxu0 0.0
        %6234 = vmatprep.subr.mxu0 0.0
        %6235 = vmatpush1.msra.mxu0 0.0
        %6236 = vmatprep.subr.mxu0 0.0
        %6237 = vmatpush1.msra.mxu0 0.0
        %6238 = vmatprep.subr.mxu0 0.0
        %6239 = vmatpush1.msra.mxu0 0.0
        %6240 = vmatprep.subr.mxu0 0.0
        %6241 = vmatpush1.msra.mxu0 0.0
        %6242 = vmatprep.subr.mxu0 0.0
        %6243 = vmatpush1.msra.mxu0 0.0
        %6244 = vmatprep.subr.mxu0 0.0
        %6245 = vmatpush1.msra.mxu0 0.0
        %6246 = vmatprep.subr.mxu0 0.0
        %6247 = vmatpush1.msra.mxu0 0.0
        %6248 = vmatprep.subr.mxu0 0.0
        %6249 = vmatpush1.msra.mxu0 0.0
        %6250 = vmatprep.subr.mxu0 0.0
        %6251 = vmatpush1.msra.mxu0 0.0
        %6252 = vmatprep.mubr.f32.mxu0 %v6165
        %6253 = vmatmul.mubr.f32.gmra.mrb[0].mxu0 %v6099
        %v6254 = vpop.f32.mrb[0].mxu0
        %v6255 = vadd.f32 %v6127, %v6254
        %v6256 = vpop.f32.mrb[0].mxu0
        %6257 = vmatprep.mubr.f32.mxu0 %v6168
        %6258 = vmatmul.mubr.f32.gmra.mrb[0].mxu0 %v6101
        %v6259 = vpop.f32.mrb[0].mxu0
        %v6260 = vadd.f32 %v6132, %v6259
        %v6261 = vpop.f32.mrb[0].mxu0
        %6262 = vmatprep.mubr.f32.mxu0 %v6171
        %6263 = vmatmul.mubr.f32.gmra.mrb[0].mxu0 %v6103
        %v6264 = vpop.f32.mrb[0].mxu0
        %v6265 = vadd.f32 %v6137, %v6264
        %v6266 = vpop.f32.mrb[0].mxu0
        %6267 = vmatprep.mubr.f32.mxu0 %v6174
        %6268 = vmatmul.mubr.f32.gmra.mrb[0].mxu0 %v6105
        %v6269 = vpop.f32.mrb[0].mxu0
        %v6270 = vadd.f32 %v6142, %v6269
        %v6271 = vpop.f32.mrb[0].mxu0
        %6272 = vmatprep.mubr.f32.mxu0 %v6177
        %6273 = vmatmul.mubr.f32.gmra.mrb[0].mxu0 %v6107
        %v6274 = vpop.f32.mrb[0].mxu0
        %v6275 = vadd.f32 %v6147, %v6274
        %v6276 = vpop.f32.mrb[0].mxu0
        %6277 = vmatprep.mubr.f32.mxu0 %v6180
        %6278 = vmatmul.mubr.f32.gmra.mrb[0].mxu0 %v6109
        %v6279 = vpop.f32.mrb[0].mxu0
        %v6280 = vadd.f32 %v6152, %v6279
        %v6281 = vpop.f32.mrb[0].mxu0
        %6282 = vmatprep.mubr.f32.mxu0 %v6183
        %6283 = vmatmul.mubr.f32.gmra.mrb[0].mxu0 %v6111
        %v6284 = vpop.f32.mrb[0].mxu0
        %v6285 = vadd.f32 %v6157, %v6284
        %v6286 = vpop.f32.mrb[0].mxu0
        %6287 = vmatprep.mubr.f32.mxu0 %v6186
        %6288 = vmatmul.mubr.f32.gmra.mrb[0].mxu0 %v6113
        %v6289 = vpop.f32.mrb[0].mxu0
        %v6290 = vadd.f32 %v6162, %v6289
        %v6291 = vpop.f32.mrb[0].mxu0
        %6292 = vdwg.mxu0
        %v6293 = vtanh.pop %v6255
        %v6294 = vtanh.pop %v6260
        %v6295 = vtanh.pop %v6265
        %v6296 = vtanh.pop %v6270
        %v6297 = vxor.u32 %v6275, 2147483648
        %v6298 = vxor.u32 %v6280, 2147483648
        %v6299 = vxor.u32 %v6285, 2147483648
        %v6300 = vxor.u32 %v6290, 2147483648
        %v6301 = vmul.f32 %v6297, 1.442695
        %v6302 = vpow.pop %v6301
        %v6303 = vmul.f32 %v6298, 1.442695
        %v6304 = vpow.pop %v6303
        %v6305 = vmul.f32 %v6299, 1.442695
        %v6306 = vpow.pop %v6305
        %v6307 = vmul.f32 %v6300, 1.442695
        %v6308 = vpow.pop %v6307
        %v6309 = vadd.f32 %v6302, 1.0
        %v6310 = vadd.f32 %v6304, 1.0
        %v6311 = vadd.f32 %v6306, 1.0
        %v6312 = vadd.f32 %v6308, 1.0
        %v6313 = vrcp.pop %v6309
        %v6314 = vmul.f32 1.0, %v6313
        %v6315 = vrcp.pop %v6310
        %v6316 = vmul.f32 1.0, %v6315
        %v6317 = vrcp.pop %v6311
        %v6318 = vmul.f32 1.0, %v6317
        %v6319 = vrcp.pop %v6312
        %v6320 = vmul.f32 1.0, %v6319
        %v6321 = vmul.f32 %v6293, %v6314
        %v6322 = vmul.f32 %v6294, %v6316
        %v6323 = vmul.f32 %v6295, %v6318
        %v6324 = vmul.f32 %v6296, %v6320
        %s6325 = scalar_lea.vmem %s6, 704
        %v6326 = vld [vmem:[%s6325 + $0x20] sm:$0xff]
        %v6327 = vld [vmem:[%s6325 + $0x28] sm:$0xff]
        %v6328 = vld [vmem:[%s6325 + $0x30] sm:$0xff]
        %v6329 = vld [vmem:[%s6325 + $0x38] sm:$0xff]
        %s6330 = scalar_lea.vmem %s7, 704
        %v6331 = vld [vmem:[%s6330 + $0x20] sm:$0xff]
        %v6332 = vld [vmem:[%s6330 + $0x28] sm:$0xff]
        %v6333 = vld [vmem:[%s6330 + $0x30] sm:$0xff]
        %v6334 = vld [vmem:[%s6330 + $0x38] sm:$0xff]
        %6336 = vset.pattern.permute.xlu0 0
        %6337 = vperm.xlu0 %6336, %v6331
        %v6338 = vpop.permute.xlu0 %6337
        %6341 = vset.pattern.permute.xlu0 0
        %6342 = vperm.xlu0 %6341, %v6332
        %v6343 = vpop.permute.xlu0 %6342
        %6346 = vset.pattern.permute.xlu0 0
        %6347 = vperm.xlu0 %6346, %v6333
        %v6348 = vpop.permute.xlu0 %6347
        %6351 = vset.pattern.permute.xlu0 0
        %6352 = vperm.xlu0 %6351, %v6334
        %v6353 = vpop.permute.xlu0 %6352
        %v6356 = vsel %vm649, %v6326, 0
        %v6359 = vsel %vm649, %v6327, 0
        %v6362 = vsel %vm649, %v6328, 0
        %v6365 = vsel %vm649, %v6329, 0
        %6367 = vmatprep.subr.mxu0 0.0
        %6368 = vmatpush1.msra.mxu0 %v6321
        %6369 = vmatprep.subr.mxu0 0.0
        %6370 = vmatpush1.msra.mxu0 %v6322
        %6371 = vmatprep.subr.mxu0 0.0
        %6372 = vmatpush1.msra.mxu0 %v6323
        %6373 = vmatprep.subr.mxu0 0.0
        %6374 = vmatpush1.msra.mxu0 %v6324
        %6375 = vmatprep.subr.mxu0 0.0
        %6376 = vmatpush1.msra.mxu0 0.0
        %6377 = vmatprep.subr.mxu0 0.0
        %6378 = vmatpush1.msra.mxu0 0.0
        %6379 = vmatprep.subr.mxu0 0.0
        %6380 = vmatpush1.msra.mxu0 0.0
        %6381 = vmatprep.subr.mxu0 0.0
        %6382 = vmatpush1.msra.mxu0 0.0
        %6383 = vmatprep.subr.mxu0 0.0
        %6384 = vmatpush1.msra.mxu0 0.0
        %6385 = vmatprep.subr.mxu0 0.0
        %6386 = vmatpush1.msra.mxu0 0.0
        %6387 = vmatprep.subr.mxu0 0.0
        %6388 = vmatpush1.msra.mxu0 0.0
        %6389 = vmatprep.subr.mxu0 0.0
        %6390 = vmatpush1.msra.mxu0 0.0
        %6391 = vmatprep.subr.mxu0 0.0
        %6392 = vmatpush1.msra.mxu0 0.0
        %6393 = vmatprep.subr.mxu0 0.0
        %6394 = vmatpush1.msra.mxu0 0.0
        %6395 = vmatprep.subr.mxu0 0.0
        %6396 = vmatpush1.msra.mxu0 0.0
        %6397 = vmatprep.subr.mxu0 0.0
        %6398 = vmatpush1.msra.mxu0 0.0
        %6399 = vmatprep.subr.mxu0 0.0
        %6400 = vmatpush1.msra.mxu0 0.0
        %6401 = vmatprep.subr.mxu0 0.0
        %6402 = vmatpush1.msra.mxu0 0.0
        %6403 = vmatprep.subr.mxu0 0.0
        %6404 = vmatpush1.msra.mxu0 0.0
        %6405 = vmatprep.subr.mxu0 0.0
        %6406 = vmatpush1.msra.mxu0 0.0
        %6407 = vmatprep.subr.mxu0 0.0
        %6408 = vmatpush1.msra.mxu0 0.0
        %6409 = vmatprep.subr.mxu0 0.0
        %6410 = vmatpush1.msra.mxu0 0.0
        %6411 = vmatprep.subr.mxu0 0.0
        %6412 = vmatpush1.msra.mxu0 0.0
        %6413 = vmatprep.subr.mxu0 0.0
        %6414 = vmatpush1.msra.mxu0 0.0
        %6415 = vmatprep.subr.mxu0 0.0
        %6416 = vmatpush1.msra.mxu0 0.0
        %6417 = vmatprep.subr.mxu0 0.0
        %6418 = vmatpush1.msra.mxu0 0.0
        %6419 = vmatprep.subr.mxu0 0.0
        %6420 = vmatpush1.msra.mxu0 0.0
        %6421 = vmatprep.subr.mxu0 0.0
        %6422 = vmatpush1.msra.mxu0 0.0
        %6423 = vmatprep.subr.mxu0 0.0
        %6424 = vmatpush1.msra.mxu0 0.0
        %6425 = vmatprep.subr.mxu0 0.0
        %6426 = vmatpush1.msra.mxu0 0.0
        %6427 = vmatprep.subr.mxu0 0.0
        %6428 = vmatpush1.msra.mxu0 0.0
        %6429 = vmatprep.subr.mxu0 0.0
        %6430 = vmatpush1.msra.mxu0 0.0
        %6431 = vmatprep.mubr.f32.mxu0 0.0
        %6432 = vmatmul.mubr.f32.gmra.mrb[0].mxu0 %v6356
        %v6433 = vpop.f32.mrb[0].mxu0
        %v6434 = vadd.f32 %v6338, %v6433
        %v6435 = vpop.f32.mrb[0].mxu0
        %6436 = vmatprep.mubr.f32.mxu0 0.0
        %6437 = vmatmul.mubr.f32.gmra.mrb[0].mxu0 %v6359
        %v6438 = vpop.f32.mrb[0].mxu0
        %v6439 = vadd.f32 %v6343, %v6438
        %v6440 = vpop.f32.mrb[0].mxu0
        %6441 = vmatprep.mubr.f32.mxu0 0.0
        %6442 = vmatmul.mubr.f32.gmra.mrb[0].mxu0 %v6362
        %v6443 = vpop.f32.mrb[0].mxu0
        %v6444 = vadd.f32 %v6348, %v6443
        %v6445 = vpop.f32.mrb[0].mxu0
        %6446 = vmatprep.mubr.f32.mxu0 0.0
        %6447 = vmatmul.mubr.f32.gmra.mrb[0].mxu0 %v6365
        %v6448 = vpop.f32.mrb[0].mxu0
        %v6449 = vadd.f32 %v6353, %v6448
        %v6450 = vpop.f32.mrb[0].mxu0
        %6451 = vdwg.mxu0
        %v6452 = vadd.f32 %v6046, %v6434
        %v6453 = vadd.f32 %v6047, %v6439
        %v6454 = vadd.f32 %v6048, %v6444
        %v6455 = vadd.f32 %v6049, %v6449
        %v6456 = vmul.f32 %v6452, %v377
        %v6457 = vmul.f32 %v6453, %v377
        %v6458 = vmul.f32 %v6454, %v377
        %v6459 = vmul.f32 %v6455, %v377
        %s6460 = scalar_lea.vmem %s8, 16
        %v6461 = vld [vmem:[%s6460] sm:$0xff]
        %s6462 = scalar_lea.vmem %s9, 16
        %v6463 = vld [vmem:[%s6462] sm:$0xff]
        %6465 = vset.pattern.permute.xlu0 0
        %6466 = vperm.xlu0 %6465, %v6463
        %v6467 = vpop.permute.xlu0 %6466
        %v6470 = vsel %vm649, %v6461, 0
        %6472 = vmatprep.subr.mxu0 0.0
        %6473 = vmatpush1.msra.mxu0 %v6456
        %6474 = vmatprep.subr.mxu0 0.0
        %6475 = vmatpush1.msra.mxu0 %v6457
        %6476 = vmatprep.subr.mxu0 0.0
        %6477 = vmatpush1.msra.mxu0 %v6458
        %6478 = vmatprep.subr.mxu0 0.0
        %6479 = vmatpush1.msra.mxu0 %v6459
        %6480 = vmatprep.subr.mxu0 0.0
        %6481 = vmatpush1.msra.mxu0 0.0
        %6482 = vmatprep.subr.mxu0 0.0
        %6483 = vmatpush1.msra.mxu0 0.0
        %6484 = vmatprep.subr.mxu0 0.0
        %6485 = vmatpush1.msra.mxu0 0.0
        %6486 = vmatprep.subr.mxu0 0.0
        %6487 = vmatpush1.msra.mxu0 0.0
        %6488 = vmatprep.subr.mxu0 0.0
        %6489 = vmatpush1.msra.mxu0 0.0
        %6490 = vmatprep.subr.mxu0 0.0
        %6491 = vmatpush1.msra.mxu0 0.0
        %6492 = vmatprep.subr.mxu0 0.0
        %6493 = vmatpush1.msra.mxu0 0.0
        %6494 = vmatprep.subr.mxu0 0.0
        %6495 = vmatpush1.msra.mxu0 0.0
        %6496 = vmatprep.subr.mxu0 0.0
        %6497 = vmatpush1.msra.mxu0 0.0
        %6498 = vmatprep.subr.mxu0 0.0
        %6499 = vmatpush1.msra.mxu0 0.0
        %6500 = vmatprep.subr.mxu0 0.0
        %6501 = vmatpush1.msra.mxu0 0.0
        %6502 = vmatprep.subr.mxu0 0.0
        %6503 = vmatpush1.msra.mxu0 0.0
        %6504 = vmatprep.subr.mxu0 0.0
        %6505 = vmatpush1.msra.mxu0 0.0
        %6506 = vmatprep.subr.mxu0 0.0
        %6507 = vmatpush1.msra.mxu0 0.0
        %6508 = vmatprep.subr.mxu0 0.0
        %6509 = vmatpush1.msra.mxu0 0.0
        %6510 = vmatprep.subr.mxu0 0.0
        %6511 = vmatpush1.msra.mxu0 0.0
        %6512 = vmatprep.subr.mxu0 0.0
        %6513 = vmatpush1.msra.mxu0 0.0
        %6514 = vmatprep.subr.mxu0 0.0
        %6515 = vmatpush1.msra.mxu0 0.0
        %6516 = vmatprep.subr.mxu0 0.0
        %6517 = vmatpush1.msra.mxu0 0.0
        %6518 = vmatprep.subr.mxu0 0.0
        %6519 = vmatpush1.msra.mxu0 0.0
        %6520 = vmatprep.subr.mxu0 0.0
        %6521 = vmatpush1.msra.mxu0 0.0
        %6522 = vmatprep.subr.mxu0 0.0
        %6523 = vmatpush1.msra.mxu0 0.0
        %6524 = vmatprep.subr.mxu0 0.0
        %6525 = vmatpush1.msra.mxu0 0.0
        %6526 = vmatprep.subr.mxu0 0.0
        %6527 = vmatpush1.msra.mxu0 0.0
        %6528 = vmatprep.subr.mxu0 0.0
        %6529 = vmatpush1.msra.mxu0 0.0
        %6530 = vmatprep.subr.mxu0 0.0
        %6531 = vmatpush1.msra.mxu0 0.0
        %6532 = vmatprep.subr.mxu0 0.0
        %6533 = vmatpush1.msra.mxu0 0.0
        %6534 = vmatprep.subr.mxu0 0.0
        %6535 = vmatpush1.msra.mxu0 0.0
        %6536 = vmatprep.mubr.f32.mxu0 0.0
        %6537 = vmatmul.mubr.f32.gmra.mrb[0].mxu0 %v6470
        %v6538 = vpop.f32.mrb[0].mxu0
        %v6539 = vadd.f32 %v6467, %v6538
        %v6540 = vpop.f32.mrb[0].mxu0
        %6541 = vdwg.mxu0
        %v6542 = vmul.f32 %v6539, %v377
        %v6543 = vmul.f32 %v2448, %v377
        %v6544 = vadd.f32 %v6542, %v6543
        %s6545 = scalar_lea.vmem %s2, 96
        %v6546 = vld [vmem:[%s6545] sm:$0xff]
        %v6547 = vld [vmem:[%s6545 + $0x8] sm:$0xff]
        %v6548 = vld [vmem:[%s6545 + $0x10] sm:$0xff]
        %v6549 = vld [vmem:[%s6545 + $0x18] sm:$0xff]
        %s6550 = scalar_lea.vmem %s3, 96
        %v6551 = vld [vmem:[%s6550] sm:$0xff]
        %v6552 = vld [vmem:[%s6550 + $0x8] sm:$0xff]
        %v6553 = vld [vmem:[%s6550 + $0x10] sm:$0xff]
        %v6554 = vld [vmem:[%s6550 + $0x18] sm:$0xff]
        %6556 = vset.pattern.permute.xlu0 0
        %6557 = vperm.xlu0 %6556, %v6551
        %v6558 = vpop.permute.xlu0 %6557
        %6561 = vset.pattern.permute.xlu0 0
        %6562 = vperm.xlu0 %6561, %v6552
        %v6563 = vpop.permute.xlu0 %6562
        %6566 = vset.pattern.permute.xlu0 0
        %6567 = vperm.xlu0 %6566, %v6553
        %v6568 = vpop.permute.xlu0 %6567
        %6571 = vset.pattern.permute.xlu0 0
        %6572 = vperm.xlu0 %6571, %v6554
        %v6573 = vpop.permute.xlu0 %6572
        %v6576 = vsel %vm435, %v6546, 0
        %v6579 = vsel %vm435, %v6547, 0
        %v6582 = vsel %vm435, %v6548, 0
        %v6585 = vsel %vm435, %v6549, 0
        %6587 = vmatprep.subr.mxu0 0.0
        %6588 = vmatpush1.msra.mxu0 %v6544
        %6589 = vmatprep.subr.mxu0 0.0
        %6590 = vmatpush1.msra.mxu0 0.0
        %6591 = vmatprep.subr.mxu0 0.0
        %6592 = vmatpush1.msra.mxu0 0.0
        %6593 = vmatprep.subr.mxu0 0.0
        %6594 = vmatpush1.msra.mxu0 0.0
        %6595 = vmatprep.subr.mxu0 0.0
        %6596 = vmatpush1.msra.mxu0 0.0
        %6597 = vmatprep.subr.mxu0 0.0
        %6598 = vmatpush1.msra.mxu0 0.0
        %6599 = vmatprep.subr.mxu0 0.0
        %6600 = vmatpush1.msra.mxu0 0.0
        %6601 = vmatprep.subr.mxu0 0.0
        %6602 = vmatpush1.msra.mxu0 0.0
        %6603 = vmatprep.subr.mxu0 0.0
        %6604 = vmatpush1.msra.mxu0 0.0
        %6605 = vmatprep.subr.mxu0 0.0
        %6606 = vmatpush1.msra.mxu0 0.0
        %6607 = vmatprep.subr.mxu0 0.0
        %6608 = vmatpush1.msra.mxu0 0.0
        %6609 = vmatprep.subr.mxu0 0.0
        %6610 = vmatpush1.msra.mxu0 0.0
        %6611 = vmatprep.subr.mxu0 0.0
        %6612 = vmatpush1.msra.mxu0 0.0
        %6613 = vmatprep.subr.mxu0 0.0
        %6614 = vmatpush1.msra.mxu0 0.0
        %6615 = vmatprep.subr.mxu0 0.0
        %6616 = vmatpush1.msra.mxu0 0.0
        %6617 = vmatprep.subr.mxu0 0.0
        %6618 = vmatpush1.msra.mxu0 0.0
        %6619 = vmatprep.subr.mxu0 0.0
        %6620 = vmatpush1.msra.mxu0 0.0
        %6621 = vmatprep.subr.mxu0 0.0
        %6622 = vmatpush1.msra.mxu0 0.0
        %6623 = vmatprep.subr.mxu0 0.0
        %6624 = vmatpush1.msra.mxu0 0.0
        %6625 = vmatprep.subr.mxu0 0.0
        %6626 = vmatpush1.msra.mxu0 0.0
        %6627 = vmatprep.subr.mxu0 0.0
        %6628 = vmatpush1.msra.mxu0 0.0
        %6629 = vmatprep.subr.mxu0 0.0
        %6630 = vmatpush1.msra.mxu0 0.0
        %6631 = vmatprep.subr.mxu0 0.0
        %6632 = vmatpush1.msra.mxu0 0.0
        %6633 = vmatprep.subr.mxu0 0.0
        %6634 = vmatpush1.msra.mxu0 0.0
        %6635 = vmatprep.subr.mxu0 0.0
        %6636 = vmatpush1.msra.mxu0 0.0
        %6637 = vmatprep.subr.mxu0 0.0
        %6638 = vmatpush1.msra.mxu0 0.0
        %6639 = vmatprep.subr.mxu0 0.0
        %6640 = vmatpush1.msra.mxu0 0.0
        %6641 = vmatprep.subr.mxu0 0.0
        %6642 = vmatpush1.msra.mxu0 0.0
        %6643 = vmatprep.subr.mxu0 0.0
        %6644 = vmatpush1.msra.mxu0 0.0
        %6645 = vmatprep.subr.mxu0 0.0
        %6646 = vmatpush1.msra.mxu0 0.0
        %6647 = vmatprep.subr.mxu0 0.0
        %6648 = vmatpush1.msra.mxu0 0.0
        %6649 = vmatprep.subr.mxu0 0.0
        %6650 = vmatpush1.msra.mxu0 0.0
        %6651 = vmatprep.mubr.f32.mxu0 0.0
        %6652 = vmatmul.mubr.f32.gmra.mrb[0].mxu0 %v6576
        %v6653 = vpop.f32.mrb[0].mxu0
        %v6654 = vadd.f32 %v6558, %v6653
        %v6655 = vpop.f32.mrb[0].mxu0
        %6656 = vmatprep.mubr.f32.mxu0 0.0
        %6657 = vmatmul.mubr.f32.gmra.mrb[0].mxu0 %v6579
        %v6658 = vpop.f32.mrb[0].mxu0
        %v6659 = vadd.f32 %v6563, %v6658
        %v6660 = vpop.f32.mrb[0].mxu0
        %6661 = vmatprep.mubr.f32.mxu0 0.0
        %6662 = vmatmul.mubr.f32.gmra.mrb[0].mxu0 %v6582
        %v6663 = vpop.f32.mrb[0].mxu0
        %v6664 = vadd.f32 %v6568, %v6663
        %v6665 = vpop.f32.mrb[0].mxu0
        %6666 = vmatprep.mubr.f32.mxu0 0.0
        %6667 = vmatmul.mubr.f32.gmra.mrb[0].mxu0 %v6585
        %v6668 = vpop.f32.mrb[0].mxu0
        %v6669 = vadd.f32 %v6573, %v6668
        %v6670 = vpop.f32.mrb[0].mxu0
        %6671 = vdwg.mxu0
        %v6672 = vmul.f32 %v6654, %v377
        %v6673 = vmul.f32 %v6659, %v377
        %v6674 = vmul.f32 %v6664, %v377
        %v6675 = vmul.f32 %v6669, %v377
        %6676 = vrot.lane.b32.xlu0 %v6672, 2
        %v6677 = vpop.permute.xlu0 %6676
        %6678 = vrot.lane.b32.xlu0 %v6673, 2
        %v6679 = vpop.permute.xlu0 %6678
        %6680 = vrot.lane.b32.xlu0 %v6674, 2
        %v6681 = vpop.permute.xlu0 %6680
        %6682 = vrot.lane.b32.xlu0 %v6675, 2
        %v6683 = vpop.permute.xlu0 %6682
        %v6684 = vmul.f32 %v6677, %v386
        %v6685 = vmul.f32 %v6679, %v386
        %v6686 = vmul.f32 %v6681, %v386
        %v6687 = vmul.f32 %v6683, %v386
        %6688 = vrot.lane.b32.xlu0 %v6672, 1
        %v6689 = vpop.permute.xlu0 %6688
        %6690 = vrot.lane.b32.xlu0 %v6673, 1
        %v6691 = vpop.permute.xlu0 %6690
        %6692 = vrot.lane.b32.xlu0 %v6674, 1
        %v6693 = vpop.permute.xlu0 %6692
        %6694 = vrot.lane.b32.xlu0 %v6675, 1
        %v6695 = vpop.permute.xlu0 %6694
        %v6696 = vmul.f32 %v6689, %v392
        %v6697 = vmul.f32 %v6691, %v392
        %v6698 = vmul.f32 %v6693, %v392
        %v6699 = vmul.f32 %v6695, %v392
        %6700 = vrot.lane.b32.xlu0 %v6672, 127
        %v6701 = vpop.permute.xlu0 %6700
        %6702 = vrot.lane.b32.xlu0 %v6673, 127
        %v6703 = vpop.permute.xlu0 %6702
        %6704 = vrot.lane.b32.xlu0 %v6674, 127
        %v6705 = vpop.permute.xlu0 %6704
        %6706 = vrot.lane.b32.xlu0 %v6675, 127
        %v6707 = vpop.permute.xlu0 %6706
        %v6708 = vmul.f32 %v6701, %v398
        %v6709 = vmul.f32 %v6703, %v398
        %v6710 = vmul.f32 %v6705, %v398
        %v6711 = vmul.f32 %v6707, %v398
        %6712 = vrot.lane.b32.xlu0 %v6672, 126
        %v6713 = vpop.permute.xlu0 %6712
        %6714 = vrot.lane.b32.xlu0 %v6673, 126
        %v6715 = vpop.permute.xlu0 %6714
        %6716 = vrot.lane.b32.xlu0 %v6674, 126
        %v6717 = vpop.permute.xlu0 %6716
        %6718 = vrot.lane.b32.xlu0 %v6675, 126
        %v6719 = vpop.permute.xlu0 %6718
        %v6720 = vmul.f32 %v6713, %v404
        %v6721 = vmul.f32 %v6715, %v404
        %v6722 = vmul.f32 %v6717, %v404
        %v6723 = vmul.f32 %v6719, %v404
        %s6724 = scalar_lea.vmem %s4, 1536
        %v6725 = vld [vmem:[%s6724] sm:$0xff]
        %v6726 = vld [vmem:[%s6724 + $0x8] sm:$0xff]
        %v6727 = vld [vmem:[%s6724 + $0x10] sm:$0xff]
        %v6728 = vld [vmem:[%s6724 + $0x18] sm:$0xff]
        %v6729 = vld [vmem:[%s6724 + $0x20] sm:$0xff]
        %v6730 = vld [vmem:[%s6724 + $0x28] sm:$0xff]
        %v6731 = vld [vmem:[%s6724 + $0x30] sm:$0xff]
        %v6732 = vld [vmem:[%s6724 + $0x38] sm:$0xff]
        %v6733 = vld [vmem:[%s6724 + $0x40] sm:$0xff]
        %v6734 = vld [vmem:[%s6724 + $0x48] sm:$0xff]
        %v6735 = vld [vmem:[%s6724 + $0x50] sm:$0xff]
        %v6736 = vld [vmem:[%s6724 + $0x58] sm:$0xff]
        %v6737 = vld [vmem:[%s6724 + $0x60] sm:$0xff]
        %v6738 = vld [vmem:[%s6724 + $0x68] sm:$0xff]
        %v6739 = vld [vmem:[%s6724 + $0x70] sm:$0xff]
        %v6740 = vld [vmem:[%s6724 + $0x78] sm:$0xff]
        %s6741 = scalar_lea.vmem %s5, 768
        %v6742 = vld [vmem:[%s6741] sm:$0xff]
        %v6743 = vld [vmem:[%s6741 + $0x8] sm:$0xff]
        %v6744 = vld [vmem:[%s6741 + $0x10] sm:$0xff]
        %v6745 = vld [vmem:[%s6741 + $0x18] sm:$0xff]
        %v6746 = vld [vmem:[%s6741 + $0x20] sm:$0xff]
        %v6747 = vld [vmem:[%s6741 + $0x28] sm:$0xff]
        %v6748 = vld [vmem:[%s6741 + $0x30] sm:$0xff]
        %v6749 = vld [vmem:[%s6741 + $0x38] sm:$0xff]
        %6751 = vset.pattern.permute.xlu0 0
        %6752 = vperm.xlu0 %6751, %v6742
        %v6753 = vpop.permute.xlu0 %6752
        %6756 = vset.pattern.permute.xlu0 0
        %6757 = vperm.xlu0 %6756, %v6743
        %v6758 = vpop.permute.xlu0 %6757
        %6761 = vset.pattern.permute.xlu0 0
        %6762 = vperm.xlu0 %6761, %v6744
        %v6763 = vpop.permute.xlu0 %6762
        %6766 = vset.pattern.permute.xlu0 0
        %6767 = vperm.xlu0 %6766, %v6745
        %v6768 = vpop.permute.xlu0 %6767
        %6771 = vset.pattern.permute.xlu0 0
        %6772 = vperm.xlu0 %6771, %v6746
        %v6773 = vpop.permute.xlu0 %6772
        %6776 = vset.pattern.permute.xlu0 0
        %6777 = vperm.xlu0 %6776, %v6747
        %v6778 = vpop.permute.xlu0 %6777
        %6781 = vset.pattern.permute.xlu0 0
        %6782 = vperm.xlu0 %6781, %v6748
        %v6783 = vpop.permute.xlu0 %6782
        %6786 = vset.pattern.permute.xlu0 0
        %6787 = vperm.xlu0 %6786, %v6749
        %v6788 = vpop.permute.xlu0 %6787
        %v6791 = vsel %vm649, %v6726, 0
        %v6794 = vsel %vm649, %v6728, 0
        %v6797 = vsel %vm649, %v6730, 0
        %v6800 = vsel %vm649, %v6732, 0
        %v6803 = vsel %vm649, %v6734, 0
        %v6806 = vsel %vm649, %v6736, 0
        %v6809 = vsel %vm649, %v6738, 0
        %v6812 = vsel %vm649, %v6740, 0
        %6814 = vmatprep.subr.mxu0 0.0
        %6815 = vmatpush1.msra.mxu0 %v6684
        %6816 = vmatprep.subr.mxu0 0.0
        %6817 = vmatpush1.msra.mxu0 %v6685
        %6818 = vmatprep.subr.mxu0 0.0
        %6819 = vmatpush1.msra.mxu0 %v6686
        %6820 = vmatprep.subr.mxu0 0.0
        %6821 = vmatpush1.msra.mxu0 %v6687
        %6822 = vmatprep.subr.mxu0 0.0
        %6823 = vmatpush1.msra.mxu0 %v6696
        %6824 = vmatprep.subr.mxu0 0.0
        %6825 = vmatpush1.msra.mxu0 %v6697
        %6826 = vmatprep.subr.mxu0 0.0
        %6827 = vmatpush1.msra.mxu0 %v6698
        %6828 = vmatprep.subr.mxu0 0.0
        %6829 = vmatpush1.msra.mxu0 %v6699
        %6830 = vmatprep.subr.mxu0 0.0
        %6831 = vmatpush1.msra.mxu0 %v6672
        %6832 = vmatprep.subr.mxu0 0.0
        %6833 = vmatpush1.msra.mxu0 %v6673
        %6834 = vmatprep.subr.mxu0 0.0
        %6835 = vmatpush1.msra.mxu0 %v6674
        %6836 = vmatprep.subr.mxu0 0.0
        %6837 = vmatpush1.msra.mxu0 %v6675
        %6838 = vmatprep.subr.mxu0 0.0
        %6839 = vmatpush1.msra.mxu0 %v6708
        %6840 = vmatprep.subr.mxu0 0.0
        %6841 = vmatpush1.msra.mxu0 %v6709
        %6842 = vmatprep.subr.mxu0 0.0
        %6843 = vmatpush1.msra.mxu0 %v6710
        %6844 = vmatprep.subr.mxu0 0.0
        %6845 = vmatpush1.msra.mxu0 %v6711
        %6846 = vmatprep.subr.mxu0 0.0
        %6847 = vmatpush1.msra.mxu0 %v6720
        %6848 = vmatprep.subr.mxu0 0.0
        %6849 = vmatpush1.msra.mxu0 %v6721
        %6850 = vmatprep.subr.mxu0 0.0
        %6851 = vmatpush1.msra.mxu0 %v6722
        %6852 = vmatprep.subr.mxu0 0.0
        %6853 = vmatpush1.msra.mxu0 %v6723
        %6854 = vmatprep.subr.mxu0 0.0
        %6855 = vmatpush1.msra.mxu0 0.0
        %6856 = vmatprep.subr.mxu0 0.0
        %6857 = vmatpush1.msra.mxu0 0.0
        %6858 = vmatprep.subr.mxu0 0.0
        %6859 = vmatpush1.msra.mxu0 0.0
        %6860 = vmatprep.subr.mxu0 0.0
        %6861 = vmatpush1.msra.mxu0 0.0
        %6862 = vmatprep.subr.mxu0 0.0
        %6863 = vmatpush1.msra.mxu0 0.0
        %6864 = vmatprep.subr.mxu0 0.0
        %6865 = vmatpush1.msra.mxu0 0.0
        %6866 = vmatprep.subr.mxu0 0.0
        %6867 = vmatpush1.msra.mxu0 0.0
        %6868 = vmatprep.subr.mxu0 0.0
        %6869 = vmatpush1.msra.mxu0 0.0
        %6870 = vmatprep.subr.mxu0 0.0
        %6871 = vmatpush1.msra.mxu0 0.0
        %6872 = vmatprep.subr.mxu0 0.0
        %6873 = vmatpush1.msra.mxu0 0.0
        %6874 = vmatprep.subr.mxu0 0.0
        %6875 = vmatpush1.msra.mxu0 0.0
        %6876 = vmatprep.subr.mxu0 0.0
        %6877 = vmatpush1.msra.mxu0 0.0
        %6878 = vmatprep.mubr.f32.mxu0 %v6791
        %6879 = vmatmul.mubr.f32.gmra.mrb[0].mxu0 %v6725
        %v6880 = vpop.f32.mrb[0].mxu0
        %v6881 = vadd.f32 %v6753, %v6880
        %v6882 = vpop.f32.mrb[0].mxu0
        %6883 = vmatprep.mubr.f32.mxu0 %v6794
        %6884 = vmatmul.mubr.f32.gmra.mrb[0].mxu0 %v6727
        %v6885 = vpop.f32.mrb[0].mxu0
        %v6886 = vadd.f32 %v6758, %v6885
        %v6887 = vpop.f32.mrb[0].mxu0
        %6888 = vmatprep.mubr.f32.mxu0 %v6797
        %6889 = vmatmul.mubr.f32.gmra.mrb[0].mxu0 %v6729
        %v6890 = vpop.f32.mrb[0].mxu0
        %v6891 = vadd.f32 %v6763, %v6890
        %v6892 = vpop.f32.mrb[0].mxu0
        %6893 = vmatprep.mubr.f32.mxu0 %v6800
        %6894 = vmatmul.mubr.f32.gmra.mrb[0].mxu0 %v6731
        %v6895 = vpop.f32.mrb[0].mxu0
        %v6896 = vadd.f32 %v6768, %v6895
        %v6897 = vpop.f32.mrb[0].mxu0
        %6898 = vmatprep.mubr.f32.mxu0 %v6803
        %6899 = vmatmul.mubr.f32.gmra.mrb[0].mxu0 %v6733
        %v6900 = vpop.f32.mrb[0].mxu0
        %v6901 = vadd.f32 %v6773, %v6900
        %v6902 = vpop.f32.mrb[0].mxu0
        %6903 = vmatprep.mubr.f32.mxu0 %v6806
        %6904 = vmatmul.mubr.f32.gmra.mrb[0].mxu0 %v6735
        %v6905 = vpop.f32.mrb[0].mxu0
        %v6906 = vadd.f32 %v6778, %v6905
        %v6907 = vpop.f32.mrb[0].mxu0
        %6908 = vmatprep.mubr.f32.mxu0 %v6809
        %6909 = vmatmul.mubr.f32.gmra.mrb[0].mxu0 %v6737
        %v6910 = vpop.f32.mrb[0].mxu0
        %v6911 = vadd.f32 %v6783, %v6910
        %v6912 = vpop.f32.mrb[0].mxu0
        %6913 = vmatprep.mubr.f32.mxu0 %v6812
        %6914 = vmatmul.mubr.f32.gmra.mrb[0].mxu0 %v6739
        %v6915 = vpop.f32.mrb[0].mxu0
        %v6916 = vadd.f32 %v6788, %v6915
        %v6917 = vpop.f32.mrb[0].mxu0
        %6918 = vdwg.mxu0
        %v6919 = vtanh.pop %v6881
        %v6920 = vtanh.pop %v6886
        %v6921 = vtanh.pop %v6891
        %v6922 = vtanh.pop %v6896
        %v6923 = vxor.u32 %v6901, 2147483648
        %v6924 = vxor.u32 %v6906, 2147483648
        %v6925 = vxor.u32 %v6911, 2147483648
        %v6926 = vxor.u32 %v6916, 2147483648
        %v6927 = vmul.f32 %v6923, 1.442695
        %v6928 = vpow.pop %v6927
        %v6929 = vmul.f32 %v6924, 1.442695
        %v6930 = vpow.pop %v6929
        %v6931 = vmul.f32 %v6925, 1.442695
        %v6932 = vpow.pop %v6931
        %v6933 = vmul.f32 %v6926, 1.442695
        %v6934 = vpow.pop %v6933
        %v6935 = vadd.f32 %v6928, 1.0
        %v6936 = vadd.f32 %v6930, 1.0
        %v6937 = vadd.f32 %v6932, 1.0
        %v6938 = vadd.f32 %v6934, 1.0
        %v6939 = vrcp.pop %v6935
        %v6940 = vmul.f32 1.0, %v6939
        %v6941 = vrcp.pop %v6936
        %v6942 = vmul.f32 1.0, %v6941
        %v6943 = vrcp.pop %v6937
        %v6944 = vmul.f32 1.0, %v6943
        %v6945 = vrcp.pop %v6938
        %v6946 = vmul.f32 1.0, %v6945
        %v6947 = vmul.f32 %v6919, %v6940
        %v6948 = vmul.f32 %v6920, %v6942
        %v6949 = vmul.f32 %v6921, %v6944
        %v6950 = vmul.f32 %v6922, %v6946
        %s6951 = scalar_lea.vmem %s6, 768
        %v6952 = vld [vmem:[%s6951] sm:$0xff]
        %v6953 = vld [vmem:[%s6951 + $0x8] sm:$0xff]
        %v6954 = vld [vmem:[%s6951 + $0x10] sm:$0xff]
        %v6955 = vld [vmem:[%s6951 + $0x18] sm:$0xff]
        %v6956 = vld [vmem:[%s6951 + $0x20] sm:$0xff]
        %v6957 = vld [vmem:[%s6951 + $0x28] sm:$0xff]
        %v6958 = vld [vmem:[%s6951 + $0x30] sm:$0xff]
        %v6959 = vld [vmem:[%s6951 + $0x38] sm:$0xff]
        %s6960 = scalar_lea.vmem %s7, 768
        %v6961 = vld [vmem:[%s6960] sm:$0xff]
        %v6962 = vld [vmem:[%s6960 + $0x8] sm:$0xff]
        %v6963 = vld [vmem:[%s6960 + $0x10] sm:$0xff]
        %v6964 = vld [vmem:[%s6960 + $0x18] sm:$0xff]
        %v6965 = vld [vmem:[%s6960 + $0x20] sm:$0xff]
        %v6966 = vld [vmem:[%s6960 + $0x28] sm:$0xff]
        %v6967 = vld [vmem:[%s6960 + $0x30] sm:$0xff]
        %v6968 = vld [vmem:[%s6960 + $0x38] sm:$0xff]
        %6970 = vset.pattern.permute.xlu0 0
        %6971 = vperm.xlu0 %6970, %v6961
        %v6972 = vpop.permute.xlu0 %6971
        %6975 = vset.pattern.permute.xlu0 0
        %6976 = vperm.xlu0 %6975, %v6962
        %v6977 = vpop.permute.xlu0 %6976
        %6980 = vset.pattern.permute.xlu0 0
        %6981 = vperm.xlu0 %6980, %v6963
        %v6982 = vpop.permute.xlu0 %6981
        %6985 = vset.pattern.permute.xlu0 0
        %6986 = vperm.xlu0 %6985, %v6964
        %v6987 = vpop.permute.xlu0 %6986
        %6990 = vset.pattern.permute.xlu0 0
        %6991 = vperm.xlu0 %6990, %v6965
        %v6992 = vpop.permute.xlu0 %6991
        %6995 = vset.pattern.permute.xlu0 0
        %6996 = vperm.xlu0 %6995, %v6966
        %v6997 = vpop.permute.xlu0 %6996
        %7000 = vset.pattern.permute.xlu0 0
        %7001 = vperm.xlu0 %7000, %v6967
        %v7002 = vpop.permute.xlu0 %7001
        %7005 = vset.pattern.permute.xlu0 0
        %7006 = vperm.xlu0 %7005, %v6968
        %v7007 = vpop.permute.xlu0 %7006
        %v7010 = vsel %vm649, %v6952, 0
        %v7013 = vsel %vm649, %v6953, 0
        %v7016 = vsel %vm649, %v6954, 0
        %v7019 = vsel %vm649, %v6955, 0
        %v7022 = vsel %vm649, %v6956, 0
        %v7025 = vsel %vm649, %v6957, 0
        %v7028 = vsel %vm649, %v6958, 0
        %v7031 = vsel %vm649, %v6959, 0
        %7033 = vmatprep.subr.mxu0 0.0
        %7034 = vmatpush1.msra.mxu0 %v6947
        %7035 = vmatprep.subr.mxu0 0.0
        %7036 = vmatpush1.msra.mxu0 %v6948
        %7037 = vmatprep.subr.mxu0 0.0
        %7038 = vmatpush1.msra.mxu0 %v6949
        %7039 = vmatprep.subr.mxu0 0.0
        %7040 = vmatpush1.msra.mxu0 %v6950
        %7041 = vmatprep.subr.mxu0 0.0
        %7042 = vmatpush1.msra.mxu0 0.0
        %7043 = vmatprep.subr.mxu0 0.0
        %7044 = vmatpush1.msra.mxu0 0.0
        %7045 = vmatprep.subr.mxu0 0.0
        %7046 = vmatpush1.msra.mxu0 0.0
        %7047 = vmatprep.subr.mxu0 0.0
        %7048 = vmatpush1.msra.mxu0 0.0
        %7049 = vmatprep.subr.mxu0 0.0
        %7050 = vmatpush1.msra.mxu0 0.0
        %7051 = vmatprep.subr.mxu0 0.0
        %7052 = vmatpush1.msra.mxu0 0.0
        %7053 = vmatprep.subr.mxu0 0.0
        %7054 = vmatpush1.msra.mxu0 0.0
        %7055 = vmatprep.subr.mxu0 0.0
        %7056 = vmatpush1.msra.mxu0 0.0
        %7057 = vmatprep.subr.mxu0 0.0
        %7058 = vmatpush1.msra.mxu0 0.0
        %7059 = vmatprep.subr.mxu0 0.0
        %7060 = vmatpush1.msra.mxu0 0.0
        %7061 = vmatprep.subr.mxu0 0.0
        %7062 = vmatpush1.msra.mxu0 0.0
        %7063 = vmatprep.subr.mxu0 0.0
        %7064 = vmatpush1.msra.mxu0 0.0
        %7065 = vmatprep.subr.mxu0 0.0
        %7066 = vmatpush1.msra.mxu0 0.0
        %7067 = vmatprep.subr.mxu0 0.0
        %7068 = vmatpush1.msra.mxu0 0.0
        %7069 = vmatprep.subr.mxu0 0.0
        %7070 = vmatpush1.msra.mxu0 0.0
        %7071 = vmatprep.subr.mxu0 0.0
        %7072 = vmatpush1.msra.mxu0 0.0
        %7073 = vmatprep.subr.mxu0 0.0
        %7074 = vmatpush1.msra.mxu0 0.0
        %7075 = vmatprep.subr.mxu0 0.0
        %7076 = vmatpush1.msra.mxu0 0.0
        %7077 = vmatprep.subr.mxu0 0.0
        %7078 = vmatpush1.msra.mxu0 0.0
        %7079 = vmatprep.subr.mxu0 0.0
        %7080 = vmatpush1.msra.mxu0 0.0
        %7081 = vmatprep.subr.mxu0 0.0
        %7082 = vmatpush1.msra.mxu0 0.0
        %7083 = vmatprep.subr.mxu0 0.0
        %7084 = vmatpush1.msra.mxu0 0.0
        %7085 = vmatprep.subr.mxu0 0.0
        %7086 = vmatpush1.msra.mxu0 0.0
        %7087 = vmatprep.subr.mxu0 0.0
        %7088 = vmatpush1.msra.mxu0 0.0
        %7089 = vmatprep.subr.mxu0 0.0
        %7090 = vmatpush1.msra.mxu0 0.0
        %7091 = vmatprep.subr.mxu0 0.0
        %7092 = vmatpush1.msra.mxu0 0.0
        %7093 = vmatprep.subr.mxu0 0.0
        %7094 = vmatpush1.msra.mxu0 0.0
        %7095 = vmatprep.subr.mxu0 0.0
        %7096 = vmatpush1.msra.mxu0 0.0
        %7097 = vmatprep.mubr.f32.mxu0 0.0
        %7098 = vmatmul.mubr.f32.gmra.mrb[0].mxu0 %v7010
        %v7099 = vpop.f32.mrb[0].mxu0
        %v7100 = vadd.f32 %v6972, %v7099
        %v7101 = vpop.f32.mrb[0].mxu0
        %7102 = vmatprep.mubr.f32.mxu0 0.0
        %7103 = vmatmul.mubr.f32.gmra.mrb[0].mxu0 %v7013
        %v7104 = vpop.f32.mrb[0].mxu0
        %v7105 = vadd.f32 %v6977, %v7104
        %v7106 = vpop.f32.mrb[0].mxu0
        %7107 = vmatprep.mubr.f32.mxu0 0.0
        %7108 = vmatmul.mubr.f32.gmra.mrb[0].mxu0 %v7016
        %v7109 = vpop.f32.mrb[0].mxu0
        %v7110 = vadd.f32 %v6982, %v7109
        %v7111 = vpop.f32.mrb[0].mxu0
        %7112 = vmatprep.mubr.f32.mxu0 0.0
        %7113 = vmatmul.mubr.f32.gmra.mrb[0].mxu0 %v7019
        %v7114 = vpop.f32.mrb[0].mxu0
        %v7115 = vadd.f32 %v6987, %v7114
        %v7116 = vpop.f32.mrb[0].mxu0
        %7117 = vmatprep.mubr.f32.mxu0 0.0
        %7118 = vmatmul.mubr.f32.gmra.mrb[0].mxu0 %v7022
        %v7119 = vpop.f32.mrb[0].mxu0
        %v7120 = vadd.f32 %v6992, %v7119
        %v7121 = vpop.f32.mrb[0].mxu0
        %7122 = vmatprep.mubr.f32.mxu0 0.0
        %7123 = vmatmul.mubr.f32.gmra.mrb[0].mxu0 %v7025
        %v7124 = vpop.f32.mrb[0].mxu0
        %v7125 = vadd.f32 %v6997, %v7124
        %v7126 = vpop.f32.mrb[0].mxu0
        %7127 = vmatprep.mubr.f32.mxu0 0.0
        %7128 = vmatmul.mubr.f32.gmra.mrb[0].mxu0 %v7028
        %v7129 = vpop.f32.mrb[0].mxu0
        %v7130 = vadd.f32 %v7002, %v7129
        %v7131 = vpop.f32.mrb[0].mxu0
        %7132 = vmatprep.mubr.f32.mxu0 0.0
        %7133 = vmatmul.mubr.f32.gmra.mrb[0].mxu0 %v7031
        %v7134 = vpop.f32.mrb[0].mxu0
        %v7135 = vadd.f32 %v7007, %v7134
        %v7136 = vpop.f32.mrb[0].mxu0
        %7137 = vdwg.mxu0
        %v7138 = vadd.f32 %v6672, %v7100
        %v7139 = vadd.f32 %v6673, %v7105
        %v7140 = vadd.f32 %v6674, %v7110
        %v7141 = vadd.f32 %v6675, %v7115
        %v7142 = vmul.f32 %v7138, %v377
        %v7143 = vmul.f32 %v7139, %v377
        %v7144 = vmul.f32 %v7140, %v377
        %v7145 = vmul.f32 %v7141, %v377
        %v7146 = vadd.f32 %v7120, 0.0
        %v7147 = vadd.f32 %v7125, 0.0
        %v7148 = vadd.f32 %v7130, 0.0
        %v7149 = vadd.f32 %v7135, 0.0
        %7150 = vrot.lane.b32.xlu0 %v7142, 2
        %v7151 = vpop.permute.xlu0 %7150
        %7152 = vrot.lane.b32.xlu0 %v7143, 2
        %v7153 = vpop.permute.xlu0 %7152
        %7154 = vrot.lane.b32.xlu0 %v7144, 2
        %v7155 = vpop.permute.xlu0 %7154
        %7156 = vrot.lane.b32.xlu0 %v7145, 2
        %v7157 = vpop.permute.xlu0 %7156
        %v7158 = vmul.f32 %v7151, %v386
        %v7159 = vmul.f32 %v7153, %v386
        %v7160 = vmul.f32 %v7155, %v386
        %v7161 = vmul.f32 %v7157, %v386
        %7162 = vrot.lane.b32.xlu0 %v7142, 1
        %v7163 = vpop.permute.xlu0 %7162
        %7164 = vrot.lane.b32.xlu0 %v7143, 1
        %v7165 = vpop.permute.xlu0 %7164
        %7166 = vrot.lane.b32.xlu0 %v7144, 1
        %v7167 = vpop.permute.xlu0 %7166
        %7168 = vrot.lane.b32.xlu0 %v7145, 1
        %v7169 = vpop.permute.xlu0 %7168
        %v7170 = vmul.f32 %v7163, %v392
        %v7171 = vmul.f32 %v7165, %v392
        %v7172 = vmul.f32 %v7167, %v392
        %v7173 = vmul.f32 %v7169, %v392
        %7174 = vrot.lane.b32.xlu0 %v7142, 127
        %v7175 = vpop.permute.xlu0 %7174
        %7176 = vrot.lane.b32.xlu0 %v7143, 127
        %v7177 = vpop.permute.xlu0 %7176
        %7178 = vrot.lane.b32.xlu0 %v7144, 127
        %v7179 = vpop.permute.xlu0 %7178
        %7180 = vrot.lane.b32.xlu0 %v7145, 127
        %v7181 = vpop.permute.xlu0 %7180
        %v7182 = vmul.f32 %v7175, %v398
        %v7183 = vmul.f32 %v7177, %v398
        %v7184 = vmul.f32 %v7179, %v398
        %v7185 = vmul.f32 %v7181, %v398
        %7186 = vrot.lane.b32.xlu0 %v7142, 126
        %v7187 = vpop.permute.xlu0 %7186
        %7188 = vrot.lane.b32.xlu0 %v7143, 126
        %v7189 = vpop.permute.xlu0 %7188
        %7190 = vrot.lane.b32.xlu0 %v7144, 126
        %v7191 = vpop.permute.xlu0 %7190
        %7192 = vrot.lane.b32.xlu0 %v7145, 126
        %v7193 = vpop.permute.xlu0 %7192
        %v7194 = vmul.f32 %v7187, %v404
        %v7195 = vmul.f32 %v7189, %v404
        %v7196 = vmul.f32 %v7191, %v404
        %v7197 = vmul.f32 %v7193, %v404
        %s7198 = scalar_lea.vmem %s4, 1664
        %v7199 = vld [vmem:[%s7198] sm:$0xff]
        %v7200 = vld [vmem:[%s7198 + $0x8] sm:$0xff]
        %v7201 = vld [vmem:[%s7198 + $0x10] sm:$0xff]
        %v7202 = vld [vmem:[%s7198 + $0x18] sm:$0xff]
        %v7203 = vld [vmem:[%s7198 + $0x20] sm:$0xff]
        %v7204 = vld [vmem:[%s7198 + $0x28] sm:$0xff]
        %v7205 = vld [vmem:[%s7198 + $0x30] sm:$0xff]
        %v7206 = vld [vmem:[%s7198 + $0x38] sm:$0xff]
        %v7207 = vld [vmem:[%s7198 + $0x40] sm:$0xff]
        %v7208 = vld [vmem:[%s7198 + $0x48] sm:$0xff]
        %v7209 = vld [vmem:[%s7198 + $0x50] sm:$0xff]
        %v7210 = vld [vmem:[%s7198 + $0x58] sm:$0xff]
        %v7211 = vld [vmem:[%s7198 + $0x60] sm:$0xff]
        %v7212 = vld [vmem:[%s7198 + $0x68] sm:$0xff]
        %v7213 = vld [vmem:[%s7198 + $0x70] sm:$0xff]
        %v7214 = vld [vmem:[%s7198 + $0x78] sm:$0xff]
        %s7215 = scalar_lea.vmem %s5, 832
        %v7216 = vld [vmem:[%s7215] sm:$0xff]
        %v7217 = vld [vmem:[%s7215 + $0x8] sm:$0xff]
        %v7218 = vld [vmem:[%s7215 + $0x10] sm:$0xff]
        %v7219 = vld [vmem:[%s7215 + $0x18] sm:$0xff]
        %v7220 = vld [vmem:[%s7215 + $0x20] sm:$0xff]
        %v7221 = vld [vmem:[%s7215 + $0x28] sm:$0xff]
        %v7222 = vld [vmem:[%s7215 + $0x30] sm:$0xff]
        %v7223 = vld [vmem:[%s7215 + $0x38] sm:$0xff]
        %7225 = vset.pattern.permute.xlu0 0
        %7226 = vperm.xlu0 %7225, %v7216
        %v7227 = vpop.permute.xlu0 %7226
        %7230 = vset.pattern.permute.xlu0 0
        %7231 = vperm.xlu0 %7230, %v7217
        %v7232 = vpop.permute.xlu0 %7231
        %7235 = vset.pattern.permute.xlu0 0
        %7236 = vperm.xlu0 %7235, %v7218
        %v7237 = vpop.permute.xlu0 %7236
        %7240 = vset.pattern.permute.xlu0 0
        %7241 = vperm.xlu0 %7240, %v7219
        %v7242 = vpop.permute.xlu0 %7241
        %7245 = vset.pattern.permute.xlu0 0
        %7246 = vperm.xlu0 %7245, %v7220
        %v7247 = vpop.permute.xlu0 %7246
        %7250 = vset.pattern.permute.xlu0 0
        %7251 = vperm.xlu0 %7250, %v7221
        %v7252 = vpop.permute.xlu0 %7251
        %7255 = vset.pattern.permute.xlu0 0
        %7256 = vperm.xlu0 %7255, %v7222
        %v7257 = vpop.permute.xlu0 %7256
        %7260 = vset.pattern.permute.xlu0 0
        %7261 = vperm.xlu0 %7260, %v7223
        %v7262 = vpop.permute.xlu0 %7261
        %v7265 = vsel %vm649, %v7200, 0
        %v7268 = vsel %vm649, %v7202, 0
        %v7271 = vsel %vm649, %v7204, 0
        %v7274 = vsel %vm649, %v7206, 0
        %v7277 = vsel %vm649, %v7208, 0
        %v7280 = vsel %vm649, %v7210, 0
        %v7283 = vsel %vm649, %v7212, 0
        %v7286 = vsel %vm649, %v7214, 0
        %7288 = vmatprep.subr.mxu0 0.0
        %7289 = vmatpush1.msra.mxu0 %v7158
        %7290 = vmatprep.subr.mxu0 0.0
        %7291 = vmatpush1.msra.mxu0 %v7159
        %7292 = vmatprep.subr.mxu0 0.0
        %7293 = vmatpush1.msra.mxu0 %v7160
        %7294 = vmatprep.subr.mxu0 0.0
        %7295 = vmatpush1.msra.mxu0 %v7161
        %7296 = vmatprep.subr.mxu0 0.0
        %7297 = vmatpush1.msra.mxu0 %v7170
        %7298 = vmatprep.subr.mxu0 0.0
        %7299 = vmatpush1.msra.mxu0 %v7171
        %7300 = vmatprep.subr.mxu0 0.0
        %7301 = vmatpush1.msra.mxu0 %v7172
        %7302 = vmatprep.subr.mxu0 0.0
        %7303 = vmatpush1.msra.mxu0 %v7173
        %7304 = vmatprep.subr.mxu0 0.0
        %7305 = vmatpush1.msra.mxu0 %v7142
        %7306 = vmatprep.subr.mxu0 0.0
        %7307 = vmatpush1.msra.mxu0 %v7143
        %7308 = vmatprep.subr.mxu0 0.0
        %7309 = vmatpush1.msra.mxu0 %v7144
        %7310 = vmatprep.subr.mxu0 0.0
        %7311 = vmatpush1.msra.mxu0 %v7145
        %7312 = vmatprep.subr.mxu0 0.0
        %7313 = vmatpush1.msra.mxu0 %v7182
        %7314 = vmatprep.subr.mxu0 0.0
        %7315 = vmatpush1.msra.mxu0 %v7183
        %7316 = vmatprep.subr.mxu0 0.0
        %7317 = vmatpush1.msra.mxu0 %v7184
        %7318 = vmatprep.subr.mxu0 0.0
        %7319 = vmatpush1.msra.mxu0 %v7185
        %7320 = vmatprep.subr.mxu0 0.0
        %7321 = vmatpush1.msra.mxu0 %v7194
        %7322 = vmatprep.subr.mxu0 0.0
        %7323 = vmatpush1.msra.mxu0 %v7195
        %7324 = vmatprep.subr.mxu0 0.0
        %7325 = vmatpush1.msra.mxu0 %v7196
        %7326 = vmatprep.subr.mxu0 0.0
        %7327 = vmatpush1.msra.mxu0 %v7197
        %7328 = vmatprep.subr.mxu0 0.0
        %7329 = vmatpush1.msra.mxu0 0.0
        %7330 = vmatprep.subr.mxu0 0.0
        %7331 = vmatpush1.msra.mxu0 0.0
        %7332 = vmatprep.subr.mxu0 0.0
        %7333 = vmatpush1.msra.mxu0 0.0
        %7334 = vmatprep.subr.mxu0 0.0
        %7335 = vmatpush1.msra.mxu0 0.0
        %7336 = vmatprep.subr.mxu0 0.0
        %7337 = vmatpush1.msra.mxu0 0.0
        %7338 = vmatprep.subr.mxu0 0.0
        %7339 = vmatpush1.msra.mxu0 0.0
        %7340 = vmatprep.subr.mxu0 0.0
        %7341 = vmatpush1.msra.mxu0 0.0
        %7342 = vmatprep.subr.mxu0 0.0
        %7343 = vmatpush1.msra.mxu0 0.0
        %7344 = vmatprep.subr.mxu0 0.0
        %7345 = vmatpush1.msra.mxu0 0.0
        %7346 = vmatprep.subr.mxu0 0.0
        %7347 = vmatpush1.msra.mxu0 0.0
        %7348 = vmatprep.subr.mxu0 0.0
        %7349 = vmatpush1.msra.mxu0 0.0
        %7350 = vmatprep.subr.mxu0 0.0
        %7351 = vmatpush1.msra.mxu0 0.0
        %7352 = vmatprep.mubr.f32.mxu0 %v7265
        %7353 = vmatmul.mubr.f32.gmra.mrb[0].mxu0 %v7199
        %v7354 = vpop.f32.mrb[0].mxu0
        %v7355 = vadd.f32 %v7227, %v7354
        %v7356 = vpop.f32.mrb[0].mxu0
        %7357 = vmatprep.mubr.f32.mxu0 %v7268
        %7358 = vmatmul.mubr.f32.gmra.mrb[0].mxu0 %v7201
        %v7359 = vpop.f32.mrb[0].mxu0
        %v7360 = vadd.f32 %v7232, %v7359
        %v7361 = vpop.f32.mrb[0].mxu0
        %7362 = vmatprep.mubr.f32.mxu0 %v7271
        %7363 = vmatmul.mubr.f32.gmra.mrb[0].mxu0 %v7203
        %v7364 = vpop.f32.mrb[0].mxu0
        %v7365 = vadd.f32 %v7237, %v7364
        %v7366 = vpop.f32.mrb[0].mxu0
        %7367 = vmatprep.mubr.f32.mxu0 %v7274
        %7368 = vmatmul.mubr.f32.gmra.mrb[0].mxu0 %v7205
        %v7369 = vpop.f32.mrb[0].mxu0
        %v7370 = vadd.f32 %v7242, %v7369
        %v7371 = vpop.f32.mrb[0].mxu0
        %7372 = vmatprep.mubr.f32.mxu0 %v7277
        %7373 = vmatmul.mubr.f32.gmra.mrb[0].mxu0 %v7207
        %v7374 = vpop.f32.mrb[0].mxu0
        %v7375 = vadd.f32 %v7247, %v7374
        %v7376 = vpop.f32.mrb[0].mxu0
        %7377 = vmatprep.mubr.f32.mxu0 %v7280
        %7378 = vmatmul.mubr.f32.gmra.mrb[0].mxu0 %v7209
        %v7379 = vpop.f32.mrb[0].mxu0
        %v7380 = vadd.f32 %v7252, %v7379
        %v7381 = vpop.f32.mrb[0].mxu0
        %7382 = vmatprep.mubr.f32.mxu0 %v7283
        %7383 = vmatmul.mubr.f32.gmra.mrb[0].mxu0 %v7211
        %v7384 = vpop.f32.mrb[0].mxu0
        %v7385 = vadd.f32 %v7257, %v7384
        %v7386 = vpop.f32.mrb[0].mxu0
        %7387 = vmatprep.mubr.f32.mxu0 %v7286
        %7388 = vmatmul.mubr.f32.gmra.mrb[0].mxu0 %v7213
        %v7389 = vpop.f32.mrb[0].mxu0
        %v7390 = vadd.f32 %v7262, %v7389
        %v7391 = vpop.f32.mrb[0].mxu0
        %7392 = vdwg.mxu0
        %v7393 = vtanh.pop %v7355
        %v7394 = vtanh.pop %v7360
        %v7395 = vtanh.pop %v7365
        %v7396 = vtanh.pop %v7370
        %v7397 = vxor.u32 %v7375, 2147483648
        %v7398 = vxor.u32 %v7380, 2147483648
        %v7399 = vxor.u32 %v7385, 2147483648
        %v7400 = vxor.u32 %v7390, 2147483648
        %v7401 = vmul.f32 %v7397, 1.442695
        %v7402 = vpow.pop %v7401
        %v7403 = vmul.f32 %v7398, 1.442695
        %v7404 = vpow.pop %v7403
        %v7405 = vmul.f32 %v7399, 1.442695
        %v7406 = vpow.pop %v7405
        %v7407 = vmul.f32 %v7400, 1.442695
        %v7408 = vpow.pop %v7407
        %v7409 = vadd.f32 %v7402, 1.0
        %v7410 = vadd.f32 %v7404, 1.0
        %v7411 = vadd.f32 %v7406, 1.0
        %v7412 = vadd.f32 %v7408, 1.0
        %v7413 = vrcp.pop %v7409
        %v7414 = vmul.f32 1.0, %v7413
        %v7415 = vrcp.pop %v7410
        %v7416 = vmul.f32 1.0, %v7415
        %v7417 = vrcp.pop %v7411
        %v7418 = vmul.f32 1.0, %v7417
        %v7419 = vrcp.pop %v7412
        %v7420 = vmul.f32 1.0, %v7419
        %v7421 = vmul.f32 %v7393, %v7414
        %v7422 = vmul.f32 %v7394, %v7416
        %v7423 = vmul.f32 %v7395, %v7418
        %v7424 = vmul.f32 %v7396, %v7420
        %s7425 = scalar_lea.vmem %s6, 832
        %v7426 = vld [vmem:[%s7425] sm:$0xff]
        %v7427 = vld [vmem:[%s7425 + $0x8] sm:$0xff]
        %v7428 = vld [vmem:[%s7425 + $0x10] sm:$0xff]
        %v7429 = vld [vmem:[%s7425 + $0x18] sm:$0xff]
        %v7430 = vld [vmem:[%s7425 + $0x20] sm:$0xff]
        %v7431 = vld [vmem:[%s7425 + $0x28] sm:$0xff]
        %v7432 = vld [vmem:[%s7425 + $0x30] sm:$0xff]
        %v7433 = vld [vmem:[%s7425 + $0x38] sm:$0xff]
        %s7434 = scalar_lea.vmem %s7, 832
        %v7435 = vld [vmem:[%s7434] sm:$0xff]
        %v7436 = vld [vmem:[%s7434 + $0x8] sm:$0xff]
        %v7437 = vld [vmem:[%s7434 + $0x10] sm:$0xff]
        %v7438 = vld [vmem:[%s7434 + $0x18] sm:$0xff]
        %v7439 = vld [vmem:[%s7434 + $0x20] sm:$0xff]
        %v7440 = vld [vmem:[%s7434 + $0x28] sm:$0xff]
        %v7441 = vld [vmem:[%s7434 + $0x30] sm:$0xff]
        %v7442 = vld [vmem:[%s7434 + $0x38] sm:$0xff]
        %7444 = vset.pattern.permute.xlu0 0
        %7445 = vperm.xlu0 %7444, %v7435
        %v7446 = vpop.permute.xlu0 %7445
        %7449 = vset.pattern.permute.xlu0 0
        %7450 = vperm.xlu0 %7449, %v7436
        %v7451 = vpop.permute.xlu0 %7450
        %7454 = vset.pattern.permute.xlu0 0
        %7455 = vperm.xlu0 %7454, %v7437
        %v7456 = vpop.permute.xlu0 %7455
        %7459 = vset.pattern.permute.xlu0 0
        %7460 = vperm.xlu0 %7459, %v7438
        %v7461 = vpop.permute.xlu0 %7460
        %7464 = vset.pattern.permute.xlu0 0
        %7465 = vperm.xlu0 %7464, %v7439
        %v7466 = vpop.permute.xlu0 %7465
        %7469 = vset.pattern.permute.xlu0 0
        %7470 = vperm.xlu0 %7469, %v7440
        %v7471 = vpop.permute.xlu0 %7470
        %7474 = vset.pattern.permute.xlu0 0
        %7475 = vperm.xlu0 %7474, %v7441
        %v7476 = vpop.permute.xlu0 %7475
        %7479 = vset.pattern.permute.xlu0 0
        %7480 = vperm.xlu0 %7479, %v7442
        %v7481 = vpop.permute.xlu0 %7480
        %v7484 = vsel %vm649, %v7426, 0
        %v7487 = vsel %vm649, %v7427, 0
        %v7490 = vsel %vm649, %v7428, 0
        %v7493 = vsel %vm649, %v7429, 0
        %v7496 = vsel %vm649, %v7430, 0
        %v7499 = vsel %vm649, %v7431, 0
        %v7502 = vsel %vm649, %v7432, 0
        %v7505 = vsel %vm649, %v7433, 0
        %7507 = vmatprep.subr.mxu0 0.0
        %7508 = vmatpush1.msra.mxu0 %v7421
        %7509 = vmatprep.subr.mxu0 0.0
        %7510 = vmatpush1.msra.mxu0 %v7422
        %7511 = vmatprep.subr.mxu0 0.0
        %7512 = vmatpush1.msra.mxu0 %v7423
        %7513 = vmatprep.subr.mxu0 0.0
        %7514 = vmatpush1.msra.mxu0 %v7424
        %7515 = vmatprep.subr.mxu0 0.0
        %7516 = vmatpush1.msra.mxu0 0.0
        %7517 = vmatprep.subr.mxu0 0.0
        %7518 = vmatpush1.msra.mxu0 0.0
        %7519 = vmatprep.subr.mxu0 0.0
        %7520 = vmatpush1.msra.mxu0 0.0
        %7521 = vmatprep.subr.mxu0 0.0
        %7522 = vmatpush1.msra.mxu0 0.0
        %7523 = vmatprep.subr.mxu0 0.0
        %7524 = vmatpush1.msra.mxu0 0.0
        %7525 = vmatprep.subr.mxu0 0.0
        %7526 = vmatpush1.msra.mxu0 0.0
        %7527 = vmatprep.subr.mxu0 0.0
        %7528 = vmatpush1.msra.mxu0 0.0
        %7529 = vmatprep.subr.mxu0 0.0
        %7530 = vmatpush1.msra.mxu0 0.0
        %7531 = vmatprep.subr.mxu0 0.0
        %7532 = vmatpush1.msra.mxu0 0.0
        %7533 = vmatprep.subr.mxu0 0.0
        %7534 = vmatpush1.msra.mxu0 0.0
        %7535 = vmatprep.subr.mxu0 0.0
        %7536 = vmatpush1.msra.mxu0 0.0
        %7537 = vmatprep.subr.mxu0 0.0
        %7538 = vmatpush1.msra.mxu0 0.0
        %7539 = vmatprep.subr.mxu0 0.0
        %7540 = vmatpush1.msra.mxu0 0.0
        %7541 = vmatprep.subr.mxu0 0.0
        %7542 = vmatpush1.msra.mxu0 0.0
        %7543 = vmatprep.subr.mxu0 0.0
        %7544 = vmatpush1.msra.mxu0 0.0
        %7545 = vmatprep.subr.mxu0 0.0
        %7546 = vmatpush1.msra.mxu0 0.0
        %7547 = vmatprep.subr.mxu0 0.0
        %7548 = vmatpush1.msra.mxu0 0.0
        %7549 = vmatprep.subr.mxu0 0.0
        %7550 = vmatpush1.msra.mxu0 0.0
        %7551 = vmatprep.subr.mxu0 0.0
        %7552 = vmatpush1.msra.mxu0 0.0
        %7553 = vmatprep.subr.mxu0 0.0
        %7554 = vmatpush1.msra.mxu0 0.0
        %7555 = vmatprep.subr.mxu0 0.0
        %7556 = vmatpush1.msra.mxu0 0.0
        %7557 = vmatprep.subr.mxu0 0.0
        %7558 = vmatpush1.msra.mxu0 0.0
        %7559 = vmatprep.subr.mxu0 0.0
        %7560 = vmatpush1.msra.mxu0 0.0
        %7561 = vmatprep.subr.mxu0 0.0
        %7562 = vmatpush1.msra.mxu0 0.0
        %7563 = vmatprep.subr.mxu0 0.0
        %7564 = vmatpush1.msra.mxu0 0.0
        %7565 = vmatprep.subr.mxu0 0.0
        %7566 = vmatpush1.msra.mxu0 0.0
        %7567 = vmatprep.subr.mxu0 0.0
        %7568 = vmatpush1.msra.mxu0 0.0
        %7569 = vmatprep.subr.mxu0 0.0
        %7570 = vmatpush1.msra.mxu0 0.0
        %7571 = vmatprep.mubr.f32.mxu0 0.0
        %7572 = vmatmul.mubr.f32.gmra.mrb[0].mxu0 %v7484
        %v7573 = vpop.f32.mrb[0].mxu0
        %v7574 = vadd.f32 %v7446, %v7573
        %v7575 = vpop.f32.mrb[0].mxu0
        %7576 = vmatprep.mubr.f32.mxu0 0.0
        %7577 = vmatmul.mubr.f32.gmra.mrb[0].mxu0 %v7487
        %v7578 = vpop.f32.mrb[0].mxu0
        %v7579 = vadd.f32 %v7451, %v7578
        %v7580 = vpop.f32.mrb[0].mxu0
        %7581 = vmatprep.mubr.f32.mxu0 0.0
        %7582 = vmatmul.mubr.f32.gmra.mrb[0].mxu0 %v7490
        %v7583 = vpop.f32.mrb[0].mxu0
        %v7584 = vadd.f32 %v7456, %v7583
        %v7585 = vpop.f32.mrb[0].mxu0
        %7586 = vmatprep.mubr.f32.mxu0 0.0
        %7587 = vmatmul.mubr.f32.gmra.mrb[0].mxu0 %v7493
        %v7588 = vpop.f32.mrb[0].mxu0
        %v7589 = vadd.f32 %v7461, %v7588
        %v7590 = vpop.f32.mrb[0].mxu0
        %7591 = vmatprep.mubr.f32.mxu0 0.0
        %7592 = vmatmul.mubr.f32.gmra.mrb[0].mxu0 %v7496
        %v7593 = vpop.f32.mrb[0].mxu0
        %v7594 = vadd.f32 %v7466, %v7593
        %v7595 = vpop.f32.mrb[0].mxu0
        %7596 = vmatprep.mubr.f32.mxu0 0.0
        %7597 = vmatmul.mubr.f32.gmra.mrb[0].mxu0 %v7499
        %v7598 = vpop.f32.mrb[0].mxu0
        %v7599 = vadd.f32 %v7471, %v7598
        %v7600 = vpop.f32.mrb[0].mxu0
        %7601 = vmatprep.mubr.f32.mxu0 0.0
        %7602 = vmatmul.mubr.f32.gmra.mrb[0].mxu0 %v7502
        %v7603 = vpop.f32.mrb[0].mxu0
        %v7604 = vadd.f32 %v7476, %v7603
        %v7605 = vpop.f32.mrb[0].mxu0
        %7606 = vmatprep.mubr.f32.mxu0 0.0
        %7607 = vmatmul.mubr.f32.gmra.mrb[0].mxu0 %v7505
        %v7608 = vpop.f32.mrb[0].mxu0
        %v7609 = vadd.f32 %v7481, %v7608
        %v7610 = vpop.f32.mrb[0].mxu0
        %7611 = vdwg.mxu0
        %v7612 = vadd.f32 %v7142, %v7574
        %v7613 = vadd.f32 %v7143, %v7579
        %v7614 = vadd.f32 %v7144, %v7584
        %v7615 = vadd.f32 %v7145, %v7589
        %v7616 = vmul.f32 %v7612, %v377
        %v7617 = vmul.f32 %v7613, %v377
        %v7618 = vmul.f32 %v7614, %v377
        %v7619 = vmul.f32 %v7615, %v377
        %v7620 = vadd.f32 %v7146, %v7594
        %v7621 = vadd.f32 %v7147, %v7599
        %v7622 = vadd.f32 %v7148, %v7604
        %v7623 = vadd.f32 %v7149, %v7609
        %7624 = vrot.lane.b32.xlu0 %v7616, 2
        %v7625 = vpop.permute.xlu0 %7624
        %7626 = vrot.lane.b32.xlu0 %v7617, 2
        %v7627 = vpop.permute.xlu0 %7626
        %7628 = vrot.lane.b32.xlu0 %v7618, 2
        %v7629 = vpop.permute.xlu0 %7628
        %7630 = vrot.lane.b32.xlu0 %v7619, 2
        %v7631 = vpop.permute.xlu0 %7630
        %v7632 = vmul.f32 %v7625, %v386
        %v7633 = vmul.f32 %v7627, %v386
        %v7634 = vmul.f32 %v7629, %v386
        %v7635 = vmul.f32 %v7631, %v386
        %7636 = vrot.lane.b32.xlu0 %v7616, 1
        %v7637 = vpop.permute.xlu0 %7636
        %7638 = vrot.lane.b32.xlu0 %v7617, 1
        %v7639 = vpop.permute.xlu0 %7638
        %7640 = vrot.lane.b32.xlu0 %v7618, 1
        %v7641 = vpop.permute.xlu0 %7640
        %7642 = vrot.lane.b32.xlu0 %v7619, 1
        %v7643 = vpop.permute.xlu0 %7642
        %v7644 = vmul.f32 %v7637, %v392
        %v7645 = vmul.f32 %v7639, %v392
        %v7646 = vmul.f32 %v7641, %v392
        %v7647 = vmul.f32 %v7643, %v392
        %7648 = vrot.lane.b32.xlu0 %v7616, 127
        %v7649 = vpop.permute.xlu0 %7648
        %7650 = vrot.lane.b32.xlu0 %v7617, 127
        %v7651 = vpop.permute.xlu0 %7650
        %7652 = vrot.lane.b32.xlu0 %v7618, 127
        %v7653 = vpop.permute.xlu0 %7652
        %7654 = vrot.lane.b32.xlu0 %v7619, 127
        %v7655 = vpop.permute.xlu0 %7654
        %v7656 = vmul.f32 %v7649, %v398
        %v7657 = vmul.f32 %v7651, %v398
        %v7658 = vmul.f32 %v7653, %v398
        %v7659 = vmul.f32 %v7655, %v398
        %7660 = vrot.lane.b32.xlu0 %v7616, 126
        %v7661 = vpop.permute.xlu0 %7660
        %7662 = vrot.lane.b32.xlu0 %v7617, 126
        %v7663 = vpop.permute.xlu0 %7662
        %7664 = vrot.lane.b32.xlu0 %v7618, 126
        %v7665 = vpop.permute.xlu0 %7664
        %7666 = vrot.lane.b32.xlu0 %v7619, 126
        %v7667 = vpop.permute.xlu0 %7666
        %v7668 = vmul.f32 %v7661, %v404
        %v7669 = vmul.f32 %v7663, %v404
        %v7670 = vmul.f32 %v7665, %v404
        %v7671 = vmul.f32 %v7667, %v404
        %s7672 = scalar_lea.vmem %s4, 1792
        %v7673 = vld [vmem:[%s7672] sm:$0xff]
        %v7674 = vld [vmem:[%s7672 + $0x8] sm:$0xff]
        %v7675 = vld [vmem:[%s7672 + $0x10] sm:$0xff]
        %v7676 = vld [vmem:[%s7672 + $0x18] sm:$0xff]
        %v7677 = vld [vmem:[%s7672 + $0x20] sm:$0xff]
        %v7678 = vld [vmem:[%s7672 + $0x28] sm:$0xff]
        %v7679 = vld [vmem:[%s7672 + $0x30] sm:$0xff]
        %v7680 = vld [vmem:[%s7672 + $0x38] sm:$0xff]
        %v7681 = vld [vmem:[%s7672 + $0x40] sm:$0xff]
        %v7682 = vld [vmem:[%s7672 + $0x48] sm:$0xff]
        %v7683 = vld [vmem:[%s7672 + $0x50] sm:$0xff]
        %v7684 = vld [vmem:[%s7672 + $0x58] sm:$0xff]
        %v7685 = vld [vmem:[%s7672 + $0x60] sm:$0xff]
        %v7686 = vld [vmem:[%s7672 + $0x68] sm:$0xff]
        %v7687 = vld [vmem:[%s7672 + $0x70] sm:$0xff]
        %v7688 = vld [vmem:[%s7672 + $0x78] sm:$0xff]
        %s7689 = scalar_lea.vmem %s5, 896
        %v7690 = vld [vmem:[%s7689] sm:$0xff]
        %v7691 = vld [vmem:[%s7689 + $0x8] sm:$0xff]
        %v7692 = vld [vmem:[%s7689 + $0x10] sm:$0xff]
        %v7693 = vld [vmem:[%s7689 + $0x18] sm:$0xff]
        %v7694 = vld [vmem:[%s7689 + $0x20] sm:$0xff]
        %v7695 = vld [vmem:[%s7689 + $0x28] sm:$0xff]
        %v7696 = vld [vmem:[%s7689 + $0x30] sm:$0xff]
        %v7697 = vld [vmem:[%s7689 + $0x38] sm:$0xff]
        %7699 = vset.pattern.permute.xlu0 0
        %7700 = vperm.xlu0 %7699, %v7690
        %v7701 = vpop.permute.xlu0 %7700
        %7704 = vset.pattern.permute.xlu0 0
        %7705 = vperm.xlu0 %7704, %v7691
        %v7706 = vpop.permute.xlu0 %7705
        %7709 = vset.pattern.permute.xlu0 0
        %7710 = vperm.xlu0 %7709, %v7692
        %v7711 = vpop.permute.xlu0 %7710
        %7714 = vset.pattern.permute.xlu0 0
        %7715 = vperm.xlu0 %7714, %v7693
        %v7716 = vpop.permute.xlu0 %7715
        %7719 = vset.pattern.permute.xlu0 0
        %7720 = vperm.xlu0 %7719, %v7694
        %v7721 = vpop.permute.xlu0 %7720
        %7724 = vset.pattern.permute.xlu0 0
        %7725 = vperm.xlu0 %7724, %v7695
        %v7726 = vpop.permute.xlu0 %7725
        %7729 = vset.pattern.permute.xlu0 0
        %7730 = vperm.xlu0 %7729, %v7696
        %v7731 = vpop.permute.xlu0 %7730
        %7734 = vset.pattern.permute.xlu0 0
        %7735 = vperm.xlu0 %7734, %v7697
        %v7736 = vpop.permute.xlu0 %7735
        %v7739 = vsel %vm649, %v7674, 0
        %v7742 = vsel %vm649, %v7676, 0
        %v7745 = vsel %vm649, %v7678, 0
        %v7748 = vsel %vm649, %v7680, 0
        %v7751 = vsel %vm649, %v7682, 0
        %v7754 = vsel %vm649, %v7684, 0
        %v7757 = vsel %vm649, %v7686, 0
        %v7760 = vsel %vm649, %v7688, 0
        %7762 = vmatprep.subr.mxu0 0.0
        %7763 = vmatpush1.msra.mxu0 %v7632
        %7764 = vmatprep.subr.mxu0 0.0
        %7765 = vmatpush1.msra.mxu0 %v7633
        %7766 = vmatprep.subr.mxu0 0.0
        %7767 = vmatpush1.msra.mxu0 %v7634
        %7768 = vmatprep.subr.mxu0 0.0
        %7769 = vmatpush1.msra.mxu0 %v7635
        %7770 = vmatprep.subr.mxu0 0.0
        %7771 = vmatpush1.msra.mxu0 %v7644
        %7772 = vmatprep.subr.mxu0 0.0
        %7773 = vmatpush1.msra.mxu0 %v7645
        %7774 = vmatprep.subr.mxu0 0.0
        %7775 = vmatpush1.msra.mxu0 %v7646
        %7776 = vmatprep.subr.mxu0 0.0
        %7777 = vmatpush1.msra.mxu0 %v7647
        %7778 = vmatprep.subr.mxu0 0.0
        %7779 = vmatpush1.msra.mxu0 %v7616
        %7780 = vmatprep.subr.mxu0 0.0
        %7781 = vmatpush1.msra.mxu0 %v7617
        %7782 = vmatprep.subr.mxu0 0.0
        %7783 = vmatpush1.msra.mxu0 %v7618
        %7784 = vmatprep.subr.mxu0 0.0
        %7785 = vmatpush1.msra.mxu0 %v7619
        %7786 = vmatprep.subr.mxu0 0.0
        %7787 = vmatpush1.msra.mxu0 %v7656
        %7788 = vmatprep.subr.mxu0 0.0
        %7789 = vmatpush1.msra.mxu0 %v7657
        %7790 = vmatprep.subr.mxu0 0.0
        %7791 = vmatpush1.msra.mxu0 %v7658
        %7792 = vmatprep.subr.mxu0 0.0
        %7793 = vmatpush1.msra.mxu0 %v7659
        %7794 = vmatprep.subr.mxu0 0.0
        %7795 = vmatpush1.msra.mxu0 %v7668
        %7796 = vmatprep.subr.mxu0 0.0
        %7797 = vmatpush1.msra.mxu0 %v7669
        %7798 = vmatprep.subr.mxu0 0.0
        %7799 = vmatpush1.msra.mxu0 %v7670
        %7800 = vmatprep.subr.mxu0 0.0
        %7801 = vmatpush1.msra.mxu0 %v7671
        %7802 = vmatprep.subr.mxu0 0.0
        %7803 = vmatpush1.msra.mxu0 0.0
        %7804 = vmatprep.subr.mxu0 0.0
        %7805 = vmatpush1.msra.mxu0 0.0
        %7806 = vmatprep.subr.mxu0 0.0
        %7807 = vmatpush1.msra.mxu0 0.0
        %7808 = vmatprep.subr.mxu0 0.0
        %7809 = vmatpush1.msra.mxu0 0.0
        %7810 = vmatprep.subr.mxu0 0.0
        %7811 = vmatpush1.msra.mxu0 0.0
        %7812 = vmatprep.subr.mxu0 0.0
        %7813 = vmatpush1.msra.mxu0 0.0
        %7814 = vmatprep.subr.mxu0 0.0
        %7815 = vmatpush1.msra.mxu0 0.0
        %7816 = vmatprep.subr.mxu0 0.0
        %7817 = vmatpush1.msra.mxu0 0.0
        %7818 = vmatprep.subr.mxu0 0.0
        %7819 = vmatpush1.msra.mxu0 0.0
        %7820 = vmatprep.subr.mxu0 0.0
        %7821 = vmatpush1.msra.mxu0 0.0
        %7822 = vmatprep.subr.mxu0 0.0
        %7823 = vmatpush1.msra.mxu0 0.0
        %7824 = vmatprep.subr.mxu0 0.0
        %7825 = vmatpush1.msra.mxu0 0.0
        %7826 = vmatprep.mubr.f32.mxu0 %v7739
        %7827 = vmatmul.mubr.f32.gmra.mrb[0].mxu0 %v7673
        %v7828 = vpop.f32.mrb[0].mxu0
        %v7829 = vadd.f32 %v7701, %v7828
        %v7830 = vpop.f32.mrb[0].mxu0
        %7831 = vmatprep.mubr.f32.mxu0 %v7742
        %7832 = vmatmul.mubr.f32.gmra.mrb[0].mxu0 %v7675
        %v7833 = vpop.f32.mrb[0].mxu0
        %v7834 = vadd.f32 %v7706, %v7833
        %v7835 = vpop.f32.mrb[0].mxu0
        %7836 = vmatprep.mubr.f32.mxu0 %v7745
        %7837 = vmatmul.mubr.f32.gmra.mrb[0].mxu0 %v7677
        %v7838 = vpop.f32.mrb[0].mxu0
        %v7839 = vadd.f32 %v7711, %v7838
        %v7840 = vpop.f32.mrb[0].mxu0
        %7841 = vmatprep.mubr.f32.mxu0 %v7748
        %7842 = vmatmul.mubr.f32.gmra.mrb[0].mxu0 %v7679
        %v7843 = vpop.f32.mrb[0].mxu0
        %v7844 = vadd.f32 %v7716, %v7843
        %v7845 = vpop.f32.mrb[0].mxu0
        %7846 = vmatprep.mubr.f32.mxu0 %v7751
        %7847 = vmatmul.mubr.f32.gmra.mrb[0].mxu0 %v7681
        %v7848 = vpop.f32.mrb[0].mxu0
        %v7849 = vadd.f32 %v7721, %v7848
        %v7850 = vpop.f32.mrb[0].mxu0
        %7851 = vmatprep.mubr.f32.mxu0 %v7754
        %7852 = vmatmul.mubr.f32.gmra.mrb[0].mxu0 %v7683
        %v7853 = vpop.f32.mrb[0].mxu0
        %v7854 = vadd.f32 %v7726, %v7853
        %v7855 = vpop.f32.mrb[0].mxu0
        %7856 = vmatprep.mubr.f32.mxu0 %v7757
        %7857 = vmatmul.mubr.f32.gmra.mrb[0].mxu0 %v7685
        %v7858 = vpop.f32.mrb[0].mxu0
        %v7859 = vadd.f32 %v7731, %v7858
        %v7860 = vpop.f32.mrb[0].mxu0
        %7861 = vmatprep.mubr.f32.mxu0 %v7760
        %7862 = vmatmul.mubr.f32.gmra.mrb[0].mxu0 %v7687
        %v7863 = vpop.f32.mrb[0].mxu0
        %v7864 = vadd.f32 %v7736, %v7863
        %v7865 = vpop.f32.mrb[0].mxu0
        %7866 = vdwg.mxu0
        %v7867 = vtanh.pop %v7829
        %v7868 = vtanh.pop %v7834
        %v7869 = vtanh.pop %v7839
        %v7870 = vtanh.pop %v7844
        %v7871 = vxor.u32 %v7849, 2147483648
        %v7872 = vxor.u32 %v7854, 2147483648
        %v7873 = vxor.u32 %v7859, 2147483648
        %v7874 = vxor.u32 %v7864, 2147483648
        %v7875 = vmul.f32 %v7871, 1.442695
        %v7876 = vpow.pop %v7875
        %v7877 = vmul.f32 %v7872, 1.442695
        %v7878 = vpow.pop %v7877
        %v7879 = vmul.f32 %v7873, 1.442695
        %v7880 = vpow.pop %v7879
        %v7881 = vmul.f32 %v7874, 1.442695
        %v7882 = vpow.pop %v7881
        %v7883 = vadd.f32 %v7876, 1.0
        %v7884 = vadd.f32 %v7878, 1.0
        %v7885 = vadd.f32 %v7880, 1.0
        %v7886 = vadd.f32 %v7882, 1.0
        %v7887 = vrcp.pop %v7883
        %v7888 = vmul.f32 1.0, %v7887
        %v7889 = vrcp.pop %v7884
        %v7890 = vmul.f32 1.0, %v7889
        %v7891 = vrcp.pop %v7885
        %v7892 = vmul.f32 1.0, %v7891
        %v7893 = vrcp.pop %v7886
        %v7894 = vmul.f32 1.0, %v7893
        %v7895 = vmul.f32 %v7867, %v7888
        %v7896 = vmul.f32 %v7868, %v7890
        %v7897 = vmul.f32 %v7869, %v7892
        %v7898 = vmul.f32 %v7870, %v7894
        %s7899 = scalar_lea.vmem %s6, 896
        %v7900 = vld [vmem:[%s7899] sm:$0xff]
        %v7901 = vld [vmem:[%s7899 + $0x8] sm:$0xff]
        %v7902 = vld [vmem:[%s7899 + $0x10] sm:$0xff]
        %v7903 = vld [vmem:[%s7899 + $0x18] sm:$0xff]
        %v7904 = vld [vmem:[%s7899 + $0x20] sm:$0xff]
        %v7905 = vld [vmem:[%s7899 + $0x28] sm:$0xff]
        %v7906 = vld [vmem:[%s7899 + $0x30] sm:$0xff]
        %v7907 = vld [vmem:[%s7899 + $0x38] sm:$0xff]
        %s7908 = scalar_lea.vmem %s7, 896
        %v7909 = vld [vmem:[%s7908] sm:$0xff]
        %v7910 = vld [vmem:[%s7908 + $0x8] sm:$0xff]
        %v7911 = vld [vmem:[%s7908 + $0x10] sm:$0xff]
        %v7912 = vld [vmem:[%s7908 + $0x18] sm:$0xff]
        %v7913 = vld [vmem:[%s7908 + $0x20] sm:$0xff]
        %v7914 = vld [vmem:[%s7908 + $0x28] sm:$0xff]
        %v7915 = vld [vmem:[%s7908 + $0x30] sm:$0xff]
        %v7916 = vld [vmem:[%s7908 + $0x38] sm:$0xff]
        %7918 = vset.pattern.permute.xlu0 0
        %7919 = vperm.xlu0 %7918, %v7909
        %v7920 = vpop.permute.xlu0 %7919
        %7923 = vset.pattern.permute.xlu0 0
        %7924 = vperm.xlu0 %7923, %v7910
        %v7925 = vpop.permute.xlu0 %7924
        %7928 = vset.pattern.permute.xlu0 0
        %7929 = vperm.xlu0 %7928, %v7911
        %v7930 = vpop.permute.xlu0 %7929
        %7933 = vset.pattern.permute.xlu0 0
        %7934 = vperm.xlu0 %7933, %v7912
        %v7935 = vpop.permute.xlu0 %7934
        %7938 = vset.pattern.permute.xlu0 0
        %7939 = vperm.xlu0 %7938, %v7913
        %v7940 = vpop.permute.xlu0 %7939
        %7943 = vset.pattern.permute.xlu0 0
        %7944 = vperm.xlu0 %7943, %v7914
        %v7945 = vpop.permute.xlu0 %7944
        %7948 = vset.pattern.permute.xlu0 0
        %7949 = vperm.xlu0 %7948, %v7915
        %v7950 = vpop.permute.xlu0 %7949
        %7953 = vset.pattern.permute.xlu0 0
        %7954 = vperm.xlu0 %7953, %v7916
        %v7955 = vpop.permute.xlu0 %7954
        %v7958 = vsel %vm649, %v7900, 0
        %v7961 = vsel %vm649, %v7901, 0
        %v7964 = vsel %vm649, %v7902, 0
        %v7967 = vsel %vm649, %v7903, 0
        %v7970 = vsel %vm649, %v7904, 0
        %v7973 = vsel %vm649, %v7905, 0
        %v7976 = vsel %vm649, %v7906, 0
        %v7979 = vsel %vm649, %v7907, 0
        %7981 = vmatprep.subr.mxu0 0.0
        %7982 = vmatpush1.msra.mxu0 %v7895
        %7983 = vmatprep.subr.mxu0 0.0
        %7984 = vmatpush1.msra.mxu0 %v7896
        %7985 = vmatprep.subr.mxu0 0.0
        %7986 = vmatpush1.msra.mxu0 %v7897
        %7987 = vmatprep.subr.mxu0 0.0
        %7988 = vmatpush1.msra.mxu0 %v7898
        %7989 = vmatprep.subr.mxu0 0.0
        %7990 = vmatpush1.msra.mxu0 0.0
        %7991 = vmatprep.subr.mxu0 0.0
        %7992 = vmatpush1.msra.mxu0 0.0
        %7993 = vmatprep.subr.mxu0 0.0
        %7994 = vmatpush1.msra.mxu0 0.0
        %7995 = vmatprep.subr.mxu0 0.0
        %7996 = vmatpush1.msra.mxu0 0.0
        %7997 = vmatprep.subr.mxu0 0.0
        %7998 = vmatpush1.msra.mxu0 0.0
        %7999 = vmatprep.subr.mxu0 0.0
        %8000 = vmatpush1.msra.mxu0 0.0
        %8001 = vmatprep.subr.mxu0 0.0
        %8002 = vmatpush1.msra.mxu0 0.0
        %8003 = vmatprep.subr.mxu0 0.0
        %8004 = vmatpush1.msra.mxu0 0.0
        %8005 = vmatprep.subr.mxu0 0.0
        %8006 = vmatpush1.msra.mxu0 0.0
        %8007 = vmatprep.subr.mxu0 0.0
        %8008 = vmatpush1.msra.mxu0 0.0
        %8009 = vmatprep.subr.mxu0 0.0
        %8010 = vmatpush1.msra.mxu0 0.0
        %8011 = vmatprep.subr.mxu0 0.0
        %8012 = vmatpush1.msra.mxu0 0.0
        %8013 = vmatprep.subr.mxu0 0.0
        %8014 = vmatpush1.msra.mxu0 0.0
        %8015 = vmatprep.subr.mxu0 0.0
        %8016 = vmatpush1.msra.mxu0 0.0
        %8017 = vmatprep.subr.mxu0 0.0
        %8018 = vmatpush1.msra.mxu0 0.0
        %8019 = vmatprep.subr.mxu0 0.0
        %8020 = vmatpush1.msra.mxu0 0.0
        %8021 = vmatprep.subr.mxu0 0.0
        %8022 = vmatpush1.msra.mxu0 0.0
        %8023 = vmatprep.subr.mxu0 0.0
        %8024 = vmatpush1.msra.mxu0 0.0
        %8025 = vmatprep.subr.mxu0 0.0
        %8026 = vmatpush1.msra.mxu0 0.0
        %8027 = vmatprep.subr.mxu0 0.0
        %8028 = vmatpush1.msra.mxu0 0.0
        %8029 = vmatprep.subr.mxu0 0.0
        %8030 = vmatpush1.msra.mxu0 0.0
        %8031 = vmatprep.subr.mxu0 0.0
        %8032 = vmatpush1.msra.mxu0 0.0
        %8033 = vmatprep.subr.mxu0 0.0
        %8034 = vmatpush1.msra.mxu0 0.0
        %8035 = vmatprep.subr.mxu0 0.0
        %8036 = vmatpush1.msra.mxu0 0.0
        %8037 = vmatprep.subr.mxu0 0.0
        %8038 = vmatpush1.msra.mxu0 0.0
        %8039 = vmatprep.subr.mxu0 0.0
        %8040 = vmatpush1.msra.mxu0 0.0
        %8041 = vmatprep.subr.mxu0 0.0
        %8042 = vmatpush1.msra.mxu0 0.0
        %8043 = vmatprep.subr.mxu0 0.0
        %8044 = vmatpush1.msra.mxu0 0.0
        %8045 = vmatprep.mubr.f32.mxu0 0.0
        %8046 = vmatmul.mubr.f32.gmra.mrb[0].mxu0 %v7958
        %v8047 = vpop.f32.mrb[0].mxu0
        %v8048 = vadd.f32 %v7920, %v8047
        %v8049 = vpop.f32.mrb[0].mxu0
        %8050 = vmatprep.mubr.f32.mxu0 0.0
        %8051 = vmatmul.mubr.f32.gmra.mrb[0].mxu0 %v7961
        %v8052 = vpop.f32.mrb[0].mxu0
        %v8053 = vadd.f32 %v7925, %v8052
        %v8054 = vpop.f32.mrb[0].mxu0
        %8055 = vmatprep.mubr.f32.mxu0 0.0
        %8056 = vmatmul.mubr.f32.gmra.mrb[0].mxu0 %v7964
        %v8057 = vpop.f32.mrb[0].mxu0
        %v8058 = vadd.f32 %v7930, %v8057
        %v8059 = vpop.f32.mrb[0].mxu0
        %8060 = vmatprep.mubr.f32.mxu0 0.0
        %8061 = vmatmul.mubr.f32.gmra.mrb[0].mxu0 %v7967
        %v8062 = vpop.f32.mrb[0].mxu0
        %v8063 = vadd.f32 %v7935, %v8062
        %v8064 = vpop.f32.mrb[0].mxu0
        %8065 = vmatprep.mubr.f32.mxu0 0.0
        %8066 = vmatmul.mubr.f32.gmra.mrb[0].mxu0 %v7970
        %v8067 = vpop.f32.mrb[0].mxu0
        %v8068 = vadd.f32 %v7940, %v8067
        %v8069 = vpop.f32.mrb[0].mxu0
        %8070 = vmatprep.mubr.f32.mxu0 0.0
        %8071 = vmatmul.mubr.f32.gmra.mrb[0].mxu0 %v7973
        %v8072 = vpop.f32.mrb[0].mxu0
        %v8073 = vadd.f32 %v7945, %v8072
        %v8074 = vpop.f32.mrb[0].mxu0
        %8075 = vmatprep.mubr.f32.mxu0 0.0
        %8076 = vmatmul.mubr.f32.gmra.mrb[0].mxu0 %v7976
        %v8077 = vpop.f32.mrb[0].mxu0
        %v8078 = vadd.f32 %v7950, %v8077
        %v8079 = vpop.f32.mrb[0].mxu0
        %8080 = vmatprep.mubr.f32.mxu0 0.0
        %8081 = vmatmul.mubr.f32.gmra.mrb[0].mxu0 %v7979
        %v8082 = vpop.f32.mrb[0].mxu0
        %v8083 = vadd.f32 %v7955, %v8082
        %v8084 = vpop.f32.mrb[0].mxu0
        %8085 = vdwg.mxu0
        %v8086 = vadd.f32 %v7616, %v8048
        %v8087 = vadd.f32 %v7617, %v8053
        %v8088 = vadd.f32 %v7618, %v8058
        %v8089 = vadd.f32 %v7619, %v8063
        %v8090 = vmul.f32 %v8086, %v377
        %v8091 = vmul.f32 %v8087, %v377
        %v8092 = vmul.f32 %v8088, %v377
        %v8093 = vmul.f32 %v8089, %v377
        %v8094 = vadd.f32 %v7620, %v8068
        %v8095 = vadd.f32 %v7621, %v8073
        %v8096 = vadd.f32 %v7622, %v8078
        %v8097 = vadd.f32 %v7623, %v8083
        %8098 = vrot.lane.b32.xlu0 %v8090, 2
        %v8099 = vpop.permute.xlu0 %8098
        %8100 = vrot.lane.b32.xlu0 %v8091, 2
        %v8101 = vpop.permute.xlu0 %8100
        %8102 = vrot.lane.b32.xlu0 %v8092, 2
        %v8103 = vpop.permute.xlu0 %8102
        %8104 = vrot.lane.b32.xlu0 %v8093, 2
        %v8105 = vpop.permute.xlu0 %8104
        %v8106 = vmul.f32 %v8099, %v386
        %v8107 = vmul.f32 %v8101, %v386
        %v8108 = vmul.f32 %v8103, %v386
        %v8109 = vmul.f32 %v8105, %v386
        %8110 = vrot.lane.b32.xlu0 %v8090, 1
        %v8111 = vpop.permute.xlu0 %8110
        %8112 = vrot.lane.b32.xlu0 %v8091, 1
        %v8113 = vpop.permute.xlu0 %8112
        %8114 = vrot.lane.b32.xlu0 %v8092, 1
        %v8115 = vpop.permute.xlu0 %8114
        %8116 = vrot.lane.b32.xlu0 %v8093, 1
        %v8117 = vpop.permute.xlu0 %8116
        %v8118 = vmul.f32 %v8111, %v392
        %v8119 = vmul.f32 %v8113, %v392
        %v8120 = vmul.f32 %v8115, %v392
        %v8121 = vmul.f32 %v8117, %v392
        %8122 = vrot.lane.b32.xlu0 %v8090, 127
        %v8123 = vpop.permute.xlu0 %8122
        %8124 = vrot.lane.b32.xlu0 %v8091, 127
        %v8125 = vpop.permute.xlu0 %8124
        %8126 = vrot.lane.b32.xlu0 %v8092, 127
        %v8127 = vpop.permute.xlu0 %8126
        %8128 = vrot.lane.b32.xlu0 %v8093, 127
        %v8129 = vpop.permute.xlu0 %8128
        %v8130 = vmul.f32 %v8123, %v398
        %v8131 = vmul.f32 %v8125, %v398
        %v8132 = vmul.f32 %v8127, %v398
        %v8133 = vmul.f32 %v8129, %v398
        %8134 = vrot.lane.b32.xlu0 %v8090, 126
        %v8135 = vpop.permute.xlu0 %8134
        %8136 = vrot.lane.b32.xlu0 %v8091, 126
        %v8137 = vpop.permute.xlu0 %8136
        %8138 = vrot.lane.b32.xlu0 %v8092, 126
        %v8139 = vpop.permute.xlu0 %8138
        %8140 = vrot.lane.b32.xlu0 %v8093, 126
        %v8141 = vpop.permute.xlu0 %8140
        %v8142 = vmul.f32 %v8135, %v404
        %v8143 = vmul.f32 %v8137, %v404
        %v8144 = vmul.f32 %v8139, %v404
        %v8145 = vmul.f32 %v8141, %v404
        %s8146 = scalar_lea.vmem %s4, 1920
        %v8147 = vld [vmem:[%s8146] sm:$0xff]
        %v8148 = vld [vmem:[%s8146 + $0x8] sm:$0xff]
        %v8149 = vld [vmem:[%s8146 + $0x10] sm:$0xff]
        %v8150 = vld [vmem:[%s8146 + $0x18] sm:$0xff]
        %v8151 = vld [vmem:[%s8146 + $0x20] sm:$0xff]
        %v8152 = vld [vmem:[%s8146 + $0x28] sm:$0xff]
        %v8153 = vld [vmem:[%s8146 + $0x30] sm:$0xff]
        %v8154 = vld [vmem:[%s8146 + $0x38] sm:$0xff]
        %v8155 = vld [vmem:[%s8146 + $0x40] sm:$0xff]
        %v8156 = vld [vmem:[%s8146 + $0x48] sm:$0xff]
        %v8157 = vld [vmem:[%s8146 + $0x50] sm:$0xff]
        %v8158 = vld [vmem:[%s8146 + $0x58] sm:$0xff]
        %v8159 = vld [vmem:[%s8146 + $0x60] sm:$0xff]
        %v8160 = vld [vmem:[%s8146 + $0x68] sm:$0xff]
        %v8161 = vld [vmem:[%s8146 + $0x70] sm:$0xff]
        %v8162 = vld [vmem:[%s8146 + $0x78] sm:$0xff]
        %s8163 = scalar_lea.vmem %s5, 960
        %v8164 = vld [vmem:[%s8163] sm:$0xff]
        %v8165 = vld [vmem:[%s8163 + $0x8] sm:$0xff]
        %v8166 = vld [vmem:[%s8163 + $0x10] sm:$0xff]
        %v8167 = vld [vmem:[%s8163 + $0x18] sm:$0xff]
        %v8168 = vld [vmem:[%s8163 + $0x20] sm:$0xff]
        %v8169 = vld [vmem:[%s8163 + $0x28] sm:$0xff]
        %v8170 = vld [vmem:[%s8163 + $0x30] sm:$0xff]
        %v8171 = vld [vmem:[%s8163 + $0x38] sm:$0xff]
        %8173 = vset.pattern.permute.xlu0 0
        %8174 = vperm.xlu0 %8173, %v8164
        %v8175 = vpop.permute.xlu0 %8174
        %8178 = vset.pattern.permute.xlu0 0
        %8179 = vperm.xlu0 %8178, %v8165
        %v8180 = vpop.permute.xlu0 %8179
        %8183 = vset.pattern.permute.xlu0 0
        %8184 = vperm.xlu0 %8183, %v8166
        %v8185 = vpop.permute.xlu0 %8184
        %8188 = vset.pattern.permute.xlu0 0
        %8189 = vperm.xlu0 %8188, %v8167
        %v8190 = vpop.permute.xlu0 %8189
        %8193 = vset.pattern.permute.xlu0 0
        %8194 = vperm.xlu0 %8193, %v8168
        %v8195 = vpop.permute.xlu0 %8194
        %8198 = vset.pattern.permute.xlu0 0
        %8199 = vperm.xlu0 %8198, %v8169
        %v8200 = vpop.permute.xlu0 %8199
        %8203 = vset.pattern.permute.xlu0 0
        %8204 = vperm.xlu0 %8203, %v8170
        %v8205 = vpop.permute.xlu0 %8204
        %8208 = vset.pattern.permute.xlu0 0
        %8209 = vperm.xlu0 %8208, %v8171
        %v8210 = vpop.permute.xlu0 %8209
        %v8213 = vsel %vm649, %v8148, 0
        %v8216 = vsel %vm649, %v8150, 0
        %v8219 = vsel %vm649, %v8152, 0
        %v8222 = vsel %vm649, %v8154, 0
        %v8225 = vsel %vm649, %v8156, 0
        %v8228 = vsel %vm649, %v8158, 0
        %v8231 = vsel %vm649, %v8160, 0
        %v8234 = vsel %vm649, %v8162, 0
        %8236 = vmatprep.subr.mxu0 0.0
        %8237 = vmatpush1.msra.mxu0 %v8106
        %8238 = vmatprep.subr.mxu0 0.0
        %8239 = vmatpush1.msra.mxu0 %v8107
        %8240 = vmatprep.subr.mxu0 0.0
        %8241 = vmatpush1.msra.mxu0 %v8108
        %8242 = vmatprep.subr.mxu0 0.0
        %8243 = vmatpush1.msra.mxu0 %v8109
        %8244 = vmatprep.subr.mxu0 0.0
        %8245 = vmatpush1.msra.mxu0 %v8118
        %8246 = vmatprep.subr.mxu0 0.0
        %8247 = vmatpush1.msra.mxu0 %v8119
        %8248 = vmatprep.subr.mxu0 0.0
        %8249 = vmatpush1.msra.mxu0 %v8120
        %8250 = vmatprep.subr.mxu0 0.0
        %8251 = vmatpush1.msra.mxu0 %v8121
        %8252 = vmatprep.subr.mxu0 0.0
        %8253 = vmatpush1.msra.mxu0 %v8090
        %8254 = vmatprep.subr.mxu0 0.0
        %8255 = vmatpush1.msra.mxu0 %v8091
        %8256 = vmatprep.subr.mxu0 0.0
        %8257 = vmatpush1.msra.mxu0 %v8092
        %8258 = vmatprep.subr.mxu0 0.0
        %8259 = vmatpush1.msra.mxu0 %v8093
        %8260 = vmatprep.subr.mxu0 0.0
        %8261 = vmatpush1.msra.mxu0 %v8130
        %8262 = vmatprep.subr.mxu0 0.0
        %8263 = vmatpush1.msra.mxu0 %v8131
        %8264 = vmatprep.subr.mxu0 0.0
        %8265 = vmatpush1.msra.mxu0 %v8132
        %8266 = vmatprep.subr.mxu0 0.0
        %8267 = vmatpush1.msra.mxu0 %v8133
        %8268 = vmatprep.subr.mxu0 0.0
        %8269 = vmatpush1.msra.mxu0 %v8142
        %8270 = vmatprep.subr.mxu0 0.0
        %8271 = vmatpush1.msra.mxu0 %v8143
        %8272 = vmatprep.subr.mxu0 0.0
        %8273 = vmatpush1.msra.mxu0 %v8144
        %8274 = vmatprep.subr.mxu0 0.0
        %8275 = vmatpush1.msra.mxu0 %v8145
        %8276 = vmatprep.subr.mxu0 0.0
        %8277 = vmatpush1.msra.mxu0 0.0
        %8278 = vmatprep.subr.mxu0 0.0
        %8279 = vmatpush1.msra.mxu0 0.0
        %8280 = vmatprep.subr.mxu0 0.0
        %8281 = vmatpush1.msra.mxu0 0.0
        %8282 = vmatprep.subr.mxu0 0.0
        %8283 = vmatpush1.msra.mxu0 0.0
        %8284 = vmatprep.subr.mxu0 0.0
        %8285 = vmatpush1.msra.mxu0 0.0
        %8286 = vmatprep.subr.mxu0 0.0
        %8287 = vmatpush1.msra.mxu0 0.0
        %8288 = vmatprep.subr.mxu0 0.0
        %8289 = vmatpush1.msra.mxu0 0.0
        %8290 = vmatprep.subr.mxu0 0.0
        %8291 = vmatpush1.msra.mxu0 0.0
        %8292 = vmatprep.subr.mxu0 0.0
        %8293 = vmatpush1.msra.mxu0 0.0
        %8294 = vmatprep.subr.mxu0 0.0
        %8295 = vmatpush1.msra.mxu0 0.0
        %8296 = vmatprep.subr.mxu0 0.0
        %8297 = vmatpush1.msra.mxu0 0.0
        %8298 = vmatprep.subr.mxu0 0.0
        %8299 = vmatpush1.msra.mxu0 0.0
        %8300 = vmatprep.mubr.f32.mxu0 %v8213
        %8301 = vmatmul.mubr.f32.gmra.mrb[0].mxu0 %v8147
        %v8302 = vpop.f32.mrb[0].mxu0
        %v8303 = vadd.f32 %v8175, %v8302
        %v8304 = vpop.f32.mrb[0].mxu0
        %8305 = vmatprep.mubr.f32.mxu0 %v8216
        %8306 = vmatmul.mubr.f32.gmra.mrb[0].mxu0 %v8149
        %v8307 = vpop.f32.mrb[0].mxu0
        %v8308 = vadd.f32 %v8180, %v8307
        %v8309 = vpop.f32.mrb[0].mxu0
        %8310 = vmatprep.mubr.f32.mxu0 %v8219
        %8311 = vmatmul.mubr.f32.gmra.mrb[0].mxu0 %v8151
        %v8312 = vpop.f32.mrb[0].mxu0
        %v8313 = vadd.f32 %v8185, %v8312
        %v8314 = vpop.f32.mrb[0].mxu0
        %8315 = vmatprep.mubr.f32.mxu0 %v8222
        %8316 = vmatmul.mubr.f32.gmra.mrb[0].mxu0 %v8153
        %v8317 = vpop.f32.mrb[0].mxu0
        %v8318 = vadd.f32 %v8190, %v8317
        %v8319 = vpop.f32.mrb[0].mxu0
        %8320 = vmatprep.mubr.f32.mxu0 %v8225
        %8321 = vmatmul.mubr.f32.gmra.mrb[0].mxu0 %v8155
        %v8322 = vpop.f32.mrb[0].mxu0
        %v8323 = vadd.f32 %v8195, %v8322
        %v8324 = vpop.f32.mrb[0].mxu0
        %8325 = vmatprep.mubr.f32.mxu0 %v8228
        %8326 = vmatmul.mubr.f32.gmra.mrb[0].mxu0 %v8157
        %v8327 = vpop.f32.mrb[0].mxu0
        %v8328 = vadd.f32 %v8200, %v8327
        %v8329 = vpop.f32.mrb[0].mxu0
        %8330 = vmatprep.mubr.f32.mxu0 %v8231
        %8331 = vmatmul.mubr.f32.gmra.mrb[0].mxu0 %v8159
        %v8332 = vpop.f32.mrb[0].mxu0
        %v8333 = vadd.f32 %v8205, %v8332
        %v8334 = vpop.f32.mrb[0].mxu0
        %8335 = vmatprep.mubr.f32.mxu0 %v8234
        %8336 = vmatmul.mubr.f32.gmra.mrb[0].mxu0 %v8161
        %v8337 = vpop.f32.mrb[0].mxu0
        %v8338 = vadd.f32 %v8210, %v8337
        %v8339 = vpop.f32.mrb[0].mxu0
        %8340 = vdwg.mxu0
        %v8341 = vtanh.pop %v8303
        %v8342 = vtanh.pop %v8308
        %v8343 = vtanh.pop %v8313
        %v8344 = vtanh.pop %v8318
        %v8345 = vxor.u32 %v8323, 2147483648
        %v8346 = vxor.u32 %v8328, 2147483648
        %v8347 = vxor.u32 %v8333, 2147483648
        %v8348 = vxor.u32 %v8338, 2147483648
        %v8349 = vmul.f32 %v8345, 1.442695
        %v8350 = vpow.pop %v8349
        %v8351 = vmul.f32 %v8346, 1.442695
        %v8352 = vpow.pop %v8351
        %v8353 = vmul.f32 %v8347, 1.442695
        %v8354 = vpow.pop %v8353
        %v8355 = vmul.f32 %v8348, 1.442695
        %v8356 = vpow.pop %v8355
        %v8357 = vadd.f32 %v8350, 1.0
        %v8358 = vadd.f32 %v8352, 1.0
        %v8359 = vadd.f32 %v8354, 1.0
        %v8360 = vadd.f32 %v8356, 1.0
        %v8361 = vrcp.pop %v8357
        %v8362 = vmul.f32 1.0, %v8361
        %v8363 = vrcp.pop %v8358
        %v8364 = vmul.f32 1.0, %v8363
        %v8365 = vrcp.pop %v8359
        %v8366 = vmul.f32 1.0, %v8365
        %v8367 = vrcp.pop %v8360
        %v8368 = vmul.f32 1.0, %v8367
        %v8369 = vmul.f32 %v8341, %v8362
        %v8370 = vmul.f32 %v8342, %v8364
        %v8371 = vmul.f32 %v8343, %v8366
        %v8372 = vmul.f32 %v8344, %v8368
        %s8373 = scalar_lea.vmem %s6, 960
        %v8374 = vld [vmem:[%s8373 + $0x20] sm:$0xff]
        %v8375 = vld [vmem:[%s8373 + $0x28] sm:$0xff]
        %v8376 = vld [vmem:[%s8373 + $0x30] sm:$0xff]
        %v8377 = vld [vmem:[%s8373 + $0x38] sm:$0xff]
        %s8378 = scalar_lea.vmem %s7, 960
        %v8379 = vld [vmem:[%s8378 + $0x20] sm:$0xff]
        %v8380 = vld [vmem:[%s8378 + $0x28] sm:$0xff]
        %v8381 = vld [vmem:[%s8378 + $0x30] sm:$0xff]
        %v8382 = vld [vmem:[%s8378 + $0x38] sm:$0xff]
        %8384 = vset.pattern.permute.xlu0 0
        %8385 = vperm.xlu0 %8384, %v8379
        %v8386 = vpop.permute.xlu0 %8385
        %8389 = vset.pattern.permute.xlu0 0
        %8390 = vperm.xlu0 %8389, %v8380
        %v8391 = vpop.permute.xlu0 %8390
        %8394 = vset.pattern.permute.xlu0 0
        %8395 = vperm.xlu0 %8394, %v8381
        %v8396 = vpop.permute.xlu0 %8395
        %8399 = vset.pattern.permute.xlu0 0
        %8400 = vperm.xlu0 %8399, %v8382
        %v8401 = vpop.permute.xlu0 %8400
        %v8404 = vsel %vm649, %v8374, 0
        %v8407 = vsel %vm649, %v8375, 0
        %v8410 = vsel %vm649, %v8376, 0
        %v8413 = vsel %vm649, %v8377, 0
        %8415 = vmatprep.subr.mxu0 0.0
        %8416 = vmatpush1.msra.mxu0 %v8369
        %8417 = vmatprep.subr.mxu0 0.0
        %8418 = vmatpush1.msra.mxu0 %v8370
        %8419 = vmatprep.subr.mxu0 0.0
        %8420 = vmatpush1.msra.mxu0 %v8371
        %8421 = vmatprep.subr.mxu0 0.0
        %8422 = vmatpush1.msra.mxu0 %v8372
        %8423 = vmatprep.subr.mxu0 0.0
        %8424 = vmatpush1.msra.mxu0 0.0
        %8425 = vmatprep.subr.mxu0 0.0
        %8426 = vmatpush1.msra.mxu0 0.0
        %8427 = vmatprep.subr.mxu0 0.0
        %8428 = vmatpush1.msra.mxu0 0.0
        %8429 = vmatprep.subr.mxu0 0.0
        %8430 = vmatpush1.msra.mxu0 0.0
        %8431 = vmatprep.subr.mxu0 0.0
        %8432 = vmatpush1.msra.mxu0 0.0
        %8433 = vmatprep.subr.mxu0 0.0
        %8434 = vmatpush1.msra.mxu0 0.0
        %8435 = vmatprep.subr.mxu0 0.0
        %8436 = vmatpush1.msra.mxu0 0.0
        %8437 = vmatprep.subr.mxu0 0.0
        %8438 = vmatpush1.msra.mxu0 0.0
        %8439 = vmatprep.subr.mxu0 0.0
        %8440 = vmatpush1.msra.mxu0 0.0
        %8441 = vmatprep.subr.mxu0 0.0
        %8442 = vmatpush1.msra.mxu0 0.0
        %8443 = vmatprep.subr.mxu0 0.0
        %8444 = vmatpush1.msra.mxu0 0.0
        %8445 = vmatprep.subr.mxu0 0.0
        %8446 = vmatpush1.msra.mxu0 0.0
        %8447 = vmatprep.subr.mxu0 0.0
        %8448 = vmatpush1.msra.mxu0 0.0
        %8449 = vmatprep.subr.mxu0 0.0
        %8450 = vmatpush1.msra.mxu0 0.0
        %8451 = vmatprep.subr.mxu0 0.0
        %8452 = vmatpush1.msra.mxu0 0.0
        %8453 = vmatprep.subr.mxu0 0.0
        %8454 = vmatpush1.msra.mxu0 0.0
        %8455 = vmatprep.subr.mxu0 0.0
        %8456 = vmatpush1.msra.mxu0 0.0
        %8457 = vmatprep.subr.mxu0 0.0
        %8458 = vmatpush1.msra.mxu0 0.0
        %8459 = vmatprep.subr.mxu0 0.0
        %8460 = vmatpush1.msra.mxu0 0.0
        %8461 = vmatprep.subr.mxu0 0.0
        %8462 = vmatpush1.msra.mxu0 0.0
        %8463 = vmatprep.subr.mxu0 0.0
        %8464 = vmatpush1.msra.mxu0 0.0
        %8465 = vmatprep.subr.mxu0 0.0
        %8466 = vmatpush1.msra.mxu0 0.0
        %8467 = vmatprep.subr.mxu0 0.0
        %8468 = vmatpush1.msra.mxu0 0.0
        %8469 = vmatprep.subr.mxu0 0.0
        %8470 = vmatpush1.msra.mxu0 0.0
        %8471 = vmatprep.subr.mxu0 0.0
        %8472 = vmatpush1.msra.mxu0 0.0
        %8473 = vmatprep.subr.mxu0 0.0
        %8474 = vmatpush1.msra.mxu0 0.0
        %8475 = vmatprep.subr.mxu0 0.0
        %8476 = vmatpush1.msra.mxu0 0.0
        %8477 = vmatprep.subr.mxu0 0.0
        %8478 = vmatpush1.msra.mxu0 0.0
        %8479 = vmatprep.mubr.f32.mxu0 0.0
        %8480 = vmatmul.mubr.f32.gmra.mrb[0].mxu0 %v8404
        %v8481 = vpop.f32.mrb[0].mxu0
        %v8482 = vadd.f32 %v8386, %v8481
        %v8483 = vpop.f32.mrb[0].mxu0
        %8484 = vmatprep.mubr.f32.mxu0 0.0
        %8485 = vmatmul.mubr.f32.gmra.mrb[0].mxu0 %v8407
        %v8486 = vpop.f32.mrb[0].mxu0
        %v8487 = vadd.f32 %v8391, %v8486
        %v8488 = vpop.f32.mrb[0].mxu0
        %8489 = vmatprep.mubr.f32.mxu0 0.0
        %8490 = vmatmul.mubr.f32.gmra.mrb[0].mxu0 %v8410
        %v8491 = vpop.f32.mrb[0].mxu0
        %v8492 = vadd.f32 %v8396, %v8491
        %v8493 = vpop.f32.mrb[0].mxu0
        %8494 = vmatprep.mubr.f32.mxu0 0.0
        %8495 = vmatmul.mubr.f32.gmra.mrb[0].mxu0 %v8413
        %v8496 = vpop.f32.mrb[0].mxu0
        %v8497 = vadd.f32 %v8401, %v8496
        %v8498 = vpop.f32.mrb[0].mxu0
        %8499 = vdwg.mxu0
        %v8500 = vadd.f32 %v8094, %v8482
        %v8501 = vadd.f32 %v8095, %v8487
        %v8502 = vadd.f32 %v8096, %v8492
        %v8503 = vadd.f32 %v8097, %v8497
        %v8504 = vmul.f32 %v8500, %v377
        %v8505 = vmul.f32 %v8501, %v377
        %v8506 = vmul.f32 %v8502, %v377
        %v8507 = vmul.f32 %v8503, %v377
        %s8508 = scalar_lea.vmem %s8, 24
        %v8509 = vld [vmem:[%s8508] sm:$0xff]
        %s8510 = scalar_lea.vmem %s9, 24
        %v8511 = vld [vmem:[%s8510] sm:$0xff]
        %8513 = vset.pattern.permute.xlu0 0
        %8514 = vperm.xlu0 %8513, %v8511
        %v8515 = vpop.permute.xlu0 %8514
        %v8518 = vsel %vm649, %v8509, 0
        %8520 = vmatprep.subr.mxu0 0.0
        %8521 = vmatpush1.msra.mxu0 %v8504
        %8522 = vmatprep.subr.mxu0 0.0
        %8523 = vmatpush1.msra.mxu0 %v8505
        %8524 = vmatprep.subr.mxu0 0.0
        %8525 = vmatpush1.msra.mxu0 %v8506
        %8526 = vmatprep.subr.mxu0 0.0
        %8527 = vmatpush1.msra.mxu0 %v8507
        %8528 = vmatprep.subr.mxu0 0.0
        %8529 = vmatpush1.msra.mxu0 0.0
        %8530 = vmatprep.subr.mxu0 0.0
        %8531 = vmatpush1.msra.mxu0 0.0
        %8532 = vmatprep.subr.mxu0 0.0
        %8533 = vmatpush1.msra.mxu0 0.0
        %8534 = vmatprep.subr.mxu0 0.0
        %8535 = vmatpush1.msra.mxu0 0.0
        %8536 = vmatprep.subr.mxu0 0.0
        %8537 = vmatpush1.msra.mxu0 0.0
        %8538 = vmatprep.subr.mxu0 0.0
        %8539 = vmatpush1.msra.mxu0 0.0
        %8540 = vmatprep.subr.mxu0 0.0
        %8541 = vmatpush1.msra.mxu0 0.0
        %8542 = vmatprep.subr.mxu0 0.0
        %8543 = vmatpush1.msra.mxu0 0.0
        %8544 = vmatprep.subr.mxu0 0.0
        %8545 = vmatpush1.msra.mxu0 0.0
        %8546 = vmatprep.subr.mxu0 0.0
        %8547 = vmatpush1.msra.mxu0 0.0
        %8548 = vmatprep.subr.mxu0 0.0
        %8549 = vmatpush1.msra.mxu0 0.0
        %8550 = vmatprep.subr.mxu0 0.0
        %8551 = vmatpush1.msra.mxu0 0.0
        %8552 = vmatprep.subr.mxu0 0.0
        %8553 = vmatpush1.msra.mxu0 0.0
        %8554 = vmatprep.subr.mxu0 0.0
        %8555 = vmatpush1.msra.mxu0 0.0
        %8556 = vmatprep.subr.mxu0 0.0
        %8557 = vmatpush1.msra.mxu0 0.0
        %8558 = vmatprep.subr.mxu0 0.0
        %8559 = vmatpush1.msra.mxu0 0.0
        %8560 = vmatprep.subr.mxu0 0.0
        %8561 = vmatpush1.msra.mxu0 0.0
        %8562 = vmatprep.subr.mxu0 0.0
        %8563 = vmatpush1.msra.mxu0 0.0
        %8564 = vmatprep.subr.mxu0 0.0
        %8565 = vmatpush1.msra.mxu0 0.0
        %8566 = vmatprep.subr.mxu0 0.0
        %8567 = vmatpush1.msra.mxu0 0.0
        %8568 = vmatprep.subr.mxu0 0.0
        %8569 = vmatpush1.msra.mxu0 0.0
        %8570 = vmatprep.subr.mxu0 0.0
        %8571 = vmatpush1.msra.mxu0 0.0
        %8572 = vmatprep.subr.mxu0 0.0
        %8573 = vmatpush1.msra.mxu0 0.0
        %8574 = vmatprep.subr.mxu0 0.0
        %8575 = vmatpush1.msra.mxu0 0.0
        %8576 = vmatprep.subr.mxu0 0.0
        %8577 = vmatpush1.msra.mxu0 0.0
        %8578 = vmatprep.subr.mxu0 0.0
        %8579 = vmatpush1.msra.mxu0 0.0
        %8580 = vmatprep.subr.mxu0 0.0
        %8581 = vmatpush1.msra.mxu0 0.0
        %8582 = vmatprep.subr.mxu0 0.0
        %8583 = vmatpush1.msra.mxu0 0.0
        %8584 = vmatprep.mubr.f32.mxu0 0.0
        %8585 = vmatmul.mubr.f32.gmra.mrb[0].mxu0 %v8518
        %v8586 = vpop.f32.mrb[0].mxu0
        %v8587 = vadd.f32 %v8515, %v8586
        %v8588 = vpop.f32.mrb[0].mxu0
        %8589 = vdwg.mxu0
        %v8590 = vmul.f32 %v8587, %v377
        %v8591 = vmul.f32 %v4496, %v377
        %v8592 = vadd.f32 %v8590, %v8591
        %8593 = vst [vmem:[%s363] sm:$0xff] %v8592
        %8594 = vst [vmem:[%s363 + $0x8] sm:$0xff] %v6544
        %s8595 = sand.u32 %s252, 1
        %s8596 = scalar_lea.sflag [#allocation3], %s8595
        %s8597 = sand.u32 %s252, 1
        %s8598 = smul.addr %s8597, 16
        %s8599 = scalar_lea.vmem [#allocation2], %s8598
        // Predicated region
        $region61: #{tpu_custom_call.1} parent=59 // pred_check
          %p8600 = pneg %p262
        $region62: #{tpu_custom_call.1} parent=59 // pred_check_branch
          %8602 = sbr.rel (%p8600) target = $region64
        $region63: #{tpu_custom_call.1} parent=59 // pred_region
          %s8604 = ssub.s32 256, 256
          %8605 = vsyncadd %s8596, %s8604
          %s8606 = smul.addr %s24, 2
          %s8607 = smul.addr %s8606, 128
          %s8608 = scalar_lea.hbm %s10, %s8607
          %s8609 = sshll.u32 %s8599, 4
          %s8610 = int_to_ptr.vmem [resolvable:$true] %s8609
          %8615 = dma.vmem_to_hbm [thread:$0]  %s8610, 256, %s8608, %s8596, 128, 128, 8
        $region64: #{tpu_custom_call.1} parent=59 // pred_fallthru
          _
      $region60: #{tpu_custom_call.1} parent=5 // pred_fallthru
        _
      %p8616 = scmp.le.s32.totalorder 2, %s19
      // Predicated region
      $region65: #{tpu_custom_call.1} parent=5 // pred_check
        %p8617 = pneg %p8616
      $region66: #{tpu_custom_call.1} parent=5 // pred_check_branch
        %8619 = sbr.rel (%p8617) target = $region68
      $region67: #{tpu_custom_call.1} parent=5 // pred_region
        %s8620 = ssub.s32 %s19, 2
        // Predicated region
        $region69: #{tpu_custom_call.1} parent=67 // pred_check
          %p8621 = pneg %p268
        $region70: #{tpu_custom_call.1} parent=67 // pred_check_branch
          %8623 = sbr.rel (%p8621) target = $region72
        $region71: #{tpu_custom_call.1} parent=67 // pred_region
          %s8624 = sand.u32 %s253, 1
          %s8625 = scalar_lea.sflag [#allocation3], %s8624
          %s8626 = sand.u32 %s253, 1
          %s8627 = smul.addr %s8626, 16
          %s8628 = scalar_lea.vmem [#allocation2], %s8627
          %8629 = dma.done %s8625, 256
        $region72: #{tpu_custom_call.1} parent=67 // pred_fallthru
          _
      $region68: #{tpu_custom_call.1} parent=5 // pred_fallthru
        _
    $region6: #{tpu_custom_call.1} parent=1 // loop_footer
      %s23 = sadd.s32 1, %s19
    $region7: #{tpu_custom_call.1} parent=1 // loop_footer_branch
      %18 = sbr.rel target = $region3
    $region8: #{tpu_custom_call.1} parent=1 // loop_exit
      _
    %8630 = vsyncpa [#allocation3], 1
    %s8631 = scalar_lea.sflag [#allocation3], 1
    %8632 = vsyncpa %s8631, 1

</llo_original>
